<compile_context>
chip_gen: v5e
topology: v5e:2x2
jax: 0.10.0
libtpu: 0.0.40
codegen_flags: <defaults>
</compile_context>

<pallas_src>
import jax
import jax.numpy as jnp
from jax import lax
from jax.experimental import pallas as pl
from jax.experimental.pallas import tpu as pltpu


# ============================================================================
# Kernel 1: fused bidirectional multi-layer LSTM (single pallas_call, no grid)
# ============================================================================
def _make_lstm_kernel(treedef, n_leaves, T, B, H):
    H2, H8 = 2 * H, 8 * H

    def kernel(*refs):
        x_ref = refs[0]                      # (T*B, In)   rows ordered t*B + b
        p_ref = refs[1]                      # (T*B, T*B)  time-block reversal permutation
        w_refs = refs[2:2 + n_leaves]
        out_ref = refs[2 + n_leaves]         # (T*B, 2H)   last-layer output
        h_sc = refs[3 + n_leaves]            # (T*B, 2H)   VMEM scratch (reused per layer)

        layers = jax.tree_util.tree_unflatten(treedef, [r[...] for r in w_refs])
        P = p_ref[...]

        # Lane masks (built once). Column layout of the fused gates is
        # [i_f i_b | f_f f_b | g_f g_b | o_f o_b], each block of width H.
        lane8 = lax.broadcasted_iota(jnp.int32, (1, H8), 1)
        fwd_gate_lane = (lane8 % H2) < H            # fwd half of every gate pair
        lane2 = lax.broadcasted_iota(jnp.int32, (1, H2), 1)
        fwd_half = lane2 < H                        # fwd half of the hidden concat

        x_cur = x_ref[...]
        n_layers = len(layers)
        for li, lp in enumerate(layers):
            # Hoisted input projection for BOTH directions: one MXU matmul per layer.
            gx = jnp.dot(x_cur, lp["wih"], preferred_element_type=jnp.float32) + lp["b"]

            h = jnp.zeros((B, H2), jnp.float32)     # [h_fwd | h_bwd]
            c = jnp.zeros((B, H2), jnp.float32)
            for s in range(T):                      # static (fully unrolled) recurrence
                tb = T - 1 - s
                # fwd lanes take time s, bwd lanes take time T-1-s.
                g_in = jnp.where(fwd_gate_lane,
                                 gx[s * B:(s + 1) * B, :],
                                 gx[tb * B:(tb + 1) * B, :])
                # Block-diagonal recurrent matmul covers both directions at once.
                g = g_in + jnp.dot(h, lp["whh"], preferred_element_type=jnp.float32)
                i = jax.nn.sigmoid(g[:, 0:H2])
                f = jax.nn.sigmoid(g[:, H2:2 * H2])
                gg = jnp.tanh(g[:, 2 * H2:3 * H2])
                o = jax.nn.sigmoid(g[:, 3 * H2:4 * H2])
                c = f * c + i * gg
                h = o * jnp.tanh(c)
                # One full-width store: fwd half belongs to time s, bwd half to time T-1-s.
                h_sc[s * B:(s + 1) * B, :] = h

            # Un-reverse the bwd half once per layer with a tiny constant permutation matmul.
            v = h_sc[...]
            y = jnp.where(fwd_half, v,
                          jnp.dot(P, v, preferred_element_type=jnp.float32))
            if li == n_layers - 1:
                out_ref[...] = y                    # single full-ref store
            else:
                x_cur = y
            # TODO(synk): inter-layer LSTM dropout (seq_lstm_drop) is eval-mode identity here.

    return kernel


def lstm_stack(x2d, perm, lstm_params, *, T, B, H):
    """x2d: (T*B, In) rows ordered t*B + b  ->  (T*B, 2H)."""
    leaves, treedef = jax.tree_util.tree_flatten(lstm_params)
    kernel = _make_lstm_kernel(treedef, len(leaves), T, B, H)
    return pl.pallas_call(
        kernel,
        out_shape=jax.ShapeDtypeStruct((T * B, 2 * H), jnp.float32),
        scratch_shapes=[pltpu.VMEM((T * B, 2 * H), jnp.float32)],
    )(x2d, perm, *leaves)


def _reversal_perm(T, B):
    """P such that (P @ v)[t*B + b] = v[(T-1-t)*B + b]."""
    r = jnp.arange(T * B)
    src = (T - 1 - r // B) * B + (r % B)
    return jnp.zeros((T * B, T * B), jnp.float32).at[r, src].set(1.0)


# ============================================================================
# Kernel 2: fused residual / conv / ELU / maxpool stack (grid over batch)
# ============================================================================
def _make_conv_kernel(treedef, n_leaves, T, H):
    Th = T // 2

    def elu(y):
        # clamp the negative-branch argument so exp never overflows on the masked branch
        return jnp.where(y > 0, y, jnp.exp(jnp.minimum(y, 0.0)) - 1.0)

    def conv3(xb, w, bias, pad):
        """3-tap 1D conv along W as shifted-slice matmuls. xb:(W,Cin), w:(3,Cin,Cout)."""
        if pad:
            z = jnp.zeros((pad, xb.shape[1]), xb.dtype)
            xb = jnp.concatenate([z, xb, z], axis=0)
        wout = xb.shape[0] - 2
        acc = jnp.dot(xb[0:wout, :], w[0], preferred_element_type=jnp.float32)
        acc = acc + jnp.dot(xb[1:wout + 1, :], w[1], preferred_element_type=jnp.float32)
        acc = acc + jnp.dot(xb[2:wout + 2, :], w[2], preferred_element_type=jnp.float32)
        return acc + bias

    def kernel(*refs):
        h_ref = refs[0]                      # (1, T, 2H)
        w_refs = refs[1:1 + n_leaves]
        o_ref = refs[1 + n_leaves]           # (1, Wf, 4H)  lane-dense last dim

        p = jax.tree_util.tree_unflatten(treedef, [r[...] for r in w_refs])

        # Even-row selection: stride-2 conv == even rows of the stride-1 'same' conv.
        rows = lax.broadcasted_iota(jnp.int32, (Th, T), 0)
        cols = lax.broadcasted_iota(jnp.int32, (Th, T), 1)
        sel = (cols == 2 * rows).astype(jnp.float32)          # (T//2, T)

        x = h_ref[0]                                          # (T, 2H)

        # res1: two plain residual blocks (BN already folded into conv weights/bias).
        for blk in p["res1"]:
            y = jnp.maximum(conv3(x, blk["w1"], blk["b1"], 1), 0.0)
            y = conv3(y, blk["w2"], blk["b2"], 1)
            x = jnp.maximum(y + x, 0.0)

        # res2[0]: stride-2 residual with 1x1 stride-2 skip.
        blk = p["res2"][0]
        y = conv3(x, blk["w1"], blk["b1"], 1)                            # (T, 4H) stride-1
        y = jnp.maximum(jnp.dot(sel, y, preferred_element_type=jnp.float32), 0.0)
        y = conv3(y, blk["w2"], blk["b2"], 1)                            # (T/2, 4H)
        xs = jnp.dot(sel, x, preferred_element_type=jnp.float32)         # (T/2, 2H)
        skip = jnp.dot(xs, blk["w3"], preferred_element_type=jnp.float32) + blk["b3"]
        x = jnp.maximum(y + skip, 0.0)

        # res2[1]: plain residual block.
        blk = p["res2"][1]
        y = jnp.maximum(conv3(x, blk["w1"], blk["b1"], 1), 0.0)
        y = conv3(y, blk["w2"], blk["b2"], 1)
        x = jnp.maximum(y + x, 0.0)

        # convolution_seq_1 / _2: BatchNorm -> ELU -> Conv(k=(1,3), no pad).
        for name in ("cs1", "cs2"):
            cs = p[name]
            y = elu(x * cs["scale"] + cs["shift"])
            x = conv3(y, cs["w"], cs["b"], 0)
        # TODO(synk): self.drop (nn.Dropout) between cs1 and cs2 is eval-mode identity here.

        # max_pooling_seq1: MaxPool2d(kernel=(1,3), stride=(1,1)).
        wp = x.shape[0] - 2
        x = jnp.maximum(jnp.maximum(x[0:wp, :], x[1:wp + 1, :]), x[2:wp + 2, :])

        o_ref[0] = x                                           # (Wf, 4H), 128-lane dense

    return kernel


def conv_stack(h, conv_params, *, B, T, H):
    """h: (B, T, 2H) -> (B, Wf, 4H) with Wf = T//2 - 6."""
    wf = T // 2 - 6
    assert wf > 0, "sequence too short for res2 stride-2 + two valid convs + maxpool"
    leaves, treedef = jax.tree_util.tree_flatten(conv_params)
    kernel = _make_conv_kernel(treedef, len(leaves), T, H)

    def const_spec(leaf):
        zeros = (0,) * leaf.ndim
        return pl.BlockSpec(leaf.shape, lambda b, _z=zeros: _z)   # fetched once, reused

    return pl.pallas_call(
        kernel,
        out_shape=jax.ShapeDtypeStruct((B, wf, 4 * H), jnp.float32),
        grid=(B,),
        in_specs=[pl.BlockSpec((1, T, 2 * H), lambda b: (b, 0, 0))]
                 + [const_spec(l) for l in leaves],
        out_specs=pl.BlockSpec((1, wf, 4 * H), lambda b: (b, 0, 0)),
        compiler_params=pltpu.CompilerParams(dimension_semantics=("parallel",)),
    )(h, *leaves)


# ============================================================================
# Full forward (matches MyNet_Sequence.forward, eval mode)
# ============================================================================
def mynet_sequence_forward(seq, params):
    """seq: (B, 12, T) -> (B, 4H, 1, W_final) float32 (NCHW, height == 1)."""
    seq = seq.astype(jnp.float32)
    B, in_size, T = seq.shape
    H = params["lstm"][0]["whh"].shape[0] // 2

    # seq.permute(0, 2, 1) -> (B, T, 12); LSTM kernel wants (T*B, 12) with rows t*B + b.
    x2d = jnp.transpose(seq, (2, 0, 1)).reshape(T * B, in_size)
    perm = _reversal_perm(T, B)

    h2d = lstm_stack(x2d, perm, params["lstm"], T=T, B=B, H=H)   # (T*B, 2H)
    h = jnp.transpose(h2d.reshape(T, B, 2 * H), (1, 0, 2))       # (B, T, 2H)  tiny XLA glue

    y = conv_stack(h, params["conv"], B=B, T=T, H=H)             # (B, Wf, 4H)

    # back to PyTorch NCHW output: (B, C, 1, W)
    return jnp.transpose(y, (0, 2, 1))[:, :, None, :]


# ============================================================================
# Raw (PyTorch-layout) params, kernel-param prep, and pure-JAX reference
# ============================================================================
def init_raw_params(key, *, hidden=32, num_layers=2, in_size=12):
    keys = iter(jax.random.split(key, 128))

    def nrm(shape, scale=0.1):
        return (scale * jax.random.normal(next(keys), shape)).astype(jnp.float32)

    def bn_stats(c):
        return ((1.0 + 0.05 * jax.random.normal(next(keys), (c,))).astype(jnp.float32),   # gamma
                (0.05 * jax.random.normal(next(keys), (c,))).astype(jnp.float32),          # beta
                (0.05 * jax.random.normal(next(keys), (c,))).astype(jnp.float32),          # mean
                (1.0 + 0.05 * jnp.abs(jax.random.normal(next(keys), (c,)))).astype(jnp.float32))  # var

    raw = {"lstm": []}
    for layer in range(num_layers):
        d_in = in_size if layer == 0 else 2 * hidden
        lp = {}
        for d in ("fwd", "bwd"):
            lp[d] = (nrm((4 * hidden, d_in)),     # W_ih (PyTorch layout)
                     nrm((4 * hidden, hidden)),   # W_hh
                     nrm((4 * hidden,)),          # b_ih
                     nrm((4 * hidden,)))          # b_hh
        raw["lstm"].append(lp)

    c2, c4 = 2 * hidden, 4 * hidden

    def res_block(cin, cout, use_1x1):
        blk = {"conv1_w": nrm((cout, cin, 1, 3)), "conv1_b": nrm((cout,)), "bn1": bn_stats(cout),
               "conv2_w": nrm((cout, cout, 1, 3)), "conv2_b": nrm((cout,)), "bn2": bn_stats(cout)}
        if use_1x1:
            blk["conv3_w"] = nrm((cout, cin, 1, 1))
            blk["conv3_b"] = nrm((cout,))
        return blk

    raw["res1"] = [res_block(c2, c2, False), res_block(c2, c2, False)]
    raw["res2"] = [res_block(c2, c4, True), res_block(c4, c4, False)]
    for name in ("cs1", "cs2"):
        raw[name] = {"bn": bn_stats(c4), "w": nrm((c4, c4, 1, 3)), "b": nrm((c4,))}
    return raw


def prep_params(raw, *, hidden):
    """Raw PyTorch-layout params -> fused/folded kernel params."""
    H = hidden

    def prep_lstm_layer(lp):
        Wih_f, Whh_f, bih_f, bhh_f = lp["fwd"]
        Wih_b, Whh_b, bih_b, bhh_b = lp["bwd"]
        bf, bb = bih_f + bhh_f, bih_b + bhh_b
        wih_cols, b_cols = [], []
        whh_blk = jnp.zeros((2 * H, 8 * H), jnp.float32)
        for k in range(4):                                   # PyTorch gate order i, f, g, o
            sl = slice(k * H, (k + 1) * H)
            wih_cols += [Wih_f[sl].T, Wih_b[sl].T]
            b_cols += [bf[sl], bb[sl]]
            whh_blk = whh_blk.at[0:H, 2 * k * H:(2 * k + 1) * H].set(Whh_f[sl].T)
            whh_blk = whh_blk.at[H:2 * H, (2 * k + 1) * H:(2 * k + 2) * H].set(Whh_b[sl].T)
        return {"wih": jnp.concatenate(wih_cols, axis=1),    # (d_in, 8H)
                "whh": whh_blk,                              # (2H, 8H) block-diagonal
                "b": jnp.concatenate(b_cols).reshape(1, 8 * H)}

    def wconv3(w):   # (O, I, 1, 3) -> (3, I, O)
        return jnp.transpose(w[:, :, 0, :], (2, 1, 0))

    def fold_bn(w3, b, bn, eps=1e-5):
        gamma, beta, mean, var = bn
        s = gamma * jax.lax.rsqrt(var + eps)
        return w3 * s[None, None, :], (b * s + beta - mean * s).reshape(1, -1)

    def prep_res(blk, use_1x1):
        w1, b1 = fold_bn(wconv3(blk["conv1_w"]), blk["conv1_b"], blk["bn1"])
        w2, b2 = fold_bn(wconv3(blk["conv2_w"]), blk["conv2_b"], blk["bn2"])
        out = {"w1": w1, "b1": b1, "w2": w2, "b2": b2}
        if use_1x1:
            out["w3"] = jnp.transpose(blk["conv3_w"][:, :, 0, 0], (1, 0))   # (I, O)
            out["b3"] = blk["conv3_b"].reshape(1, -1)
        return out

    conv = {"res1": [prep_res(raw["res1"][0], False), prep_res(raw["res1"][1], False)],
            "res2": [prep_res(raw["res2"][0], True), prep_res(raw["res2"][1], False)]}
    for name in ("cs1", "cs2"):
        gamma, beta, mean, var = raw[name]["bn"]
        s = gamma * jax.lax.rsqrt(var + 1e-5)
        conv[name] = {"scale": s.reshape(1, -1), "shift": (beta - mean * s).reshape(1, -1),
                      "w": wconv3(raw[name]["w"]), "b": raw[name]["b"].reshape(1, -1)}

    return {"lstm": [prep_lstm_layer(lp) for lp in raw["lstm"]], "conv": conv}


def reference_forward(seq, raw, *, hidden):
    """Pure-JAX/XLA reference mirroring the PyTorch module (eval mode)."""
    H = hidden
    hp = lax.Precision.HIGHEST
    seq = seq.astype(jnp.float32)
    B, _, T = seq.shape
    x = jnp.transpose(seq, (0, 2, 1))                         # (B, T, In)

    for lp in raw["lstm"]:
        outs = []
        for name, reverse in (("fwd", False), ("bwd", True)):
            Wih, Whh, bih, bhh = lp[name]
            h = jnp.zeros((B, H), jnp.float32)
            c = jnp.zeros((B, H), jnp.float32)
            hs = [None] * T
            order = range(T - 1, -1, -1) if reverse else range(T)
            for t in order:
                g = (jnp.dot(x[:, t, :], Wih.T, precision=hp) + bih
                     + jnp.dot(h, Whh.T, precision=hp) + bhh)
                i = jax.nn.sigmoid(g[:, 0:H]); f = jax.nn.sigmoid(g[:, H:2 * H])
                gg = jnp.tanh(g[:, 2 * H:3 * H]); o = jax.nn.sigmoid(g[:, 3 * H:4 * H])
                c = f * c + i * gg
                h = o * jnp.tanh(c)
                hs[t] = h
            outs.append(jnp.stack(hs, axis=1))
        x = jnp.concatenate(outs, axis=-1)                    # (B, T, 2H)

    z = jnp.transpose(x, (0, 2, 1))[:, :, None, :]            # (B, 2H, 1, T)

    def conv(z, w, b, stride, pad):
        out = lax.conv_general_dilated(z, w, window_strides=(1, stride),
                                       padding=[(0, 0), (pad, pad)],
                                       dimension_numbers=("NCHW", "OIHW", "NCHW"),
                                       precision=hp)
        return out + b[None, :, None, None]

    def bn(z, stats, eps=1e-5):
        gamma, beta, mean, var = stats
        s = gamma * jax.lax.rsqrt(var + eps)
        return z * s[None, :, None, None] + (beta - mean * s)[None, :, None, None]

    def residual(z, blk, stride, use_1x1):
        y = jax.nn.relu(bn(conv(z, blk["conv1_w"], blk["conv1_b"], stride, 1), blk["bn1"]))
        y = bn(conv(y, blk["conv2_w"], blk["conv2_b"], 1, 1), blk["bn2"])
        s = conv(z, blk["conv3_w"], blk["conv3_b"], stride, 0) if use_1x1 else z
        return jax.nn.relu(y + s)

    z = residual(z, raw["res1"][0], 1, False)
    z = residual(z, raw["res1"][1], 1, False)
    z = residual(z, raw["res2"][0], 2, True)
    z = residual(z, raw["res2"][1], 1, False)
    for name in ("cs1", "cs2"):
        c_ = raw[name]
        z = conv(jax.nn.elu(bn(z, c_["bn"])), c_["w"], c_["b"], 1, 0)
    z = jnp.maximum(jnp.maximum(z[..., :-2], z[..., 1:-1]), z[..., 2:])
    return z


# ============================================================================
if __name__ == "__main__":
    B, IN, T = 2, 12, 16          # (batch, 12 input features, sequence length)
    HIDDEN, NUM_LAYERS = 32, 2    # lstm_hidder_size=32, seq_lstm_num_layer=2

    root = jax.random.PRNGKey(0)
    k_x, k_p = jax.random.split(root)
    seq = jax.random.normal(k_x, (B, IN, T), dtype=jnp.float32)

    raw = init_raw_params(k_p, hidden=HIDDEN, num_layers=NUM_LAYERS, in_size=IN)
    params = prep_params(raw, hidden=HIDDEN)

    fwd = jax.jit(mynet_sequence_forward)
    out = jax.block_until_ready(fwd(seq, params))

    # With T=16: res2 halves width to 8, two valid (1,3) convs -> 4, maxpool(1,3) -> 2.
    assert out.shape == (B, 4 * HIDDEN, 1, T // 2 - 6), out.shape
    assert out.dtype == jnp.float32
    assert bool(jnp.all(jnp.isfinite(out)))

    # Numerical check against the pure-JAX/XLA reference of the same module.
    ref = jax.block_until_ready(
        jax.jit(lambda s, r: reference_forward(s, r, hidden=HIDDEN))(seq, raw))
    assert ref.shape == out.shape
    assert bool(jnp.allclose(out, ref, rtol=2e-2, atol=2e-3)), \
        float(jnp.max(jnp.abs(out - ref)))

    print("KERNEL_OK")
</pallas_src>

<mosaic_0001>
module attributes {stable_mosaic.version = 11 : i64} {
  func.func @kernel(%arg0: i32, %arg1: memref<1x16x64xf32, #tpu.memory_space<vmem>>, %arg2: memref<1x128xf32, #tpu.memory_space<vmem>>, %arg3: memref<1x128xf32, #tpu.memory_space<vmem>>, %arg4: memref<1x128xf32, #tpu.memory_space<vmem>>, %arg5: memref<3x128x128xf32, #tpu.memory_space<vmem>>, %arg6: memref<1x128xf32, #tpu.memory_space<vmem>>, %arg7: memref<1x128xf32, #tpu.memory_space<vmem>>, %arg8: memref<1x128xf32, #tpu.memory_space<vmem>>, %arg9: memref<3x128x128xf32, #tpu.memory_space<vmem>>, %arg10: memref<1x64xf32, #tpu.memory_space<vmem>>, %arg11: memref<1x64xf32, #tpu.memory_space<vmem>>, %arg12: memref<3x64x64xf32, #tpu.memory_space<vmem>>, %arg13: memref<3x64x64xf32, #tpu.memory_space<vmem>>, %arg14: memref<1x64xf32, #tpu.memory_space<vmem>>, %arg15: memref<1x64xf32, #tpu.memory_space<vmem>>, %arg16: memref<3x64x64xf32, #tpu.memory_space<vmem>>, %arg17: memref<3x64x64xf32, #tpu.memory_space<vmem>>, %arg18: memref<1x128xf32, #tpu.memory_space<vmem>>, %arg19: memref<1x128xf32, #tpu.memory_space<vmem>>, %arg20: memref<1x128xf32, #tpu.memory_space<vmem>>, %arg21: memref<3x64x128xf32, #tpu.memory_space<vmem>>, %arg22: memref<3x128x128xf32, #tpu.memory_space<vmem>>, %arg23: memref<64x128xf32, #tpu.memory_space<vmem>>, %arg24: memref<1x128xf32, #tpu.memory_space<vmem>>, %arg25: memref<1x128xf32, #tpu.memory_space<vmem>>, %arg26: memref<3x128x128xf32, #tpu.memory_space<vmem>>, %arg27: memref<3x128x128xf32, #tpu.memory_space<vmem>>, %arg28: memref<1x2x128xf32, #tpu.memory_space<vmem>>) attributes {dimension_semantics = [#tpu.dimension_semantics<parallel>], iteration_bounds = array<i64: 2>, scalar_prefetch = 0 : i64, scratch_operands = 0 : i64, tpu.core_type = #tpu.core_type<tc>, window_params = [{transform_indices = @transform_0, window_bounds = array<i64: 1, 16, 64>}, {pipeline_mode = #tpu.pipeline_mode<synchronous>, transform_indices = @transform_1, window_bounds = array<i64: 1, 128>}, {pipeline_mode = #tpu.pipeline_mode<synchronous>, transform_indices = @transform_2, window_bounds = array<i64: 1, 128>}, {pipeline_mode = #tpu.pipeline_mode<synchronous>, transform_indices = @transform_3, window_bounds = array<i64: 1, 128>}, {pipeline_mode = #tpu.pipeline_mode<synchronous>, transform_indices = @transform_4, window_bounds = array<i64: 3, 128, 128>}, {pipeline_mode = #tpu.pipeline_mode<synchronous>, transform_indices = @transform_5, window_bounds = array<i64: 1, 128>}, {pipeline_mode = #tpu.pipeline_mode<synchronous>, transform_indices = @transform_6, window_bounds = array<i64: 1, 128>}, {pipeline_mode = #tpu.pipeline_mode<synchronous>, transform_indices = @transform_7, window_bounds = array<i64: 1, 128>}, {pipeline_mode = #tpu.pipeline_mode<synchronous>, transform_indices = @transform_8, window_bounds = array<i64: 3, 128, 128>}, {pipeline_mode = #tpu.pipeline_mode<synchronous>, transform_indices = @transform_9, window_bounds = array<i64: 1, 64>}, {pipeline_mode = #tpu.pipeline_mode<synchronous>, transform_indices = @transform_10, window_bounds = array<i64: 1, 64>}, {pipeline_mode = #tpu.pipeline_mode<synchronous>, transform_indices = @transform_11, window_bounds = array<i64: 3, 64, 64>}, {pipeline_mode = #tpu.pipeline_mode<synchronous>, transform_indices = @transform_12, window_bounds = array<i64: 3, 64, 64>}, {pipeline_mode = #tpu.pipeline_mode<synchronous>, transform_indices = @transform_13, window_bounds = array<i64: 1, 64>}, {pipeline_mode = #tpu.pipeline_mode<synchronous>, transform_indices = @transform_14, window_bounds = array<i64: 1, 64>}, {pipeline_mode = #tpu.pipeline_mode<synchronous>, transform_indices = @transform_15, window_bounds = array<i64: 3, 64, 64>}, {pipeline_mode = #tpu.pipeline_mode<synchronous>, transform_indices = @transform_16, window_bounds = array<i64: 3, 64, 64>}, {pipeline_mode = #tpu.pipeline_mode<synchronous>, transform_indices = @transform_17, window_bounds = array<i64: 1, 128>}, {pipeline_mode = #tpu.pipeline_mode<synchronous>, transform_indices = @transform_18, window_bounds = array<i64: 1, 128>}, {pipeline_mode = #tpu.pipeline_mode<synchronous>, transform_indices = @transform_19, window_bounds = array<i64: 1, 128>}, {pipeline_mode = #tpu.pipeline_mode<synchronous>, transform_indices = @transform_20, window_bounds = array<i64: 3, 64, 128>}, {pipeline_mode = #tpu.pipeline_mode<synchronous>, transform_indices = @transform_21, window_bounds = array<i64: 3, 128, 128>}, {pipeline_mode = #tpu.pipeline_mode<synchronous>, transform_indices = @transform_22, window_bounds = array<i64: 64, 128>}, {pipeline_mode = #tpu.pipeline_mode<synchronous>, transform_indices = @transform_23, window_bounds = array<i64: 1, 128>}, {pipeline_mode = #tpu.pipeline_mode<synchronous>, transform_indices = @transform_24, window_bounds = array<i64: 1, 128>}, {pipeline_mode = #tpu.pipeline_mode<synchronous>, transform_indices = @transform_25, window_bounds = array<i64: 3, 128, 128>}, {pipeline_mode = #tpu.pipeline_mode<synchronous>, transform_indices = @transform_26, window_bounds = array<i64: 3, 128, 128>}, {transform_indices = @transform_27, window_bounds = array<i64: 1, 2, 128>}]} {
    %c0 = arith.constant 0 : index
    %c0_0 = arith.constant 0 : index
    %0 = vector.load %arg2[%c0, %c0_0] : memref<1x128xf32, #tpu.memory_space<vmem>>, vector<1x128xf32>
    %c0_1 = arith.constant 0 : index
    %c0_2 = arith.constant 0 : index
    %1 = vector.load %arg3[%c0_1, %c0_2] : memref<1x128xf32, #tpu.memory_space<vmem>>, vector<1x128xf32>
    %c0_3 = arith.constant 0 : index
    %c0_4 = arith.constant 0 : index
    %2 = vector.load %arg4[%c0_3, %c0_4] : memref<1x128xf32, #tpu.memory_space<vmem>>, vector<1x128xf32>
    %c0_5 = arith.constant 0 : index
    %c0_6 = arith.constant 0 : index
    %c0_7 = arith.constant 0 : index
    %3 = vector.load %arg5[%c0_5, %c0_6, %c0_7] : memref<3x128x128xf32, #tpu.memory_space<vmem>>, vector<3x128x128xf32>
    %c0_8 = arith.constant 0 : index
    %c0_9 = arith.constant 0 : index
    %4 = vector.load %arg6[%c0_8, %c0_9] : memref<1x128xf32, #tpu.memory_space<vmem>>, vector<1x128xf32>
    %c0_10 = arith.constant 0 : index
    %c0_11 = arith.constant 0 : index
    %5 = vector.load %arg7[%c0_10, %c0_11] : memref<1x128xf32, #tpu.memory_space<vmem>>, vector<1x128xf32>
    %c0_12 = arith.constant 0 : index
    %c0_13 = arith.constant 0 : index
    %6 = vector.load %arg8[%c0_12, %c0_13] : memref<1x128xf32, #tpu.memory_space<vmem>>, vector<1x128xf32>
    %c0_14 = arith.constant 0 : index
    %c0_15 = arith.constant 0 : index
    %c0_16 = arith.constant 0 : index
    %7 = vector.load %arg9[%c0_14, %c0_15, %c0_16] : memref<3x128x128xf32, #tpu.memory_space<vmem>>, vector<3x128x128xf32>
    %c0_17 = arith.constant 0 : index
    %c0_18 = arith.constant 0 : index
    %8 = vector.load %arg10[%c0_17, %c0_18] : memref<1x64xf32, #tpu.memory_space<vmem>>, vector<1x64xf32>
    %c0_19 = arith.constant 0 : index
    %c0_20 = arith.constant 0 : index
    %9 = vector.load %arg11[%c0_19, %c0_20] : memref<1x64xf32, #tpu.memory_space<vmem>>, vector<1x64xf32>
    %c0_21 = arith.constant 0 : index
    %c0_22 = arith.constant 0 : index
    %c0_23 = arith.constant 0 : index
    %10 = vector.load %arg12[%c0_21, %c0_22, %c0_23] : memref<3x64x64xf32, #tpu.memory_space<vmem>>, vector<3x64x64xf32>
    %c0_24 = arith.constant 0 : index
    %c0_25 = arith.constant 0 : index
    %c0_26 = arith.constant 0 : index
    %11 = vector.load %arg13[%c0_24, %c0_25, %c0_26] : memref<3x64x64xf32, #tpu.memory_space<vmem>>, vector<3x64x64xf32>
    %c0_27 = arith.constant 0 : index
    %c0_28 = arith.constant 0 : index
    %12 = vector.load %arg14[%c0_27, %c0_28] : memref<1x64xf32, #tpu.memory_space<vmem>>, vector<1x64xf32>
    %c0_29 = arith.constant 0 : index
    %c0_30 = arith.constant 0 : index
    %13 = vector.load %arg15[%c0_29, %c0_30] : memref<1x64xf32, #tpu.memory_space<vmem>>, vector<1x64xf32>
    %c0_31 = arith.constant 0 : index
    %c0_32 = arith.constant 0 : index
    %c0_33 = arith.constant 0 : index
    %14 = vector.load %arg16[%c0_31, %c0_32, %c0_33] : memref<3x64x64xf32, #tpu.memory_space<vmem>>, vector<3x64x64xf32>
    %c0_34 = arith.constant 0 : index
    %c0_35 = arith.constant 0 : index
    %c0_36 = arith.constant 0 : index
    %15 = vector.load %arg17[%c0_34, %c0_35, %c0_36] : memref<3x64x64xf32, #tpu.memory_space<vmem>>, vector<3x64x64xf32>
    %c0_37 = arith.constant 0 : index
    %c0_38 = arith.constant 0 : index
    %16 = vector.load %arg18[%c0_37, %c0_38] : memref<1x128xf32, #tpu.memory_space<vmem>>, vector<1x128xf32>
    %c0_39 = arith.constant 0 : index
    %c0_40 = arith.constant 0 : index
    %17 = vector.load %arg19[%c0_39, %c0_40] : memref<1x128xf32, #tpu.memory_space<vmem>>, vector<1x128xf32>
    %c0_41 = arith.constant 0 : index
    %c0_42 = arith.constant 0 : index
    %18 = vector.load %arg20[%c0_41, %c0_42] : memref<1x128xf32, #tpu.memory_space<vmem>>, vector<1x128xf32>
    %c0_43 = arith.constant 0 : index
    %c0_44 = arith.constant 0 : index
    %c0_45 = arith.constant 0 : index
    %19 = vector.load %arg21[%c0_43, %c0_44, %c0_45] : memref<3x64x128xf32, #tpu.memory_space<vmem>>, vector<3x64x128xf32>
    %c0_46 = arith.constant 0 : index
    %c0_47 = arith.constant 0 : index
    %c0_48 = arith.constant 0 : index
    %20 = vector.load %arg22[%c0_46, %c0_47, %c0_48] : memref<3x128x128xf32, #tpu.memory_space<vmem>>, vector<3x128x128xf32>
    %c0_49 = arith.constant 0 : index
    %c0_50 = arith.constant 0 : index
    %21 = vector.load %arg23[%c0_49, %c0_50] : memref<64x128xf32, #tpu.memory_space<vmem>>, vector<64x128xf32>
    %c0_51 = arith.constant 0 : index
    %c0_52 = arith.constant 0 : index
    %22 = vector.load %arg24[%c0_51, %c0_52] : memref<1x128xf32, #tpu.memory_space<vmem>>, vector<1x128xf32>
    %c0_53 = arith.constant 0 : index
    %c0_54 = arith.constant 0 : index
    %23 = vector.load %arg25[%c0_53, %c0_54] : memref<1x128xf32, #tpu.memory_space<vmem>>, vector<1x128xf32>
    %c0_55 = arith.constant 0 : index
    %c0_56 = arith.constant 0 : index
    %c0_57 = arith.constant 0 : index
    %24 = vector.load %arg26[%c0_55, %c0_56, %c0_57] : memref<3x128x128xf32, #tpu.memory_space<vmem>>, vector<3x128x128xf32>
    %c0_58 = arith.constant 0 : index
    %c0_59 = arith.constant 0 : index
    %c0_60 = arith.constant 0 : index
    %25 = vector.load %arg27[%c0_58, %c0_59, %c0_60] : memref<3x128x128xf32, #tpu.memory_space<vmem>>, vector<3x128x128xf32>
    %26 = tpu.iota {dimensions = array<i32: 0>} : vector<8x16xi32>
    %27 = tpu.iota {dimensions = array<i32: 1>} : vector<8x16xi32>
    %c2_i32 = arith.constant 2 : i32
    %28 = vector.broadcast %c2_i32 : i32 to vector<8x16xi32>
    %29 = arith.muli %28, %26 : vector<8x16xi32>
    %30 = arith.cmpi eq, %27, %29 : vector<8x16xi32>
    %31 = arith.extui %30 : vector<8x16xi1> to vector<8x16xi32>
    %32 = arith.sitofp %31 : vector<8x16xi32> to vector<8x16xf32>
    %c0_61 = arith.constant 0 : index
    %c0_62 = arith.constant 0 : index
    %c0_63 = arith.constant 0 : index
    %33 = vector.load %arg1[%c0_61, %c0_62, %c0_63] : memref<1x16x64xf32, #tpu.memory_space<vmem>>, vector<1x16x64xf32>
    %34 = vector.shape_cast %33 : vector<1x16x64xf32> to vector<16x64xf32>
    %cst = arith.constant 0.000000e+00 : f32
    %35 = vector.broadcast %cst : f32 to vector<1x64xf32>
    %36 = tpu.concatenate %35, %34, %35 in 0 : vector<1x64xf32>, vector<16x64xf32>, vector<1x64xf32> -> vector<18x64xf32>
    %37 = vector.extract_strided_slice %36 {offsets = [0, 0], sizes = [16, 64], strides = [1, 1]} : vector<18x64xf32> to vector<16x64xf32>
    %38 = vector.extract_strided_slice %10 {offsets = [0, 0, 0], sizes = [1, 64, 64], strides = [1, 1, 1]} : vector<3x64x64xf32> to vector<1x64x64xf32>
    %39 = vector.shape_cast %38 : vector<1x64x64xf32> to vector<64x64xf32>
    %cst_64 = arith.constant dense<0.000000e+00> : vector<16x64xf32>
    %40 = tpu.matmul %37, %39, %cst_64 {dimension_numbers = #tpu.dot_dimension_numbers<[1], [0], [0], [1], [0, 0, 1, 1], [], []>} : vector<16x64xf32>, vector<64x64xf32>, vector<16x64xf32> -> vector<16x64xf32>
    %41 = vector.extract_strided_slice %36 {offsets = [1, 0], sizes = [16, 64], strides = [1, 1]} : vector<18x64xf32> to vector<16x64xf32>
    %42 = vector.extract_strided_slice %10 {offsets = [1, 0, 0], sizes = [1, 64, 64], strides = [1, 1, 1]} : vector<3x64x64xf32> to vector<1x64x64xf32>
    %43 = vector.shape_cast %42 : vector<1x64x64xf32> to vector<64x64xf32>
    %cst_65 = arith.constant dense<0.000000e+00> : vector<16x64xf32>
    %44 = tpu.matmul %41, %43, %cst_65 {dimension_numbers = #tpu.dot_dimension_numbers<[1], [0], [0], [1], [0, 0, 1, 1], [], []>} : vector<16x64xf32>, vector<64x64xf32>, vector<16x64xf32> -> vector<16x64xf32>
    %45 = arith.addf %40, %44 : vector<16x64xf32>
    %46 = vector.extract_strided_slice %36 {offsets = [2, 0], sizes = [16, 64], strides = [1, 1]} : vector<18x64xf32> to vector<16x64xf32>
    %47 = vector.extract_strided_slice %10 {offsets = [2, 0, 0], sizes = [1, 64, 64], strides = [1, 1, 1]} : vector<3x64x64xf32> to vector<1x64x64xf32>
    %48 = vector.shape_cast %47 : vector<1x64x64xf32> to vector<64x64xf32>
    %cst_66 = arith.constant dense<0.000000e+00> : vector<16x64xf32>
    %49 = tpu.matmul %46, %48, %cst_66 {dimension_numbers = #tpu.dot_dimension_numbers<[1], [0], [0], [1], [0, 0, 1, 1], [], []>} : vector<16x64xf32>, vector<64x64xf32>, vector<16x64xf32> -> vector<16x64xf32>
    %50 = arith.addf %45, %49 : vector<16x64xf32>
    %51 = vector.broadcast %8 : vector<1x64xf32> to vector<16x64xf32>
    %52 = arith.addf %50, %51 : vector<16x64xf32>
    %cst_67 = arith.constant 0.000000e+00 : f32
    %53 = vector.broadcast %cst_67 : f32 to vector<16x64xf32>
    %54 = arith.maximumf %52, %53 : vector<16x64xf32>
    %cst_68 = arith.constant 0.000000e+00 : f32
    %55 = vector.broadcast %cst_68 : f32 to vector<1x64xf32>
    %56 = tpu.concatenate %55, %54, %55 in 0 : vector<1x64xf32>, vector<16x64xf32>, vector<1x64xf32> -> vector<18x64xf32>
    %57 = vector.extract_strided_slice %56 {offsets = [0, 0], sizes = [16, 64], strides = [1, 1]} : vector<18x64xf32> to vector<16x64xf32>
    %58 = vector.extract_strided_slice %11 {offsets = [0, 0, 0], sizes = [1, 64, 64], strides = [1, 1, 1]} : vector<3x64x64xf32> to vector<1x64x64xf32>
    %59 = vector.shape_cast %58 : vector<1x64x64xf32> to vector<64x64xf32>
    %cst_69 = arith.constant dense<0.000000e+00> : vector<16x64xf32>
    %60 = tpu.matmul %57, %59, %cst_69 {dimension_numbers = #tpu.dot_dimension_numbers<[1], [0], [0], [1], [0, 0, 1, 1], [], []>} : vector<16x64xf32>, vector<64x64xf32>, vector<16x64xf32> -> vector<16x64xf32>
    %61 = vector.extract_strided_slice %56 {offsets = [1, 0], sizes = [16, 64], strides = [1, 1]} : vector<18x64xf32> to vector<16x64xf32>
    %62 = vector.extract_strided_slice %11 {offsets = [1, 0, 0], sizes = [1, 64, 64], strides = [1, 1, 1]} : vector<3x64x64xf32> to vector<1x64x64xf32>
    %63 = vector.shape_cast %62 : vector<1x64x64xf32> to vector<64x64xf32>
    %cst_70 = arith.constant dense<0.000000e+00> : vector<16x64xf32>
    %64 = tpu.matmul %61, %63, %cst_70 {dimension_numbers = #tpu.dot_dimension_numbers<[1], [0], [0], [1], [0, 0, 1, 1], [], []>} : vector<16x64xf32>, vector<64x64xf32>, vector<16x64xf32> -> vector<16x64xf32>
    %65 = arith.addf %60, %64 : vector<16x64xf32>
    %66 = vector.extract_strided_slice %56 {offsets = [2, 0], sizes = [16, 64], strides = [1, 1]} : vector<18x64xf32> to vector<16x64xf32>
    %67 = vector.extract_strided_slice %11 {offsets = [2, 0, 0], sizes = [1, 64, 64], strides = [1, 1, 1]} : vector<3x64x64xf32> to vector<1x64x64xf32>
    %68 = vector.shape_cast %67 : vector<1x64x64xf32> to vector<64x64xf32>
    %cst_71 = arith.constant dense<0.000000e+00> : vector<16x64xf32>
    %69 = tpu.matmul %66, %68, %cst_71 {dimension_numbers = #tpu.dot_dimension_numbers<[1], [0], [0], [1], [0, 0, 1, 1], [], []>} : vector<16x64xf32>, vector<64x64xf32>, vector<16x64xf32> -> vector<16x64xf32>
    %70 = arith.addf %65, %69 : vector<16x64xf32>
    %71 = vector.broadcast %9 : vector<1x64xf32> to vector<16x64xf32>
    %72 = arith.addf %70, %71 : vector<16x64xf32>
    %73 = arith.addf %72, %34 : vector<16x64xf32>
    %cst_72 = arith.constant 0.000000e+00 : f32
    %74 = vector.broadcast %cst_72 : f32 to vector<16x64xf32>
    %75 = arith.maximumf %73, %74 : vector<16x64xf32>
    %cst_73 = arith.constant 0.000000e+00 : f32
    %76 = vector.broadcast %cst_73 : f32 to vector<1x64xf32>
    %77 = tpu.concatenate %76, %75, %76 in 0 : vector<1x64xf32>, vector<16x64xf32>, vector<1x64xf32> -> vector<18x64xf32>
    %78 = vector.extract_strided_slice %77 {offsets = [0, 0], sizes = [16, 64], strides = [1, 1]} : vector<18x64xf32> to vector<16x64xf32>
    %79 = vector.extract_strided_slice %14 {offsets = [0, 0, 0], sizes = [1, 64, 64], strides = [1, 1, 1]} : vector<3x64x64xf32> to vector<1x64x64xf32>
    %80 = vector.shape_cast %79 : vector<1x64x64xf32> to vector<64x64xf32>
    %cst_74 = arith.constant dense<0.000000e+00> : vector<16x64xf32>
    %81 = tpu.matmul %78, %80, %cst_74 {dimension_numbers = #tpu.dot_dimension_numbers<[1], [0], [0], [1], [0, 0, 1, 1], [], []>} : vector<16x64xf32>, vector<64x64xf32>, vector<16x64xf32> -> vector<16x64xf32>
    %82 = vector.extract_strided_slice %77 {offsets = [1, 0], sizes = [16, 64], strides = [1, 1]} : vector<18x64xf32> to vector<16x64xf32>
    %83 = vector.extract_strided_slice %14 {offsets = [1, 0, 0], sizes = [1, 64, 64], strides = [1, 1, 1]} : vector<3x64x64xf32> to vector<1x64x64xf32>
    %84 = vector.shape_cast %83 : vector<1x64x64xf32> to vector<64x64xf32>
    %cst_75 = arith.constant dense<0.000000e+00> : vector<16x64xf32>
    %85 = tpu.matmul %82, %84, %cst_75 {dimension_numbers = #tpu.dot_dimension_numbers<[1], [0], [0], [1], [0, 0, 1, 1], [], []>} : vector<16x64xf32>, vector<64x64xf32>, vector<16x64xf32> -> vector<16x64xf32>
    %86 = arith.addf %81, %85 : vector<16x64xf32>
    %87 = vector.extract_strided_slice %77 {offsets = [2, 0], sizes = [16, 64], strides = [1, 1]} : vector<18x64xf32> to vector<16x64xf32>
    %88 = vector.extract_strided_slice %14 {offsets = [2, 0, 0], sizes = [1, 64, 64], strides = [1, 1, 1]} : vector<3x64x64xf32> to vector<1x64x64xf32>
    %89 = vector.shape_cast %88 : vector<1x64x64xf32> to vector<64x64xf32>
    %cst_76 = arith.constant dense<0.000000e+00> : vector<16x64xf32>
    %90 = tpu.matmul %87, %89, %cst_76 {dimension_numbers = #tpu.dot_dimension_numbers<[1], [0], [0], [1], [0, 0, 1, 1], [], []>} : vector<16x64xf32>, vector<64x64xf32>, vector<16x64xf32> -> vector<16x64xf32>
    %91 = arith.addf %86, %90 : vector<16x64xf32>
    %92 = vector.broadcast %12 : vector<1x64xf32> to vector<16x64xf32>
    %93 = arith.addf %91, %92 : vector<16x64xf32>
    %cst_77 = arith.constant 0.000000e+00 : f32
    %94 = vector.broadcast %cst_77 : f32 to vector<16x64xf32>
    %95 = arith.maximumf %93, %94 : vector<16x64xf32>
    %cst_78 = arith.constant 0.000000e+00 : f32
    %96 = vector.broadcast %cst_78 : f32 to vector<1x64xf32>
    %97 = tpu.concatenate %96, %95, %96 in 0 : vector<1x64xf32>, vector<16x64xf32>, vector<1x64xf32> -> vector<18x64xf32>
    %98 = vector.extract_strided_slice %97 {offsets = [0, 0], sizes = [16, 64], strides = [1, 1]} : vector<18x64xf32> to vector<16x64xf32>
    %99 = vector.extract_strided_slice %15 {offsets = [0, 0, 0], sizes = [1, 64, 64], strides = [1, 1, 1]} : vector<3x64x64xf32> to vector<1x64x64xf32>
    %100 = vector.shape_cast %99 : vector<1x64x64xf32> to vector<64x64xf32>
    %cst_79 = arith.constant dense<0.000000e+00> : vector<16x64xf32>
    %101 = tpu.matmul %98, %100, %cst_79 {dimension_numbers = #tpu.dot_dimension_numbers<[1], [0], [0], [1], [0, 0, 1, 1], [], []>} : vector<16x64xf32>, vector<64x64xf32>, vector<16x64xf32> -> vector<16x64xf32>
    %102 = vector.extract_strided_slice %97 {offsets = [1, 0], sizes = [16, 64], strides = [1, 1]} : vector<18x64xf32> to vector<16x64xf32>
    %103 = vector.extract_strided_slice %15 {offsets = [1, 0, 0], sizes = [1, 64, 64], strides = [1, 1, 1]} : vector<3x64x64xf32> to vector<1x64x64xf32>
    %104 = vector.shape_cast %103 : vector<1x64x64xf32> to vector<64x64xf32>
    %cst_80 = arith.constant dense<0.000000e+00> : vector<16x64xf32>
    %105 = tpu.matmul %102, %104, %cst_80 {dimension_numbers = #tpu.dot_dimension_numbers<[1], [0], [0], [1], [0, 0, 1, 1], [], []>} : vector<16x64xf32>, vector<64x64xf32>, vector<16x64xf32> -> vector<16x64xf32>
    %106 = arith.addf %101, %105 : vector<16x64xf32>
    %107 = vector.extract_strided_slice %97 {offsets = [2, 0], sizes = [16, 64], strides = [1, 1]} : vector<18x64xf32> to vector<16x64xf32>
    %108 = vector.extract_strided_slice %15 {offsets = [2, 0, 0], sizes = [1, 64, 64], strides = [1, 1, 1]} : vector<3x64x64xf32> to vector<1x64x64xf32>
    %109 = vector.shape_cast %108 : vector<1x64x64xf32> to vector<64x64xf32>
    %cst_81 = arith.constant dense<0.000000e+00> : vector<16x64xf32>
    %110 = tpu.matmul %107, %109, %cst_81 {dimension_numbers = #tpu.dot_dimension_numbers<[1], [0], [0], [1], [0, 0, 1, 1], [], []>} : vector<16x64xf32>, vector<64x64xf32>, vector<16x64xf32> -> vector<16x64xf32>
    %111 = arith.addf %106, %110 : vector<16x64xf32>
    %112 = vector.broadcast %13 : vector<1x64xf32> to vector<16x64xf32>
    %113 = arith.addf %111, %112 : vector<16x64xf32>
    %114 = arith.addf %113, %75 : vector<16x64xf32>
    %cst_82 = arith.constant 0.000000e+00 : f32
    %115 = vector.broadcast %cst_82 : f32 to vector<16x64xf32>
    %116 = arith.maximumf %114, %115 : vector<16x64xf32>
    %cst_83 = arith.constant 0.000000e+00 : f32
    %117 = vector.broadcast %cst_83 : f32 to vector<1x64xf32>
    %118 = tpu.concatenate %117, %116, %117 in 0 : vector<1x64xf32>, vector<16x64xf32>, vector<1x64xf32> -> vector<18x64xf32>
    %119 = vector.extract_strided_slice %118 {offsets = [0, 0], sizes = [16, 64], strides = [1, 1]} : vector<18x64xf32> to vector<16x64xf32>
    %120 = vector.extract_strided_slice %19 {offsets = [0, 0, 0], sizes = [1, 64, 128], strides = [1, 1, 1]} : vector<3x64x128xf32> to vector<1x64x128xf32>
    %121 = vector.shape_cast %120 : vector<1x64x128xf32> to vector<64x128xf32>
    %cst_84 = arith.constant dense<0.000000e+00> : vector<16x128xf32>
    %122 = tpu.matmul %119, %121, %cst_84 {dimension_numbers = #tpu.dot_dimension_numbers<[1], [0], [0], [1], [0, 0, 1, 1], [], []>} : vector<16x64xf32>, vector<64x128xf32>, vector<16x128xf32> -> vector<16x128xf32>
    %123 = vector.extract_strided_slice %118 {offsets = [1, 0], sizes = [16, 64], strides = [1, 1]} : vector<18x64xf32> to vector<16x64xf32>
    %124 = vector.extract_strided_slice %19 {offsets = [1, 0, 0], sizes = [1, 64, 128], strides = [1, 1, 1]} : vector<3x64x128xf32> to vector<1x64x128xf32>
    %125 = vector.shape_cast %124 : vector<1x64x128xf32> to vector<64x128xf32>
    %cst_85 = arith.constant dense<0.000000e+00> : vector<16x128xf32>
    %126 = tpu.matmul %123, %125, %cst_85 {dimension_numbers = #tpu.dot_dimension_numbers<[1], [0], [0], [1], [0, 0, 1, 1], [], []>} : vector<16x64xf32>, vector<64x128xf32>, vector<16x128xf32> -> vector<16x128xf32>
    %127 = arith.addf %122, %126 : vector<16x128xf32>
    %128 = vector.extract_strided_slice %118 {offsets = [2, 0], sizes = [16, 64], strides = [1, 1]} : vector<18x64xf32> to vector<16x64xf32>
    %129 = vector.extract_strided_slice %19 {offsets = [2, 0, 0], sizes = [1, 64, 128], strides = [1, 1, 1]} : vector<3x64x128xf32> to vector<1x64x128xf32>
    %130 = vector.shape_cast %129 : vector<1x64x128xf32> to vector<64x128xf32>
    %cst_86 = arith.constant dense<0.000000e+00> : vector<16x128xf32>
    %131 = tpu.matmul %128, %130, %cst_86 {dimension_numbers = #tpu.dot_dimension_numbers<[1], [0], [0], [1], [0, 0, 1, 1], [], []>} : vector<16x64xf32>, vector<64x128xf32>, vector<16x128xf32> -> vector<16x128xf32>
    %132 = arith.addf %127, %131 : vector<16x128xf32>
    %133 = vector.broadcast %16 : vector<1x128xf32> to vector<16x128xf32>
    %134 = arith.addf %132, %133 : vector<16x128xf32>
    %cst_87 = arith.constant dense<0.000000e+00> : vector<8x128xf32>
    %135 = tpu.matmul %32, %134, %cst_87 {dimension_numbers = #tpu.dot_dimension_numbers<[1], [0], [0], [1], [0, 0, 1, 1], [], []>} : vector<8x16xf32>, vector<16x128xf32>, vector<8x128xf32> -> vector<8x128xf32>
    %cst_88 = arith.constant 0.000000e+00 : f32
    %136 = vector.broadcast %cst_88 : f32 to vector<8x128xf32>
    %137 = arith.maximumf %135, %136 : vector<8x128xf32>
    %cst_89 = arith.constant 0.000000e+00 : f32
    %138 = vector.broadcast %cst_89 : f32 to vector<1x128xf32>
    %139 = tpu.concatenate %138, %137, %138 in 0 : vector<1x128xf32>, vector<8x128xf32>, vector<1x128xf32> -> vector<10x128xf32>
    %140 = vector.extract_strided_slice %139 {offsets = [0, 0], sizes = [8, 128], strides = [1, 1]} : vector<10x128xf32> to vector<8x128xf32>
    %141 = vector.extract_strided_slice %20 {offsets = [0, 0, 0], sizes = [1, 128, 128], strides = [1, 1, 1]} : vector<3x128x128xf32> to vector<1x128x128xf32>
    %142 = vector.shape_cast %141 : vector<1x128x128xf32> to vector<128x128xf32>
    %cst_90 = arith.constant dense<0.000000e+00> : vector<8x128xf32>
    %143 = tpu.matmul %140, %142, %cst_90 {dimension_numbers = #tpu.dot_dimension_numbers<[1], [0], [0], [1], [0, 0, 1, 1], [], []>} : vector<8x128xf32>, vector<128x128xf32>, vector<8x128xf32> -> vector<8x128xf32>
    %144 = vector.extract_strided_slice %139 {offsets = [1, 0], sizes = [8, 128], strides = [1, 1]} : vector<10x128xf32> to vector<8x128xf32>
    %145 = vector.extract_strided_slice %20 {offsets = [1, 0, 0], sizes = [1, 128, 128], strides = [1, 1, 1]} : vector<3x128x128xf32> to vector<1x128x128xf32>
    %146 = vector.shape_cast %145 : vector<1x128x128xf32> to vector<128x128xf32>
    %cst_91 = arith.constant dense<0.000000e+00> : vector<8x128xf32>
    %147 = tpu.matmul %144, %146, %cst_91 {dimension_numbers = #tpu.dot_dimension_numbers<[1], [0], [0], [1], [0, 0, 1, 1], [], []>} : vector<8x128xf32>, vector<128x128xf32>, vector<8x128xf32> -> vector<8x128xf32>
    %148 = arith.addf %143, %147 : vector<8x128xf32>
    %149 = vector.extract_strided_slice %139 {offsets = [2, 0], sizes = [8, 128], strides = [1, 1]} : vector<10x128xf32> to vector<8x128xf32>
    %150 = vector.extract_strided_slice %20 {offsets = [2, 0, 0], sizes = [1, 128, 128], strides = [1, 1, 1]} : vector<3x128x128xf32> to vector<1x128x128xf32>
    %151 = vector.shape_cast %150 : vector<1x128x128xf32> to vector<128x128xf32>
    %cst_92 = arith.constant dense<0.000000e+00> : vector<8x128xf32>
    %152 = tpu.matmul %149, %151, %cst_92 {dimension_numbers = #tpu.dot_dimension_numbers<[1], [0], [0], [1], [0, 0, 1, 1], [], []>} : vector<8x128xf32>, vector<128x128xf32>, vector<8x128xf32> -> vector<8x128xf32>
    %153 = arith.addf %148, %152 : vector<8x128xf32>
    %154 = vector.broadcast %17 : vector<1x128xf32> to vector<8x128xf32>
    %155 = arith.addf %153, %154 : vector<8x128xf32>
    %cst_93 = arith.constant dense<0.000000e+00> : vector<8x64xf32>
    %156 = tpu.matmul %32, %116, %cst_93 {dimension_numbers = #tpu.dot_dimension_numbers<[1], [0], [0], [1], [0, 0, 1, 1], [], []>} : vector<8x16xf32>, vector<16x64xf32>, vector<8x64xf32> -> vector<8x64xf32>
    %cst_94 = arith.constant dense<0.000000e+00> : vector<8x128xf32>
    %157 = tpu.matmul %156, %21, %cst_94 {dimension_numbers = #tpu.dot_dimension_numbers<[1], [0], [0], [1], [0, 0, 1, 1], [], []>} : vector<8x64xf32>, vector<64x128xf32>, vector<8x128xf32> -> vector<8x128xf32>
    %158 = vector.broadcast %18 : vector<1x128xf32> to vector<8x128xf32>
    %159 = arith.addf %157, %158 : vector<8x128xf32>
    %160 = arith.addf %155, %159 : vector<8x128xf32>
    %cst_95 = arith.constant 0.000000e+00 : f32
    %161 = vector.broadcast %cst_95 : f32 to vector<8x128xf32>
    %162 = arith.maximumf %160, %161 : vector<8x128xf32>
    %cst_96 = arith.constant 0.000000e+00 : f32
    %163 = vector.broadcast %cst_96 : f32 to vector<1x128xf32>
    %164 = tpu.concatenate %163, %162, %163 in 0 : vector<1x128xf32>, vector<8x128xf32>, vector<1x128xf32> -> vector<10x128xf32>
    %165 = vector.extract_strided_slice %164 {offsets = [0, 0], sizes = [8, 128], strides = [1, 1]} : vector<10x128xf32> to vector<8x128xf32>
    %166 = vector.extract_strided_slice %24 {offsets = [0, 0, 0], sizes = [1, 128, 128], strides = [1, 1, 1]} : vector<3x128x128xf32> to vector<1x128x128xf32>
    %167 = vector.shape_cast %166 : vector<1x128x128xf32> to vector<128x128xf32>
    %cst_97 = arith.constant dense<0.000000e+00> : vector<8x128xf32>
    %168 = tpu.matmul %165, %167, %cst_97 {dimension_numbers = #tpu.dot_dimension_numbers<[1], [0], [0], [1], [0, 0, 1, 1], [], []>} : vector<8x128xf32>, vector<128x128xf32>, vector<8x128xf32> -> vector<8x128xf32>
    %169 = vector.extract_strided_slice %164 {offsets = [1, 0], sizes = [8, 128], strides = [1, 1]} : vector<10x128xf32> to vector<8x128xf32>
    %170 = vector.extract_strided_slice %24 {offsets = [1, 0, 0], sizes = [1, 128, 128], strides = [1, 1, 1]} : vector<3x128x128xf32> to vector<1x128x128xf32>
    %171 = vector.shape_cast %170 : vector<1x128x128xf32> to vector<128x128xf32>
    %cst_98 = arith.constant dense<0.000000e+00> : vector<8x128xf32>
    %172 = tpu.matmul %169, %171, %cst_98 {dimension_numbers = #tpu.dot_dimension_numbers<[1], [0], [0], [1], [0, 0, 1, 1], [], []>} : vector<8x128xf32>, vector<128x128xf32>, vector<8x128xf32> -> vector<8x128xf32>
    %173 = arith.addf %168, %172 : vector<8x128xf32>
    %174 = vector.extract_strided_slice %164 {offsets = [2, 0], sizes = [8, 128], strides = [1, 1]} : vector<10x128xf32> to vector<8x128xf32>
    %175 = vector.extract_strided_slice %24 {offsets = [2, 0, 0], sizes = [1, 128, 128], strides = [1, 1, 1]} : vector<3x128x128xf32> to vector<1x128x128xf32>
    %176 = vector.shape_cast %175 : vector<1x128x128xf32> to vector<128x128xf32>
    %cst_99 = arith.constant dense<0.000000e+00> : vector<8x128xf32>
    %177 = tpu.matmul %174, %176, %cst_99 {dimension_numbers = #tpu.dot_dimension_numbers<[1], [0], [0], [1], [0, 0, 1, 1], [], []>} : vector<8x128xf32>, vector<128x128xf32>, vector<8x128xf32> -> vector<8x128xf32>
    %178 = arith.addf %173, %177 : vector<8x128xf32>
    %179 = vector.broadcast %22 : vector<1x128xf32> to vector<8x128xf32>
    %180 = arith.addf %178, %179 : vector<8x128xf32>
    %cst_100 = arith.constant 0.000000e+00 : f32
    %181 = vector.broadcast %cst_100 : f32 to vector<8x128xf32>
    %182 = arith.maximumf %180, %181 : vector<8x128xf32>
    %cst_101 = arith.constant 0.000000e+00 : f32
    %183 = vector.broadcast %cst_101 : f32 to vector<1x128xf32>
    %184 = tpu.concatenate %183, %182, %183 in 0 : vector<1x128xf32>, vector<8x128xf32>, vector<1x128xf32> -> vector<10x128xf32>
    %185 = vector.extract_strided_slice %184 {offsets = [0, 0], sizes = [8, 128], strides = [1, 1]} : vector<10x128xf32> to vector<8x128xf32>
    %186 = vector.extract_strided_slice %25 {offsets = [0, 0, 0], sizes = [1, 128, 128], strides = [1, 1, 1]} : vector<3x128x128xf32> to vector<1x128x128xf32>
    %187 = vector.shape_cast %186 : vector<1x128x128xf32> to vector<128x128xf32>
    %cst_102 = arith.constant dense<0.000000e+00> : vector<8x128xf32>
    %188 = tpu.matmul %185, %187, %cst_102 {dimension_numbers = #tpu.dot_dimension_numbers<[1], [0], [0], [1], [0, 0, 1, 1], [], []>} : vector<8x128xf32>, vector<128x128xf32>, vector<8x128xf32> -> vector<8x128xf32>
    %189 = vector.extract_strided_slice %184 {offsets = [1, 0], sizes = [8, 128], strides = [1, 1]} : vector<10x128xf32> to vector<8x128xf32>
    %190 = vector.extract_strided_slice %25 {offsets = [1, 0, 0], sizes = [1, 128, 128], strides = [1, 1, 1]} : vector<3x128x128xf32> to vector<1x128x128xf32>
    %191 = vector.shape_cast %190 : vector<1x128x128xf32> to vector<128x128xf32>
    %cst_103 = arith.constant dense<0.000000e+00> : vector<8x128xf32>
    %192 = tpu.matmul %189, %191, %cst_103 {dimension_numbers = #tpu.dot_dimension_numbers<[1], [0], [0], [1], [0, 0, 1, 1], [], []>} : vector<8x128xf32>, vector<128x128xf32>, vector<8x128xf32> -> vector<8x128xf32>
    %193 = arith.addf %188, %192 : vector<8x128xf32>
    %194 = vector.extract_strided_slice %184 {offsets = [2, 0], sizes = [8, 128], strides = [1, 1]} : vector<10x128xf32> to vector<8x128xf32>
    %195 = vector.extract_strided_slice %25 {offsets = [2, 0, 0], sizes = [1, 128, 128], strides = [1, 1, 1]} : vector<3x128x128xf32> to vector<1x128x128xf32>
    %196 = vector.shape_cast %195 : vector<1x128x128xf32> to vector<128x128xf32>
    %cst_104 = arith.constant dense<0.000000e+00> : vector<8x128xf32>
    %197 = tpu.matmul %194, %196, %cst_104 {dimension_numbers = #tpu.dot_dimension_numbers<[1], [0], [0], [1], [0, 0, 1, 1], [], []>} : vector<8x128xf32>, vector<128x128xf32>, vector<8x128xf32> -> vector<8x128xf32>
    %198 = arith.addf %193, %197 : vector<8x128xf32>
    %199 = vector.broadcast %23 : vector<1x128xf32> to vector<8x128xf32>
    %200 = arith.addf %198, %199 : vector<8x128xf32>
    %201 = arith.addf %200, %162 : vector<8x128xf32>
    %cst_105 = arith.constant 0.000000e+00 : f32
    %202 = vector.broadcast %cst_105 : f32 to vector<8x128xf32>
    %203 = arith.maximumf %201, %202 : vector<8x128xf32>
    %204 = vector.broadcast %1 : vector<1x128xf32> to vector<8x128xf32>
    %205 = arith.mulf %203, %204 : vector<8x128xf32>
    %206 = vector.broadcast %2 : vector<1x128xf32> to vector<8x128xf32>
    %207 = arith.addf %205, %206 : vector<8x128xf32>
    %cst_106 = arith.constant 0.000000e+00 : f32
    %208 = vector.broadcast %cst_106 : f32 to vector<8x128xf32>
    %209 = arith.cmpf ogt, %207, %208 : vector<8x128xf32>
    %cst_107 = arith.constant 0.000000e+00 : f32
    %210 = vector.broadcast %cst_107 : f32 to vector<8x128xf32>
    %211 = arith.minimumf %207, %210 : vector<8x128xf32>
    %212 = math.exp %211 : vector<8x128xf32>
    %cst_108 = arith.constant 1.000000e+00 : f32
    %213 = vector.broadcast %cst_108 : f32 to vector<8x128xf32>
    %214 = arith.subf %212, %213 : vector<8x128xf32>
    %215 = arith.select %209, %207, %214 : vector<8x128xi1>, vector<8x128xf32>
    %216 = vector.extract_strided_slice %215 {offsets = [0, 0], sizes = [6, 128], strides = [1, 1]} : vector<8x128xf32> to vector<6x128xf32>
    %217 = vector.extract_strided_slice %3 {offsets = [0, 0, 0], sizes = [1, 128, 128], strides = [1, 1, 1]} : vector<3x128x128xf32> to vector<1x128x128xf32>
    %218 = vector.shape_cast %217 : vector<1x128x128xf32> to vector<128x128xf32>
    %cst_109 = arith.constant dense<0.000000e+00> : vector<6x128xf32>
    %219 = tpu.matmul %216, %218, %cst_109 {dimension_numbers = #tpu.dot_dimension_numbers<[1], [0], [0], [1], [0, 0, 1, 1], [], []>} : vector<6x128xf32>, vector<128x128xf32>, vector<6x128xf32> -> vector<6x128xf32>
    %220 = vector.extract_strided_slice %215 {offsets = [1, 0], sizes = [6, 128], strides = [1, 1]} : vector<8x128xf32> to vector<6x128xf32>
    %221 = vector.extract_strided_slice %3 {offsets = [1, 0, 0], sizes = [1, 128, 128], strides = [1, 1, 1]} : vector<3x128x128xf32> to vector<1x128x128xf32>
    %222 = vector.shape_cast %221 : vector<1x128x128xf32> to vector<128x128xf32>
    %cst_110 = arith.constant dense<0.000000e+00> : vector<6x128xf32>
    %223 = tpu.matmul %220, %222, %cst_110 {dimension_numbers = #tpu.dot_dimension_numbers<[1], [0], [0], [1], [0, 0, 1, 1], [], []>} : vector<6x128xf32>, vector<128x128xf32>, vector<6x128xf32> -> vector<6x128xf32>
    %224 = arith.addf %219, %223 : vector<6x128xf32>
    %225 = vector.extract_strided_slice %215 {offsets = [2, 0], sizes = [6, 128], strides = [1, 1]} : vector<8x128xf32> to vector<6x128xf32>
    %226 = vector.extract_strided_slice %3 {offsets = [2, 0, 0], sizes = [1, 128, 128], strides = [1, 1, 1]} : vector<3x128x128xf32> to vector<1x128x128xf32>
    %227 = vector.shape_cast %226 : vector<1x128x128xf32> to vector<128x128xf32>
    %cst_111 = arith.constant dense<0.000000e+00> : vector<6x128xf32>
    %228 = tpu.matmul %225, %227, %cst_111 {dimension_numbers = #tpu.dot_dimension_numbers<[1], [0], [0], [1], [0, 0, 1, 1], [], []>} : vector<6x128xf32>, vector<128x128xf32>, vector<6x128xf32> -> vector<6x128xf32>
    %229 = arith.addf %224, %228 : vector<6x128xf32>
    %230 = vector.broadcast %0 : vector<1x128xf32> to vector<6x128xf32>
    %231 = arith.addf %229, %230 : vector<6x128xf32>
    %232 = vector.broadcast %5 : vector<1x128xf32> to vector<6x128xf32>
    %233 = arith.mulf %231, %232 : vector<6x128xf32>
    %234 = vector.broadcast %6 : vector<1x128xf32> to vector<6x128xf32>
    %235 = arith.addf %233, %234 : vector<6x128xf32>
    %cst_112 = arith.constant 0.000000e+00 : f32
    %236 = vector.broadcast %cst_112 : f32 to vector<6x128xf32>
    %237 = arith.cmpf ogt, %235, %236 : vector<6x128xf32>
    %cst_113 = arith.constant 0.000000e+00 : f32
    %238 = vector.broadcast %cst_113 : f32 to vector<6x128xf32>
    %239 = arith.minimumf %235, %238 : vector<6x128xf32>
    %240 = math.exp %239 : vector<6x128xf32>
    %cst_114 = arith.constant 1.000000e+00 : f32
    %241 = vector.broadcast %cst_114 : f32 to vector<6x128xf32>
    %242 = arith.subf %240, %241 : vector<6x128xf32>
    %243 = arith.select %237, %235, %242 : vector<6x128xi1>, vector<6x128xf32>
    %244 = vector.extract_strided_slice %243 {offsets = [0, 0], sizes = [4, 128], strides = [1, 1]} : vector<6x128xf32> to vector<4x128xf32>
    %245 = vector.extract_strided_slice %7 {offsets = [0, 0, 0], sizes = [1, 128, 128], strides = [1, 1, 1]} : vector<3x128x128xf32> to vector<1x128x128xf32>
    %246 = vector.shape_cast %245 : vector<1x128x128xf32> to vector<128x128xf32>
    %cst_115 = arith.constant dense<0.000000e+00> : vector<4x128xf32>
    %247 = tpu.matmul %244, %246, %cst_115 {dimension_numbers = #tpu.dot_dimension_numbers<[1], [0], [0], [1], [0, 0, 1, 1], [], []>} : vector<4x128xf32>, vector<128x128xf32>, vector<4x128xf32> -> vector<4x128xf32>
    %248 = vector.extract_strided_slice %243 {offsets = [1, 0], sizes = [4, 128], strides = [1, 1]} : vector<6x128xf32> to vector<4x128xf32>
    %249 = vector.extract_strided_slice %7 {offsets = [1, 0, 0], sizes = [1, 128, 128], strides = [1, 1, 1]} : vector<3x128x128xf32> to vector<1x128x128xf32>
    %250 = vector.shape_cast %249 : vector<1x128x128xf32> to vector<128x128xf32>
    %cst_116 = arith.constant dense<0.000000e+00> : vector<4x128xf32>
    %251 = tpu.matmul %248, %250, %cst_116 {dimension_numbers = #tpu.dot_dimension_numbers<[1], [0], [0], [1], [0, 0, 1, 1], [], []>} : vector<4x128xf32>, vector<128x128xf32>, vector<4x128xf32> -> vector<4x128xf32>
    %252 = arith.addf %247, %251 : vector<4x128xf32>
    %253 = vector.extract_strided_slice %243 {offsets = [2, 0], sizes = [4, 128], strides = [1, 1]} : vector<6x128xf32> to vector<4x128xf32>
    %254 = vector.extract_strided_slice %7 {offsets = [2, 0, 0], sizes = [1, 128, 128], strides = [1, 1, 1]} : vector<3x128x128xf32> to vector<1x128x128xf32>
    %255 = vector.shape_cast %254 : vector<1x128x128xf32> to vector<128x128xf32>
    %cst_117 = arith.constant dense<0.000000e+00> : vector<4x128xf32>
    %256 = tpu.matmul %253, %255, %cst_117 {dimension_numbers = #tpu.dot_dimension_numbers<[1], [0], [0], [1], [0, 0, 1, 1], [], []>} : vector<4x128xf32>, vector<128x128xf32>, vector<4x128xf32> -> vector<4x128xf32>
    %257 = arith.addf %252, %256 : vector<4x128xf32>
    %258 = vector.broadcast %4 : vector<1x128xf32> to vector<4x128xf32>
    %259 = arith.addf %257, %258 : vector<4x128xf32>
    %260 = vector.extract_strided_slice %259 {offsets = [0, 0], sizes = [2, 128], strides = [1, 1]} : vector<4x128xf32> to vector<2x128xf32>
    %261 = vector.extract_strided_slice %259 {offsets = [1, 0], sizes = [2, 128], strides = [1, 1]} : vector<4x128xf32> to vector<2x128xf32>
    %262 = arith.maximumf %260, %261 : vector<2x128xf32>
    %263 = vector.extract_strided_slice %259 {offsets = [2, 0], sizes = [2, 128], strides = [1, 1]} : vector<4x128xf32> to vector<2x128xf32>
    %264 = arith.maximumf %262, %263 : vector<2x128xf32>
    %c0_118 = arith.constant 0 : index
    %c0_119 = arith.constant 0 : index
    %c0_120 = arith.constant 0 : index
    %265 = vector.load %arg28[%c0_118, %c0_119, %c0_120] : memref<1x2x128xf32, #tpu.memory_space<vmem>>, vector<1x2x128xf32>
    %266 = vector.shape_cast %265 : vector<1x2x128xf32> to vector<2x128xf32>
    %267 = vector.shape_cast %264 : vector<2x128xf32> to vector<1x2x128xf32>
    tpu.vector_store %arg28[%c0_118, %c0_119, %c0_120], %267 {strides = array<i32>} : memref<1x2x128xf32, #tpu.memory_space<vmem>>, vector<1x2x128xf32>,
    return
  }
  func.func @transform_0(%arg0: i32) -> (i32, i32, i32) {
    %c0_i32 = arith.constant 0 : i32
    %c0_i32_0 = arith.constant 0 : i32
    %c0_i32_1 = arith.constant 0 : i32
    return %arg0, %c0_i32, %c0_i32_0 : i32, i32, i32
  }
  func.func @transform_1(%arg0: i32) -> (i32, i32) {
    %c0_i32 = arith.constant 0 : i32
    %c0_i32_0 = arith.constant 0 : i32
    %c0_i32_1 = arith.constant 0 : i32
    return %c0_i32, %c0_i32_0 : i32, i32
  }
  func.func @transform_2(%arg0: i32) -> (i32, i32) {
    %c0_i32 = arith.constant 0 : i32
    %c0_i32_0 = arith.constant 0 : i32
    %c0_i32_1 = arith.constant 0 : i32
    return %c0_i32, %c0_i32_0 : i32, i32
  }
  func.func @transform_3(%arg0: i32) -> (i32, i32) {
    %c0_i32 = arith.constant 0 : i32
    %c0_i32_0 = arith.constant 0 : i32
    %c0_i32_1 = arith.constant 0 : i32
    return %c0_i32, %c0_i32_0 : i32, i32
  }
  func.func @transform_4(%arg0: i32) -> (i32, i32, i32) {
    %c0_i32 = arith.constant 0 : i32
    %c0_i32_0 = arith.constant 0 : i32
    %c0_i32_1 = arith.constant 0 : i32
    %c0_i32_2 = arith.constant 0 : i32
    return %c0_i32, %c0_i32_0, %c0_i32_1 : i32, i32, i32
  }
  func.func @transform_5(%arg0: i32) -> (i32, i32) {
    %c0_i32 = arith.constant 0 : i32
    %c0_i32_0 = arith.constant 0 : i32
    %c0_i32_1 = arith.constant 0 : i32
    return %c0_i32, %c0_i32_0 : i32, i32
  }
  func.func @transform_6(%arg0: i32) -> (i32, i32) {
    %c0_i32 = arith.constant 0 : i32
    %c0_i32_0 = arith.constant 0 : i32
    %c0_i32_1 = arith.constant 0 : i32
    return %c0_i32, %c0_i32_0 : i32, i32
  }
  func.func @transform_7(%arg0: i32) -> (i32, i32) {
    %c0_i32 = arith.constant 0 : i32
    %c0_i32_0 = arith.constant 0 : i32
    %c0_i32_1 = arith.constant 0 : i32
    return %c0_i32, %c0_i32_0 : i32, i32
  }
  func.func @transform_8(%arg0: i32) -> (i32, i32, i32) {
    %c0_i32 = arith.constant 0 : i32
    %c0_i32_0 = arith.constant 0 : i32
    %c0_i32_1 = arith.constant 0 : i32
    %c0_i32_2 = arith.constant 0 : i32
    return %c0_i32, %c0_i32_0, %c0_i32_1 : i32, i32, i32
  }
  func.func @transform_9(%arg0: i32) -> (i32, i32) {
    %c0_i32 = arith.constant 0 : i32
    %c0_i32_0 = arith.constant 0 : i32
    %c0_i32_1 = arith.constant 0 : i32
    return %c0_i32, %c0_i32_0 : i32, i32
  }
  func.func @transform_10(%arg0: i32) -> (i32, i32) {
    %c0_i32 = arith.constant 0 : i32
    %c0_i32_0 = arith.constant 0 : i32
    %c0_i32_1 = arith.constant 0 : i32
    return %c0_i32, %c0_i32_0 : i32, i32
  }
  func.func @transform_11(%arg0: i32) -> (i32, i32, i32) {
    %c0_i32 = arith.constant 0 : i32
    %c0_i32_0 = arith.constant 0 : i32
    %c0_i32_1 = arith.constant 0 : i32
    %c0_i32_2 = arith.constant 0 : i32
    return %c0_i32, %c0_i32_0, %c0_i32_1 : i32, i32, i32
  }
  func.func @transform_12(%arg0: i32) -> (i32, i32, i32) {
    %c0_i32 = arith.constant 0 : i32
    %c0_i32_0 = arith.constant 0 : i32
    %c0_i32_1 = arith.constant 0 : i32
    %c0_i32_2 = arith.constant 0 : i32
    return %c0_i32, %c0_i32_0, %c0_i32_1 : i32, i32, i32
  }
  func.func @transform_13(%arg0: i32) -> (i32, i32) {
    %c0_i32 = arith.constant 0 : i32
    %c0_i32_0 = arith.constant 0 : i32
    %c0_i32_1 = arith.constant 0 : i32
    return %c0_i32, %c0_i32_0 : i32, i32
  }
  func.func @transform_14(%arg0: i32) -> (i32, i32) {
    %c0_i32 = arith.constant 0 : i32
    %c0_i32_0 = arith.constant 0 : i32
    %c0_i32_1 = arith.constant 0 : i32
    return %c0_i32, %c0_i32_0 : i32, i32
  }
  func.func @transform_15(%arg0: i32) -> (i32, i32, i32) {
    %c0_i32 = arith.constant 0 : i32
    %c0_i32_0 = arith.constant 0 : i32
    %c0_i32_1 = arith.constant 0 : i32
    %c0_i32_2 = arith.constant 0 : i32
    return %c0_i32, %c0_i32_0, %c0_i32_1 : i32, i32, i32
  }
  func.func @transform_16(%arg0: i32) -> (i32, i32, i32) {
    %c0_i32 = arith.constant 0 : i32
    %c0_i32_0 = arith.constant 0 : i32
    %c0_i32_1 = arith.constant 0 : i32
    %c0_i32_2 = arith.constant 0 : i32
    return %c0_i32, %c0_i32_0, %c0_i32_1 : i32, i32, i32
  }
  func.func @transform_17(%arg0: i32) -> (i32, i32) {
    %c0_i32 = arith.constant 0 : i32
    %c0_i32_0 = arith.constant 0 : i32
    %c0_i32_1 = arith.constant 0 : i32
    return %c0_i32, %c0_i32_0 : i32, i32
  }
  func.func @transform_18(%arg0: i32) -> (i32, i32) {
    %c0_i32 = arith.constant 0 : i32
    %c0_i32_0 = arith.constant 0 : i32
    %c0_i32_1 = arith.constant 0 : i32
    return %c0_i32, %c0_i32_0 : i32, i32
  }
  func.func @transform_19(%arg0: i32) -> (i32, i32) {
    %c0_i32 = arith.constant 0 : i32
    %c0_i32_0 = arith.constant 0 : i32
    %c0_i32_1 = arith.constant 0 : i32
    return %c0_i32, %c0_i32_0 : i32, i32
  }
  func.func @transform_20(%arg0: i32) -> (i32, i32, i32) {
    %c0_i32 = arith.constant 0 : i32
    %c0_i32_0 = arith.constant 0 : i32
    %c0_i32_1 = arith.constant 0 : i32
    %c0_i32_2 = arith.constant 0 : i32
    return %c0_i32, %c0_i32_0, %c0_i32_1 : i32, i32, i32
  }
  func.func @transform_21(%arg0: i32) -> (i32, i32, i32) {
    %c0_i32 = arith.constant 0 : i32
    %c0_i32_0 = arith.constant 0 : i32
    %c0_i32_1 = arith.constant 0 : i32
    %c0_i32_2 = arith.constant 0 : i32
    return %c0_i32, %c0_i32_0, %c0_i32_1 : i32, i32, i32
  }
  func.func @transform_22(%arg0: i32) -> (i32, i32) {
    %c0_i32 = arith.constant 0 : i32
    %c0_i32_0 = arith.constant 0 : i32
    %c0_i32_1 = arith.constant 0 : i32
    return %c0_i32, %c0_i32_0 : i32, i32
  }
  func.func @transform_23(%arg0: i32) -> (i32, i32) {
    %c0_i32 = arith.constant 0 : i32
    %c0_i32_0 = arith.constant 0 : i32
    %c0_i32_1 = arith.constant 0 : i32
    return %c0_i32, %c0_i32_0 : i32, i32
  }
  func.func @transform_24(%arg0: i32) -> (i32, i32) {
    %c0_i32 = arith.constant 0 : i32
    %c0_i32_0 = arith.constant 0 : i32
    %c0_i32_1 = arith.constant 0 : i32
    return %c0_i32, %c0_i32_0 : i32, i32
  }
  func.func @transform_25(%arg0: i32) -> (i32, i32, i32) {
    %c0_i32 = arith.constant 0 : i32
    %c0_i32_0 = arith.constant 0 : i32
    %c0_i32_1 = arith.constant 0 : i32
    %c0_i32_2 = arith.constant 0 : i32
    return %c0_i32, %c0_i32_0, %c0_i32_1 : i32, i32, i32
  }
  func.func @transform_26(%arg0: i32) -> (i32, i32, i32) {
    %c0_i32 = arith.constant 0 : i32
    %c0_i32_0 = arith.constant 0 : i32
    %c0_i32_1 = arith.constant 0 : i32
    %c0_i32_2 = arith.constant 0 : i32
    return %c0_i32, %c0_i32_0, %c0_i32_1 : i32, i32, i32
  }
  func.func @transform_27(%arg0: i32) -> (i32, i32, i32) {
    %c0_i32 = arith.constant 0 : i32
    %c0_i32_0 = arith.constant 0 : i32
    %c0_i32_1 = arith.constant 0 : i32
    return %arg0, %c0_i32, %c0_i32_0 : i32, i32, i32
  }
}

module attributes {stable_mosaic.version = 11 : i64} {
  func.func @kernel(%arg0: memref<32x12xf32, #tpu.memory_space<vmem>>, %arg1: memref<32x32xf32, #tpu.memory_space<vmem>>, %arg2: memref<1x256xf32, #tpu.memory_space<vmem>>, %arg3: memref<64x256xf32, #tpu.memory_space<vmem>>, %arg4: memref<12x256xf32, #tpu.memory_space<vmem>>, %arg5: memref<1x256xf32, #tpu.memory_space<vmem>>, %arg6: memref<64x256xf32, #tpu.memory_space<vmem>>, %arg7: memref<64x256xf32, #tpu.memory_space<vmem>>, %arg8: memref<32x64xf32, #tpu.memory_space<vmem>>, %arg9: memref<32x64xf32, #tpu.memory_space<vmem>>) attributes {dimension_semantics = [], scalar_prefetch = 0 : i64, scratch_operands = 1 : i64, tpu.core_type = #tpu.core_type<tc>} {
    %c0 = arith.constant 0 : index
    %c0_0 = arith.constant 0 : index
    %0 = vector.load %arg2[%c0, %c0_0] : memref<1x256xf32, #tpu.memory_space<vmem>>, vector<1x256xf32>
    %c0_1 = arith.constant 0 : index
    %c0_2 = arith.constant 0 : index
    %1 = vector.load %arg3[%c0_1, %c0_2] : memref<64x256xf32, #tpu.memory_space<vmem>>, vector<64x256xf32>
    %c0_3 = arith.constant 0 : index
    %c0_4 = arith.constant 0 : index
    %2 = vector.load %arg4[%c0_3, %c0_4] : memref<12x256xf32, #tpu.memory_space<vmem>>, vector<12x256xf32>
    %c0_5 = arith.constant 0 : index
    %c0_6 = arith.constant 0 : index
    %3 = vector.load %arg5[%c0_5, %c0_6] : memref<1x256xf32, #tpu.memory_space<vmem>>, vector<1x256xf32>
    %c0_7 = arith.constant 0 : index
    %c0_8 = arith.constant 0 : index
    %4 = vector.load %arg6[%c0_7, %c0_8] : memref<64x256xf32, #tpu.memory_space<vmem>>, vector<64x256xf32>
    %c0_9 = arith.constant 0 : index
    %c0_10 = arith.constant 0 : index
    %5 = vector.load %arg7[%c0_9, %c0_10] : memref<64x256xf32, #tpu.memory_space<vmem>>, vector<64x256xf32>
    %c0_11 = arith.constant 0 : index
    %c0_12 = arith.constant 0 : index
    %6 = vector.load %arg1[%c0_11, %c0_12] : memref<32x32xf32, #tpu.memory_space<vmem>>, vector<32x32xf32>
    %7 = tpu.iota {dimensions = array<i32: 1>} : vector<1x256xi32>
    %c64_i32 = arith.constant 64 : i32
    %c0_i32 = arith.constant 0 : i32
    %8 = arith.cmpi eq, %c64_i32, %c0_i32 : i32
    %c1_i32 = arith.constant 1 : i32
    %9 = arith.select %8, %c1_i32, %c64_i32 : i32
    %10 = vector.broadcast %9 : i32 to vector<1x256xi32>
    %11 = arith.remsi %7, %10 : vector<1x256xi32>
    %c0_i32_13 = arith.constant 0 : i32
    %12 = vector.broadcast %c0_i32_13 : i32 to vector<1x256xi32>
    %13 = arith.cmpi ne, %11, %12 : vector<1x256xi32>
    %c0_i32_14 = arith.constant 0 : i32
    %14 = vector.broadcast %c0_i32_14 : i32 to vector<1x256xi32>
    %15 = arith.cmpi slt, %11, %14 : vector<1x256xi32>
    %c0_i32_15 = arith.constant 0 : i32
    %16 = arith.cmpi slt, %9, %c0_i32_15 : i32
    %17 = vector.broadcast %16 : i1 to vector<1x256xi1>
    %18 = vector.broadcast %17 : vector<1x256xi1> to vector<1x256xi1>
    %19 = arith.xori %15, %18 : vector<1x256xi1>
    %20 = arith.andi %19, %13 : vector<1x256xi1>
    %21 = vector.broadcast %9 : i32 to vector<1x256xi32>
    %22 = arith.addi %11, %21 : vector<1x256xi32>
    %23 = arith.select %20, %22, %11 : vector<1x256xi1>, vector<1x256xi32>
    %c32_i32 = arith.constant 32 : i32
    %24 = vector.broadcast %c32_i32 : i32 to vector<1x256xi32>
    %25 = arith.cmpi slt, %23, %24 : vector<1x256xi32>
    %26 = tpu.iota {dimensions = array<i32: 1>} : vector<1x64xi32>
    %c32_i32_16 = arith.constant 32 : i32
    %27 = vector.broadcast %c32_i32_16 : i32 to vector<1x64xi32>
    %28 = arith.cmpi slt, %26, %27 : vector<1x64xi32>
    %c0_17 = arith.constant 0 : index
    %c0_18 = arith.constant 0 : index
    %29 = vector.load %arg0[%c0_17, %c0_18] : memref<32x12xf32, #tpu.memory_space<vmem>>, vector<32x12xf32>
    %cst = arith.constant dense<0.000000e+00> : vector<32x256xf32>
    %30 = tpu.matmul %29, %2, %cst {dimension_numbers = #tpu.dot_dimension_numbers<[1], [0], [0], [1], [0, 0, 1, 1], [], []>} : vector<32x12xf32>, vector<12x256xf32>, vector<32x256xf32> -> vector<32x256xf32>
    %31 = vector.broadcast %0 : vector<1x256xf32> to vector<32x256xf32>
    %32 = arith.addf %30, %31 : vector<32x256xf32>
    %cst_19 = arith.constant 0.000000e+00 : f32
    %33 = vector.broadcast %cst_19 : f32 to vector<2x64xf32>
    %cst_20 = arith.constant 0.000000e+00 : f32
    %34 = vector.broadcast %cst_20 : f32 to vector<2x64xf32>
    %35 = vector.extract_strided_slice %32 {offsets = [0, 0], sizes = [2, 256], strides = [1, 1]} : vector<32x256xf32> to vector<2x256xf32>
    %36 = vector.extract_strided_slice %32 {offsets = [30, 0], sizes = [2, 256], strides = [1, 1]} : vector<32x256xf32> to vector<2x256xf32>
    %37 = vector.shape_cast %25 : vector<1x256xi1> to vector<1x256xi1>
    %38 = vector.broadcast %37 : vector<1x256xi1> to vector<2x256xi1>
    %39 = arith.select %38, %35, %36 : vector<2x256xi1>, vector<2x256xf32>
    %cst_21 = arith.constant dense<0.000000e+00> : vector<2x256xf32>
    %40 = tpu.matmul %33, %1, %cst_21 {dimension_numbers = #tpu.dot_dimension_numbers<[1], [0], [0], [1], [0, 0, 1, 1], [], []>} : vector<2x64xf32>, vector<64x256xf32>, vector<2x256xf32> -> vector<2x256xf32>
    %41 = arith.addf %39, %40 : vector<2x256xf32>
    %42 = vector.extract_strided_slice %41 {offsets = [0, 0], sizes = [2, 64], strides = [1, 1]} : vector<2x256xf32> to vector<2x64xf32>
    %43 = arith.negf %42 : vector<2x64xf32>
    %44 = math.exp %43 : vector<2x64xf32>
    %cst_22 = arith.constant 1.000000e+00 : f32
    %45 = vector.broadcast %cst_22 : f32 to vector<2x64xf32>
    %46 = arith.addf %45, %44 : vector<2x64xf32>
    %47 = arith.divf %45, %46 : vector<2x64xf32>
    %48 = vector.extract_strided_slice %41 {offsets = [0, 64], sizes = [2, 64], strides = [1, 1]} : vector<2x256xf32> to vector<2x64xf32>
    %49 = arith.negf %48 : vector<2x64xf32>
    %50 = math.exp %49 : vector<2x64xf32>
    %cst_23 = arith.constant 1.000000e+00 : f32
    %51 = vector.broadcast %cst_23 : f32 to vector<2x64xf32>
    %52 = arith.addf %51, %50 : vector<2x64xf32>
    %53 = arith.divf %51, %52 : vector<2x64xf32>
    %54 = vector.extract_strided_slice %41 {offsets = [0, 128], sizes = [2, 64], strides = [1, 1]} : vector<2x256xf32> to vector<2x64xf32>
    %55 = math.tanh %54 : vector<2x64xf32>
    %56 = vector.extract_strided_slice %41 {offsets = [0, 192], sizes = [2, 64], strides = [1, 1]} : vector<2x256xf32> to vector<2x64xf32>
    %57 = arith.negf %56 : vector<2x64xf32>
    %58 = math.exp %57 : vector<2x64xf32>
    %cst_24 = arith.constant 1.000000e+00 : f32
    %59 = vector.broadcast %cst_24 : f32 to vector<2x64xf32>
    %60 = arith.addf %59, %58 : vector<2x64xf32>
    %61 = arith.divf %59, %60 : vector<2x64xf32>
    %62 = arith.mulf %53, %34 : vector<2x64xf32>
    %63 = arith.mulf %47, %55 : vector<2x64xf32>
    %64 = arith.addf %62, %63 : vector<2x64xf32>
    %65 = math.tanh %64 : vector<2x64xf32>
    %66 = arith.mulf %61, %65 : vector<2x64xf32>
    %c0_25 = arith.constant 0 : index
    %c0_26 = arith.constant 0 : index
    %67 = vector.load %arg9[%c0_25, %c0_26] : memref<32x64xf32, #tpu.memory_space<vmem>>, vector<2x64xf32>
    tpu.vector_store %arg9[%c0_25, %c0_26], %66 {strides = array<i32>} : memref<32x64xf32, #tpu.memory_space<vmem>>, vector<2x64xf32>,
    %68 = vector.extract_strided_slice %32 {offsets = [2, 0], sizes = [2, 256], strides = [1, 1]} : vector<32x256xf32> to vector<2x256xf32>
    %69 = vector.extract_strided_slice %32 {offsets = [28, 0], sizes = [2, 256], strides = [1, 1]} : vector<32x256xf32> to vector<2x256xf32>
    %70 = vector.shape_cast %25 : vector<1x256xi1> to vector<1x256xi1>
    %71 = vector.broadcast %70 : vector<1x256xi1> to vector<2x256xi1>
    %72 = arith.select %71, %68, %69 : vector<2x256xi1>, vector<2x256xf32>
    %cst_27 = arith.constant dense<0.000000e+00> : vector<2x256xf32>
    %73 = tpu.matmul %66, %1, %cst_27 {dimension_numbers = #tpu.dot_dimension_numbers<[1], [0], [0], [1], [0, 0, 1, 1], [], []>} : vector<2x64xf32>, vector<64x256xf32>, vector<2x256xf32> -> vector<2x256xf32>
    %74 = arith.addf %72, %73 : vector<2x256xf32>
    %75 = vector.extract_strided_slice %74 {offsets = [0, 0], sizes = [2, 64], strides = [1, 1]} : vector<2x256xf32> to vector<2x64xf32>
    %76 = arith.negf %75 : vector<2x64xf32>
    %77 = math.exp %76 : vector<2x64xf32>
    %cst_28 = arith.constant 1.000000e+00 : f32
    %78 = vector.broadcast %cst_28 : f32 to vector<2x64xf32>
    %79 = arith.addf %78, %77 : vector<2x64xf32>
    %80 = arith.divf %78, %79 : vector<2x64xf32>
    %81 = vector.extract_strided_slice %74 {offsets = [0, 64], sizes = [2, 64], strides = [1, 1]} : vector<2x256xf32> to vector<2x64xf32>
    %82 = arith.negf %81 : vector<2x64xf32>
    %83 = math.exp %82 : vector<2x64xf32>
    %cst_29 = arith.constant 1.000000e+00 : f32
    %84 = vector.broadcast %cst_29 : f32 to vector<2x64xf32>
    %85 = arith.addf %84, %83 : vector<2x64xf32>
    %86 = arith.divf %84, %85 : vector<2x64xf32>
    %87 = vector.extract_strided_slice %74 {offsets = [0, 128], sizes = [2, 64], strides = [1, 1]} : vector<2x256xf32> to vector<2x64xf32>
    %88 = math.tanh %87 : vector<2x64xf32>
    %89 = vector.extract_strided_slice %74 {offsets = [0, 192], sizes = [2, 64], strides = [1, 1]} : vector<2x256xf32> to vector<2x64xf32>
    %90 = arith.negf %89 : vector<2x64xf32>
    %91 = math.exp %90 : vector<2x64xf32>
    %cst_30 = arith.constant 1.000000e+00 : f32
    %92 = vector.broadcast %cst_30 : f32 to vector<2x64xf32>
    %93 = arith.addf %92, %91 : vector<2x64xf32>
    %94 = arith.divf %92, %93 : vector<2x64xf32>
    %95 = arith.mulf %86, %64 : vector<2x64xf32>
    %96 = arith.mulf %80, %88 : vector<2x64xf32>
    %97 = arith.addf %95, %96 : vector<2x64xf32>
    %98 = math.tanh %97 : vector<2x64xf32>
    %99 = arith.mulf %94, %98 : vector<2x64xf32>
    %c2 = arith.constant 2 : index
    %c0_31 = arith.constant 0 : index
    %100 = vector.load %arg9[%c2, %c0_31] : memref<32x64xf32, #tpu.memory_space<vmem>>, vector<2x64xf32>
    tpu.vector_store %arg9[%c2, %c0_31], %99 {strides = array<i32>} : memref<32x64xf32, #tpu.memory_space<vmem>>, vector<2x64xf32>,
    %101 = vector.extract_strided_slice %32 {offsets = [4, 0], sizes = [2, 256], strides = [1, 1]} : vector<32x256xf32> to vector<2x256xf32>
    %102 = vector.extract_strided_slice %32 {offsets = [26, 0], sizes = [2, 256], strides = [1, 1]} : vector<32x256xf32> to vector<2x256xf32>
    %103 = vector.shape_cast %25 : vector<1x256xi1> to vector<1x256xi1>
    %104 = vector.broadcast %103 : vector<1x256xi1> to vector<2x256xi1>
    %105 = arith.select %104, %101, %102 : vector<2x256xi1>, vector<2x256xf32>
    %cst_32 = arith.constant dense<0.000000e+00> : vector<2x256xf32>
    %106 = tpu.matmul %99, %1, %cst_32 {dimension_numbers = #tpu.dot_dimension_numbers<[1], [0], [0], [1], [0, 0, 1, 1], [], []>} : vector<2x64xf32>, vector<64x256xf32>, vector<2x256xf32> -> vector<2x256xf32>
    %107 = arith.addf %105, %106 : vector<2x256xf32>
    %108 = vector.extract_strided_slice %107 {offsets = [0, 0], sizes = [2, 64], strides = [1, 1]} : vector<2x256xf32> to vector<2x64xf32>
    %109 = arith.negf %108 : vector<2x64xf32>
    %110 = math.exp %109 : vector<2x64xf32>
    %cst_33 = arith.constant 1.000000e+00 : f32
    %111 = vector.broadcast %cst_33 : f32 to vector<2x64xf32>
    %112 = arith.addf %111, %110 : vector<2x64xf32>
    %113 = arith.divf %111, %112 : vector<2x64xf32>
    %114 = vector.extract_strided_slice %107 {offsets = [0, 64], sizes = [2, 64], strides = [1, 1]} : vector<2x256xf32> to vector<2x64xf32>
    %115 = arith.negf %114 : vector<2x64xf32>
    %116 = math.exp %115 : vector<2x64xf32>
    %cst_34 = arith.constant 1.000000e+00 : f32
    %117 = vector.broadcast %cst_34 : f32 to vector<2x64xf32>
    %118 = arith.addf %117, %116 : vector<2x64xf32>
    %119 = arith.divf %117, %118 : vector<2x64xf32>
    %120 = vector.extract_strided_slice %107 {offsets = [0, 128], sizes = [2, 64], strides = [1, 1]} : vector<2x256xf32> to vector<2x64xf32>
    %121 = math.tanh %120 : vector<2x64xf32>
    %122 = vector.extract_strided_slice %107 {offsets = [0, 192], sizes = [2, 64], strides = [1, 1]} : vector<2x256xf32> to vector<2x64xf32>
    %123 = arith.negf %122 : vector<2x64xf32>
    %124 = math.exp %123 : vector<2x64xf32>
    %cst_35 = arith.constant 1.000000e+00 : f32
    %125 = vector.broadcast %cst_35 : f32 to vector<2x64xf32>
    %126 = arith.addf %125, %124 : vector<2x64xf32>
    %127 = arith.divf %125, %126 : vector<2x64xf32>
    %128 = arith.mulf %119, %97 : vector<2x64xf32>
    %129 = arith.mulf %113, %121 : vector<2x64xf32>
    %130 = arith.addf %128, %129 : vector<2x64xf32>
    %131 = math.tanh %130 : vector<2x64xf32>
    %132 = arith.mulf %127, %131 : vector<2x64xf32>
    %c4 = arith.constant 4 : index
    %c0_36 = arith.constant 0 : index
    %133 = vector.load %arg9[%c4, %c0_36] : memref<32x64xf32, #tpu.memory_space<vmem>>, vector<2x64xf32>
    tpu.vector_store %arg9[%c4, %c0_36], %132 {strides = array<i32>} : memref<32x64xf32, #tpu.memory_space<vmem>>, vector<2x64xf32>,
    %134 = vector.extract_strided_slice %32 {offsets = [6, 0], sizes = [2, 256], strides = [1, 1]} : vector<32x256xf32> to vector<2x256xf32>
    %135 = vector.extract_strided_slice %32 {offsets = [24, 0], sizes = [2, 256], strides = [1, 1]} : vector<32x256xf32> to vector<2x256xf32>
    %136 = vector.shape_cast %25 : vector<1x256xi1> to vector<1x256xi1>
    %137 = vector.broadcast %136 : vector<1x256xi1> to vector<2x256xi1>
    %138 = arith.select %137, %134, %135 : vector<2x256xi1>, vector<2x256xf32>
    %cst_37 = arith.constant dense<0.000000e+00> : vector<2x256xf32>
    %139 = tpu.matmul %132, %1, %cst_37 {dimension_numbers = #tpu.dot_dimension_numbers<[1], [0], [0], [1], [0, 0, 1, 1], [], []>} : vector<2x64xf32>, vector<64x256xf32>, vector<2x256xf32> -> vector<2x256xf32>
    %140 = arith.addf %138, %139 : vector<2x256xf32>
    %141 = vector.extract_strided_slice %140 {offsets = [0, 0], sizes = [2, 64], strides = [1, 1]} : vector<2x256xf32> to vector<2x64xf32>
    %142 = arith.negf %141 : vector<2x64xf32>
    %143 = math.exp %142 : vector<2x64xf32>
    %cst_38 = arith.constant 1.000000e+00 : f32
    %144 = vector.broadcast %cst_38 : f32 to vector<2x64xf32>
    %145 = arith.addf %144, %143 : vector<2x64xf32>
    %146 = arith.divf %144, %145 : vector<2x64xf32>
    %147 = vector.extract_strided_slice %140 {offsets = [0, 64], sizes = [2, 64], strides = [1, 1]} : vector<2x256xf32> to vector<2x64xf32>
    %148 = arith.negf %147 : vector<2x64xf32>
    %149 = math.exp %148 : vector<2x64xf32>
    %cst_39 = arith.constant 1.000000e+00 : f32
    %150 = vector.broadcast %cst_39 : f32 to vector<2x64xf32>
    %151 = arith.addf %150, %149 : vector<2x64xf32>
    %152 = arith.divf %150, %151 : vector<2x64xf32>
    %153 = vector.extract_strided_slice %140 {offsets = [0, 128], sizes = [2, 64], strides = [1, 1]} : vector<2x256xf32> to vector<2x64xf32>
    %154 = math.tanh %153 : vector<2x64xf32>
    %155 = vector.extract_strided_slice %140 {offsets = [0, 192], sizes = [2, 64], strides = [1, 1]} : vector<2x256xf32> to vector<2x64xf32>
    %156 = arith.negf %155 : vector<2x64xf32>
    %157 = math.exp %156 : vector<2x64xf32>
    %cst_40 = arith.constant 1.000000e+00 : f32
    %158 = vector.broadcast %cst_40 : f32 to vector<2x64xf32>
    %159 = arith.addf %158, %157 : vector<2x64xf32>
    %160 = arith.divf %158, %159 : vector<2x64xf32>
    %161 = arith.mulf %152, %130 : vector<2x64xf32>
    %162 = arith.mulf %146, %154 : vector<2x64xf32>
    %163 = arith.addf %161, %162 : vector<2x64xf32>
    %164 = math.tanh %163 : vector<2x64xf32>
    %165 = arith.mulf %160, %164 : vector<2x64xf32>
    %c6 = arith.constant 6 : index
    %c0_41 = arith.constant 0 : index
    %166 = vector.load %arg9[%c6, %c0_41] : memref<32x64xf32, #tpu.memory_space<vmem>>, vector<2x64xf32>
    tpu.vector_store %arg9[%c6, %c0_41], %165 {strides = array<i32>} : memref<32x64xf32, #tpu.memory_space<vmem>>, vector<2x64xf32>,
    %167 = vector.extract_strided_slice %32 {offsets = [8, 0], sizes = [2, 256], strides = [1, 1]} : vector<32x256xf32> to vector<2x256xf32>
    %168 = vector.extract_strided_slice %32 {offsets = [22, 0], sizes = [2, 256], strides = [1, 1]} : vector<32x256xf32> to vector<2x256xf32>
    %169 = vector.shape_cast %25 : vector<1x256xi1> to vector<1x256xi1>
    %170 = vector.broadcast %169 : vector<1x256xi1> to vector<2x256xi1>
    %171 = arith.select %170, %167, %168 : vector<2x256xi1>, vector<2x256xf32>
    %cst_42 = arith.constant dense<0.000000e+00> : vector<2x256xf32>
    %172 = tpu.matmul %165, %1, %cst_42 {dimension_numbers = #tpu.dot_dimension_numbers<[1], [0], [0], [1], [0, 0, 1, 1], [], []>} : vector<2x64xf32>, vector<64x256xf32>, vector<2x256xf32> -> vector<2x256xf32>
    %173 = arith.addf %171, %172 : vector<2x256xf32>
    %174 = vector.extract_strided_slice %173 {offsets = [0, 0], sizes = [2, 64], strides = [1, 1]} : vector<2x256xf32> to vector<2x64xf32>
    %175 = arith.negf %174 : vector<2x64xf32>
    %176 = math.exp %175 : vector<2x64xf32>
    %cst_43 = arith.constant 1.000000e+00 : f32
    %177 = vector.broadcast %cst_43 : f32 to vector<2x64xf32>
    %178 = arith.addf %177, %176 : vector<2x64xf32>
    %179 = arith.divf %177, %178 : vector<2x64xf32>
    %180 = vector.extract_strided_slice %173 {offsets = [0, 64], sizes = [2, 64], strides = [1, 1]} : vector<2x256xf32> to vector<2x64xf32>
    %181 = arith.negf %180 : vector<2x64xf32>
    %182 = math.exp %181 : vector<2x64xf32>
    %cst_44 = arith.constant 1.000000e+00 : f32
    %183 = vector.broadcast %cst_44 : f32 to vector<2x64xf32>
    %184 = arith.addf %183, %182 : vector<2x64xf32>
    %185 = arith.divf %183, %184 : vector<2x64xf32>
    %186 = vector.extract_strided_slice %173 {offsets = [0, 128], sizes = [2, 64], strides = [1, 1]} : vector<2x256xf32> to vector<2x64xf32>
    %187 = math.tanh %186 : vector<2x64xf32>
    %188 = vector.extract_strided_slice %173 {offsets = [0, 192], sizes = [2, 64], strides = [1, 1]} : vector<2x256xf32> to vector<2x64xf32>
    %189 = arith.negf %188 : vector<2x64xf32>
    %190 = math.exp %189 : vector<2x64xf32>
    %cst_45 = arith.constant 1.000000e+00 : f32
    %191 = vector.broadcast %cst_45 : f32 to vector<2x64xf32>
    %192 = arith.addf %191, %190 : vector<2x64xf32>
    %193 = arith.divf %191, %192 : vector<2x64xf32>
    %194 = arith.mulf %185, %163 : vector<2x64xf32>
    %195 = arith.mulf %179, %187 : vector<2x64xf32>
    %196 = arith.addf %194, %195 : vector<2x64xf32>
    %197 = math.tanh %196 : vector<2x64xf32>
    %198 = arith.mulf %193, %197 : vector<2x64xf32>
    %c8 = arith.constant 8 : index
    %c0_46 = arith.constant 0 : index
    %199 = vector.load %arg9[%c8, %c0_46] : memref<32x64xf32, #tpu.memory_space<vmem>>, vector<2x64xf32>
    tpu.vector_store %arg9[%c8, %c0_46], %198 {strides = array<i32>} : memref<32x64xf32, #tpu.memory_space<vmem>>, vector<2x64xf32>,
    %200 = vector.extract_strided_slice %32 {offsets = [10, 0], sizes = [2, 256], strides = [1, 1]} : vector<32x256xf32> to vector<2x256xf32>
    %201 = vector.extract_strided_slice %32 {offsets = [20, 0], sizes = [2, 256], strides = [1, 1]} : vector<32x256xf32> to vector<2x256xf32>
    %202 = vector.shape_cast %25 : vector<1x256xi1> to vector<1x256xi1>
    %203 = vector.broadcast %202 : vector<1x256xi1> to vector<2x256xi1>
    %204 = arith.select %203, %200, %201 : vector<2x256xi1>, vector<2x256xf32>
    %cst_47 = arith.constant dense<0.000000e+00> : vector<2x256xf32>
    %205 = tpu.matmul %198, %1, %cst_47 {dimension_numbers = #tpu.dot_dimension_numbers<[1], [0], [0], [1], [0, 0, 1, 1], [], []>} : vector<2x64xf32>, vector<64x256xf32>, vector<2x256xf32> -> vector<2x256xf32>
    %206 = arith.addf %204, %205 : vector<2x256xf32>
    %207 = vector.extract_strided_slice %206 {offsets = [0, 0], sizes = [2, 64], strides = [1, 1]} : vector<2x256xf32> to vector<2x64xf32>
    %208 = arith.negf %207 : vector<2x64xf32>
    %209 = math.exp %208 : vector<2x64xf32>
    %cst_48 = arith.constant 1.000000e+00 : f32
    %210 = vector.broadcast %cst_48 : f32 to vector<2x64xf32>
    %211 = arith.addf %210, %209 : vector<2x64xf32>
    %212 = arith.divf %210, %211 : vector<2x64xf32>
    %213 = vector.extract_strided_slice %206 {offsets = [0, 64], sizes = [2, 64], strides = [1, 1]} : vector<2x256xf32> to vector<2x64xf32>
    %214 = arith.negf %213 : vector<2x64xf32>
    %215 = math.exp %214 : vector<2x64xf32>
    %cst_49 = arith.constant 1.000000e+00 : f32
    %216 = vector.broadcast %cst_49 : f32 to vector<2x64xf32>
    %217 = arith.addf %216, %215 : vector<2x64xf32>
    %218 = arith.divf %216, %217 : vector<2x64xf32>
    %219 = vector.extract_strided_slice %206 {offsets = [0, 128], sizes = [2, 64], strides = [1, 1]} : vector<2x256xf32> to vector<2x64xf32>
    %220 = math.tanh %219 : vector<2x64xf32>
    %221 = vector.extract_strided_slice %206 {offsets = [0, 192], sizes = [2, 64], strides = [1, 1]} : vector<2x256xf32> to vector<2x64xf32>
    %222 = arith.negf %221 : vector<2x64xf32>
    %223 = math.exp %222 : vector<2x64xf32>
    %cst_50 = arith.constant 1.000000e+00 : f32
    %224 = vector.broadcast %cst_50 : f32 to vector<2x64xf32>
    %225 = arith.addf %224, %223 : vector<2x64xf32>
    %226 = arith.divf %224, %225 : vector<2x64xf32>
    %227 = arith.mulf %218, %196 : vector<2x64xf32>
    %228 = arith.mulf %212, %220 : vector<2x64xf32>
    %229 = arith.addf %227, %228 : vector<2x64xf32>
    %230 = math.tanh %229 : vector<2x64xf32>
    %231 = arith.mulf %226, %230 : vector<2x64xf32>
    %c10 = arith.constant 10 : index
    %c0_51 = arith.constant 0 : index
    %232 = vector.load %arg9[%c10, %c0_51] : memref<32x64xf32, #tpu.memory_space<vmem>>, vector<2x64xf32>
    tpu.vector_store %arg9[%c10, %c0_51], %231 {strides = array<i32>} : memref<32x64xf32, #tpu.memory_space<vmem>>, vector<2x64xf32>,
    %233 = vector.extract_strided_slice %32 {offsets = [12, 0], sizes = [2, 256], strides = [1, 1]} : vector<32x256xf32> to vector<2x256xf32>
    %234 = vector.extract_strided_slice %32 {offsets = [18, 0], sizes = [2, 256], strides = [1, 1]} : vector<32x256xf32> to vector<2x256xf32>
    %235 = vector.shape_cast %25 : vector<1x256xi1> to vector<1x256xi1>
    %236 = vector.broadcast %235 : vector<1x256xi1> to vector<2x256xi1>
    %237 = arith.select %236, %233, %234 : vector<2x256xi1>, vector<2x256xf32>
    %cst_52 = arith.constant dense<0.000000e+00> : vector<2x256xf32>
    %238 = tpu.matmul %231, %1, %cst_52 {dimension_numbers = #tpu.dot_dimension_numbers<[1], [0], [0], [1], [0, 0, 1, 1], [], []>} : vector<2x64xf32>, vector<64x256xf32>, vector<2x256xf32> -> vector<2x256xf32>
    %239 = arith.addf %237, %238 : vector<2x256xf32>
    %240 = vector.extract_strided_slice %239 {offsets = [0, 0], sizes = [2, 64], strides = [1, 1]} : vector<2x256xf32> to vector<2x64xf32>
    %241 = arith.negf %240 : vector<2x64xf32>
    %242 = math.exp %241 : vector<2x64xf32>
    %cst_53 = arith.constant 1.000000e+00 : f32
    %243 = vector.broadcast %cst_53 : f32 to vector<2x64xf32>
    %244 = arith.addf %243, %242 : vector<2x64xf32>
    %245 = arith.divf %243, %244 : vector<2x64xf32>
    %246 = vector.extract_strided_slice %239 {offsets = [0, 64], sizes = [2, 64], strides = [1, 1]} : vector<2x256xf32> to vector<2x64xf32>
    %247 = arith.negf %246 : vector<2x64xf32>
    %248 = math.exp %247 : vector<2x64xf32>
    %cst_54 = arith.constant 1.000000e+00 : f32
    %249 = vector.broadcast %cst_54 : f32 to vector<2x64xf32>
    %250 = arith.addf %249, %248 : vector<2x64xf32>
    %251 = arith.divf %249, %250 : vector<2x64xf32>
    %252 = vector.extract_strided_slice %239 {offsets = [0, 128], sizes = [2, 64], strides = [1, 1]} : vector<2x256xf32> to vector<2x64xf32>
    %253 = math.tanh %252 : vector<2x64xf32>
    %254 = vector.extract_strided_slice %239 {offsets = [0, 192], sizes = [2, 64], strides = [1, 1]} : vector<2x256xf32> to vector<2x64xf32>
    %255 = arith.negf %254 : vector<2x64xf32>
    %256 = math.exp %255 : vector<2x64xf32>
    %cst_55 = arith.constant 1.000000e+00 : f32
    %257 = vector.broadcast %cst_55 : f32 to vector<2x64xf32>
    %258 = arith.addf %257, %256 : vector<2x64xf32>
    %259 = arith.divf %257, %258 : vector<2x64xf32>
    %260 = arith.mulf %251, %229 : vector<2x64xf32>
    %261 = arith.mulf %245, %253 : vector<2x64xf32>
    %262 = arith.addf %260, %261 : vector<2x64xf32>
    %263 = math.tanh %262 : vector<2x64xf32>
    %264 = arith.mulf %259, %263 : vector<2x64xf32>
    %c12 = arith.constant 12 : index
    %c0_56 = arith.constant 0 : index
    %265 = vector.load %arg9[%c12, %c0_56] : memref<32x64xf32, #tpu.memory_space<vmem>>, vector<2x64xf32>
    tpu.vector_store %arg9[%c12, %c0_56], %264 {strides = array<i32>} : memref<32x64xf32, #tpu.memory_space<vmem>>, vector<2x64xf32>,
    %266 = vector.extract_strided_slice %32 {offsets = [14, 0], sizes = [2, 256], strides = [1, 1]} : vector<32x256xf32> to vector<2x256xf32>
    %267 = vector.extract_strided_slice %32 {offsets = [16, 0], sizes = [2, 256], strides = [1, 1]} : vector<32x256xf32> to vector<2x256xf32>
    %268 = vector.shape_cast %25 : vector<1x256xi1> to vector<1x256xi1>
    %269 = vector.broadcast %268 : vector<1x256xi1> to vector<2x256xi1>
    %270 = arith.select %269, %266, %267 : vector<2x256xi1>, vector<2x256xf32>
    %cst_57 = arith.constant dense<0.000000e+00> : vector<2x256xf32>
    %271 = tpu.matmul %264, %1, %cst_57 {dimension_numbers = #tpu.dot_dimension_numbers<[1], [0], [0], [1], [0, 0, 1, 1], [], []>} : vector<2x64xf32>, vector<64x256xf32>, vector<2x256xf32> -> vector<2x256xf32>
    %272 = arith.addf %270, %271 : vector<2x256xf32>
    %273 = vector.extract_strided_slice %272 {offsets = [0, 0], sizes = [2, 64], strides = [1, 1]} : vector<2x256xf32> to vector<2x64xf32>
    %274 = arith.negf %273 : vector<2x64xf32>
    %275 = math.exp %274 : vector<2x64xf32>
    %cst_58 = arith.constant 1.000000e+00 : f32
    %276 = vector.broadcast %cst_58 : f32 to vector<2x64xf32>
    %277 = arith.addf %276, %275 : vector<2x64xf32>
    %278 = arith.divf %276, %277 : vector<2x64xf32>
    %279 = vector.extract_strided_slice %272 {offsets = [0, 64], sizes = [2, 64], strides = [1, 1]} : vector<2x256xf32> to vector<2x64xf32>
    %280 = arith.negf %279 : vector<2x64xf32>
    %281 = math.exp %280 : vector<2x64xf32>
    %cst_59 = arith.constant 1.000000e+00 : f32
    %282 = vector.broadcast %cst_59 : f32 to vector<2x64xf32>
    %283 = arith.addf %282, %281 : vector<2x64xf32>
    %284 = arith.divf %282, %283 : vector<2x64xf32>
    %285 = vector.extract_strided_slice %272 {offsets = [0, 128], sizes = [2, 64], strides = [1, 1]} : vector<2x256xf32> to vector<2x64xf32>
    %286 = math.tanh %285 : vector<2x64xf32>
    %287 = vector.extract_strided_slice %272 {offsets = [0, 192], sizes = [2, 64], strides = [1, 1]} : vector<2x256xf32> to vector<2x64xf32>
    %288 = arith.negf %287 : vector<2x64xf32>
    %289 = math.exp %288 : vector<2x64xf32>
    %cst_60 = arith.constant 1.000000e+00 : f32
    %290 = vector.broadcast %cst_60 : f32 to vector<2x64xf32>
    %291 = arith.addf %290, %289 : vector<2x64xf32>
    %292 = arith.divf %290, %291 : vector<2x64xf32>
    %293 = arith.mulf %284, %262 : vector<2x64xf32>
    %294 = arith.mulf %278, %286 : vector<2x64xf32>
    %295 = arith.addf %293, %294 : vector<2x64xf32>
    %296 = math.tanh %295 : vector<2x64xf32>
    %297 = arith.mulf %292, %296 : vector<2x64xf32>
    %c14 = arith.constant 14 : index
    %c0_61 = arith.constant 0 : index
    %298 = vector.load %arg9[%c14, %c0_61] : memref<32x64xf32, #tpu.memory_space<vmem>>, vector<2x64xf32>
    tpu.vector_store %arg9[%c14, %c0_61], %297 {strides = array<i32>} : memref<32x64xf32, #tpu.memory_space<vmem>>, vector<2x64xf32>,
    %299 = vector.extract_strided_slice %32 {offsets = [16, 0], sizes = [2, 256], strides = [1, 1]} : vector<32x256xf32> to vector<2x256xf32>
    %300 = vector.extract_strided_slice %32 {offsets = [14, 0], sizes = [2, 256], strides = [1, 1]} : vector<32x256xf32> to vector<2x256xf32>
    %301 = vector.shape_cast %25 : vector<1x256xi1> to vector<1x256xi1>
    %302 = vector.broadcast %301 : vector<1x256xi1> to vector<2x256xi1>
    %303 = arith.select %302, %299, %300 : vector<2x256xi1>, vector<2x256xf32>
    %cst_62 = arith.constant dense<0.000000e+00> : vector<2x256xf32>
    %304 = tpu.matmul %297, %1, %cst_62 {dimension_numbers = #tpu.dot_dimension_numbers<[1], [0], [0], [1], [0, 0, 1, 1], [], []>} : vector<2x64xf32>, vector<64x256xf32>, vector<2x256xf32> -> vector<2x256xf32>
    %305 = arith.addf %303, %304 : vector<2x256xf32>
    %306 = vector.extract_strided_slice %305 {offsets = [0, 0], sizes = [2, 64], strides = [1, 1]} : vector<2x256xf32> to vector<2x64xf32>
    %307 = arith.negf %306 : vector<2x64xf32>
    %308 = math.exp %307 : vector<2x64xf32>
    %cst_63 = arith.constant 1.000000e+00 : f32
    %309 = vector.broadcast %cst_63 : f32 to vector<2x64xf32>
    %310 = arith.addf %309, %308 : vector<2x64xf32>
    %311 = arith.divf %309, %310 : vector<2x64xf32>
    %312 = vector.extract_strided_slice %305 {offsets = [0, 64], sizes = [2, 64], strides = [1, 1]} : vector<2x256xf32> to vector<2x64xf32>
    %313 = arith.negf %312 : vector<2x64xf32>
    %314 = math.exp %313 : vector<2x64xf32>
    %cst_64 = arith.constant 1.000000e+00 : f32
    %315 = vector.broadcast %cst_64 : f32 to vector<2x64xf32>
    %316 = arith.addf %315, %314 : vector<2x64xf32>
    %317 = arith.divf %315, %316 : vector<2x64xf32>
    %318 = vector.extract_strided_slice %305 {offsets = [0, 128], sizes = [2, 64], strides = [1, 1]} : vector<2x256xf32> to vector<2x64xf32>
    %319 = math.tanh %318 : vector<2x64xf32>
    %320 = vector.extract_strided_slice %305 {offsets = [0, 192], sizes = [2, 64], strides = [1, 1]} : vector<2x256xf32> to vector<2x64xf32>
    %321 = arith.negf %320 : vector<2x64xf32>
    %322 = math.exp %321 : vector<2x64xf32>
    %cst_65 = arith.constant 1.000000e+00 : f32
    %323 = vector.broadcast %cst_65 : f32 to vector<2x64xf32>
    %324 = arith.addf %323, %322 : vector<2x64xf32>
    %325 = arith.divf %323, %324 : vector<2x64xf32>
    %326 = arith.mulf %317, %295 : vector<2x64xf32>
    %327 = arith.mulf %311, %319 : vector<2x64xf32>
    %328 = arith.addf %326, %327 : vector<2x64xf32>
    %329 = math.tanh %328 : vector<2x64xf32>
    %330 = arith.mulf %325, %329 : vector<2x64xf32>
    %c16 = arith.constant 16 : index
    %c0_66 = arith.constant 0 : index
    %331 = vector.load %arg9[%c16, %c0_66] : memref<32x64xf32, #tpu.memory_space<vmem>>, vector<2x64xf32>
    tpu.vector_store %arg9[%c16, %c0_66], %330 {strides = array<i32>} : memref<32x64xf32, #tpu.memory_space<vmem>>, vector<2x64xf32>,
    %332 = vector.extract_strided_slice %32 {offsets = [18, 0], sizes = [2, 256], strides = [1, 1]} : vector<32x256xf32> to vector<2x256xf32>
    %333 = vector.extract_strided_slice %32 {offsets = [12, 0], sizes = [2, 256], strides = [1, 1]} : vector<32x256xf32> to vector<2x256xf32>
    %334 = vector.shape_cast %25 : vector<1x256xi1> to vector<1x256xi1>
    %335 = vector.broadcast %334 : vector<1x256xi1> to vector<2x256xi1>
    %336 = arith.select %335, %332, %333 : vector<2x256xi1>, vector<2x256xf32>
    %cst_67 = arith.constant dense<0.000000e+00> : vector<2x256xf32>
    %337 = tpu.matmul %330, %1, %cst_67 {dimension_numbers = #tpu.dot_dimension_numbers<[1], [0], [0], [1], [0, 0, 1, 1], [], []>} : vector<2x64xf32>, vector<64x256xf32>, vector<2x256xf32> -> vector<2x256xf32>
    %338 = arith.addf %336, %337 : vector<2x256xf32>
    %339 = vector.extract_strided_slice %338 {offsets = [0, 0], sizes = [2, 64], strides = [1, 1]} : vector<2x256xf32> to vector<2x64xf32>
    %340 = arith.negf %339 : vector<2x64xf32>
    %341 = math.exp %340 : vector<2x64xf32>
    %cst_68 = arith.constant 1.000000e+00 : f32
    %342 = vector.broadcast %cst_68 : f32 to vector<2x64xf32>
    %343 = arith.addf %342, %341 : vector<2x64xf32>
    %344 = arith.divf %342, %343 : vector<2x64xf32>
    %345 = vector.extract_strided_slice %338 {offsets = [0, 64], sizes = [2, 64], strides = [1, 1]} : vector<2x256xf32> to vector<2x64xf32>
    %346 = arith.negf %345 : vector<2x64xf32>
    %347 = math.exp %346 : vector<2x64xf32>
    %cst_69 = arith.constant 1.000000e+00 : f32
    %348 = vector.broadcast %cst_69 : f32 to vector<2x64xf32>
    %349 = arith.addf %348, %347 : vector<2x64xf32>
    %350 = arith.divf %348, %349 : vector<2x64xf32>
    %351 = vector.extract_strided_slice %338 {offsets = [0, 128], sizes = [2, 64], strides = [1, 1]} : vector<2x256xf32> to vector<2x64xf32>
    %352 = math.tanh %351 : vector<2x64xf32>
    %353 = vector.extract_strided_slice %338 {offsets = [0, 192], sizes = [2, 64], strides = [1, 1]} : vector<2x256xf32> to vector<2x64xf32>
    %354 = arith.negf %353 : vector<2x64xf32>
    %355 = math.exp %354 : vector<2x64xf32>
    %cst_70 = arith.constant 1.000000e+00 : f32
    %356 = vector.broadcast %cst_70 : f32 to vector<2x64xf32>
    %357 = arith.addf %356, %355 : vector<2x64xf32>
    %358 = arith.divf %356, %357 : vector<2x64xf32>
    %359 = arith.mulf %350, %328 : vector<2x64xf32>
    %360 = arith.mulf %344, %352 : vector<2x64xf32>
    %361 = arith.addf %359, %360 : vector<2x64xf32>
    %362 = math.tanh %361 : vector<2x64xf32>
    %363 = arith.mulf %358, %362 : vector<2x64xf32>
    %c18 = arith.constant 18 : index
    %c0_71 = arith.constant 0 : index
    %364 = vector.load %arg9[%c18, %c0_71] : memref<32x64xf32, #tpu.memory_space<vmem>>, vector<2x64xf32>
    tpu.vector_store %arg9[%c18, %c0_71], %363 {strides = array<i32>} : memref<32x64xf32, #tpu.memory_space<vmem>>, vector<2x64xf32>,
    %365 = vector.extract_strided_slice %32 {offsets = [20, 0], sizes = [2, 256], strides = [1, 1]} : vector<32x256xf32> to vector<2x256xf32>
    %366 = vector.extract_strided_slice %32 {offsets = [10, 0], sizes = [2, 256], strides = [1, 1]} : vector<32x256xf32> to vector<2x256xf32>
    %367 = vector.shape_cast %25 : vector<1x256xi1> to vector<1x256xi1>
    %368 = vector.broadcast %367 : vector<1x256xi1> to vector<2x256xi1>
    %369 = arith.select %368, %365, %366 : vector<2x256xi1>, vector<2x256xf32>
    %cst_72 = arith.constant dense<0.000000e+00> : vector<2x256xf32>
    %370 = tpu.matmul %363, %1, %cst_72 {dimension_numbers = #tpu.dot_dimension_numbers<[1], [0], [0], [1], [0, 0, 1, 1], [], []>} : vector<2x64xf32>, vector<64x256xf32>, vector<2x256xf32> -> vector<2x256xf32>
    %371 = arith.addf %369, %370 : vector<2x256xf32>
    %372 = vector.extract_strided_slice %371 {offsets = [0, 0], sizes = [2, 64], strides = [1, 1]} : vector<2x256xf32> to vector<2x64xf32>
    %373 = arith.negf %372 : vector<2x64xf32>
    %374 = math.exp %373 : vector<2x64xf32>
    %cst_73 = arith.constant 1.000000e+00 : f32
    %375 = vector.broadcast %cst_73 : f32 to vector<2x64xf32>
    %376 = arith.addf %375, %374 : vector<2x64xf32>
    %377 = arith.divf %375, %376 : vector<2x64xf32>
    %378 = vector.extract_strided_slice %371 {offsets = [0, 64], sizes = [2, 64], strides = [1, 1]} : vector<2x256xf32> to vector<2x64xf32>
    %379 = arith.negf %378 : vector<2x64xf32>
    %380 = math.exp %379 : vector<2x64xf32>
    %cst_74 = arith.constant 1.000000e+00 : f32
    %381 = vector.broadcast %cst_74 : f32 to vector<2x64xf32>
    %382 = arith.addf %381, %380 : vector<2x64xf32>
    %383 = arith.divf %381, %382 : vector<2x64xf32>
    %384 = vector.extract_strided_slice %371 {offsets = [0, 128], sizes = [2, 64], strides = [1, 1]} : vector<2x256xf32> to vector<2x64xf32>
    %385 = math.tanh %384 : vector<2x64xf32>
    %386 = vector.extract_strided_slice %371 {offsets = [0, 192], sizes = [2, 64], strides = [1, 1]} : vector<2x256xf32> to vector<2x64xf32>
    %387 = arith.negf %386 : vector<2x64xf32>
    %388 = math.exp %387 : vector<2x64xf32>
    %cst_75 = arith.constant 1.000000e+00 : f32
    %389 = vector.broadcast %cst_75 : f32 to vector<2x64xf32>
    %390 = arith.addf %389, %388 : vector<2x64xf32>
    %391 = arith.divf %389, %390 : vector<2x64xf32>
    %392 = arith.mulf %383, %361 : vector<2x64xf32>
    %393 = arith.mulf %377, %385 : vector<2x64xf32>
    %394 = arith.addf %392, %393 : vector<2x64xf32>
    %395 = math.tanh %394 : vector<2x64xf32>
    %396 = arith.mulf %391, %395 : vector<2x64xf32>
    %c20 = arith.constant 20 : index
    %c0_76 = arith.constant 0 : index
    %397 = vector.load %arg9[%c20, %c0_76] : memref<32x64xf32, #tpu.memory_space<vmem>>, vector<2x64xf32>
    tpu.vector_store %arg9[%c20, %c0_76], %396 {strides = array<i32>} : memref<32x64xf32, #tpu.memory_space<vmem>>, vector<2x64xf32>,
    %398 = vector.extract_strided_slice %32 {offsets = [22, 0], sizes = [2, 256], strides = [1, 1]} : vector<32x256xf32> to vector<2x256xf32>
    %399 = vector.extract_strided_slice %32 {offsets = [8, 0], sizes = [2, 256], strides = [1, 1]} : vector<32x256xf32> to vector<2x256xf32>
    %400 = vector.shape_cast %25 : vector<1x256xi1> to vector<1x256xi1>
    %401 = vector.broadcast %400 : vector<1x256xi1> to vector<2x256xi1>
    %402 = arith.select %401, %398, %399 : vector<2x256xi1>, vector<2x256xf32>
    %cst_77 = arith.constant dense<0.000000e+00> : vector<2x256xf32>
    %403 = tpu.matmul %396, %1, %cst_77 {dimension_numbers = #tpu.dot_dimension_numbers<[1], [0], [0], [1], [0, 0, 1, 1], [], []>} : vector<2x64xf32>, vector<64x256xf32>, vector<2x256xf32> -> vector<2x256xf32>
    %404 = arith.addf %402, %403 : vector<2x256xf32>
    %405 = vector.extract_strided_slice %404 {offsets = [0, 0], sizes = [2, 64], strides = [1, 1]} : vector<2x256xf32> to vector<2x64xf32>
    %406 = arith.negf %405 : vector<2x64xf32>
    %407 = math.exp %406 : vector<2x64xf32>
    %cst_78 = arith.constant 1.000000e+00 : f32
    %408 = vector.broadcast %cst_78 : f32 to vector<2x64xf32>
    %409 = arith.addf %408, %407 : vector<2x64xf32>
    %410 = arith.divf %408, %409 : vector<2x64xf32>
    %411 = vector.extract_strided_slice %404 {offsets = [0, 64], sizes = [2, 64], strides = [1, 1]} : vector<2x256xf32> to vector<2x64xf32>
    %412 = arith.negf %411 : vector<2x64xf32>
    %413 = math.exp %412 : vector<2x64xf32>
    %cst_79 = arith.constant 1.000000e+00 : f32
    %414 = vector.broadcast %cst_79 : f32 to vector<2x64xf32>
    %415 = arith.addf %414, %413 : vector<2x64xf32>
    %416 = arith.divf %414, %415 : vector<2x64xf32>
    %417 = vector.extract_strided_slice %404 {offsets = [0, 128], sizes = [2, 64], strides = [1, 1]} : vector<2x256xf32> to vector<2x64xf32>
    %418 = math.tanh %417 : vector<2x64xf32>
    %419 = vector.extract_strided_slice %404 {offsets = [0, 192], sizes = [2, 64], strides = [1, 1]} : vector<2x256xf32> to vector<2x64xf32>
    %420 = arith.negf %419 : vector<2x64xf32>
    %421 = math.exp %420 : vector<2x64xf32>
    %cst_80 = arith.constant 1.000000e+00 : f32
    %422 = vector.broadcast %cst_80 : f32 to vector<2x64xf32>
    %423 = arith.addf %422, %421 : vector<2x64xf32>
    %424 = arith.divf %422, %423 : vector<2x64xf32>
    %425 = arith.mulf %416, %394 : vector<2x64xf32>
    %426 = arith.mulf %410, %418 : vector<2x64xf32>
    %427 = arith.addf %425, %426 : vector<2x64xf32>
    %428 = math.tanh %427 : vector<2x64xf32>
    %429 = arith.mulf %424, %428 : vector<2x64xf32>
    %c22 = arith.constant 22 : index
    %c0_81 = arith.constant 0 : index
    %430 = vector.load %arg9[%c22, %c0_81] : memref<32x64xf32, #tpu.memory_space<vmem>>, vector<2x64xf32>
    tpu.vector_store %arg9[%c22, %c0_81], %429 {strides = array<i32>} : memref<32x64xf32, #tpu.memory_space<vmem>>, vector<2x64xf32>,
    %431 = vector.extract_strided_slice %32 {offsets = [24, 0], sizes = [2, 256], strides = [1, 1]} : vector<32x256xf32> to vector<2x256xf32>
    %432 = vector.extract_strided_slice %32 {offsets = [6, 0], sizes = [2, 256], strides = [1, 1]} : vector<32x256xf32> to vector<2x256xf32>
    %433 = vector.shape_cast %25 : vector<1x256xi1> to vector<1x256xi1>
    %434 = vector.broadcast %433 : vector<1x256xi1> to vector<2x256xi1>
    %435 = arith.select %434, %431, %432 : vector<2x256xi1>, vector<2x256xf32>
    %cst_82 = arith.constant dense<0.000000e+00> : vector<2x256xf32>
    %436 = tpu.matmul %429, %1, %cst_82 {dimension_numbers = #tpu.dot_dimension_numbers<[1], [0], [0], [1], [0, 0, 1, 1], [], []>} : vector<2x64xf32>, vector<64x256xf32>, vector<2x256xf32> -> vector<2x256xf32>
    %437 = arith.addf %435, %436 : vector<2x256xf32>
    %438 = vector.extract_strided_slice %437 {offsets = [0, 0], sizes = [2, 64], strides = [1, 1]} : vector<2x256xf32> to vector<2x64xf32>
    %439 = arith.negf %438 : vector<2x64xf32>
    %440 = math.exp %439 : vector<2x64xf32>
    %cst_83 = arith.constant 1.000000e+00 : f32
    %441 = vector.broadcast %cst_83 : f32 to vector<2x64xf32>
    %442 = arith.addf %441, %440 : vector<2x64xf32>
    %443 = arith.divf %441, %442 : vector<2x64xf32>
    %444 = vector.extract_strided_slice %437 {offsets = [0, 64], sizes = [2, 64], strides = [1, 1]} : vector<2x256xf32> to vector<2x64xf32>
    %445 = arith.negf %444 : vector<2x64xf32>
    %446 = math.exp %445 : vector<2x64xf32>
    %cst_84 = arith.constant 1.000000e+00 : f32
    %447 = vector.broadcast %cst_84 : f32 to vector<2x64xf32>
    %448 = arith.addf %447, %446 : vector<2x64xf32>
    %449 = arith.divf %447, %448 : vector<2x64xf32>
    %450 = vector.extract_strided_slice %437 {offsets = [0, 128], sizes = [2, 64], strides = [1, 1]} : vector<2x256xf32> to vector<2x64xf32>
    %451 = math.tanh %450 : vector<2x64xf32>
    %452 = vector.extract_strided_slice %437 {offsets = [0, 192], sizes = [2, 64], strides = [1, 1]} : vector<2x256xf32> to vector<2x64xf32>
    %453 = arith.negf %452 : vector<2x64xf32>
    %454 = math.exp %453 : vector<2x64xf32>
    %cst_85 = arith.constant 1.000000e+00 : f32
    %455 = vector.broadcast %cst_85 : f32 to vector<2x64xf32>
    %456 = arith.addf %455, %454 : vector<2x64xf32>
    %457 = arith.divf %455, %456 : vector<2x64xf32>
    %458 = arith.mulf %449, %427 : vector<2x64xf32>
    %459 = arith.mulf %443, %451 : vector<2x64xf32>
    %460 = arith.addf %458, %459 : vector<2x64xf32>
    %461 = math.tanh %460 : vector<2x64xf32>
    %462 = arith.mulf %457, %461 : vector<2x64xf32>
    %c24 = arith.constant 24 : index
    %c0_86 = arith.constant 0 : index
    %463 = vector.load %arg9[%c24, %c0_86] : memref<32x64xf32, #tpu.memory_space<vmem>>, vector<2x64xf32>
    tpu.vector_store %arg9[%c24, %c0_86], %462 {strides = array<i32>} : memref<32x64xf32, #tpu.memory_space<vmem>>, vector<2x64xf32>,
    %464 = vector.extract_strided_slice %32 {offsets = [26, 0], sizes = [2, 256], strides = [1, 1]} : vector<32x256xf32> to vector<2x256xf32>
    %465 = vector.extract_strided_slice %32 {offsets = [4, 0], sizes = [2, 256], strides = [1, 1]} : vector<32x256xf32> to vector<2x256xf32>
    %466 = vector.shape_cast %25 : vector<1x256xi1> to vector<1x256xi1>
    %467 = vector.broadcast %466 : vector<1x256xi1> to vector<2x256xi1>
    %468 = arith.select %467, %464, %465 : vector<2x256xi1>, vector<2x256xf32>
    %cst_87 = arith.constant dense<0.000000e+00> : vector<2x256xf32>
    %469 = tpu.matmul %462, %1, %cst_87 {dimension_numbers = #tpu.dot_dimension_numbers<[1], [0], [0], [1], [0, 0, 1, 1], [], []>} : vector<2x64xf32>, vector<64x256xf32>, vector<2x256xf32> -> vector<2x256xf32>
    %470 = arith.addf %468, %469 : vector<2x256xf32>
    %471 = vector.extract_strided_slice %470 {offsets = [0, 0], sizes = [2, 64], strides = [1, 1]} : vector<2x256xf32> to vector<2x64xf32>
    %472 = arith.negf %471 : vector<2x64xf32>
    %473 = math.exp %472 : vector<2x64xf32>
    %cst_88 = arith.constant 1.000000e+00 : f32
    %474 = vector.broadcast %cst_88 : f32 to vector<2x64xf32>
    %475 = arith.addf %474, %473 : vector<2x64xf32>
    %476 = arith.divf %474, %475 : vector<2x64xf32>
    %477 = vector.extract_strided_slice %470 {offsets = [0, 64], sizes = [2, 64], strides = [1, 1]} : vector<2x256xf32> to vector<2x64xf32>
    %478 = arith.negf %477 : vector<2x64xf32>
    %479 = math.exp %478 : vector<2x64xf32>
    %cst_89 = arith.constant 1.000000e+00 : f32
    %480 = vector.broadcast %cst_89 : f32 to vector<2x64xf32>
    %481 = arith.addf %480, %479 : vector<2x64xf32>
    %482 = arith.divf %480, %481 : vector<2x64xf32>
    %483 = vector.extract_strided_slice %470 {offsets = [0, 128], sizes = [2, 64], strides = [1, 1]} : vector<2x256xf32> to vector<2x64xf32>
    %484 = math.tanh %483 : vector<2x64xf32>
    %485 = vector.extract_strided_slice %470 {offsets = [0, 192], sizes = [2, 64], strides = [1, 1]} : vector<2x256xf32> to vector<2x64xf32>
    %486 = arith.negf %485 : vector<2x64xf32>
    %487 = math.exp %486 : vector<2x64xf32>
    %cst_90 = arith.constant 1.000000e+00 : f32
    %488 = vector.broadcast %cst_90 : f32 to vector<2x64xf32>
    %489 = arith.addf %488, %487 : vector<2x64xf32>
    %490 = arith.divf %488, %489 : vector<2x64xf32>
    %491 = arith.mulf %482, %460 : vector<2x64xf32>
    %492 = arith.mulf %476, %484 : vector<2x64xf32>
    %493 = arith.addf %491, %492 : vector<2x64xf32>
    %494 = math.tanh %493 : vector<2x64xf32>
    %495 = arith.mulf %490, %494 : vector<2x64xf32>
    %c26 = arith.constant 26 : index
    %c0_91 = arith.constant 0 : index
    %496 = vector.load %arg9[%c26, %c0_91] : memref<32x64xf32, #tpu.memory_space<vmem>>, vector<2x64xf32>
    tpu.vector_store %arg9[%c26, %c0_91], %495 {strides = array<i32>} : memref<32x64xf32, #tpu.memory_space<vmem>>, vector<2x64xf32>,
    %497 = vector.extract_strided_slice %32 {offsets = [28, 0], sizes = [2, 256], strides = [1, 1]} : vector<32x256xf32> to vector<2x256xf32>
    %498 = vector.extract_strided_slice %32 {offsets = [2, 0], sizes = [2, 256], strides = [1, 1]} : vector<32x256xf32> to vector<2x256xf32>
    %499 = vector.shape_cast %25 : vector<1x256xi1> to vector<1x256xi1>
    %500 = vector.broadcast %499 : vector<1x256xi1> to vector<2x256xi1>
    %501 = arith.select %500, %497, %498 : vector<2x256xi1>, vector<2x256xf32>
    %cst_92 = arith.constant dense<0.000000e+00> : vector<2x256xf32>
    %502 = tpu.matmul %495, %1, %cst_92 {dimension_numbers = #tpu.dot_dimension_numbers<[1], [0], [0], [1], [0, 0, 1, 1], [], []>} : vector<2x64xf32>, vector<64x256xf32>, vector<2x256xf32> -> vector<2x256xf32>
    %503 = arith.addf %501, %502 : vector<2x256xf32>
    %504 = vector.extract_strided_slice %503 {offsets = [0, 0], sizes = [2, 64], strides = [1, 1]} : vector<2x256xf32> to vector<2x64xf32>
    %505 = arith.negf %504 : vector<2x64xf32>
    %506 = math.exp %505 : vector<2x64xf32>
    %cst_93 = arith.constant 1.000000e+00 : f32
    %507 = vector.broadcast %cst_93 : f32 to vector<2x64xf32>
    %508 = arith.addf %507, %506 : vector<2x64xf32>
    %509 = arith.divf %507, %508 : vector<2x64xf32>
    %510 = vector.extract_strided_slice %503 {offsets = [0, 64], sizes = [2, 64], strides = [1, 1]} : vector<2x256xf32> to vector<2x64xf32>
    %511 = arith.negf %510 : vector<2x64xf32>
    %512 = math.exp %511 : vector<2x64xf32>
    %cst_94 = arith.constant 1.000000e+00 : f32
    %513 = vector.broadcast %cst_94 : f32 to vector<2x64xf32>
    %514 = arith.addf %513, %512 : vector<2x64xf32>
    %515 = arith.divf %513, %514 : vector<2x64xf32>
    %516 = vector.extract_strided_slice %503 {offsets = [0, 128], sizes = [2, 64], strides = [1, 1]} : vector<2x256xf32> to vector<2x64xf32>
    %517 = math.tanh %516 : vector<2x64xf32>
    %518 = vector.extract_strided_slice %503 {offsets = [0, 192], sizes = [2, 64], strides = [1, 1]} : vector<2x256xf32> to vector<2x64xf32>
    %519 = arith.negf %518 : vector<2x64xf32>
    %520 = math.exp %519 : vector<2x64xf32>
    %cst_95 = arith.constant 1.000000e+00 : f32
    %521 = vector.broadcast %cst_95 : f32 to vector<2x64xf32>
    %522 = arith.addf %521, %520 : vector<2x64xf32>
    %523 = arith.divf %521, %522 : vector<2x64xf32>
    %524 = arith.mulf %515, %493 : vector<2x64xf32>
    %525 = arith.mulf %509, %517 : vector<2x64xf32>
    %526 = arith.addf %524, %525 : vector<2x64xf32>
    %527 = math.tanh %526 : vector<2x64xf32>
    %528 = arith.mulf %523, %527 : vector<2x64xf32>
    %c28 = arith.constant 28 : index
    %c0_96 = arith.constant 0 : index
    %529 = vector.load %arg9[%c28, %c0_96] : memref<32x64xf32, #tpu.memory_space<vmem>>, vector<2x64xf32>
    tpu.vector_store %arg9[%c28, %c0_96], %528 {strides = array<i32>} : memref<32x64xf32, #tpu.memory_space<vmem>>, vector<2x64xf32>,
    %530 = vector.extract_strided_slice %32 {offsets = [30, 0], sizes = [2, 256], strides = [1, 1]} : vector<32x256xf32> to vector<2x256xf32>
    %531 = vector.extract_strided_slice %32 {offsets = [0, 0], sizes = [2, 256], strides = [1, 1]} : vector<32x256xf32> to vector<2x256xf32>
    %532 = vector.shape_cast %25 : vector<1x256xi1> to vector<1x256xi1>
    %533 = vector.broadcast %532 : vector<1x256xi1> to vector<2x256xi1>
    %534 = arith.select %533, %530, %531 : vector<2x256xi1>, vector<2x256xf32>
    %cst_97 = arith.constant dense<0.000000e+00> : vector<2x256xf32>
    %535 = tpu.matmul %528, %1, %cst_97 {dimension_numbers = #tpu.dot_dimension_numbers<[1], [0], [0], [1], [0, 0, 1, 1], [], []>} : vector<2x64xf32>, vector<64x256xf32>, vector<2x256xf32> -> vector<2x256xf32>
    %536 = arith.addf %534, %535 : vector<2x256xf32>
    %537 = vector.extract_strided_slice %536 {offsets = [0, 0], sizes = [2, 64], strides = [1, 1]} : vector<2x256xf32> to vector<2x64xf32>
    %538 = arith.negf %537 : vector<2x64xf32>
    %539 = math.exp %538 : vector<2x64xf32>
    %cst_98 = arith.constant 1.000000e+00 : f32
    %540 = vector.broadcast %cst_98 : f32 to vector<2x64xf32>
    %541 = arith.addf %540, %539 : vector<2x64xf32>
    %542 = arith.divf %540, %541 : vector<2x64xf32>
    %543 = vector.extract_strided_slice %536 {offsets = [0, 64], sizes = [2, 64], strides = [1, 1]} : vector<2x256xf32> to vector<2x64xf32>
    %544 = arith.negf %543 : vector<2x64xf32>
    %545 = math.exp %544 : vector<2x64xf32>
    %cst_99 = arith.constant 1.000000e+00 : f32
    %546 = vector.broadcast %cst_99 : f32 to vector<2x64xf32>
    %547 = arith.addf %546, %545 : vector<2x64xf32>
    %548 = arith.divf %546, %547 : vector<2x64xf32>
    %549 = vector.extract_strided_slice %536 {offsets = [0, 128], sizes = [2, 64], strides = [1, 1]} : vector<2x256xf32> to vector<2x64xf32>
    %550 = math.tanh %549 : vector<2x64xf32>
    %551 = vector.extract_strided_slice %536 {offsets = [0, 192], sizes = [2, 64], strides = [1, 1]} : vector<2x256xf32> to vector<2x64xf32>
    %552 = arith.negf %551 : vector<2x64xf32>
    %553 = math.exp %552 : vector<2x64xf32>
    %cst_100 = arith.constant 1.000000e+00 : f32
    %554 = vector.broadcast %cst_100 : f32 to vector<2x64xf32>
    %555 = arith.addf %554, %553 : vector<2x64xf32>
    %556 = arith.divf %554, %555 : vector<2x64xf32>
    %557 = arith.mulf %548, %526 : vector<2x64xf32>
    %558 = arith.mulf %542, %550 : vector<2x64xf32>
    %559 = arith.addf %557, %558 : vector<2x64xf32>
    %560 = math.tanh %559 : vector<2x64xf32>
    %561 = arith.mulf %556, %560 : vector<2x64xf32>
    %c30 = arith.constant 30 : index
    %c0_101 = arith.constant 0 : index
    %562 = vector.load %arg9[%c30, %c0_101] : memref<32x64xf32, #tpu.memory_space<vmem>>, vector<2x64xf32>
    tpu.vector_store %arg9[%c30, %c0_101], %561 {strides = array<i32>} : memref<32x64xf32, #tpu.memory_space<vmem>>, vector<2x64xf32>,
    %c0_102 = arith.constant 0 : index
    %c0_103 = arith.constant 0 : index
    %563 = vector.load %arg9[%c0_102, %c0_103] : memref<32x64xf32, #tpu.memory_space<vmem>>, vector<32x64xf32>
    %cst_104 = arith.constant dense<0.000000e+00> : vector<32x64xf32>
    %564 = tpu.matmul %6, %563, %cst_104 {dimension_numbers = #tpu.dot_dimension_numbers<[1], [0], [0], [1], [0, 0, 1, 1], [], []>} : vector<32x32xf32>, vector<32x64xf32>, vector<32x64xf32> -> vector<32x64xf32>
    %565 = vector.shape_cast %28 : vector<1x64xi1> to vector<1x64xi1>
    %566 = vector.broadcast %565 : vector<1x64xi1> to vector<32x64xi1>
    %567 = arith.select %566, %563, %564 : vector<32x64xi1>, vector<32x64xf32>
    %cst_105 = arith.constant dense<0.000000e+00> : vector<32x256xf32>
    %568 = tpu.matmul %567, %5, %cst_105 {dimension_numbers = #tpu.dot_dimension_numbers<[1], [0], [0], [1], [0, 0, 1, 1], [], []>} : vector<32x64xf32>, vector<64x256xf32>, vector<32x256xf32> -> vector<32x256xf32>
    %569 = vector.broadcast %3 : vector<1x256xf32> to vector<32x256xf32>
    %570 = arith.addf %568, %569 : vector<32x256xf32>
    %cst_106 = arith.constant 0.000000e+00 : f32
    %571 = vector.broadcast %cst_106 : f32 to vector<2x64xf32>
    %cst_107 = arith.constant 0.000000e+00 : f32
    %572 = vector.broadcast %cst_107 : f32 to vector<2x64xf32>
    %573 = vector.extract_strided_slice %570 {offsets = [0, 0], sizes = [2, 256], strides = [1, 1]} : vector<32x256xf32> to vector<2x256xf32>
    %574 = vector.extract_strided_slice %570 {offsets = [30, 0], sizes = [2, 256], strides = [1, 1]} : vector<32x256xf32> to vector<2x256xf32>
    %575 = vector.shape_cast %25 : vector<1x256xi1> to vector<1x256xi1>
    %576 = vector.broadcast %575 : vector<1x256xi1> to vector<2x256xi1>
    %577 = arith.select %576, %573, %574 : vector<2x256xi1>, vector<2x256xf32>
    %cst_108 = arith.constant dense<0.000000e+00> : vector<2x256xf32>
    %578 = tpu.matmul %571, %4, %cst_108 {dimension_numbers = #tpu.dot_dimension_numbers<[1], [0], [0], [1], [0, 0, 1, 1], [], []>} : vector<2x64xf32>, vector<64x256xf32>, vector<2x256xf32> -> vector<2x256xf32>
    %579 = arith.addf %577, %578 : vector<2x256xf32>
    %580 = vector.extract_strided_slice %579 {offsets = [0, 0], sizes = [2, 64], strides = [1, 1]} : vector<2x256xf32> to vector<2x64xf32>
    %581 = arith.negf %580 : vector<2x64xf32>
    %582 = math.exp %581 : vector<2x64xf32>
    %cst_109 = arith.constant 1.000000e+00 : f32
    %583 = vector.broadcast %cst_109 : f32 to vector<2x64xf32>
    %584 = arith.addf %583, %582 : vector<2x64xf32>
    %585 = arith.divf %583, %584 : vector<2x64xf32>
    %586 = vector.extract_strided_slice %579 {offsets = [0, 64], sizes = [2, 64], strides = [1, 1]} : vector<2x256xf32> to vector<2x64xf32>
    %587 = arith.negf %586 : vector<2x64xf32>
    %588 = math.exp %587 : vector<2x64xf32>
    %cst_110 = arith.constant 1.000000e+00 : f32
    %589 = vector.broadcast %cst_110 : f32 to vector<2x64xf32>
    %590 = arith.addf %589, %588 : vector<2x64xf32>
    %591 = arith.divf %589, %590 : vector<2x64xf32>
    %592 = vector.extract_strided_slice %579 {offsets = [0, 128], sizes = [2, 64], strides = [1, 1]} : vector<2x256xf32> to vector<2x64xf32>
    %593 = math.tanh %592 : vector<2x64xf32>
    %594 = vector.extract_strided_slice %579 {offsets = [0, 192], sizes = [2, 64], strides = [1, 1]} : vector<2x256xf32> to vector<2x64xf32>
    %595 = arith.negf %594 : vector<2x64xf32>
    %596 = math.exp %595 : vector<2x64xf32>
    %cst_111 = arith.constant 1.000000e+00 : f32
    %597 = vector.broadcast %cst_111 : f32 to vector<2x64xf32>
    %598 = arith.addf %597, %596 : vector<2x64xf32>
    %599 = arith.divf %597, %598 : vector<2x64xf32>
    %600 = arith.mulf %591, %572 : vector<2x64xf32>
    %601 = arith.mulf %585, %593 : vector<2x64xf32>
    %602 = arith.addf %600, %601 : vector<2x64xf32>
    %603 = math.tanh %602 : vector<2x64xf32>
    %604 = arith.mulf %599, %603 : vector<2x64xf32>
    %c0_112 = arith.constant 0 : index
    %c0_113 = arith.constant 0 : index
    %605 = vector.load %arg9[%c0_112, %c0_113] : memref<32x64xf32, #tpu.memory_space<vmem>>, vector<2x64xf32>
    tpu.vector_store %arg9[%c0_112, %c0_113], %604 {strides = array<i32>} : memref<32x64xf32, #tpu.memory_space<vmem>>, vector<2x64xf32>,
    %606 = vector.extract_strided_slice %570 {offsets = [2, 0], sizes = [2, 256], strides = [1, 1]} : vector<32x256xf32> to vector<2x256xf32>
    %607 = vector.extract_strided_slice %570 {offsets = [28, 0], sizes = [2, 256], strides = [1, 1]} : vector<32x256xf32> to vector<2x256xf32>
    %608 = vector.shape_cast %25 : vector<1x256xi1> to vector<1x256xi1>
    %609 = vector.broadcast %608 : vector<1x256xi1> to vector<2x256xi1>
    %610 = arith.select %609, %606, %607 : vector<2x256xi1>, vector<2x256xf32>
    %cst_114 = arith.constant dense<0.000000e+00> : vector<2x256xf32>
    %611 = tpu.matmul %604, %4, %cst_114 {dimension_numbers = #tpu.dot_dimension_numbers<[1], [0], [0], [1], [0, 0, 1, 1], [], []>} : vector<2x64xf32>, vector<64x256xf32>, vector<2x256xf32> -> vector<2x256xf32>
    %612 = arith.addf %610, %611 : vector<2x256xf32>
    %613 = vector.extract_strided_slice %612 {offsets = [0, 0], sizes = [2, 64], strides = [1, 1]} : vector<2x256xf32> to vector<2x64xf32>
    %614 = arith.negf %613 : vector<2x64xf32>
    %615 = math.exp %614 : vector<2x64xf32>
    %cst_115 = arith.constant 1.000000e+00 : f32
    %616 = vector.broadcast %cst_115 : f32 to vector<2x64xf32>
    %617 = arith.addf %616, %615 : vector<2x64xf32>
    %618 = arith.divf %616, %617 : vector<2x64xf32>
    %619 = vector.extract_strided_slice %612 {offsets = [0, 64], sizes = [2, 64], strides = [1, 1]} : vector<2x256xf32> to vector<2x64xf32>
    %620 = arith.negf %619 : vector<2x64xf32>
    %621 = math.exp %620 : vector<2x64xf32>
    %cst_116 = arith.constant 1.000000e+00 : f32
    %622 = vector.broadcast %cst_116 : f32 to vector<2x64xf32>
    %623 = arith.addf %622, %621 : vector<2x64xf32>
    %624 = arith.divf %622, %623 : vector<2x64xf32>
    %625 = vector.extract_strided_slice %612 {offsets = [0, 128], sizes = [2, 64], strides = [1, 1]} : vector<2x256xf32> to vector<2x64xf32>
    %626 = math.tanh %625 : vector<2x64xf32>
    %627 = vector.extract_strided_slice %612 {offsets = [0, 192], sizes = [2, 64], strides = [1, 1]} : vector<2x256xf32> to vector<2x64xf32>
    %628 = arith.negf %627 : vector<2x64xf32>
    %629 = math.exp %628 : vector<2x64xf32>
    %cst_117 = arith.constant 1.000000e+00 : f32
    %630 = vector.broadcast %cst_117 : f32 to vector<2x64xf32>
    %631 = arith.addf %630, %629 : vector<2x64xf32>
    %632 = arith.divf %630, %631 : vector<2x64xf32>
    %633 = arith.mulf %624, %602 : vector<2x64xf32>
    %634 = arith.mulf %618, %626 : vector<2x64xf32>
    %635 = arith.addf %633, %634 : vector<2x64xf32>
    %636 = math.tanh %635 : vector<2x64xf32>
    %637 = arith.mulf %632, %636 : vector<2x64xf32>
    %c2_118 = arith.constant 2 : index
    %c0_119 = arith.constant 0 : index
    %638 = vector.load %arg9[%c2_118, %c0_119] : memref<32x64xf32, #tpu.memory_space<vmem>>, vector<2x64xf32>
    tpu.vector_store %arg9[%c2_118, %c0_119], %637 {strides = array<i32>} : memref<32x64xf32, #tpu.memory_space<vmem>>, vector<2x64xf32>,
    %639 = vector.extract_strided_slice %570 {offsets = [4, 0], sizes = [2, 256], strides = [1, 1]} : vector<32x256xf32> to vector<2x256xf32>
    %640 = vector.extract_strided_slice %570 {offsets = [26, 0], sizes = [2, 256], strides = [1, 1]} : vector<32x256xf32> to vector<2x256xf32>
    %641 = vector.shape_cast %25 : vector<1x256xi1> to vector<1x256xi1>
    %642 = vector.broadcast %641 : vector<1x256xi1> to vector<2x256xi1>
    %643 = arith.select %642, %639, %640 : vector<2x256xi1>, vector<2x256xf32>
    %cst_120 = arith.constant dense<0.000000e+00> : vector<2x256xf32>
    %644 = tpu.matmul %637, %4, %cst_120 {dimension_numbers = #tpu.dot_dimension_numbers<[1], [0], [0], [1], [0, 0, 1, 1], [], []>} : vector<2x64xf32>, vector<64x256xf32>, vector<2x256xf32> -> vector<2x256xf32>
    %645 = arith.addf %643, %644 : vector<2x256xf32>
    %646 = vector.extract_strided_slice %645 {offsets = [0, 0], sizes = [2, 64], strides = [1, 1]} : vector<2x256xf32> to vector<2x64xf32>
    %647 = arith.negf %646 : vector<2x64xf32>
    %648 = math.exp %647 : vector<2x64xf32>
    %cst_121 = arith.constant 1.000000e+00 : f32
    %649 = vector.broadcast %cst_121 : f32 to vector<2x64xf32>
    %650 = arith.addf %649, %648 : vector<2x64xf32>
    %651 = arith.divf %649, %650 : vector<2x64xf32>
    %652 = vector.extract_strided_slice %645 {offsets = [0, 64], sizes = [2, 64], strides = [1, 1]} : vector<2x256xf32> to vector<2x64xf32>
    %653 = arith.negf %652 : vector<2x64xf32>
    %654 = math.exp %653 : vector<2x64xf32>
    %cst_122 = arith.constant 1.000000e+00 : f32
    %655 = vector.broadcast %cst_122 : f32 to vector<2x64xf32>
    %656 = arith.addf %655, %654 : vector<2x64xf32>
    %657 = arith.divf %655, %656 : vector<2x64xf32>
    %658 = vector.extract_strided_slice %645 {offsets = [0, 128], sizes = [2, 64], strides = [1, 1]} : vector<2x256xf32> to vector<2x64xf32>
    %659 = math.tanh %658 : vector<2x64xf32>
    %660 = vector.extract_strided_slice %645 {offsets = [0, 192], sizes = [2, 64], strides = [1, 1]} : vector<2x256xf32> to vector<2x64xf32>
    %661 = arith.negf %660 : vector<2x64xf32>
    %662 = math.exp %661 : vector<2x64xf32>
    %cst_123 = arith.constant 1.000000e+00 : f32
    %663 = vector.broadcast %cst_123 : f32 to vector<2x64xf32>
    %664 = arith.addf %663, %662 : vector<2x64xf32>
    %665 = arith.divf %663, %664 : vector<2x64xf32>
    %666 = arith.mulf %657, %635 : vector<2x64xf32>
    %667 = arith.mulf %651, %659 : vector<2x64xf32>
    %668 = arith.addf %666, %667 : vector<2x64xf32>
    %669 = math.tanh %668 : vector<2x64xf32>
    %670 = arith.mulf %665, %669 : vector<2x64xf32>
    %c4_124 = arith.constant 4 : index
    %c0_125 = arith.constant 0 : index
    %671 = vector.load %arg9[%c4_124, %c0_125] : memref<32x64xf32, #tpu.memory_space<vmem>>, vector<2x64xf32>
    tpu.vector_store %arg9[%c4_124, %c0_125], %670 {strides = array<i32>} : memref<32x64xf32, #tpu.memory_space<vmem>>, vector<2x64xf32>,
    %672 = vector.extract_strided_slice %570 {offsets = [6, 0], sizes = [2, 256], strides = [1, 1]} : vector<32x256xf32> to vector<2x256xf32>
    %673 = vector.extract_strided_slice %570 {offsets = [24, 0], sizes = [2, 256], strides = [1, 1]} : vector<32x256xf32> to vector<2x256xf32>
    %674 = vector.shape_cast %25 : vector<1x256xi1> to vector<1x256xi1>
    %675 = vector.broadcast %674 : vector<1x256xi1> to vector<2x256xi1>
    %676 = arith.select %675, %672, %673 : vector<2x256xi1>, vector<2x256xf32>
    %cst_126 = arith.constant dense<0.000000e+00> : vector<2x256xf32>
    %677 = tpu.matmul %670, %4, %cst_126 {dimension_numbers = #tpu.dot_dimension_numbers<[1], [0], [0], [1], [0, 0, 1, 1], [], []>} : vector<2x64xf32>, vector<64x256xf32>, vector<2x256xf32> -> vector<2x256xf32>
    %678 = arith.addf %676, %677 : vector<2x256xf32>
    %679 = vector.extract_strided_slice %678 {offsets = [0, 0], sizes = [2, 64], strides = [1, 1]} : vector<2x256xf32> to vector<2x64xf32>
    %680 = arith.negf %679 : vector<2x64xf32>
    %681 = math.exp %680 : vector<2x64xf32>
    %cst_127 = arith.constant 1.000000e+00 : f32
    %682 = vector.broadcast %cst_127 : f32 to vector<2x64xf32>
    %683 = arith.addf %682, %681 : vector<2x64xf32>
    %684 = arith.divf %682, %683 : vector<2x64xf32>
    %685 = vector.extract_strided_slice %678 {offsets = [0, 64], sizes = [2, 64], strides = [1, 1]} : vector<2x256xf32> to vector<2x64xf32>
    %686 = arith.negf %685 : vector<2x64xf32>
    %687 = math.exp %686 : vector<2x64xf32>
    %cst_128 = arith.constant 1.000000e+00 : f32
    %688 = vector.broadcast %cst_128 : f32 to vector<2x64xf32>
    %689 = arith.addf %688, %687 : vector<2x64xf32>
    %690 = arith.divf %688, %689 : vector<2x64xf32>
    %691 = vector.extract_strided_slice %678 {offsets = [0, 128], sizes = [2, 64], strides = [1, 1]} : vector<2x256xf32> to vector<2x64xf32>
    %692 = math.tanh %691 : vector<2x64xf32>
    %693 = vector.extract_strided_slice %678 {offsets = [0, 192], sizes = [2, 64], strides = [1, 1]} : vector<2x256xf32> to vector<2x64xf32>
    %694 = arith.negf %693 : vector<2x64xf32>
    %695 = math.exp %694 : vector<2x64xf32>
    %cst_129 = arith.constant 1.000000e+00 : f32
    %696 = vector.broadcast %cst_129 : f32 to vector<2x64xf32>
    %697 = arith.addf %696, %695 : vector<2x64xf32>
    %698 = arith.divf %696, %697 : vector<2x64xf32>
    %699 = arith.mulf %690, %668 : vector<2x64xf32>
    %700 = arith.mulf %684, %692 : vector<2x64xf32>
    %701 = arith.addf %699, %700 : vector<2x64xf32>
    %702 = math.tanh %701 : vector<2x64xf32>
    %703 = arith.mulf %698, %702 : vector<2x64xf32>
    %c6_130 = arith.constant 6 : index
    %c0_131 = arith.constant 0 : index
    %704 = vector.load %arg9[%c6_130, %c0_131] : memref<32x64xf32, #tpu.memory_space<vmem>>, vector<2x64xf32>
    tpu.vector_store %arg9[%c6_130, %c0_131], %703 {strides = array<i32>} : memref<32x64xf32, #tpu.memory_space<vmem>>, vector<2x64xf32>,
    %705 = vector.extract_strided_slice %570 {offsets = [8, 0], sizes = [2, 256], strides = [1, 1]} : vector<32x256xf32> to vector<2x256xf32>
    %706 = vector.extract_strided_slice %570 {offsets = [22, 0], sizes = [2, 256], strides = [1, 1]} : vector<32x256xf32> to vector<2x256xf32>
    %707 = vector.shape_cast %25 : vector<1x256xi1> to vector<1x256xi1>
    %708 = vector.broadcast %707 : vector<1x256xi1> to vector<2x256xi1>
    %709 = arith.select %708, %705, %706 : vector<2x256xi1>, vector<2x256xf32>
    %cst_132 = arith.constant dense<0.000000e+00> : vector<2x256xf32>
    %710 = tpu.matmul %703, %4, %cst_132 {dimension_numbers = #tpu.dot_dimension_numbers<[1], [0], [0], [1], [0, 0, 1, 1], [], []>} : vector<2x64xf32>, vector<64x256xf32>, vector<2x256xf32> -> vector<2x256xf32>
    %711 = arith.addf %709, %710 : vector<2x256xf32>
    %712 = vector.extract_strided_slice %711 {offsets = [0, 0], sizes = [2, 64], strides = [1, 1]} : vector<2x256xf32> to vector<2x64xf32>
    %713 = arith.negf %712 : vector<2x64xf32>
    %714 = math.exp %713 : vector<2x64xf32>
    %cst_133 = arith.constant 1.000000e+00 : f32
    %715 = vector.broadcast %cst_133 : f32 to vector<2x64xf32>
    %716 = arith.addf %715, %714 : vector<2x64xf32>
    %717 = arith.divf %715, %716 : vector<2x64xf32>
    %718 = vector.extract_strided_slice %711 {offsets = [0, 64], sizes = [2, 64], strides = [1, 1]} : vector<2x256xf32> to vector<2x64xf32>
    %719 = arith.negf %718 : vector<2x64xf32>
    %720 = math.exp %719 : vector<2x64xf32>
    %cst_134 = arith.constant 1.000000e+00 : f32
    %721 = vector.broadcast %cst_134 : f32 to vector<2x64xf32>
    %722 = arith.addf %721, %720 : vector<2x64xf32>
    %723 = arith.divf %721, %722 : vector<2x64xf32>
    %724 = vector.extract_strided_slice %711 {offsets = [0, 128], sizes = [2, 64], strides = [1, 1]} : vector<2x256xf32> to vector<2x64xf32>
    %725 = math.tanh %724 : vector<2x64xf32>
    %726 = vector.extract_strided_slice %711 {offsets = [0, 192], sizes = [2, 64], strides = [1, 1]} : vector<2x256xf32> to vector<2x64xf32>
    %727 = arith.negf %726 : vector<2x64xf32>
    %728 = math.exp %727 : vector<2x64xf32>
    %cst_135 = arith.constant 1.000000e+00 : f32
    %729 = vector.broadcast %cst_135 : f32 to vector<2x64xf32>
    %730 = arith.addf %729, %728 : vector<2x64xf32>
    %731 = arith.divf %729, %730 : vector<2x64xf32>
    %732 = arith.mulf %723, %701 : vector<2x64xf32>
    %733 = arith.mulf %717, %725 : vector<2x64xf32>
    %734 = arith.addf %732, %733 : vector<2x64xf32>
    %735 = math.tanh %734 : vector<2x64xf32>
    %736 = arith.mulf %731, %735 : vector<2x64xf32>
    %c8_136 = arith.constant 8 : index
    %c0_137 = arith.constant 0 : index
    %737 = vector.load %arg9[%c8_136, %c0_137] : memref<32x64xf32, #tpu.memory_space<vmem>>, vector<2x64xf32>
    tpu.vector_store %arg9[%c8_136, %c0_137], %736 {strides = array<i32>} : memref<32x64xf32, #tpu.memory_space<vmem>>, vector<2x64xf32>,
    %738 = vector.extract_strided_slice %570 {offsets = [10, 0], sizes = [2, 256], strides = [1, 1]} : vector<32x256xf32> to vector<2x256xf32>
    %739 = vector.extract_strided_slice %570 {offsets = [20, 0], sizes = [2, 256], strides = [1, 1]} : vector<32x256xf32> to vector<2x256xf32>
    %740 = vector.shape_cast %25 : vector<1x256xi1> to vector<1x256xi1>
    %741 = vector.broadcast %740 : vector<1x256xi1> to vector<2x256xi1>
    %742 = arith.select %741, %738, %739 : vector<2x256xi1>, vector<2x256xf32>
    %cst_138 = arith.constant dense<0.000000e+00> : vector<2x256xf32>
    %743 = tpu.matmul %736, %4, %cst_138 {dimension_numbers = #tpu.dot_dimension_numbers<[1], [0], [0], [1], [0, 0, 1, 1], [], []>} : vector<2x64xf32>, vector<64x256xf32>, vector<2x256xf32> -> vector<2x256xf32>
    %744 = arith.addf %742, %743 : vector<2x256xf32>
    %745 = vector.extract_strided_slice %744 {offsets = [0, 0], sizes = [2, 64], strides = [1, 1]} : vector<2x256xf32> to vector<2x64xf32>
    %746 = arith.negf %745 : vector<2x64xf32>
    %747 = math.exp %746 : vector<2x64xf32>
    %cst_139 = arith.constant 1.000000e+00 : f32
    %748 = vector.broadcast %cst_139 : f32 to vector<2x64xf32>
    %749 = arith.addf %748, %747 : vector<2x64xf32>
    %750 = arith.divf %748, %749 : vector<2x64xf32>
    %751 = vector.extract_strided_slice %744 {offsets = [0, 64], sizes = [2, 64], strides = [1, 1]} : vector<2x256xf32> to vector<2x64xf32>
    %752 = arith.negf %751 : vector<2x64xf32>
    %753 = math.exp %752 : vector<2x64xf32>
    %cst_140 = arith.constant 1.000000e+00 : f32
    %754 = vector.broadcast %cst_140 : f32 to vector<2x64xf32>
    %755 = arith.addf %754, %753 : vector<2x64xf32>
    %756 = arith.divf %754, %755 : vector<2x64xf32>
    %757 = vector.extract_strided_slice %744 {offsets = [0, 128], sizes = [2, 64], strides = [1, 1]} : vector<2x256xf32> to vector<2x64xf32>
    %758 = math.tanh %757 : vector<2x64xf32>
    %759 = vector.extract_strided_slice %744 {offsets = [0, 192], sizes = [2, 64], strides = [1, 1]} : vector<2x256xf32> to vector<2x64xf32>
    %760 = arith.negf %759 : vector<2x64xf32>
    %761 = math.exp %760 : vector<2x64xf32>
    %cst_141 = arith.constant 1.000000e+00 : f32
    %762 = vector.broadcast %cst_141 : f32 to vector<2x64xf32>
    %763 = arith.addf %762, %761 : vector<2x64xf32>
    %764 = arith.divf %762, %763 : vector<2x64xf32>
    %765 = arith.mulf %756, %734 : vector<2x64xf32>
    %766 = arith.mulf %750, %758 : vector<2x64xf32>
    %767 = arith.addf %765, %766 : vector<2x64xf32>
    %768 = math.tanh %767 : vector<2x64xf32>
    %769 = arith.mulf %764, %768 : vector<2x64xf32>
    %c10_142 = arith.constant 10 : index
    %c0_143 = arith.constant 0 : index
    %770 = vector.load %arg9[%c10_142, %c0_143] : memref<32x64xf32, #tpu.memory_space<vmem>>, vector<2x64xf32>
    tpu.vector_store %arg9[%c10_142, %c0_143], %769 {strides = array<i32>} : memref<32x64xf32, #tpu.memory_space<vmem>>, vector<2x64xf32>,
    %771 = vector.extract_strided_slice %570 {offsets = [12, 0], sizes = [2, 256], strides = [1, 1]} : vector<32x256xf32> to vector<2x256xf32>
    %772 = vector.extract_strided_slice %570 {offsets = [18, 0], sizes = [2, 256], strides = [1, 1]} : vector<32x256xf32> to vector<2x256xf32>
    %773 = vector.shape_cast %25 : vector<1x256xi1> to vector<1x256xi1>
    %774 = vector.broadcast %773 : vector<1x256xi1> to vector<2x256xi1>
    %775 = arith.select %774, %771, %772 : vector<2x256xi1>, vector<2x256xf32>
    %cst_144 = arith.constant dense<0.000000e+00> : vector<2x256xf32>
    %776 = tpu.matmul %769, %4, %cst_144 {dimension_numbers = #tpu.dot_dimension_numbers<[1], [0], [0], [1], [0, 0, 1, 1], [], []>} : vector<2x64xf32>, vector<64x256xf32>, vector<2x256xf32> -> vector<2x256xf32>
    %777 = arith.addf %775, %776 : vector<2x256xf32>
    %778 = vector.extract_strided_slice %777 {offsets = [0, 0], sizes = [2, 64], strides = [1, 1]} : vector<2x256xf32> to vector<2x64xf32>
    %779 = arith.negf %778 : vector<2x64xf32>
    %780 = math.exp %779 : vector<2x64xf32>
    %cst_145 = arith.constant 1.000000e+00 : f32
    %781 = vector.broadcast %cst_145 : f32 to vector<2x64xf32>
    %782 = arith.addf %781, %780 : vector<2x64xf32>
    %783 = arith.divf %781, %782 : vector<2x64xf32>
    %784 = vector.extract_strided_slice %777 {offsets = [0, 64], sizes = [2, 64], strides = [1, 1]} : vector<2x256xf32> to vector<2x64xf32>
    %785 = arith.negf %784 : vector<2x64xf32>
    %786 = math.exp %785 : vector<2x64xf32>
    %cst_146 = arith.constant 1.000000e+00 : f32
    %787 = vector.broadcast %cst_146 : f32 to vector<2x64xf32>
    %788 = arith.addf %787, %786 : vector<2x64xf32>
    %789 = arith.divf %787, %788 : vector<2x64xf32>
    %790 = vector.extract_strided_slice %777 {offsets = [0, 128], sizes = [2, 64], strides = [1, 1]} : vector<2x256xf32> to vector<2x64xf32>
    %791 = math.tanh %790 : vector<2x64xf32>
    %792 = vector.extract_strided_slice %777 {offsets = [0, 192], sizes = [2, 64], strides = [1, 1]} : vector<2x256xf32> to vector<2x64xf32>
    %793 = arith.negf %792 : vector<2x64xf32>
    %794 = math.exp %793 : vector<2x64xf32>
    %cst_147 = arith.constant 1.000000e+00 : f32
    %795 = vector.broadcast %cst_147 : f32 to vector<2x64xf32>
    %796 = arith.addf %795, %794 : vector<2x64xf32>
    %797 = arith.divf %795, %796 : vector<2x64xf32>
    %798 = arith.mulf %789, %767 : vector<2x64xf32>
    %799 = arith.mulf %783, %791 : vector<2x64xf32>
    %800 = arith.addf %798, %799 : vector<2x64xf32>
    %801 = math.tanh %800 : vector<2x64xf32>
    %802 = arith.mulf %797, %801 : vector<2x64xf32>
    %c12_148 = arith.constant 12 : index
    %c0_149 = arith.constant 0 : index
    %803 = vector.load %arg9[%c12_148, %c0_149] : memref<32x64xf32, #tpu.memory_space<vmem>>, vector<2x64xf32>
    tpu.vector_store %arg9[%c12_148, %c0_149], %802 {strides = array<i32>} : memref<32x64xf32, #tpu.memory_space<vmem>>, vector<2x64xf32>,
    %804 = vector.extract_strided_slice %570 {offsets = [14, 0], sizes = [2, 256], strides = [1, 1]} : vector<32x256xf32> to vector<2x256xf32>
    %805 = vector.extract_strided_slice %570 {offsets = [16, 0], sizes = [2, 256], strides = [1, 1]} : vector<32x256xf32> to vector<2x256xf32>
    %806 = vector.shape_cast %25 : vector<1x256xi1> to vector<1x256xi1>
    %807 = vector.broadcast %806 : vector<1x256xi1> to vector<2x256xi1>
    %808 = arith.select %807, %804, %805 : vector<2x256xi1>, vector<2x256xf32>
    %cst_150 = arith.constant dense<0.000000e+00> : vector<2x256xf32>
    %809 = tpu.matmul %802, %4, %cst_150 {dimension_numbers = #tpu.dot_dimension_numbers<[1], [0], [0], [1], [0, 0, 1, 1], [], []>} : vector<2x64xf32>, vector<64x256xf32>, vector<2x256xf32> -> vector<2x256xf32>
    %810 = arith.addf %808, %809 : vector<2x256xf32>
    %811 = vector.extract_strided_slice %810 {offsets = [0, 0], sizes = [2, 64], strides = [1, 1]} : vector<2x256xf32> to vector<2x64xf32>
    %812 = arith.negf %811 : vector<2x64xf32>
    %813 = math.exp %812 : vector<2x64xf32>
    %cst_151 = arith.constant 1.000000e+00 : f32
    %814 = vector.broadcast %cst_151 : f32 to vector<2x64xf32>
    %815 = arith.addf %814, %813 : vector<2x64xf32>
    %816 = arith.divf %814, %815 : vector<2x64xf32>
    %817 = vector.extract_strided_slice %810 {offsets = [0, 64], sizes = [2, 64], strides = [1, 1]} : vector<2x256xf32> to vector<2x64xf32>
    %818 = arith.negf %817 : vector<2x64xf32>
    %819 = math.exp %818 : vector<2x64xf32>
    %cst_152 = arith.constant 1.000000e+00 : f32
    %820 = vector.broadcast %cst_152 : f32 to vector<2x64xf32>
    %821 = arith.addf %820, %819 : vector<2x64xf32>
    %822 = arith.divf %820, %821 : vector<2x64xf32>
    %823 = vector.extract_strided_slice %810 {offsets = [0, 128], sizes = [2, 64], strides = [1, 1]} : vector<2x256xf32> to vector<2x64xf32>
    %824 = math.tanh %823 : vector<2x64xf32>
    %825 = vector.extract_strided_slice %810 {offsets = [0, 192], sizes = [2, 64], strides = [1, 1]} : vector<2x256xf32> to vector<2x64xf32>
    %826 = arith.negf %825 : vector<2x64xf32>
    %827 = math.exp %826 : vector<2x64xf32>
    %cst_153 = arith.constant 1.000000e+00 : f32
    %828 = vector.broadcast %cst_153 : f32 to vector<2x64xf32>
    %829 = arith.addf %828, %827 : vector<2x64xf32>
    %830 = arith.divf %828, %829 : vector<2x64xf32>
    %831 = arith.mulf %822, %800 : vector<2x64xf32>
    %832 = arith.mulf %816, %824 : vector<2x64xf32>
    %833 = arith.addf %831, %832 : vector<2x64xf32>
    %834 = math.tanh %833 : vector<2x64xf32>
    %835 = arith.mulf %830, %834 : vector<2x64xf32>
    %c14_154 = arith.constant 14 : index
    %c0_155 = arith.constant 0 : index
    %836 = vector.load %arg9[%c14_154, %c0_155] : memref<32x64xf32, #tpu.memory_space<vmem>>, vector<2x64xf32>
    tpu.vector_store %arg9[%c14_154, %c0_155], %835 {strides = array<i32>} : memref<32x64xf32, #tpu.memory_space<vmem>>, vector<2x64xf32>,
    %837 = vector.extract_strided_slice %570 {offsets = [16, 0], sizes = [2, 256], strides = [1, 1]} : vector<32x256xf32> to vector<2x256xf32>
    %838 = vector.extract_strided_slice %570 {offsets = [14, 0], sizes = [2, 256], strides = [1, 1]} : vector<32x256xf32> to vector<2x256xf32>
    %839 = vector.shape_cast %25 : vector<1x256xi1> to vector<1x256xi1>
    %840 = vector.broadcast %839 : vector<1x256xi1> to vector<2x256xi1>
    %841 = arith.select %840, %837, %838 : vector<2x256xi1>, vector<2x256xf32>
    %cst_156 = arith.constant dense<0.000000e+00> : vector<2x256xf32>
    %842 = tpu.matmul %835, %4, %cst_156 {dimension_numbers = #tpu.dot_dimension_numbers<[1], [0], [0], [1], [0, 0, 1, 1], [], []>} : vector<2x64xf32>, vector<64x256xf32>, vector<2x256xf32> -> vector<2x256xf32>
    %843 = arith.addf %841, %842 : vector<2x256xf32>
    %844 = vector.extract_strided_slice %843 {offsets = [0, 0], sizes = [2, 64], strides = [1, 1]} : vector<2x256xf32> to vector<2x64xf32>
    %845 = arith.negf %844 : vector<2x64xf32>
    %846 = math.exp %845 : vector<2x64xf32>
    %cst_157 = arith.constant 1.000000e+00 : f32
    %847 = vector.broadcast %cst_157 : f32 to vector<2x64xf32>
    %848 = arith.addf %847, %846 : vector<2x64xf32>
    %849 = arith.divf %847, %848 : vector<2x64xf32>
    %850 = vector.extract_strided_slice %843 {offsets = [0, 64], sizes = [2, 64], strides = [1, 1]} : vector<2x256xf32> to vector<2x64xf32>
    %851 = arith.negf %850 : vector<2x64xf32>
    %852 = math.exp %851 : vector<2x64xf32>
    %cst_158 = arith.constant 1.000000e+00 : f32
    %853 = vector.broadcast %cst_158 : f32 to vector<2x64xf32>
    %854 = arith.addf %853, %852 : vector<2x64xf32>
    %855 = arith.divf %853, %854 : vector<2x64xf32>
    %856 = vector.extract_strided_slice %843 {offsets = [0, 128], sizes = [2, 64], strides = [1, 1]} : vector<2x256xf32> to vector<2x64xf32>
    %857 = math.tanh %856 : vector<2x64xf32>
    %858 = vector.extract_strided_slice %843 {offsets = [0, 192], sizes = [2, 64], strides = [1, 1]} : vector<2x256xf32> to vector<2x64xf32>
    %859 = arith.negf %858 : vector<2x64xf32>
    %860 = math.exp %859 : vector<2x64xf32>
    %cst_159 = arith.constant 1.000000e+00 : f32
    %861 = vector.broadcast %cst_159 : f32 to vector<2x64xf32>
    %862 = arith.addf %861, %860 : vector<2x64xf32>
    %863 = arith.divf %861, %862 : vector<2x64xf32>
    %864 = arith.mulf %855, %833 : vector<2x64xf32>
    %865 = arith.mulf %849, %857 : vector<2x64xf32>
    %866 = arith.addf %864, %865 : vector<2x64xf32>
    %867 = math.tanh %866 : vector<2x64xf32>
    %868 = arith.mulf %863, %867 : vector<2x64xf32>
    %c16_160 = arith.constant 16 : index
    %c0_161 = arith.constant 0 : index
    %869 = vector.load %arg9[%c16_160, %c0_161] : memref<32x64xf32, #tpu.memory_space<vmem>>, vector<2x64xf32>
    tpu.vector_store %arg9[%c16_160, %c0_161], %868 {strides = array<i32>} : memref<32x64xf32, #tpu.memory_space<vmem>>, vector<2x64xf32>,
    %870 = vector.extract_strided_slice %570 {offsets = [18, 0], sizes = [2, 256], strides = [1, 1]} : vector<32x256xf32> to vector<2x256xf32>
    %871 = vector.extract_strided_slice %570 {offsets = [12, 0], sizes = [2, 256], strides = [1, 1]} : vector<32x256xf32> to vector<2x256xf32>
    %872 = vector.shape_cast %25 : vector<1x256xi1> to vector<1x256xi1>
    %873 = vector.broadcast %872 : vector<1x256xi1> to vector<2x256xi1>
    %874 = arith.select %873, %870, %871 : vector<2x256xi1>, vector<2x256xf32>
    %cst_162 = arith.constant dense<0.000000e+00> : vector<2x256xf32>
    %875 = tpu.matmul %868, %4, %cst_162 {dimension_numbers = #tpu.dot_dimension_numbers<[1], [0], [0], [1], [0, 0, 1, 1], [], []>} : vector<2x64xf32>, vector<64x256xf32>, vector<2x256xf32> -> vector<2x256xf32>
    %876 = arith.addf %874, %875 : vector<2x256xf32>
    %877 = vector.extract_strided_slice %876 {offsets = [0, 0], sizes = [2, 64], strides = [1, 1]} : vector<2x256xf32> to vector<2x64xf32>
    %878 = arith.negf %877 : vector<2x64xf32>
    %879 = math.exp %878 : vector<2x64xf32>
    %cst_163 = arith.constant 1.000000e+00 : f32
    %880 = vector.broadcast %cst_163 : f32 to vector<2x64xf32>
    %881 = arith.addf %880, %879 : vector<2x64xf32>
    %882 = arith.divf %880, %881 : vector<2x64xf32>
    %883 = vector.extract_strided_slice %876 {offsets = [0, 64], sizes = [2, 64], strides = [1, 1]} : vector<2x256xf32> to vector<2x64xf32>
    %884 = arith.negf %883 : vector<2x64xf32>
    %885 = math.exp %884 : vector<2x64xf32>
    %cst_164 = arith.constant 1.000000e+00 : f32
    %886 = vector.broadcast %cst_164 : f32 to vector<2x64xf32>
    %887 = arith.addf %886, %885 : vector<2x64xf32>
    %888 = arith.divf %886, %887 : vector<2x64xf32>
    %889 = vector.extract_strided_slice %876 {offsets = [0, 128], sizes = [2, 64], strides = [1, 1]} : vector<2x256xf32> to vector<2x64xf32>
    %890 = math.tanh %889 : vector<2x64xf32>
    %891 = vector.extract_strided_slice %876 {offsets = [0, 192], sizes = [2, 64], strides = [1, 1]} : vector<2x256xf32> to vector<2x64xf32>
    %892 = arith.negf %891 : vector<2x64xf32>
    %893 = math.exp %892 : vector<2x64xf32>
    %cst_165 = arith.constant 1.000000e+00 : f32
    %894 = vector.broadcast %cst_165 : f32 to vector<2x64xf32>
    %895 = arith.addf %894, %893 : vector<2x64xf32>
    %896 = arith.divf %894, %895 : vector<2x64xf32>
    %897 = arith.mulf %888, %866 : vector<2x64xf32>
    %898 = arith.mulf %882, %890 : vector<2x64xf32>
    %899 = arith.addf %897, %898 : vector<2x64xf32>
    %900 = math.tanh %899 : vector<2x64xf32>
    %901 = arith.mulf %896, %900 : vector<2x64xf32>
    %c18_166 = arith.constant 18 : index
    %c0_167 = arith.constant 0 : index
    %902 = vector.load %arg9[%c18_166, %c0_167] : memref<32x64xf32, #tpu.memory_space<vmem>>, vector<2x64xf32>
    tpu.vector_store %arg9[%c18_166, %c0_167], %901 {strides = array<i32>} : memref<32x64xf32, #tpu.memory_space<vmem>>, vector<2x64xf32>,
    %903 = vector.extract_strided_slice %570 {offsets = [20, 0], sizes = [2, 256], strides = [1, 1]} : vector<32x256xf32> to vector<2x256xf32>
    %904 = vector.extract_strided_slice %570 {offsets = [10, 0], sizes = [2, 256], strides = [1, 1]} : vector<32x256xf32> to vector<2x256xf32>
    %905 = vector.shape_cast %25 : vector<1x256xi1> to vector<1x256xi1>
    %906 = vector.broadcast %905 : vector<1x256xi1> to vector<2x256xi1>
    %907 = arith.select %906, %903, %904 : vector<2x256xi1>, vector<2x256xf32>
    %cst_168 = arith.constant dense<0.000000e+00> : vector<2x256xf32>
    %908 = tpu.matmul %901, %4, %cst_168 {dimension_numbers = #tpu.dot_dimension_numbers<[1], [0], [0], [1], [0, 0, 1, 1], [], []>} : vector<2x64xf32>, vector<64x256xf32>, vector<2x256xf32> -> vector<2x256xf32>
    %909 = arith.addf %907, %908 : vector<2x256xf32>
    %910 = vector.extract_strided_slice %909 {offsets = [0, 0], sizes = [2, 64], strides = [1, 1]} : vector<2x256xf32> to vector<2x64xf32>
    %911 = arith.negf %910 : vector<2x64xf32>
    %912 = math.exp %911 : vector<2x64xf32>
    %cst_169 = arith.constant 1.000000e+00 : f32
    %913 = vector.broadcast %cst_169 : f32 to vector<2x64xf32>
    %914 = arith.addf %913, %912 : vector<2x64xf32>
    %915 = arith.divf %913, %914 : vector<2x64xf32>
    %916 = vector.extract_strided_slice %909 {offsets = [0, 64], sizes = [2, 64], strides = [1, 1]} : vector<2x256xf32> to vector<2x64xf32>
    %917 = arith.negf %916 : vector<2x64xf32>
    %918 = math.exp %917 : vector<2x64xf32>
    %cst_170 = arith.constant 1.000000e+00 : f32
    %919 = vector.broadcast %cst_170 : f32 to vector<2x64xf32>
    %920 = arith.addf %919, %918 : vector<2x64xf32>
    %921 = arith.divf %919, %920 : vector<2x64xf32>
    %922 = vector.extract_strided_slice %909 {offsets = [0, 128], sizes = [2, 64], strides = [1, 1]} : vector<2x256xf32> to vector<2x64xf32>
    %923 = math.tanh %922 : vector<2x64xf32>
    %924 = vector.extract_strided_slice %909 {offsets = [0, 192], sizes = [2, 64], strides = [1, 1]} : vector<2x256xf32> to vector<2x64xf32>
    %925 = arith.negf %924 : vector<2x64xf32>
    %926 = math.exp %925 : vector<2x64xf32>
    %cst_171 = arith.constant 1.000000e+00 : f32
    %927 = vector.broadcast %cst_171 : f32 to vector<2x64xf32>
    %928 = arith.addf %927, %926 : vector<2x64xf32>
    %929 = arith.divf %927, %928 : vector<2x64xf32>
    %930 = arith.mulf %921, %899 : vector<2x64xf32>
    %931 = arith.mulf %915, %923 : vector<2x64xf32>
    %932 = arith.addf %930, %931 : vector<2x64xf32>
    %933 = math.tanh %932 : vector<2x64xf32>
    %934 = arith.mulf %929, %933 : vector<2x64xf32>
    %c20_172 = arith.constant 20 : index
    %c0_173 = arith.constant 0 : index
    %935 = vector.load %arg9[%c20_172, %c0_173] : memref<32x64xf32, #tpu.memory_space<vmem>>, vector<2x64xf32>
    tpu.vector_store %arg9[%c20_172, %c0_173], %934 {strides = array<i32>} : memref<32x64xf32, #tpu.memory_space<vmem>>, vector<2x64xf32>,
    %936 = vector.extract_strided_slice %570 {offsets = [22, 0], sizes = [2, 256], strides = [1, 1]} : vector<32x256xf32> to vector<2x256xf32>
    %937 = vector.extract_strided_slice %570 {offsets = [8, 0], sizes = [2, 256], strides = [1, 1]} : vector<32x256xf32> to vector<2x256xf32>
    %938 = vector.shape_cast %25 : vector<1x256xi1> to vector<1x256xi1>
    %939 = vector.broadcast %938 : vector<1x256xi1> to vector<2x256xi1>
    %940 = arith.select %939, %936, %937 : vector<2x256xi1>, vector<2x256xf32>
    %cst_174 = arith.constant dense<0.000000e+00> : vector<2x256xf32>
    %941 = tpu.matmul %934, %4, %cst_174 {dimension_numbers = #tpu.dot_dimension_numbers<[1], [0], [0], [1], [0, 0, 1, 1], [], []>} : vector<2x64xf32>, vector<64x256xf32>, vector<2x256xf32> -> vector<2x256xf32>
    %942 = arith.addf %940, %941 : vector<2x256xf32>
    %943 = vector.extract_strided_slice %942 {offsets = [0, 0], sizes = [2, 64], strides = [1, 1]} : vector<2x256xf32> to vector<2x64xf32>
    %944 = arith.negf %943 : vector<2x64xf32>
    %945 = math.exp %944 : vector<2x64xf32>
    %cst_175 = arith.constant 1.000000e+00 : f32
    %946 = vector.broadcast %cst_175 : f32 to vector<2x64xf32>
    %947 = arith.addf %946, %945 : vector<2x64xf32>
    %948 = arith.divf %946, %947 : vector<2x64xf32>
    %949 = vector.extract_strided_slice %942 {offsets = [0, 64], sizes = [2, 64], strides = [1, 1]} : vector<2x256xf32> to vector<2x64xf32>
    %950 = arith.negf %949 : vector<2x64xf32>
    %951 = math.exp %950 : vector<2x64xf32>
    %cst_176 = arith.constant 1.000000e+00 : f32
    %952 = vector.broadcast %cst_176 : f32 to vector<2x64xf32>
    %953 = arith.addf %952, %951 : vector<2x64xf32>
    %954 = arith.divf %952, %953 : vector<2x64xf32>
    %955 = vector.extract_strided_slice %942 {offsets = [0, 128], sizes = [2, 64], strides = [1, 1]} : vector<2x256xf32> to vector<2x64xf32>
    %956 = math.tanh %955 : vector<2x64xf32>
    %957 = vector.extract_strided_slice %942 {offsets = [0, 192], sizes = [2, 64], strides = [1, 1]} : vector<2x256xf32> to vector<2x64xf32>
    %958 = arith.negf %957 : vector<2x64xf32>
    %959 = math.exp %958 : vector<2x64xf32>
    %cst_177 = arith.constant 1.000000e+00 : f32
    %960 = vector.broadcast %cst_177 : f32 to vector<2x64xf32>
    %961 = arith.addf %960, %959 : vector<2x64xf32>
    %962 = arith.divf %960, %961 : vector<2x64xf32>
    %963 = arith.mulf %954, %932 : vector<2x64xf32>
    %964 = arith.mulf %948, %956 : vector<2x64xf32>
    %965 = arith.addf %963, %964 : vector<2x64xf32>
    %966 = math.tanh %965 : vector<2x64xf32>
    %967 = arith.mulf %962, %966 : vector<2x64xf32>
    %c22_178 = arith.constant 22 : index
    %c0_179 = arith.constant 0 : index
    %968 = vector.load %arg9[%c22_178, %c0_179] : memref<32x64xf32, #tpu.memory_space<vmem>>, vector<2x64xf32>
    tpu.vector_store %arg9[%c22_178, %c0_179], %967 {strides = array<i32>} : memref<32x64xf32, #tpu.memory_space<vmem>>, vector<2x64xf32>,
    %969 = vector.extract_strided_slice %570 {offsets = [24, 0], sizes = [2, 256], strides = [1, 1]} : vector<32x256xf32> to vector<2x256xf32>
    %970 = vector.extract_strided_slice %570 {offsets = [6, 0], sizes = [2, 256], strides = [1, 1]} : vector<32x256xf32> to vector<2x256xf32>
    %971 = vector.shape_cast %25 : vector<1x256xi1> to vector<1x256xi1>
    %972 = vector.broadcast %971 : vector<1x256xi1> to vector<2x256xi1>
    %973 = arith.select %972, %969, %970 : vector<2x256xi1>, vector<2x256xf32>
    %cst_180 = arith.constant dense<0.000000e+00> : vector<2x256xf32>
    %974 = tpu.matmul %967, %4, %cst_180 {dimension_numbers = #tpu.dot_dimension_numbers<[1], [0], [0], [1], [0, 0, 1, 1], [], []>} : vector<2x64xf32>, vector<64x256xf32>, vector<2x256xf32> -> vector<2x256xf32>
    %975 = arith.addf %973, %974 : vector<2x256xf32>
    %976 = vector.extract_strided_slice %975 {offsets = [0, 0], sizes = [2, 64], strides = [1, 1]} : vector<2x256xf32> to vector<2x64xf32>
    %977 = arith.negf %976 : vector<2x64xf32>
    %978 = math.exp %977 : vector<2x64xf32>
    %cst_181 = arith.constant 1.000000e+00 : f32
    %979 = vector.broadcast %cst_181 : f32 to vector<2x64xf32>
    %980 = arith.addf %979, %978 : vector<2x64xf32>
    %981 = arith.divf %979, %980 : vector<2x64xf32>
    %982 = vector.extract_strided_slice %975 {offsets = [0, 64], sizes = [2, 64], strides = [1, 1]} : vector<2x256xf32> to vector<2x64xf32>
    %983 = arith.negf %982 : vector<2x64xf32>
    %984 = math.exp %983 : vector<2x64xf32>
    %cst_182 = arith.constant 1.000000e+00 : f32
    %985 = vector.broadcast %cst_182 : f32 to vector<2x64xf32>
    %986 = arith.addf %985, %984 : vector<2x64xf32>
    %987 = arith.divf %985, %986 : vector<2x64xf32>
    %988 = vector.extract_strided_slice %975 {offsets = [0, 128], sizes = [2, 64], strides = [1, 1]} : vector<2x256xf32> to vector<2x64xf32>
    %989 = math.tanh %988 : vector<2x64xf32>
    %990 = vector.extract_strided_slice %975 {offsets = [0, 192], sizes = [2, 64], strides = [1, 1]} : vector<2x256xf32> to vector<2x64xf32>
    %991 = arith.negf %990 : vector<2x64xf32>
    %992 = math.exp %991 : vector<2x64xf32>
    %cst_183 = arith.constant 1.000000e+00 : f32
    %993 = vector.broadcast %cst_183 : f32 to vector<2x64xf32>
    %994 = arith.addf %993, %992 : vector<2x64xf32>
    %995 = arith.divf %993, %994 : vector<2x64xf32>
    %996 = arith.mulf %987, %965 : vector<2x64xf32>
    %997 = arith.mulf %981, %989 : vector<2x64xf32>
    %998 = arith.addf %996, %997 : vector<2x64xf32>
    %999 = math.tanh %998 : vector<2x64xf32>
    %1000 = arith.mulf %995, %999 : vector<2x64xf32>
    %c24_184 = arith.constant 24 : index
    %c0_185 = arith.constant 0 : index
    %1001 = vector.load %arg9[%c24_184, %c0_185] : memref<32x64xf32, #tpu.memory_space<vmem>>, vector<2x64xf32>
    tpu.vector_store %arg9[%c24_184, %c0_185], %1000 {strides = array<i32>} : memref<32x64xf32, #tpu.memory_space<vmem>>, vector<2x64xf32>,
    %1002 = vector.extract_strided_slice %570 {offsets = [26, 0], sizes = [2, 256], strides = [1, 1]} : vector<32x256xf32> to vector<2x256xf32>
    %1003 = vector.extract_strided_slice %570 {offsets = [4, 0], sizes = [2, 256], strides = [1, 1]} : vector<32x256xf32> to vector<2x256xf32>
    %1004 = vector.shape_cast %25 : vector<1x256xi1> to vector<1x256xi1>
    %1005 = vector.broadcast %1004 : vector<1x256xi1> to vector<2x256xi1>
    %1006 = arith.select %1005, %1002, %1003 : vector<2x256xi1>, vector<2x256xf32>
    %cst_186 = arith.constant dense<0.000000e+00> : vector<2x256xf32>
    %1007 = tpu.matmul %1000, %4, %cst_186 {dimension_numbers = #tpu.dot_dimension_numbers<[1], [0], [0], [1], [0, 0, 1, 1], [], []>} : vector<2x64xf32>, vector<64x256xf32>, vector<2x256xf32> -> vector<2x256xf32>
    %1008 = arith.addf %1006, %1007 : vector<2x256xf32>
    %1009 = vector.extract_strided_slice %1008 {offsets = [0, 0], sizes = [2, 64], strides = [1, 1]} : vector<2x256xf32> to vector<2x64xf32>
    %1010 = arith.negf %1009 : vector<2x64xf32>
    %1011 = math.exp %1010 : vector<2x64xf32>
    %cst_187 = arith.constant 1.000000e+00 : f32
    %1012 = vector.broadcast %cst_187 : f32 to vector<2x64xf32>
    %1013 = arith.addf %1012, %1011 : vector<2x64xf32>
    %1014 = arith.divf %1012, %1013 : vector<2x64xf32>
    %1015 = vector.extract_strided_slice %1008 {offsets = [0, 64], sizes = [2, 64], strides = [1, 1]} : vector<2x256xf32> to vector<2x64xf32>
    %1016 = arith.negf %1015 : vector<2x64xf32>
    %1017 = math.exp %1016 : vector<2x64xf32>
    %cst_188 = arith.constant 1.000000e+00 : f32
    %1018 = vector.broadcast %cst_188 : f32 to vector<2x64xf32>
    %1019 = arith.addf %1018, %1017 : vector<2x64xf32>
    %1020 = arith.divf %1018, %1019 : vector<2x64xf32>
    %1021 = vector.extract_strided_slice %1008 {offsets = [0, 128], sizes = [2, 64], strides = [1, 1]} : vector<2x256xf32> to vector<2x64xf32>
    %1022 = math.tanh %1021 : vector<2x64xf32>
    %1023 = vector.extract_strided_slice %1008 {offsets = [0, 192], sizes = [2, 64], strides = [1, 1]} : vector<2x256xf32> to vector<2x64xf32>
    %1024 = arith.negf %1023 : vector<2x64xf32>
    %1025 = math.exp %1024 : vector<2x64xf32>
    %cst_189 = arith.constant 1.000000e+00 : f32
    %1026 = vector.broadcast %cst_189 : f32 to vector<2x64xf32>
    %1027 = arith.addf %1026, %1025 : vector<2x64xf32>
    %1028 = arith.divf %1026, %1027 : vector<2x64xf32>
    %1029 = arith.mulf %1020, %998 : vector<2x64xf32>
    %1030 = arith.mulf %1014, %1022 : vector<2x64xf32>
    %1031 = arith.addf %1029, %1030 : vector<2x64xf32>
    %1032 = math.tanh %1031 : vector<2x64xf32>
    %1033 = arith.mulf %1028, %1032 : vector<2x64xf32>
    %c26_190 = arith.constant 26 : index
    %c0_191 = arith.constant 0 : index
    %1034 = vector.load %arg9[%c26_190, %c0_191] : memref<32x64xf32, #tpu.memory_space<vmem>>, vector<2x64xf32>
    tpu.vector_store %arg9[%c26_190, %c0_191], %1033 {strides = array<i32>} : memref<32x64xf32, #tpu.memory_space<vmem>>, vector<2x64xf32>,
    %1035 = vector.extract_strided_slice %570 {offsets = [28, 0], sizes = [2, 256], strides = [1, 1]} : vector<32x256xf32> to vector<2x256xf32>
    %1036 = vector.extract_strided_slice %570 {offsets = [2, 0], sizes = [2, 256], strides = [1, 1]} : vector<32x256xf32> to vector<2x256xf32>
    %1037 = vector.shape_cast %25 : vector<1x256xi1> to vector<1x256xi1>
    %1038 = vector.broadcast %1037 : vector<1x256xi1> to vector<2x256xi1>
    %1039 = arith.select %1038, %1035, %1036 : vector<2x256xi1>, vector<2x256xf32>
    %cst_192 = arith.constant dense<0.000000e+00> : vector<2x256xf32>
    %1040 = tpu.matmul %1033, %4, %cst_192 {dimension_numbers = #tpu.dot_dimension_numbers<[1], [0], [0], [1], [0, 0, 1, 1], [], []>} : vector<2x64xf32>, vector<64x256xf32>, vector<2x256xf32> -> vector<2x256xf32>
    %1041 = arith.addf %1039, %1040 : vector<2x256xf32>
    %1042 = vector.extract_strided_slice %1041 {offsets = [0, 0], sizes = [2, 64], strides = [1, 1]} : vector<2x256xf32> to vector<2x64xf32>
    %1043 = arith.negf %1042 : vector<2x64xf32>
    %1044 = math.exp %1043 : vector<2x64xf32>
    %cst_193 = arith.constant 1.000000e+00 : f32
    %1045 = vector.broadcast %cst_193 : f32 to vector<2x64xf32>
    %1046 = arith.addf %1045, %1044 : vector<2x64xf32>
    %1047 = arith.divf %1045, %1046 : vector<2x64xf32>
    %1048 = vector.extract_strided_slice %1041 {offsets = [0, 64], sizes = [2, 64], strides = [1, 1]} : vector<2x256xf32> to vector<2x64xf32>
    %1049 = arith.negf %1048 : vector<2x64xf32>
    %1050 = math.exp %1049 : vector<2x64xf32>
    %cst_194 = arith.constant 1.000000e+00 : f32
    %1051 = vector.broadcast %cst_194 : f32 to vector<2x64xf32>
    %1052 = arith.addf %1051, %1050 : vector<2x64xf32>
    %1053 = arith.divf %1051, %1052 : vector<2x64xf32>
    %1054 = vector.extract_strided_slice %1041 {offsets = [0, 128], sizes = [2, 64], strides = [1, 1]} : vector<2x256xf32> to vector<2x64xf32>
    %1055 = math.tanh %1054 : vector<2x64xf32>
    %1056 = vector.extract_strided_slice %1041 {offsets = [0, 192], sizes = [2, 64], strides = [1, 1]} : vector<2x256xf32> to vector<2x64xf32>
    %1057 = arith.negf %1056 : vector<2x64xf32>
    %1058 = math.exp %1057 : vector<2x64xf32>
    %cst_195 = arith.constant 1.000000e+00 : f32
    %1059 = vector.broadcast %cst_195 : f32 to vector<2x64xf32>
    %1060 = arith.addf %1059, %1058 : vector<2x64xf32>
    %1061 = arith.divf %1059, %1060 : vector<2x64xf32>
    %1062 = arith.mulf %1053, %1031 : vector<2x64xf32>
    %1063 = arith.mulf %1047, %1055 : vector<2x64xf32>
    %1064 = arith.addf %1062, %1063 : vector<2x64xf32>
    %1065 = math.tanh %1064 : vector<2x64xf32>
    %1066 = arith.mulf %1061, %1065 : vector<2x64xf32>
    %c28_196 = arith.constant 28 : index
    %c0_197 = arith.constant 0 : index
    %1067 = vector.load %arg9[%c28_196, %c0_197] : memref<32x64xf32, #tpu.memory_space<vmem>>, vector<2x64xf32>
    tpu.vector_store %arg9[%c28_196, %c0_197], %1066 {strides = array<i32>} : memref<32x64xf32, #tpu.memory_space<vmem>>, vector<2x64xf32>,
    %1068 = vector.extract_strided_slice %570 {offsets = [30, 0], sizes = [2, 256], strides = [1, 1]} : vector<32x256xf32> to vector<2x256xf32>
    %1069 = vector.extract_strided_slice %570 {offsets = [0, 0], sizes = [2, 256], strides = [1, 1]} : vector<32x256xf32> to vector<2x256xf32>
    %1070 = vector.shape_cast %25 : vector<1x256xi1> to vector<1x256xi1>
    %1071 = vector.broadcast %1070 : vector<1x256xi1> to vector<2x256xi1>
    %1072 = arith.select %1071, %1068, %1069 : vector<2x256xi1>, vector<2x256xf32>
    %cst_198 = arith.constant dense<0.000000e+00> : vector<2x256xf32>
    %1073 = tpu.matmul %1066, %4, %cst_198 {dimension_numbers = #tpu.dot_dimension_numbers<[1], [0], [0], [1], [0, 0, 1, 1], [], []>} : vector<2x64xf32>, vector<64x256xf32>, vector<2x256xf32> -> vector<2x256xf32>
    %1074 = arith.addf %1072, %1073 : vector<2x256xf32>
    %1075 = vector.extract_strided_slice %1074 {offsets = [0, 0], sizes = [2, 64], strides = [1, 1]} : vector<2x256xf32> to vector<2x64xf32>
    %1076 = arith.negf %1075 : vector<2x64xf32>
    %1077 = math.exp %1076 : vector<2x64xf32>
    %cst_199 = arith.constant 1.000000e+00 : f32
    %1078 = vector.broadcast %cst_199 : f32 to vector<2x64xf32>
    %1079 = arith.addf %1078, %1077 : vector<2x64xf32>
    %1080 = arith.divf %1078, %1079 : vector<2x64xf32>
    %1081 = vector.extract_strided_slice %1074 {offsets = [0, 64], sizes = [2, 64], strides = [1, 1]} : vector<2x256xf32> to vector<2x64xf32>
    %1082 = arith.negf %1081 : vector<2x64xf32>
    %1083 = math.exp %1082 : vector<2x64xf32>
    %cst_200 = arith.constant 1.000000e+00 : f32
    %1084 = vector.broadcast %cst_200 : f32 to vector<2x64xf32>
    %1085 = arith.addf %1084, %1083 : vector<2x64xf32>
    %1086 = arith.divf %1084, %1085 : vector<2x64xf32>
    %1087 = vector.extract_strided_slice %1074 {offsets = [0, 128], sizes = [2, 64], strides = [1, 1]} : vector<2x256xf32> to vector<2x64xf32>
    %1088 = math.tanh %1087 : vector<2x64xf32>
    %1089 = vector.extract_strided_slice %1074 {offsets = [0, 192], sizes = [2, 64], strides = [1, 1]} : vector<2x256xf32> to vector<2x64xf32>
    %1090 = arith.negf %1089 : vector<2x64xf32>
    %1091 = math.exp %1090 : vector<2x64xf32>
    %cst_201 = arith.constant 1.000000e+00 : f32
    %1092 = vector.broadcast %cst_201 : f32 to vector<2x64xf32>
    %1093 = arith.addf %1092, %1091 : vector<2x64xf32>
    %1094 = arith.divf %1092, %1093 : vector<2x64xf32>
    %1095 = arith.mulf %1086, %1064 : vector<2x64xf32>
    %1096 = arith.mulf %1080, %1088 : vector<2x64xf32>
    %1097 = arith.addf %1095, %1096 : vector<2x64xf32>
    %1098 = math.tanh %1097 : vector<2x64xf32>
    %1099 = arith.mulf %1094, %1098 : vector<2x64xf32>
    %c30_202 = arith.constant 30 : index
    %c0_203 = arith.constant 0 : index
    %1100 = vector.load %arg9[%c30_202, %c0_203] : memref<32x64xf32, #tpu.memory_space<vmem>>, vector<2x64xf32>
    tpu.vector_store %arg9[%c30_202, %c0_203], %1099 {strides = array<i32>} : memref<32x64xf32, #tpu.memory_space<vmem>>, vector<2x64xf32>,
    %c0_204 = arith.constant 0 : index
    %c0_205 = arith.constant 0 : index
    %1101 = vector.load %arg9[%c0_204, %c0_205] : memref<32x64xf32, #tpu.memory_space<vmem>>, vector<32x64xf32>
    %cst_206 = arith.constant dense<0.000000e+00> : vector<32x64xf32>
    %1102 = tpu.matmul %6, %1101, %cst_206 {dimension_numbers = #tpu.dot_dimension_numbers<[1], [0], [0], [1], [0, 0, 1, 1], [], []>} : vector<32x32xf32>, vector<32x64xf32>, vector<32x64xf32> -> vector<32x64xf32>
    %1103 = vector.shape_cast %28 : vector<1x64xi1> to vector<1x64xi1>
    %1104 = vector.broadcast %1103 : vector<1x64xi1> to vector<32x64xi1>
    %1105 = arith.select %1104, %1101, %1102 : vector<32x64xi1>, vector<32x64xf32>
    %c0_207 = arith.constant 0 : index
    %c0_208 = arith.constant 0 : index
    %1106 = vector.load %arg8[%c0_207, %c0_208] : memref<32x64xf32, #tpu.memory_space<vmem>>, vector<32x64xf32>
    tpu.vector_store %arg8[%c0_207, %c0_208], %1105 {strides = array<i32>} : memref<32x64xf32, #tpu.memory_space<vmem>>, vector<32x64xf32>,
    return
  }
}

</mosaic_0001>

<llo_original>
// kernel: mynet_sequence_forward.3
$region0: #{mynet_sequence_forward.3}
  #allocation0 [shape = 'u32[]', space=smem, size = 0x4, offset = 0x4, fixed_abs, tag = 'smem constant byte address 0x4 - core index']
  #allocation1 [shape = 'u32[72,128]{1,0:T(1,128)}', space=vmem, size = 0x9000, scoped, tag = 'internal scratch']
  %s0 = inlined_call_operand.vmem [shape: f32[2,16,64], index: 0, kind: input, shape index: {}]
  %s1 = inlined_call_operand.vmem [shape: f32[1,128], index: 1, kind: input, shape index: {}]
  %s2 = inlined_call_operand.vmem [shape: f32[1,128], index: 2, kind: input, shape index: {}]
  %s3 = inlined_call_operand.vmem [shape: f32[1,128], index: 3, kind: input, shape index: {}]
  %s4 = inlined_call_operand.vmem [shape: f32[3,128,128], index: 4, kind: input, shape index: {}]
  %s5 = inlined_call_operand.hbm [shape: f32[1,128], index: 5, kind: input, shape index: {}]
  %s6 = inlined_call_operand.hbm [shape: f32[1,128], index: 6, kind: input, shape index: {}]
  %s7 = inlined_call_operand.hbm [shape: f32[1,128], index: 7, kind: input, shape index: {}]
  %s8 = inlined_call_operand.vmem [shape: f32[3,128,128], index: 8, kind: input, shape index: {}]
  %s9 = inlined_call_operand.hbm [shape: f32[1,64], index: 9, kind: input, shape index: {}]
  %s10 = inlined_call_operand.hbm [shape: f32[1,64], index: 10, kind: input, shape index: {}]
  %s11 = inlined_call_operand.vmem [shape: f32[3,64,64], index: 11, kind: input, shape index: {}]
  %s12 = inlined_call_operand.hbm [shape: f32[3,64,64], index: 12, kind: input, shape index: {}]
  %s13 = inlined_call_operand.hbm [shape: f32[1,64], index: 13, kind: input, shape index: {}]
  %s14 = inlined_call_operand.hbm [shape: f32[1,64], index: 14, kind: input, shape index: {}]
  %s15 = inlined_call_operand.hbm [shape: f32[3,64,64], index: 15, kind: input, shape index: {}]
  %s16 = inlined_call_operand.hbm [shape: f32[3,64,64], index: 16, kind: input, shape index: {}]
  %s17 = inlined_call_operand.hbm [shape: f32[1,128], index: 17, kind: input, shape index: {}]
  %s18 = inlined_call_operand.hbm [shape: f32[1,128], index: 18, kind: input, shape index: {}]
  %s19 = inlined_call_operand.hbm [shape: f32[1,128], index: 19, kind: input, shape index: {}]
  %s20 = inlined_call_operand.hbm [shape: f32[3,64,128], index: 20, kind: input, shape index: {}]
  %s21 = inlined_call_operand.vmem [shape: f32[3,128,128], index: 21, kind: input, shape index: {}]
  %s22 = inlined_call_operand.vmem [shape: f32[64,128], index: 22, kind: input, shape index: {}]
  %s23 = inlined_call_operand.hbm [shape: f32[1,128], index: 23, kind: input, shape index: {}]
  %s24 = inlined_call_operand.hbm [shape: f32[1,128], index: 24, kind: input, shape index: {}]
  %s25 = inlined_call_operand.vmem [shape: f32[3,128,128], index: 25, kind: input, shape index: {}]
  %s26 = inlined_call_operand.vmem [shape: f32[3,128,128], index: 26, kind: input, shape index: {}]
  %s27 = inlined_call_operand.hbm [shape: f32[2,2,128], index: 27, kind: output, shape index: {}]
  %s28 = sld [smem:[#allocation0]]
  $region205: #{mynet_sequence_forward.3} parent=0
    _
  %s30 = ssub.s32 1, %s28
  %s31 = scalar_select 0, %s30, %s28
  $region1: #{mynet_sequence_forward.3} parent=0
    #allocation2 [shape = 'u8[512]{0}', space=vmem, size = 0x400, scoped, tag = 'input window, operand 5, single buffered']
    #allocation3 [shape = 's32[2]{0}', space=sflag, size = 0x8, scoped, tag = 'scoped memory for mynet_sequence_forward.3']
    #allocation4 [shape = 's32[2]{0}', space=sflag, size = 0x8, scoped, tag = 'scoped memory for mynet_sequence_forward.3']
    #allocation5 [shape = 'u8[512]{0}', space=vmem, size = 0x400, scoped, tag = 'input window, operand 6, single buffered']
    #allocation6 [shape = 's32[1]{0}', space=sflag, size = 0x4, scoped, tag = 'scoped memory for mynet_sequence_forward.3']
    #allocation7 [shape = 'u8[512]{0}', space=vmem, size = 0x400, scoped, tag = 'input window, operand 7, single buffered']
    #allocation8 [shape = 'u8[512]{0}', space=vmem, size = 0x400, scoped, tag = 'input window, operand 9, single buffered']
    #allocation9 [shape = 's32[1]{0}', space=sflag, size = 0x4, scoped, tag = 'scoped memory for mynet_sequence_forward.3']
    #allocation10 [shape = 'u8[512]{0}', space=vmem, size = 0x400, scoped, tag = 'input window, operand 10, single buffered']
    #allocation11 [shape = 'u8[98304]{0}', space=vmem, size = 0x18000, scoped, tag = 'input window, operand 12, single buffered']
    #allocation12 [shape = 's32[1]{0}', space=sflag, size = 0x4, scoped, tag = 'scoped memory for mynet_sequence_forward.3']
    #allocation13 [shape = 'u8[512]{0}', space=vmem, size = 0x400, scoped, tag = 'input window, operand 13, single buffered']
    #allocation14 [shape = 'u8[512]{0}', space=vmem, size = 0x400, scoped, tag = 'input window, operand 14, single buffered']
    #allocation15 [shape = 's32[1]{0}', space=sflag, size = 0x4, scoped, tag = 'scoped memory for mynet_sequence_forward.3']
    #allocation16 [shape = 'u8[98304]{0}', space=vmem, size = 0x18000, scoped, tag = 'input window, operand 15, single buffered']
    #allocation17 [shape = 'u8[98304]{0}', space=vmem, size = 0x18000, scoped, tag = 'input window, operand 16, single buffered']
    #allocation18 [shape = 's32[1]{0}', space=sflag, size = 0x4, scoped, tag = 'scoped memory for mynet_sequence_forward.3']
    #allocation19 [shape = 'u8[512]{0}', space=vmem, size = 0x400, scoped, tag = 'input window, operand 17, single buffered']
    #allocation20 [shape = 'u8[512]{0}', space=vmem, size = 0x400, scoped, tag = 'input window, operand 18, single buffered']
    #allocation21 [shape = 's32[1]{0}', space=sflag, size = 0x4, scoped, tag = 'scoped memory for mynet_sequence_forward.3']
    #allocation22 [shape = 'u8[512]{0}', space=vmem, size = 0x400, scoped, tag = 'input window, operand 19, single buffered']
    #allocation23 [shape = 'u8[98304]{0}', space=vmem, size = 0x18000, scoped, tag = 'input window, operand 20, single buffered']
    #allocation24 [shape = 's32[1]{0}', space=sflag, size = 0x4, scoped, tag = 'scoped memory for mynet_sequence_forward.3']
    #allocation25 [shape = 'u8[512]{0}', space=vmem, size = 0x400, scoped, tag = 'input window, operand 23, single buffered']
    #allocation26 [shape = 'u8[512]{0}', space=vmem, size = 0x400, scoped, tag = 'input window, operand 24, single buffered']
    #allocation27 [shape = 's32[1]{0}', space=sflag, size = 0x4, scoped, tag = 'scoped memory for mynet_sequence_forward.3']
    #allocation28 [shape = 'u8[2048]{0}', space=vmem, size = 0x800, scoped, tag = 'output window, operand 0']
    %32 = vsyncpa [#allocation3], 0
    %33 = vsyncpa [#allocation6], 0
    %34 = vsyncpa [#allocation9], 0
    %35 = vsyncpa [#allocation12], 0
    %36 = vsyncpa [#allocation15], 0
    %37 = vsyncpa [#allocation18], 0
    %38 = vsyncpa [#allocation21], 0
    %39 = vsyncpa [#allocation24], 0
    %40 = vsyncpa [#allocation27], 0
    %41 = vsyncpa [#allocation4], 0
    %s42 = scalar_lea.sflag [#allocation4], 1
    %43 = vsyncpa %s42, 0
    loop: start=0, step=1, limit=4
    $region2: #{mynet_sequence_forward.3} parent=1 // loop_pre_header
      _
    $region3: #{mynet_sequence_forward.3} parent=1 // loop_header
      %s45 = sphi 0, %s49
      %p46 = scmp.ge.s32.totalorder %s45, 4
      %s55 = sphi 0, %s57
      %s58 = sphi 0, %s55
      %s59 = sphi 0, %s58
      %s75 = sphi 0, %s59
      %s79 = sphi 0, %s79
      %s81 = sphi 0, %s79
      %s82 = sphi 0, %s81
      %s96 = sphi 0, %s82
      %s100 = sphi 0, %s100
      %s102 = sphi 0, %s100
      %s103 = sphi 0, %s102
      %s117 = sphi 0, %s103
      %s121 = sphi 0, %s121
      %s123 = sphi 0, %s121
      %s124 = sphi 0, %s123
      %s138 = sphi 0, %s124
      %s142 = sphi 0, %s142
      %s144 = sphi 0, %s142
      %s145 = sphi 0, %s144
      %s159 = sphi 0, %s145
      %s163 = sphi 0, %s163
      %s165 = sphi 0, %s163
      %s166 = sphi 0, %s165
      %s180 = sphi 0, %s166
      %s184 = sphi 0, %s184
      %s186 = sphi 0, %s184
      %s187 = sphi 0, %s186
      %s201 = sphi 0, %s187
      %s205 = sphi 0, %s205
      %s207 = sphi 0, %s205
      %s208 = sphi 0, %s207
      %s222 = sphi 0, %s208
      %s226 = sphi 0, %s226
      %s228 = sphi 0, %s226
      %s229 = sphi 0, %s228
      %s243 = sphi 0, %s229
      %s247 = sphi 0, %s247
      %s249 = sphi 0, %s247
      %s250 = sphi 0, %s249
      %s264 = sphi 0, %s250
      %s268 = sphi 0, %s268
      %s270 = sphi 0, %s268
      %s271 = sphi 0, %s270
      %s285 = sphi 0, %s271
      %s289 = sphi 0, %s289
      %s291 = sphi 0, %s289
      %s292 = sphi 0, %s291
      %s306 = sphi 0, %s292
      %s310 = sphi 0, %s310
      %s312 = sphi 0, %s310
      %s313 = sphi 0, %s312
      %s327 = sphi 0, %s313
      %s331 = sphi 0, %s331
      %s333 = sphi 0, %s331
      %s334 = sphi 0, %s333
      %s348 = sphi 0, %s334
      %s352 = sphi 0, %s352
      %s354 = sphi 0, %s352
      %s355 = sphi 0, %s354
      %s369 = sphi 0, %s355
      %s373 = sphi 0, %s373
      %s375 = sphi 0, %s373
      %s376 = sphi 0, %s375
      %s390 = sphi 0, %s376
      %s394 = sphi 0, %s394
      %s396 = sphi 0, %s394
      %s397 = sphi 0, %s396
      %s411 = sphi 0, %s397
      %s415 = sphi 0, %s415
      %s417 = sphi 0, %s415
      %s418 = sphi 0, %s417
      %s432 = sphi 0, %s418
      %s436 = sphi 0, %s436
      %s438 = sphi 0, %s436
      %s439 = sphi 0, %s438
      %s453 = sphi 0, %s439
      %s457 = sphi 0, %s457
      %s459 = sphi 0, %s457
      %s460 = sphi 0, %s459
      %s474 = sphi 0, %s460
      %s478 = sphi 0, %s478
      %s480 = sphi 0, %s478
      %s481 = sphi 0, %s480
      %s495 = sphi 0, %s481
      %s499 = sphi 0, %s499
      %s501 = sphi 0, %s499
      %s502 = sphi 0, %s501
      %s516 = sphi 0, %s502
      %s520 = sphi 0, %s520
      %s522 = sphi 0, %s520
      %s523 = sphi 0, %s522
      %s537 = sphi 0, %s523
      %s541 = sphi 0, %s541
      %s543 = sphi 0, %s541
      %s544 = sphi 0, %s543
      %s558 = sphi 0, %s544
      %s562 = sphi 0, %s562
      %s564 = sphi 0, %s562
      %s565 = sphi 0, %s564
      %s579 = sphi 0, %s565
      %s583 = sphi 0, %s583
      %s585 = sphi 0, %s583
      %s586 = sphi 0, %s585
      %s600 = sphi 0, %s586
      %s604 = sphi 0, %s604
      %s606 = sphi 0, %s604
      %s607 = sphi 0, %s606
      %s621 = sphi 0, %s607
      %s627 = sphi 0, %s629
      %s630 = sphi 0, %s627
      %s631 = sphi 0, %s630
      %s647 = sphi 0, %s631
    $region4: #{mynet_sequence_forward.3} parent=1 // loop_header_branch
      %48 = sbr.rel (%p46) target = $region8
    $region5: #{mynet_sequence_forward.3} parent=1 // loop_body
      %s50 = ssub.s32 %s45, 1
      %s51 = ssub.s32 %s45, 2
      %s52 = sadd.s32 %s45, 1
      %s53 = ssub.s32 %s45, %s52
      %p54 = scmp.eq.s32.totalorder %s53, 0
      %s56 = sadd.s32 %s55, 1
      %s57 = scalar_select %p54, %s55, %s56
      %p60 = pneg %p54
      %p61 = scmp.eq.s32.totalorder %s45, 1
      %p62 = por %p60, %p61
      %p63 = scmp.ne.s32.totalorder %s55, %s58
      %p64 = scmp.eq.s32.totalorder %s45, 0
      %p65 = por %p63, %p64
      %p66 = scmp.ne.s32.totalorder %s55, %s58
      %p67 = scmp.eq.s32.totalorder %s50, 1
      %p68 = por %p66, %p67
      %p69 = scmp.ne.s32.totalorder %s58, %s59
      %p70 = scmp.eq.s32.totalorder %s50, 0
      %p71 = por %p69, %p70
      %p72 = scmp.ne.s32.totalorder %s58, %s59
      %p73 = scmp.eq.s32.totalorder %s51, 1
      %p74 = por %p72, %p73
      %p76 = scmp.ne.s32.totalorder %s59, %s75
      %p77 = scmp.eq.s32.totalorder %s51, 0
      %p78 = por %p76, %p77
      %s80 = sadd.s32 %s79, 1
      %p83 = scmp.eq.s32.totalorder %s45, 1
      %p84 = scmp.ne.s32.totalorder %s79, %s81
      %p85 = scmp.eq.s32.totalorder %s45, 0
      %p86 = por %p84, %p85
      %p87 = scmp.ne.s32.totalorder %s79, %s81
      %p88 = scmp.eq.s32.totalorder %s50, 1
      %p89 = por %p87, %p88
      %p90 = scmp.ne.s32.totalorder %s81, %s82
      %p91 = scmp.eq.s32.totalorder %s50, 0
      %p92 = por %p90, %p91
      %p93 = scmp.ne.s32.totalorder %s81, %s82
      %p94 = scmp.eq.s32.totalorder %s51, 1
      %p95 = por %p93, %p94
      %p97 = scmp.ne.s32.totalorder %s82, %s96
      %p98 = scmp.eq.s32.totalorder %s51, 0
      %p99 = por %p97, %p98
      %s101 = sadd.s32 %s100, 1
      %p104 = scmp.eq.s32.totalorder %s45, 1
      %p105 = scmp.ne.s32.totalorder %s100, %s102
      %p106 = scmp.eq.s32.totalorder %s45, 0
      %p107 = por %p105, %p106
      %p108 = scmp.ne.s32.totalorder %s100, %s102
      %p109 = scmp.eq.s32.totalorder %s50, 1
      %p110 = por %p108, %p109
      %p111 = scmp.ne.s32.totalorder %s102, %s103
      %p112 = scmp.eq.s32.totalorder %s50, 0
      %p113 = por %p111, %p112
      %p114 = scmp.ne.s32.totalorder %s102, %s103
      %p115 = scmp.eq.s32.totalorder %s51, 1
      %p116 = por %p114, %p115
      %p118 = scmp.ne.s32.totalorder %s103, %s117
      %p119 = scmp.eq.s32.totalorder %s51, 0
      %p120 = por %p118, %p119
      %s122 = sadd.s32 %s121, 1
      %p125 = scmp.eq.s32.totalorder %s45, 1
      %p126 = scmp.ne.s32.totalorder %s121, %s123
      %p127 = scmp.eq.s32.totalorder %s45, 0
      %p128 = por %p126, %p127
      %p129 = scmp.ne.s32.totalorder %s121, %s123
      %p130 = scmp.eq.s32.totalorder %s50, 1
      %p131 = por %p129, %p130
      %p132 = scmp.ne.s32.totalorder %s123, %s124
      %p133 = scmp.eq.s32.totalorder %s50, 0
      %p134 = por %p132, %p133
      %p135 = scmp.ne.s32.totalorder %s123, %s124
      %p136 = scmp.eq.s32.totalorder %s51, 1
      %p137 = por %p135, %p136
      %p139 = scmp.ne.s32.totalorder %s124, %s138
      %p140 = scmp.eq.s32.totalorder %s51, 0
      %p141 = por %p139, %p140
      %s143 = sadd.s32 %s142, 1
      %p146 = scmp.eq.s32.totalorder %s45, 1
      %p147 = scmp.ne.s32.totalorder %s142, %s144
      %p148 = scmp.eq.s32.totalorder %s45, 0
      %p149 = por %p147, %p148
      %p150 = scmp.ne.s32.totalorder %s142, %s144
      %p151 = scmp.eq.s32.totalorder %s50, 1
      %p152 = por %p150, %p151
      %p153 = scmp.ne.s32.totalorder %s144, %s145
      %p154 = scmp.eq.s32.totalorder %s50, 0
      %p155 = por %p153, %p154
      %p156 = scmp.ne.s32.totalorder %s144, %s145
      %p157 = scmp.eq.s32.totalorder %s51, 1
      %p158 = por %p156, %p157
      %p160 = scmp.ne.s32.totalorder %s145, %s159
      %p161 = scmp.eq.s32.totalorder %s51, 0
      %p162 = por %p160, %p161
      %s164 = sadd.s32 %s163, 1
      %p167 = scmp.eq.s32.totalorder %s45, 1
      %p168 = scmp.ne.s32.totalorder %s163, %s165
      %p169 = scmp.eq.s32.totalorder %s45, 0
      %p170 = por %p168, %p169
      %p171 = scmp.ne.s32.totalorder %s163, %s165
      %p172 = scmp.eq.s32.totalorder %s50, 1
      %p173 = por %p171, %p172
      %p174 = scmp.ne.s32.totalorder %s165, %s166
      %p175 = scmp.eq.s32.totalorder %s50, 0
      %p176 = por %p174, %p175
      %p177 = scmp.ne.s32.totalorder %s165, %s166
      %p178 = scmp.eq.s32.totalorder %s51, 1
      %p179 = por %p177, %p178
      %p181 = scmp.ne.s32.totalorder %s166, %s180
      %p182 = scmp.eq.s32.totalorder %s51, 0
      %p183 = por %p181, %p182
      %s185 = sadd.s32 %s184, 1
      %p188 = scmp.eq.s32.totalorder %s45, 1
      %p189 = scmp.ne.s32.totalorder %s184, %s186
      %p190 = scmp.eq.s32.totalorder %s45, 0
      %p191 = por %p189, %p190
      %p192 = scmp.ne.s32.totalorder %s184, %s186
      %p193 = scmp.eq.s32.totalorder %s50, 1
      %p194 = por %p192, %p193
      %p195 = scmp.ne.s32.totalorder %s186, %s187
      %p196 = scmp.eq.s32.totalorder %s50, 0
      %p197 = por %p195, %p196
      %p198 = scmp.ne.s32.totalorder %s186, %s187
      %p199 = scmp.eq.s32.totalorder %s51, 1
      %p200 = por %p198, %p199
      %p202 = scmp.ne.s32.totalorder %s187, %s201
      %p203 = scmp.eq.s32.totalorder %s51, 0
      %p204 = por %p202, %p203
      %s206 = sadd.s32 %s205, 1
      %p209 = scmp.eq.s32.totalorder %s45, 1
      %p210 = scmp.ne.s32.totalorder %s205, %s207
      %p211 = scmp.eq.s32.totalorder %s45, 0
      %p212 = por %p210, %p211
      %p213 = scmp.ne.s32.totalorder %s205, %s207
      %p214 = scmp.eq.s32.totalorder %s50, 1
      %p215 = por %p213, %p214
      %p216 = scmp.ne.s32.totalorder %s207, %s208
      %p217 = scmp.eq.s32.totalorder %s50, 0
      %p218 = por %p216, %p217
      %p219 = scmp.ne.s32.totalorder %s207, %s208
      %p220 = scmp.eq.s32.totalorder %s51, 1
      %p221 = por %p219, %p220
      %p223 = scmp.ne.s32.totalorder %s208, %s222
      %p224 = scmp.eq.s32.totalorder %s51, 0
      %p225 = por %p223, %p224
      %s227 = sadd.s32 %s226, 1
      %p230 = scmp.eq.s32.totalorder %s45, 1
      %p231 = scmp.ne.s32.totalorder %s226, %s228
      %p232 = scmp.eq.s32.totalorder %s45, 0
      %p233 = por %p231, %p232
      %p234 = scmp.ne.s32.totalorder %s226, %s228
      %p235 = scmp.eq.s32.totalorder %s50, 1
      %p236 = por %p234, %p235
      %p237 = scmp.ne.s32.totalorder %s228, %s229
      %p238 = scmp.eq.s32.totalorder %s50, 0
      %p239 = por %p237, %p238
      %p240 = scmp.ne.s32.totalorder %s228, %s229
      %p241 = scmp.eq.s32.totalorder %s51, 1
      %p242 = por %p240, %p241
      %p244 = scmp.ne.s32.totalorder %s229, %s243
      %p245 = scmp.eq.s32.totalorder %s51, 0
      %p246 = por %p244, %p245
      %s248 = sadd.s32 %s247, 1
      %p251 = scmp.eq.s32.totalorder %s45, 1
      %p252 = scmp.ne.s32.totalorder %s247, %s249
      %p253 = scmp.eq.s32.totalorder %s45, 0
      %p254 = por %p252, %p253
      %p255 = scmp.ne.s32.totalorder %s247, %s249
      %p256 = scmp.eq.s32.totalorder %s50, 1
      %p257 = por %p255, %p256
      %p258 = scmp.ne.s32.totalorder %s249, %s250
      %p259 = scmp.eq.s32.totalorder %s50, 0
      %p260 = por %p258, %p259
      %p261 = scmp.ne.s32.totalorder %s249, %s250
      %p262 = scmp.eq.s32.totalorder %s51, 1
      %p263 = por %p261, %p262
      %p265 = scmp.ne.s32.totalorder %s250, %s264
      %p266 = scmp.eq.s32.totalorder %s51, 0
      %p267 = por %p265, %p266
      %s269 = sadd.s32 %s268, 1
      %p272 = scmp.eq.s32.totalorder %s45, 1
      %p273 = scmp.ne.s32.totalorder %s268, %s270
      %p274 = scmp.eq.s32.totalorder %s45, 0
      %p275 = por %p273, %p274
      %p276 = scmp.ne.s32.totalorder %s268, %s270
      %p277 = scmp.eq.s32.totalorder %s50, 1
      %p278 = por %p276, %p277
      %p279 = scmp.ne.s32.totalorder %s270, %s271
      %p280 = scmp.eq.s32.totalorder %s50, 0
      %p281 = por %p279, %p280
      %p282 = scmp.ne.s32.totalorder %s270, %s271
      %p283 = scmp.eq.s32.totalorder %s51, 1
      %p284 = por %p282, %p283
      %p286 = scmp.ne.s32.totalorder %s271, %s285
      %p287 = scmp.eq.s32.totalorder %s51, 0
      %p288 = por %p286, %p287
      %s290 = sadd.s32 %s289, 1
      %p293 = scmp.eq.s32.totalorder %s45, 1
      %p294 = scmp.ne.s32.totalorder %s289, %s291
      %p295 = scmp.eq.s32.totalorder %s45, 0
      %p296 = por %p294, %p295
      %p297 = scmp.ne.s32.totalorder %s289, %s291
      %p298 = scmp.eq.s32.totalorder %s50, 1
      %p299 = por %p297, %p298
      %p300 = scmp.ne.s32.totalorder %s291, %s292
      %p301 = scmp.eq.s32.totalorder %s50, 0
      %p302 = por %p300, %p301
      %p303 = scmp.ne.s32.totalorder %s291, %s292
      %p304 = scmp.eq.s32.totalorder %s51, 1
      %p305 = por %p303, %p304
      %p307 = scmp.ne.s32.totalorder %s292, %s306
      %p308 = scmp.eq.s32.totalorder %s51, 0
      %p309 = por %p307, %p308
      %s311 = sadd.s32 %s310, 1
      %p314 = scmp.eq.s32.totalorder %s45, 1
      %p315 = scmp.ne.s32.totalorder %s310, %s312
      %p316 = scmp.eq.s32.totalorder %s45, 0
      %p317 = por %p315, %p316
      %p318 = scmp.ne.s32.totalorder %s310, %s312
      %p319 = scmp.eq.s32.totalorder %s50, 1
      %p320 = por %p318, %p319
      %p321 = scmp.ne.s32.totalorder %s312, %s313
      %p322 = scmp.eq.s32.totalorder %s50, 0
      %p323 = por %p321, %p322
      %p324 = scmp.ne.s32.totalorder %s312, %s313
      %p325 = scmp.eq.s32.totalorder %s51, 1
      %p326 = por %p324, %p325
      %p328 = scmp.ne.s32.totalorder %s313, %s327
      %p329 = scmp.eq.s32.totalorder %s51, 0
      %p330 = por %p328, %p329
      %s332 = sadd.s32 %s331, 1
      %p335 = scmp.eq.s32.totalorder %s45, 1
      %p336 = scmp.ne.s32.totalorder %s331, %s333
      %p337 = scmp.eq.s32.totalorder %s45, 0
      %p338 = por %p336, %p337
      %p339 = scmp.ne.s32.totalorder %s331, %s333
      %p340 = scmp.eq.s32.totalorder %s50, 1
      %p341 = por %p339, %p340
      %p342 = scmp.ne.s32.totalorder %s333, %s334
      %p343 = scmp.eq.s32.totalorder %s50, 0
      %p344 = por %p342, %p343
      %p345 = scmp.ne.s32.totalorder %s333, %s334
      %p346 = scmp.eq.s32.totalorder %s51, 1
      %p347 = por %p345, %p346
      %p349 = scmp.ne.s32.totalorder %s334, %s348
      %p350 = scmp.eq.s32.totalorder %s51, 0
      %p351 = por %p349, %p350
      %s353 = sadd.s32 %s352, 1
      %p356 = scmp.eq.s32.totalorder %s45, 1
      %p357 = scmp.ne.s32.totalorder %s352, %s354
      %p358 = scmp.eq.s32.totalorder %s45, 0
      %p359 = por %p357, %p358
      %p360 = scmp.ne.s32.totalorder %s352, %s354
      %p361 = scmp.eq.s32.totalorder %s50, 1
      %p362 = por %p360, %p361
      %p363 = scmp.ne.s32.totalorder %s354, %s355
      %p364 = scmp.eq.s32.totalorder %s50, 0
      %p365 = por %p363, %p364
      %p366 = scmp.ne.s32.totalorder %s354, %s355
      %p367 = scmp.eq.s32.totalorder %s51, 1
      %p368 = por %p366, %p367
      %p370 = scmp.ne.s32.totalorder %s355, %s369
      %p371 = scmp.eq.s32.totalorder %s51, 0
      %p372 = por %p370, %p371
      %s374 = sadd.s32 %s373, 1
      %p377 = scmp.eq.s32.totalorder %s45, 1
      %p378 = scmp.ne.s32.totalorder %s373, %s375
      %p379 = scmp.eq.s32.totalorder %s45, 0
      %p380 = por %p378, %p379
      %p381 = scmp.ne.s32.totalorder %s373, %s375
      %p382 = scmp.eq.s32.totalorder %s50, 1
      %p383 = por %p381, %p382
      %p384 = scmp.ne.s32.totalorder %s375, %s376
      %p385 = scmp.eq.s32.totalorder %s50, 0
      %p386 = por %p384, %p385
      %p387 = scmp.ne.s32.totalorder %s375, %s376
      %p388 = scmp.eq.s32.totalorder %s51, 1
      %p389 = por %p387, %p388
      %p391 = scmp.ne.s32.totalorder %s376, %s390
      %p392 = scmp.eq.s32.totalorder %s51, 0
      %p393 = por %p391, %p392
      %s395 = sadd.s32 %s394, 1
      %p398 = scmp.eq.s32.totalorder %s45, 1
      %p399 = scmp.ne.s32.totalorder %s394, %s396
      %p400 = scmp.eq.s32.totalorder %s45, 0
      %p401 = por %p399, %p400
      %p402 = scmp.ne.s32.totalorder %s394, %s396
      %p403 = scmp.eq.s32.totalorder %s50, 1
      %p404 = por %p402, %p403
      %p405 = scmp.ne.s32.totalorder %s396, %s397
      %p406 = scmp.eq.s32.totalorder %s50, 0
      %p407 = por %p405, %p406
      %p408 = scmp.ne.s32.totalorder %s396, %s397
      %p409 = scmp.eq.s32.totalorder %s51, 1
      %p410 = por %p408, %p409
      %p412 = scmp.ne.s32.totalorder %s397, %s411
      %p413 = scmp.eq.s32.totalorder %s51, 0
      %p414 = por %p412, %p413
      %s416 = sadd.s32 %s415, 1
      %p419 = scmp.eq.s32.totalorder %s45, 1
      %p420 = scmp.ne.s32.totalorder %s415, %s417
      %p421 = scmp.eq.s32.totalorder %s45, 0
      %p422 = por %p420, %p421
      %p423 = scmp.ne.s32.totalorder %s415, %s417
      %p424 = scmp.eq.s32.totalorder %s50, 1
      %p425 = por %p423, %p424
      %p426 = scmp.ne.s32.totalorder %s417, %s418
      %p427 = scmp.eq.s32.totalorder %s50, 0
      %p428 = por %p426, %p427
      %p429 = scmp.ne.s32.totalorder %s417, %s418
      %p430 = scmp.eq.s32.totalorder %s51, 1
      %p431 = por %p429, %p430
      %p433 = scmp.ne.s32.totalorder %s418, %s432
      %p434 = scmp.eq.s32.totalorder %s51, 0
      %p435 = por %p433, %p434
      %s437 = sadd.s32 %s436, 1
      %p440 = scmp.eq.s32.totalorder %s45, 1
      %p441 = scmp.ne.s32.totalorder %s436, %s438
      %p442 = scmp.eq.s32.totalorder %s45, 0
      %p443 = por %p441, %p442
      %p444 = scmp.ne.s32.totalorder %s436, %s438
      %p445 = scmp.eq.s32.totalorder %s50, 1
      %p446 = por %p444, %p445
      %p447 = scmp.ne.s32.totalorder %s438, %s439
      %p448 = scmp.eq.s32.totalorder %s50, 0
      %p449 = por %p447, %p448
      %p450 = scmp.ne.s32.totalorder %s438, %s439
      %p451 = scmp.eq.s32.totalorder %s51, 1
      %p452 = por %p450, %p451
      %p454 = scmp.ne.s32.totalorder %s439, %s453
      %p455 = scmp.eq.s32.totalorder %s51, 0
      %p456 = por %p454, %p455
      %s458 = sadd.s32 %s457, 1
      %p461 = scmp.eq.s32.totalorder %s45, 1
      %p462 = scmp.ne.s32.totalorder %s457, %s459
      %p463 = scmp.eq.s32.totalorder %s45, 0
      %p464 = por %p462, %p463
      %p465 = scmp.ne.s32.totalorder %s457, %s459
      %p466 = scmp.eq.s32.totalorder %s50, 1
      %p467 = por %p465, %p466
      %p468 = scmp.ne.s32.totalorder %s459, %s460
      %p469 = scmp.eq.s32.totalorder %s50, 0
      %p470 = por %p468, %p469
      %p471 = scmp.ne.s32.totalorder %s459, %s460
      %p472 = scmp.eq.s32.totalorder %s51, 1
      %p473 = por %p471, %p472
      %p475 = scmp.ne.s32.totalorder %s460, %s474
      %p476 = scmp.eq.s32.totalorder %s51, 0
      %p477 = por %p475, %p476
      %s479 = sadd.s32 %s478, 1
      %p482 = scmp.eq.s32.totalorder %s45, 1
      %p483 = scmp.ne.s32.totalorder %s478, %s480
      %p484 = scmp.eq.s32.totalorder %s45, 0
      %p485 = por %p483, %p484
      %p486 = scmp.ne.s32.totalorder %s478, %s480
      %p487 = scmp.eq.s32.totalorder %s50, 1
      %p488 = por %p486, %p487
      %p489 = scmp.ne.s32.totalorder %s480, %s481
      %p490 = scmp.eq.s32.totalorder %s50, 0
      %p491 = por %p489, %p490
      %p492 = scmp.ne.s32.totalorder %s480, %s481
      %p493 = scmp.eq.s32.totalorder %s51, 1
      %p494 = por %p492, %p493
      %p496 = scmp.ne.s32.totalorder %s481, %s495
      %p497 = scmp.eq.s32.totalorder %s51, 0
      %p498 = por %p496, %p497
      %s500 = sadd.s32 %s499, 1
      %p503 = scmp.eq.s32.totalorder %s45, 1
      %p504 = scmp.ne.s32.totalorder %s499, %s501
      %p505 = scmp.eq.s32.totalorder %s45, 0
      %p506 = por %p504, %p505
      %p507 = scmp.ne.s32.totalorder %s499, %s501
      %p508 = scmp.eq.s32.totalorder %s50, 1
      %p509 = por %p507, %p508
      %p510 = scmp.ne.s32.totalorder %s501, %s502
      %p511 = scmp.eq.s32.totalorder %s50, 0
      %p512 = por %p510, %p511
      %p513 = scmp.ne.s32.totalorder %s501, %s502
      %p514 = scmp.eq.s32.totalorder %s51, 1
      %p515 = por %p513, %p514
      %p517 = scmp.ne.s32.totalorder %s502, %s516
      %p518 = scmp.eq.s32.totalorder %s51, 0
      %p519 = por %p517, %p518
      %s521 = sadd.s32 %s520, 1
      %p524 = scmp.eq.s32.totalorder %s45, 1
      %p525 = scmp.ne.s32.totalorder %s520, %s522
      %p526 = scmp.eq.s32.totalorder %s45, 0
      %p527 = por %p525, %p526
      %p528 = scmp.ne.s32.totalorder %s520, %s522
      %p529 = scmp.eq.s32.totalorder %s50, 1
      %p530 = por %p528, %p529
      %p531 = scmp.ne.s32.totalorder %s522, %s523
      %p532 = scmp.eq.s32.totalorder %s50, 0
      %p533 = por %p531, %p532
      %p534 = scmp.ne.s32.totalorder %s522, %s523
      %p535 = scmp.eq.s32.totalorder %s51, 1
      %p536 = por %p534, %p535
      %p538 = scmp.ne.s32.totalorder %s523, %s537
      %p539 = scmp.eq.s32.totalorder %s51, 0
      %p540 = por %p538, %p539
      %s542 = sadd.s32 %s541, 1
      %p545 = scmp.eq.s32.totalorder %s45, 1
      %p546 = scmp.ne.s32.totalorder %s541, %s543
      %p547 = scmp.eq.s32.totalorder %s45, 0
      %p548 = por %p546, %p547
      %p549 = scmp.ne.s32.totalorder %s541, %s543
      %p550 = scmp.eq.s32.totalorder %s50, 1
      %p551 = por %p549, %p550
      %p552 = scmp.ne.s32.totalorder %s543, %s544
      %p553 = scmp.eq.s32.totalorder %s50, 0
      %p554 = por %p552, %p553
      %p555 = scmp.ne.s32.totalorder %s543, %s544
      %p556 = scmp.eq.s32.totalorder %s51, 1
      %p557 = por %p555, %p556
      %p559 = scmp.ne.s32.totalorder %s544, %s558
      %p560 = scmp.eq.s32.totalorder %s51, 0
      %p561 = por %p559, %p560
      %s563 = sadd.s32 %s562, 1
      %p566 = scmp.eq.s32.totalorder %s45, 1
      %p567 = scmp.ne.s32.totalorder %s562, %s564
      %p568 = scmp.eq.s32.totalorder %s45, 0
      %p569 = por %p567, %p568
      %p570 = scmp.ne.s32.totalorder %s562, %s564
      %p571 = scmp.eq.s32.totalorder %s50, 1
      %p572 = por %p570, %p571
      %p573 = scmp.ne.s32.totalorder %s564, %s565
      %p574 = scmp.eq.s32.totalorder %s50, 0
      %p575 = por %p573, %p574
      %p576 = scmp.ne.s32.totalorder %s564, %s565
      %p577 = scmp.eq.s32.totalorder %s51, 1
      %p578 = por %p576, %p577
      %p580 = scmp.ne.s32.totalorder %s565, %s579
      %p581 = scmp.eq.s32.totalorder %s51, 0
      %p582 = por %p580, %p581
      %s584 = sadd.s32 %s583, 1
      %p587 = scmp.eq.s32.totalorder %s45, 1
      %p588 = scmp.ne.s32.totalorder %s583, %s585
      %p589 = scmp.eq.s32.totalorder %s45, 0
      %p590 = por %p588, %p589
      %p591 = scmp.ne.s32.totalorder %s583, %s585
      %p592 = scmp.eq.s32.totalorder %s50, 1
      %p593 = por %p591, %p592
      %p594 = scmp.ne.s32.totalorder %s585, %s586
      %p595 = scmp.eq.s32.totalorder %s50, 0
      %p596 = por %p594, %p595
      %p597 = scmp.ne.s32.totalorder %s585, %s586
      %p598 = scmp.eq.s32.totalorder %s51, 1
      %p599 = por %p597, %p598
      %p601 = scmp.ne.s32.totalorder %s586, %s600
      %p602 = scmp.eq.s32.totalorder %s51, 0
      %p603 = por %p601, %p602
      %s605 = sadd.s32 %s604, 1
      %p608 = scmp.eq.s32.totalorder %s45, 1
      %p609 = scmp.ne.s32.totalorder %s604, %s606
      %p610 = scmp.eq.s32.totalorder %s45, 0
      %p611 = por %p609, %p610
      %p612 = scmp.ne.s32.totalorder %s604, %s606
      %p613 = scmp.eq.s32.totalorder %s50, 1
      %p614 = por %p612, %p613
      %p615 = scmp.ne.s32.totalorder %s606, %s607
      %p616 = scmp.eq.s32.totalorder %s50, 0
      %p617 = por %p615, %p616
      %p618 = scmp.ne.s32.totalorder %s606, %s607
      %p619 = scmp.eq.s32.totalorder %s51, 1
      %p620 = por %p618, %p619
      %p622 = scmp.ne.s32.totalorder %s607, %s621
      %p623 = scmp.eq.s32.totalorder %s51, 0
      %p624 = por %p622, %p623
      %s625 = ssub.s32 %s45, %s52
      %p626 = scmp.eq.s32.totalorder %s625, 0
      %s628 = sadd.s32 %s627, 1
      %s629 = scalar_select %p626, %s627, %s628
      %p632 = pneg %p626
      %p633 = scmp.eq.s32.totalorder %s45, 1
      %p634 = por %p632, %p633
      %p635 = scmp.ne.s32.totalorder %s627, %s630
      %p636 = scmp.eq.s32.totalorder %s45, 0
      %p637 = por %p635, %p636
      %p638 = scmp.ne.s32.totalorder %s627, %s630
      %p639 = scmp.eq.s32.totalorder %s50, 1
      %p640 = por %p638, %p639
      %p641 = scmp.ne.s32.totalorder %s630, %s631
      %p642 = scmp.eq.s32.totalorder %s50, 0
      %p643 = por %p641, %p642
      %p644 = scmp.ne.s32.totalorder %s630, %s631
      %p645 = scmp.eq.s32.totalorder %s51, 1
      %p646 = por %p644, %p645
      %p648 = scmp.ne.s32.totalorder %s631, %s647
      %p649 = scmp.eq.s32.totalorder %s51, 0
      %p650 = por %p648, %p649
      %p651 = scmp.le.s32.totalorder 1, %s45
      %p652 = scmp.lt.s32.totalorder %s45, 3
      %p653 = pnand %p651, %p652
      %p654 = pneg %p653
      // Predicated region
      $region9: #{mynet_sequence_forward.3} parent=5 // pred_check
        _
      $region10: #{mynet_sequence_forward.3} parent=5 // pred_check_branch
        %656 = sbr.rel (%p653) target = $region12
      $region11: #{mynet_sequence_forward.3} parent=5 // pred_region
        %s657 = ssub.s32 %s45, 1
        // Predicated region
        $region13: #{mynet_sequence_forward.3} parent=11 // pred_check
          %p658 = pneg %p92
        $region14: #{mynet_sequence_forward.3} parent=11 // pred_check_branch
          %660 = sbr.rel (%p658) target = $region16
        $region15: #{mynet_sequence_forward.3} parent=11 // pred_region
          _
        $region16: #{mynet_sequence_forward.3} parent=11 // pred_fallthru
          _
        // Predicated region
        $region17: #{mynet_sequence_forward.3} parent=11 // pred_check
          %p661 = pneg %p113
        $region18: #{mynet_sequence_forward.3} parent=11 // pred_check_branch
          %663 = sbr.rel (%p661) target = $region20
        $region19: #{mynet_sequence_forward.3} parent=11 // pred_region
          _
        $region20: #{mynet_sequence_forward.3} parent=11 // pred_fallthru
          _
        // Predicated region
        $region21: #{mynet_sequence_forward.3} parent=11 // pred_check
          %p664 = pneg %p134
        $region22: #{mynet_sequence_forward.3} parent=11 // pred_check_branch
          %666 = sbr.rel (%p664) target = $region24
        $region23: #{mynet_sequence_forward.3} parent=11 // pred_region
          _
        $region24: #{mynet_sequence_forward.3} parent=11 // pred_fallthru
          _
        // Predicated region
        $region25: #{mynet_sequence_forward.3} parent=11 // pred_check
          %p667 = pneg %p155
        $region26: #{mynet_sequence_forward.3} parent=11 // pred_check_branch
          %669 = sbr.rel (%p667) target = $region28
        $region27: #{mynet_sequence_forward.3} parent=11 // pred_region
          _
        $region28: #{mynet_sequence_forward.3} parent=11 // pred_fallthru
          _
        // Predicated region
        $region29: #{mynet_sequence_forward.3} parent=11 // pred_check
          %p670 = pneg %p176
        $region30: #{mynet_sequence_forward.3} parent=11 // pred_check_branch
          %672 = sbr.rel (%p670) target = $region32
        $region31: #{mynet_sequence_forward.3} parent=11 // pred_region
          %674 = vsyncadd [#allocation3], 0
          %s676 = sshll.u32 %s5, 4
          %s677 = int_to_ptr.hbm [resolvable:$true] %s676
          %s678 = sshll.u32 [#allocation2], 4
          %s679 = int_to_ptr.vmem [resolvable:$true] %s678
          %681 = dma.hbm_to_vmem [thread:$0]  %s677, 16, %s679, [#allocation3]
        $region32: #{mynet_sequence_forward.3} parent=11 // pred_fallthru
          _
        // Predicated region
        $region33: #{mynet_sequence_forward.3} parent=11 // pred_check
          %p682 = pneg %p197
        $region34: #{mynet_sequence_forward.3} parent=11 // pred_check_branch
          %684 = sbr.rel (%p682) target = $region36
        $region35: #{mynet_sequence_forward.3} parent=11 // pred_region
          %686 = vsyncadd [#allocation6], 0
          %s688 = sshll.u32 %s6, 4
          %s689 = int_to_ptr.hbm [resolvable:$true] %s688
          %s690 = sshll.u32 [#allocation5], 4
          %s691 = int_to_ptr.vmem [resolvable:$true] %s690
          %693 = dma.hbm_to_vmem [thread:$0]  %s689, 16, %s691, [#allocation6]
        $region36: #{mynet_sequence_forward.3} parent=11 // pred_fallthru
          _
        // Predicated region
        $region37: #{mynet_sequence_forward.3} parent=11 // pred_check
          %p694 = pneg %p218
        $region38: #{mynet_sequence_forward.3} parent=11 // pred_check_branch
          %696 = sbr.rel (%p694) target = $region40
        $region39: #{mynet_sequence_forward.3} parent=11 // pred_region
          %698 = vsyncadd [#allocation6], 0
          %s700 = sshll.u32 %s7, 4
          %s701 = int_to_ptr.hbm [resolvable:$true] %s700
          %s702 = sshll.u32 [#allocation7], 4
          %s703 = int_to_ptr.vmem [resolvable:$true] %s702
          %705 = dma.hbm_to_vmem [thread:$0]  %s701, 16, %s703, [#allocation6]
        $region40: #{mynet_sequence_forward.3} parent=11 // pred_fallthru
          _
        // Predicated region
        $region41: #{mynet_sequence_forward.3} parent=11 // pred_check
          %p706 = pneg %p239
        $region42: #{mynet_sequence_forward.3} parent=11 // pred_check_branch
          %708 = sbr.rel (%p706) target = $region44
        $region43: #{mynet_sequence_forward.3} parent=11 // pred_region
          _
        $region44: #{mynet_sequence_forward.3} parent=11 // pred_fallthru
          _
        // Predicated region
        $region45: #{mynet_sequence_forward.3} parent=11 // pred_check
          %p709 = pneg %p260
        $region46: #{mynet_sequence_forward.3} parent=11 // pred_check_branch
          %711 = sbr.rel (%p709) target = $region48
        $region47: #{mynet_sequence_forward.3} parent=11 // pred_region
          %713 = vsyncadd [#allocation9], 0
          %s715 = sshll.u32 %s9, 4
          %s716 = int_to_ptr.hbm [resolvable:$true] %s715
          %s717 = sshll.u32 [#allocation8], 4
          %s718 = int_to_ptr.vmem [resolvable:$true] %s717
          %720 = dma.hbm_to_vmem [thread:$0]  %s716, 16, %s718, [#allocation9]
        $region48: #{mynet_sequence_forward.3} parent=11 // pred_fallthru
          _
        // Predicated region
        $region49: #{mynet_sequence_forward.3} parent=11 // pred_check
          %p721 = pneg %p281
        $region50: #{mynet_sequence_forward.3} parent=11 // pred_check_branch
          %723 = sbr.rel (%p721) target = $region52
        $region51: #{mynet_sequence_forward.3} parent=11 // pred_region
          %725 = vsyncadd [#allocation9], 0
          %s727 = sshll.u32 %s10, 4
          %s728 = int_to_ptr.hbm [resolvable:$true] %s727
          %s729 = sshll.u32 [#allocation10], 4
          %s730 = int_to_ptr.vmem [resolvable:$true] %s729
          %732 = dma.hbm_to_vmem [thread:$0]  %s728, 16, %s730, [#allocation9]
        $region52: #{mynet_sequence_forward.3} parent=11 // pred_fallthru
          _
        // Predicated region
        $region53: #{mynet_sequence_forward.3} parent=11 // pred_check
          %p733 = pneg %p302
        $region54: #{mynet_sequence_forward.3} parent=11 // pred_check_branch
          %735 = sbr.rel (%p733) target = $region56
        $region55: #{mynet_sequence_forward.3} parent=11 // pred_region
          _
        $region56: #{mynet_sequence_forward.3} parent=11 // pred_fallthru
          _
        // Predicated region
        $region57: #{mynet_sequence_forward.3} parent=11 // pred_check
          %p736 = pneg %p323
        $region58: #{mynet_sequence_forward.3} parent=11 // pred_check_branch
          %738 = sbr.rel (%p736) target = $region60
        $region59: #{mynet_sequence_forward.3} parent=11 // pred_region
          %740 = vsyncadd [#allocation12], 0
          %s741 = sshll.u32 %s12, 4
          %s742 = int_to_ptr.hbm [resolvable:$true] %s741
          %s743 = sshll.u32 [#allocation11], 4
          %s744 = int_to_ptr.vmem [resolvable:$true] %s743
          %749 = dma.hbm_to_vmem [thread:$0]  %s742, 3072, %s744, [#allocation12], 128, 128, 8
        $region60: #{mynet_sequence_forward.3} parent=11 // pred_fallthru
          _
        // Predicated region
        $region61: #{mynet_sequence_forward.3} parent=11 // pred_check
          %p750 = pneg %p344
        $region62: #{mynet_sequence_forward.3} parent=11 // pred_check_branch
          %752 = sbr.rel (%p750) target = $region64
        $region63: #{mynet_sequence_forward.3} parent=11 // pred_region
          %754 = vsyncadd [#allocation12], 0
          %s756 = sshll.u32 %s13, 4
          %s757 = int_to_ptr.hbm [resolvable:$true] %s756
          %s758 = sshll.u32 [#allocation13], 4
          %s759 = int_to_ptr.vmem [resolvable:$true] %s758
          %761 = dma.hbm_to_vmem [thread:$0]  %s757, 16, %s759, [#allocation12]
        $region64: #{mynet_sequence_forward.3} parent=11 // pred_fallthru
          _
        // Predicated region
        $region65: #{mynet_sequence_forward.3} parent=11 // pred_check
          %p762 = pneg %p365
        $region66: #{mynet_sequence_forward.3} parent=11 // pred_check_branch
          %764 = sbr.rel (%p762) target = $region68
        $region67: #{mynet_sequence_forward.3} parent=11 // pred_region
          %766 = vsyncadd [#allocation15], 0
          %s768 = sshll.u32 %s14, 4
          %s769 = int_to_ptr.hbm [resolvable:$true] %s768
          %s770 = sshll.u32 [#allocation14], 4
          %s771 = int_to_ptr.vmem [resolvable:$true] %s770
          %773 = dma.hbm_to_vmem [thread:$0]  %s769, 16, %s771, [#allocation15]
        $region68: #{mynet_sequence_forward.3} parent=11 // pred_fallthru
          _
        // Predicated region
        $region69: #{mynet_sequence_forward.3} parent=11 // pred_check
          %p774 = pneg %p386
        $region70: #{mynet_sequence_forward.3} parent=11 // pred_check_branch
          %776 = sbr.rel (%p774) target = $region72
        $region71: #{mynet_sequence_forward.3} parent=11 // pred_region
          %778 = vsyncadd [#allocation15], 0
          %s779 = sshll.u32 %s15, 4
          %s780 = int_to_ptr.hbm [resolvable:$true] %s779
          %s781 = sshll.u32 [#allocation16], 4
          %s782 = int_to_ptr.vmem [resolvable:$true] %s781
          %787 = dma.hbm_to_vmem [thread:$0]  %s780, 3072, %s782, [#allocation15], 128, 128, 8
        $region72: #{mynet_sequence_forward.3} parent=11 // pred_fallthru
          _
        // Predicated region
        $region73: #{mynet_sequence_forward.3} parent=11 // pred_check
          %p788 = pneg %p407
        $region74: #{mynet_sequence_forward.3} parent=11 // pred_check_branch
          %790 = sbr.rel (%p788) target = $region76
        $region75: #{mynet_sequence_forward.3} parent=11 // pred_region
          %792 = vsyncadd [#allocation18], 0
          %s793 = sshll.u32 %s16, 4
          %s794 = int_to_ptr.hbm [resolvable:$true] %s793
          %s795 = sshll.u32 [#allocation17], 4
          %s796 = int_to_ptr.vmem [resolvable:$true] %s795
          %801 = dma.hbm_to_vmem [thread:$0]  %s794, 3072, %s796, [#allocation18], 128, 128, 8
        $region76: #{mynet_sequence_forward.3} parent=11 // pred_fallthru
          _
        // Predicated region
        $region77: #{mynet_sequence_forward.3} parent=11 // pred_check
          %p802 = pneg %p428
        $region78: #{mynet_sequence_forward.3} parent=11 // pred_check_branch
          %804 = sbr.rel (%p802) target = $region80
        $region79: #{mynet_sequence_forward.3} parent=11 // pred_region
          %806 = vsyncadd [#allocation18], 0
          %s808 = sshll.u32 %s17, 4
          %s809 = int_to_ptr.hbm [resolvable:$true] %s808
          %s810 = sshll.u32 [#allocation19], 4
          %s811 = int_to_ptr.vmem [resolvable:$true] %s810
          %813 = dma.hbm_to_vmem [thread:$0]  %s809, 16, %s811, [#allocation18]
        $region80: #{mynet_sequence_forward.3} parent=11 // pred_fallthru
          _
        // Predicated region
        $region81: #{mynet_sequence_forward.3} parent=11 // pred_check
          %p814 = pneg %p449
        $region82: #{mynet_sequence_forward.3} parent=11 // pred_check_branch
          %816 = sbr.rel (%p814) target = $region84
        $region83: #{mynet_sequence_forward.3} parent=11 // pred_region
          %818 = vsyncadd [#allocation21], 0
          %s820 = sshll.u32 %s18, 4
          %s821 = int_to_ptr.hbm [resolvable:$true] %s820
          %s822 = sshll.u32 [#allocation20], 4
          %s823 = int_to_ptr.vmem [resolvable:$true] %s822
          %825 = dma.hbm_to_vmem [thread:$0]  %s821, 16, %s823, [#allocation21]
        $region84: #{mynet_sequence_forward.3} parent=11 // pred_fallthru
          _
        // Predicated region
        $region85: #{mynet_sequence_forward.3} parent=11 // pred_check
          %p826 = pneg %p470
        $region86: #{mynet_sequence_forward.3} parent=11 // pred_check_branch
          %828 = sbr.rel (%p826) target = $region88
        $region87: #{mynet_sequence_forward.3} parent=11 // pred_region
          %830 = vsyncadd [#allocation21], 0
          %s832 = sshll.u32 %s19, 4
          %s833 = int_to_ptr.hbm [resolvable:$true] %s832
          %s834 = sshll.u32 [#allocation22], 4
          %s835 = int_to_ptr.vmem [resolvable:$true] %s834
          %837 = dma.hbm_to_vmem [thread:$0]  %s833, 16, %s835, [#allocation21]
        $region88: #{mynet_sequence_forward.3} parent=11 // pred_fallthru
          _
        // Predicated region
        $region89: #{mynet_sequence_forward.3} parent=11 // pred_check
          %p838 = pneg %p491
        $region90: #{mynet_sequence_forward.3} parent=11 // pred_check_branch
          %840 = sbr.rel (%p838) target = $region92
        $region91: #{mynet_sequence_forward.3} parent=11 // pred_region
          %842 = vsyncadd [#allocation24], 0
          %s843 = sshll.u32 %s20, 4
          %s844 = int_to_ptr.hbm [resolvable:$true] %s843
          %s845 = sshll.u32 [#allocation23], 4
          %s846 = int_to_ptr.vmem [resolvable:$true] %s845
          %851 = dma.hbm_to_vmem [thread:$0]  %s844, 3072, %s846, [#allocation24], 128, 128, 8
        $region92: #{mynet_sequence_forward.3} parent=11 // pred_fallthru
          _
        // Predicated region
        $region93: #{mynet_sequence_forward.3} parent=11 // pred_check
          %p852 = pneg %p512
        $region94: #{mynet_sequence_forward.3} parent=11 // pred_check_branch
          %854 = sbr.rel (%p852) target = $region96
        $region95: #{mynet_sequence_forward.3} parent=11 // pred_region
          _
        $region96: #{mynet_sequence_forward.3} parent=11 // pred_fallthru
          _
        // Predicated region
        $region97: #{mynet_sequence_forward.3} parent=11 // pred_check
          %p855 = pneg %p533
        $region98: #{mynet_sequence_forward.3} parent=11 // pred_check_branch
          %857 = sbr.rel (%p855) target = $region100
        $region99: #{mynet_sequence_forward.3} parent=11 // pred_region
          _
        $region100: #{mynet_sequence_forward.3} parent=11 // pred_fallthru
          _
        // Predicated region
        $region101: #{mynet_sequence_forward.3} parent=11 // pred_check
          %p858 = pneg %p554
        $region102: #{mynet_sequence_forward.3} parent=11 // pred_check_branch
          %860 = sbr.rel (%p858) target = $region104
        $region103: #{mynet_sequence_forward.3} parent=11 // pred_region
          %862 = vsyncadd [#allocation24], 0
          %s864 = sshll.u32 %s23, 4
          %s865 = int_to_ptr.hbm [resolvable:$true] %s864
          %s866 = sshll.u32 [#allocation25], 4
          %s867 = int_to_ptr.vmem [resolvable:$true] %s866
          %869 = dma.hbm_to_vmem [thread:$0]  %s865, 16, %s867, [#allocation24]
        $region104: #{mynet_sequence_forward.3} parent=11 // pred_fallthru
          _
        // Predicated region
        $region105: #{mynet_sequence_forward.3} parent=11 // pred_check
          %p870 = pneg %p575
        $region106: #{mynet_sequence_forward.3} parent=11 // pred_check_branch
          %872 = sbr.rel (%p870) target = $region108
        $region107: #{mynet_sequence_forward.3} parent=11 // pred_region
          %874 = vsyncadd [#allocation27], 0
          %s876 = sshll.u32 %s24, 4
          %s877 = int_to_ptr.hbm [resolvable:$true] %s876
          %s878 = sshll.u32 [#allocation26], 4
          %s879 = int_to_ptr.vmem [resolvable:$true] %s878
          %881 = dma.hbm_to_vmem [thread:$0]  %s877, 16, %s879, [#allocation27]
        $region108: #{mynet_sequence_forward.3} parent=11 // pred_fallthru
          _
        // Predicated region
        $region109: #{mynet_sequence_forward.3} parent=11 // pred_check
          %p882 = pneg %p596
        $region110: #{mynet_sequence_forward.3} parent=11 // pred_check_branch
          %884 = sbr.rel (%p882) target = $region112
        $region111: #{mynet_sequence_forward.3} parent=11 // pred_region
          _
        $region112: #{mynet_sequence_forward.3} parent=11 // pred_fallthru
          _
        // Predicated region
        $region113: #{mynet_sequence_forward.3} parent=11 // pred_check
          %p885 = pneg %p617
        $region114: #{mynet_sequence_forward.3} parent=11 // pred_check_branch
          %887 = sbr.rel (%p885) target = $region116
        $region115: #{mynet_sequence_forward.3} parent=11 // pred_region
          _
        $region116: #{mynet_sequence_forward.3} parent=11 // pred_fallthru
          _
      $region12: #{mynet_sequence_forward.3} parent=5 // pred_fallthru
        _
      %p888 = scmp.lt.s32.totalorder %s45, 2
      // Predicated region
      $region117: #{mynet_sequence_forward.3} parent=5 // pred_check
        %p889 = pneg %p888
      $region118: #{mynet_sequence_forward.3} parent=5 // pred_check_branch
        %891 = sbr.rel (%p889) target = $region120
      $region119: #{mynet_sequence_forward.3} parent=5 // pred_region
        // Predicated region
        $region121: #{mynet_sequence_forward.3} parent=119 // pred_check
          %p892 = pneg %p65
        $region122: #{mynet_sequence_forward.3} parent=119 // pred_check_branch
          %894 = sbr.rel (%p892) target = $region124
        $region123: #{mynet_sequence_forward.3} parent=119 // pred_region
          %p895 = scmp.lt.s32.totalorder %s45, 1
          %s896 = scalar_select %p895, %s45, 1
          %s897 = smul.addr %s896, 2
          %s898 = smul.addr %s897, 8
          %s899 = scalar_lea.vmem %s0, %s898
        $region124: #{mynet_sequence_forward.3} parent=119 // pred_fallthru
          _
      $region120: #{mynet_sequence_forward.3} parent=5 // pred_fallthru
        _
      %p900 = scmp.le.s32.totalorder 1, %s45
      %p901 = scmp.lt.s32.totalorder %s45, 3
      %p902 = pnand %p900, %p901
      %p903 = pneg %p902
      // Predicated region
      $region125: #{mynet_sequence_forward.3} parent=5 // pred_check
        _
      $region126: #{mynet_sequence_forward.3} parent=5 // pred_check_branch
        %905 = sbr.rel (%p902) target = $region128
      $region127: #{mynet_sequence_forward.3} parent=5 // pred_region
        %s906 = ssub.s32 %s45, 1
        // Predicated region
        $region129: #{mynet_sequence_forward.3} parent=127 // pred_check
          %p907 = pneg %p176
        $region130: #{mynet_sequence_forward.3} parent=127 // pred_check_branch
          %909 = sbr.rel (%p907) target = $region132
        $region131: #{mynet_sequence_forward.3} parent=127 // pred_region
          %911 = dma.done [#allocation3], 16
        $region132: #{mynet_sequence_forward.3} parent=127 // pred_fallthru
          _
        // Predicated region
        $region133: #{mynet_sequence_forward.3} parent=127 // pred_check
          %p912 = pneg %p197
        $region134: #{mynet_sequence_forward.3} parent=127 // pred_check_branch
          %914 = sbr.rel (%p912) target = $region136
        $region135: #{mynet_sequence_forward.3} parent=127 // pred_region
          %916 = dma.done [#allocation6], 16
        $region136: #{mynet_sequence_forward.3} parent=127 // pred_fallthru
          _
        // Predicated region
        $region137: #{mynet_sequence_forward.3} parent=127 // pred_check
          %p917 = pneg %p218
        $region138: #{mynet_sequence_forward.3} parent=127 // pred_check_branch
          %919 = sbr.rel (%p917) target = $region140
        $region139: #{mynet_sequence_forward.3} parent=127 // pred_region
          %921 = dma.done [#allocation6], 16
        $region140: #{mynet_sequence_forward.3} parent=127 // pred_fallthru
          _
        // Predicated region
        $region141: #{mynet_sequence_forward.3} parent=127 // pred_check
          %p922 = pneg %p260
        $region142: #{mynet_sequence_forward.3} parent=127 // pred_check_branch
          %924 = sbr.rel (%p922) target = $region144
        $region143: #{mynet_sequence_forward.3} parent=127 // pred_region
          %926 = dma.done [#allocation9], 16
        $region144: #{mynet_sequence_forward.3} parent=127 // pred_fallthru
          _
        // Predicated region
        $region145: #{mynet_sequence_forward.3} parent=127 // pred_check
          %p927 = pneg %p281
        $region146: #{mynet_sequence_forward.3} parent=127 // pred_check_branch
          %929 = sbr.rel (%p927) target = $region148
        $region147: #{mynet_sequence_forward.3} parent=127 // pred_region
          %931 = dma.done [#allocation9], 16
        $region148: #{mynet_sequence_forward.3} parent=127 // pred_fallthru
          _
        // Predicated region
        $region149: #{mynet_sequence_forward.3} parent=127 // pred_check
          %p932 = pneg %p323
        $region150: #{mynet_sequence_forward.3} parent=127 // pred_check_branch
          %934 = sbr.rel (%p932) target = $region152
        $region151: #{mynet_sequence_forward.3} parent=127 // pred_region
          %936 = dma.done [#allocation12], 3072
        $region152: #{mynet_sequence_forward.3} parent=127 // pred_fallthru
          _
        // Predicated region
        $region153: #{mynet_sequence_forward.3} parent=127 // pred_check
          %p937 = pneg %p344
        $region154: #{mynet_sequence_forward.3} parent=127 // pred_check_branch
          %939 = sbr.rel (%p937) target = $region156
        $region155: #{mynet_sequence_forward.3} parent=127 // pred_region
          %941 = dma.done [#allocation12], 16
        $region156: #{mynet_sequence_forward.3} parent=127 // pred_fallthru
          _
        // Predicated region
        $region157: #{mynet_sequence_forward.3} parent=127 // pred_check
          %p942 = pneg %p365
        $region158: #{mynet_sequence_forward.3} parent=127 // pred_check_branch
          %944 = sbr.rel (%p942) target = $region160
        $region159: #{mynet_sequence_forward.3} parent=127 // pred_region
          %946 = dma.done [#allocation15], 16
        $region160: #{mynet_sequence_forward.3} parent=127 // pred_fallthru
          _
        // Predicated region
        $region161: #{mynet_sequence_forward.3} parent=127 // pred_check
          %p947 = pneg %p386
        $region162: #{mynet_sequence_forward.3} parent=127 // pred_check_branch
          %949 = sbr.rel (%p947) target = $region164
        $region163: #{mynet_sequence_forward.3} parent=127 // pred_region
          %951 = dma.done [#allocation15], 3072
        $region164: #{mynet_sequence_forward.3} parent=127 // pred_fallthru
          _
        // Predicated region
        $region165: #{mynet_sequence_forward.3} parent=127 // pred_check
          %p952 = pneg %p407
        $region166: #{mynet_sequence_forward.3} parent=127 // pred_check_branch
          %954 = sbr.rel (%p952) target = $region168
        $region167: #{mynet_sequence_forward.3} parent=127 // pred_region
          %956 = dma.done [#allocation18], 3072
        $region168: #{mynet_sequence_forward.3} parent=127 // pred_fallthru
          _
        // Predicated region
        $region169: #{mynet_sequence_forward.3} parent=127 // pred_check
          %p957 = pneg %p428
        $region170: #{mynet_sequence_forward.3} parent=127 // pred_check_branch
          %959 = sbr.rel (%p957) target = $region172
        $region171: #{mynet_sequence_forward.3} parent=127 // pred_region
          %961 = dma.done [#allocation18], 16
        $region172: #{mynet_sequence_forward.3} parent=127 // pred_fallthru
          _
        // Predicated region
        $region173: #{mynet_sequence_forward.3} parent=127 // pred_check
          %p962 = pneg %p449
        $region174: #{mynet_sequence_forward.3} parent=127 // pred_check_branch
          %964 = sbr.rel (%p962) target = $region176
        $region175: #{mynet_sequence_forward.3} parent=127 // pred_region
          %966 = dma.done [#allocation21], 16
        $region176: #{mynet_sequence_forward.3} parent=127 // pred_fallthru
          _
        // Predicated region
        $region177: #{mynet_sequence_forward.3} parent=127 // pred_check
          %p967 = pneg %p470
        $region178: #{mynet_sequence_forward.3} parent=127 // pred_check_branch
          %969 = sbr.rel (%p967) target = $region180
        $region179: #{mynet_sequence_forward.3} parent=127 // pred_region
          %971 = dma.done [#allocation21], 16
        $region180: #{mynet_sequence_forward.3} parent=127 // pred_fallthru
          _
        // Predicated region
        $region181: #{mynet_sequence_forward.3} parent=127 // pred_check
          %p972 = pneg %p491
        $region182: #{mynet_sequence_forward.3} parent=127 // pred_check_branch
          %974 = sbr.rel (%p972) target = $region184
        $region183: #{mynet_sequence_forward.3} parent=127 // pred_region
          %976 = dma.done [#allocation24], 3072
        $region184: #{mynet_sequence_forward.3} parent=127 // pred_fallthru
          _
        // Predicated region
        $region185: #{mynet_sequence_forward.3} parent=127 // pred_check
          %p977 = pneg %p554
        $region186: #{mynet_sequence_forward.3} parent=127 // pred_check_branch
          %979 = sbr.rel (%p977) target = $region188
        $region187: #{mynet_sequence_forward.3} parent=127 // pred_region
          %981 = dma.done [#allocation24], 16
        $region188: #{mynet_sequence_forward.3} parent=127 // pred_fallthru
          _
        // Predicated region
        $region189: #{mynet_sequence_forward.3} parent=127 // pred_check
          %p982 = pneg %p575
        $region190: #{mynet_sequence_forward.3} parent=127 // pred_check_branch
          %984 = sbr.rel (%p982) target = $region192
        $region191: #{mynet_sequence_forward.3} parent=127 // pred_region
          %986 = dma.done [#allocation27], 16
        $region192: #{mynet_sequence_forward.3} parent=127 // pred_fallthru
          _
        %p987 = scmp.lt.s32.totalorder %s50, 1
        %s988 = scalar_select %p987, %s50, 1
        %s989 = smul.addr %s988, 2
        %s990 = smul.addr %s989, 8
        %s991 = scalar_lea.vmem %s0, %s990
        %p992 = pneg %p71
        %p993 = pneg %p68
        %p994 = pneg %p92
        %p995 = pneg %p89
        %p996 = pneg %p113
        %p997 = pneg %p110
        %p998 = pneg %p134
        %p999 = pneg %p131
        %p1000 = pneg %p155
        %p1001 = pneg %p152
        %p1002 = pneg %p176
        %p1003 = pneg %p173
        %p1004 = pneg %p197
        %p1005 = pneg %p194
        %p1006 = pneg %p218
        %p1007 = pneg %p215
        %p1008 = pneg %p239
        %p1009 = pneg %p236
        %p1010 = pneg %p260
        %p1011 = pneg %p257
        %p1012 = pneg %p281
        %p1013 = pneg %p278
        %p1014 = pneg %p302
        %p1015 = pneg %p299
        %p1016 = pneg %p323
        %p1017 = pneg %p320
        %p1018 = pneg %p344
        %p1019 = pneg %p341
        %p1020 = pneg %p365
        %p1021 = pneg %p362
        %p1022 = pneg %p386
        %p1023 = pneg %p383
        %p1024 = pneg %p407
        %p1025 = pneg %p404
        %p1026 = pneg %p428
        %p1027 = pneg %p425
        %p1028 = pneg %p449
        %p1029 = pneg %p446
        %p1030 = pneg %p470
        %p1031 = pneg %p467
        %p1032 = pneg %p491
        %p1033 = pneg %p488
        %p1034 = pneg %p512
        %p1035 = pneg %p509
        %p1036 = pneg %p533
        %p1037 = pneg %p530
        %p1038 = pneg %p554
        %p1039 = pneg %p551
        %p1040 = pneg %p575
        %p1041 = pneg %p572
        %p1042 = pneg %p596
        %p1043 = pneg %p593
        %p1044 = pneg %p617
        %p1045 = pneg %p614
        %p1046 = pneg %p643
        %p1047 = pneg %p640
        %s1048 = sand.u32 %s630, 1
        %s1049 = scalar_lea.sflag [#allocation4], %s1048
        %s1050 = sand.u32 %s630, 1
        %s1051 = smul.addr %s1050, 2
        %s1052 = scalar_lea.vmem [#allocation28], %s1051
        %p1053 = scmp.lt.s32.totalorder %s50, 1
        %s1054 = scalar_select %p1053, %s50, 1
        %s1055 = smul.addr %s1054, 2
        %s1056 = smul.addr %s1055, 8
        %s1057 = scalar_lea.vmem %s0, %s1056
        %v1058 = vld [vmem:[%s1] sm:$0x1]
        %v1059 = vld [vmem:[%s2] sm:$0x1]
        %v1060 = vld [vmem:[%s3] sm:$0x1]
        %v1061 = vld [vmem:[%s4] sm:$0xff]
        %v1062 = vld [vmem:[%s4 + $0x8] sm:$0xff]
        %v1063 = vld [vmem:[%s4 + $0x10] sm:$0xff]
        %v1064 = vld [vmem:[%s4 + $0x18] sm:$0xff]
        %v1065 = vld [vmem:[%s4 + $0x20] sm:$0xff]
        %v1066 = vld [vmem:[%s4 + $0x28] sm:$0xff]
        %v1067 = vld [vmem:[%s4 + $0x30] sm:$0xff]
        %v1068 = vld [vmem:[%s4 + $0x38] sm:$0xff]
        %v1069 = vld [vmem:[%s4 + $0x40] sm:$0xff]
        %v1070 = vld [vmem:[%s4 + $0x48] sm:$0xff]
        %v1071 = vld [vmem:[%s4 + $0x50] sm:$0xff]
        %v1072 = vld [vmem:[%s4 + $0x58] sm:$0xff]
        %v1073 = vld [vmem:[%s4 + $0x60] sm:$0xff]
        %v1074 = vld [vmem:[%s4 + $0x68] sm:$0xff]
        %v1075 = vld [vmem:[%s4 + $0x70] sm:$0xff]
        %v1076 = vld [vmem:[%s4 + $0x78] sm:$0xff]
        %v1077 = vld [vmem:[%s4 + $0x80] sm:$0xff]
        %v1078 = vld [vmem:[%s4 + $0x88] sm:$0xff]
        %v1079 = vld [vmem:[%s4 + $0x90] sm:$0xff]
        %v1080 = vld [vmem:[%s4 + $0x98] sm:$0xff]
        %v1081 = vld [vmem:[%s4 + $0xa0] sm:$0xff]
        %v1082 = vld [vmem:[%s4 + $0xa8] sm:$0xff]
        %v1083 = vld [vmem:[%s4 + $0xb0] sm:$0xff]
        %v1084 = vld [vmem:[%s4 + $0xb8] sm:$0xff]
        %v1085 = vld [vmem:[%s4 + $0xc0] sm:$0xff]
        %v1086 = vld [vmem:[%s4 + $0xc8] sm:$0xff]
        %v1087 = vld [vmem:[%s4 + $0xd0] sm:$0xff]
        %v1088 = vld [vmem:[%s4 + $0xd8] sm:$0xff]
        %v1089 = vld [vmem:[%s4 + $0xe0] sm:$0xff]
        %v1090 = vld [vmem:[%s4 + $0xe8] sm:$0xff]
        %v1091 = vld [vmem:[%s4 + $0xf0] sm:$0xff]
        %v1092 = vld [vmem:[%s4 + $0xf8] sm:$0xff]
        %v1093 = vld [vmem:[%s4 + $0x100] sm:$0xff]
        %v1094 = vld [vmem:[%s4 + $0x108] sm:$0xff]
        %v1095 = vld [vmem:[%s4 + $0x110] sm:$0xff]
        %v1096 = vld [vmem:[%s4 + $0x118] sm:$0xff]
        %v1097 = vld [vmem:[%s4 + $0x120] sm:$0xff]
        %v1098 = vld [vmem:[%s4 + $0x128] sm:$0xff]
        %v1099 = vld [vmem:[%s4 + $0x130] sm:$0xff]
        %v1100 = vld [vmem:[%s4 + $0x138] sm:$0xff]
        %v1101 = vld [vmem:[%s4 + $0x140] sm:$0xff]
        %v1102 = vld [vmem:[%s4 + $0x148] sm:$0xff]
        %v1103 = vld [vmem:[%s4 + $0x150] sm:$0xff]
        %v1104 = vld [vmem:[%s4 + $0x158] sm:$0xff]
        %v1105 = vld [vmem:[%s4 + $0x160] sm:$0xff]
        %v1106 = vld [vmem:[%s4 + $0x168] sm:$0xff]
        %v1107 = vld [vmem:[%s4 + $0x170] sm:$0xff]
        %v1108 = vld [vmem:[%s4 + $0x178] sm:$0xff]
        %v1109 = vld [vmem:[#allocation2] sm:$0x1]
        %v1110 = vld [vmem:[#allocation5] sm:$0x1]
        %v1111 = vld [vmem:[#allocation7] sm:$0x1]
        %v1112 = vld [vmem:[%s8] sm:$0xff]
        %v1113 = vld [vmem:[%s8 + $0x8] sm:$0xff]
        %v1114 = vld [vmem:[%s8 + $0x10] sm:$0xff]
        %v1115 = vld [vmem:[%s8 + $0x18] sm:$0xff]
        %v1116 = vld [vmem:[%s8 + $0x20] sm:$0xff]
        %v1117 = vld [vmem:[%s8 + $0x28] sm:$0xff]
        %v1118 = vld [vmem:[%s8 + $0x30] sm:$0xff]
        %v1119 = vld [vmem:[%s8 + $0x38] sm:$0xff]
        %v1120 = vld [vmem:[%s8 + $0x40] sm:$0xff]
        %v1121 = vld [vmem:[%s8 + $0x48] sm:$0xff]
        %v1122 = vld [vmem:[%s8 + $0x50] sm:$0xff]
        %v1123 = vld [vmem:[%s8 + $0x58] sm:$0xff]
        %v1124 = vld [vmem:[%s8 + $0x60] sm:$0xff]
        %v1125 = vld [vmem:[%s8 + $0x68] sm:$0xff]
        %v1126 = vld [vmem:[%s8 + $0x70] sm:$0xff]
        %v1127 = vld [vmem:[%s8 + $0x78] sm:$0xff]
        %v1128 = vld [vmem:[%s8 + $0x80] sm:$0xff]
        %v1129 = vld [vmem:[%s8 + $0x88] sm:$0xff]
        %v1130 = vld [vmem:[%s8 + $0x90] sm:$0xff]
        %v1131 = vld [vmem:[%s8 + $0x98] sm:$0xff]
        %v1132 = vld [vmem:[%s8 + $0xa0] sm:$0xff]
        %v1133 = vld [vmem:[%s8 + $0xa8] sm:$0xff]
        %v1134 = vld [vmem:[%s8 + $0xb0] sm:$0xff]
        %v1135 = vld [vmem:[%s8 + $0xb8] sm:$0xff]
        %v1136 = vld [vmem:[%s8 + $0xc0] sm:$0xff]
        %v1137 = vld [vmem:[%s8 + $0xc8] sm:$0xff]
        %v1138 = vld [vmem:[%s8 + $0xd0] sm:$0xff]
        %v1139 = vld [vmem:[%s8 + $0xd8] sm:$0xff]
        %v1140 = vld [vmem:[%s8 + $0xe0] sm:$0xff]
        %v1141 = vld [vmem:[%s8 + $0xe8] sm:$0xff]
        %v1142 = vld [vmem:[%s8 + $0xf0] sm:$0xff]
        %v1143 = vld [vmem:[%s8 + $0xf8] sm:$0xff]
        %v1144 = vld [vmem:[%s8 + $0x100] sm:$0xff]
        %v1145 = vld [vmem:[%s8 + $0x108] sm:$0xff]
        %v1146 = vld [vmem:[%s8 + $0x110] sm:$0xff]
        %v1147 = vld [vmem:[%s8 + $0x118] sm:$0xff]
        %v1148 = vld [vmem:[%s8 + $0x120] sm:$0xff]
        %v1149 = vld [vmem:[%s8 + $0x128] sm:$0xff]
        %v1150 = vld [vmem:[%s8 + $0x130] sm:$0xff]
        %v1151 = vld [vmem:[%s8 + $0x138] sm:$0xff]
        %v1152 = vld [vmem:[%s8 + $0x140] sm:$0xff]
        %v1153 = vld [vmem:[%s8 + $0x148] sm:$0xff]
        %v1154 = vld [vmem:[%s8 + $0x150] sm:$0xff]
        %v1155 = vld [vmem:[%s8 + $0x158] sm:$0xff]
        %v1156 = vld [vmem:[%s8 + $0x160] sm:$0xff]
        %v1157 = vld [vmem:[%s8 + $0x168] sm:$0xff]
        %v1158 = vld [vmem:[%s8 + $0x170] sm:$0xff]
        %v1159 = vld [vmem:[%s8 + $0x178] sm:$0xff]
        %v1160 = vld [vmem:[#allocation8] sm:$0x1]
        %v1161 = vld [vmem:[#allocation10] sm:$0x1]
        %v1162 = vld [vmem:[%s11] sm:$0xff]
        %v1163 = vld [vmem:[%s11 + $0x8] sm:$0xff]
        %v1164 = vld [vmem:[%s11 + $0x10] sm:$0xff]
        %v1165 = vld [vmem:[%s11 + $0x18] sm:$0xff]
        %v1166 = vld [vmem:[%s11 + $0x20] sm:$0xff]
        %v1167 = vld [vmem:[%s11 + $0x28] sm:$0xff]
        %v1168 = vld [vmem:[%s11 + $0x30] sm:$0xff]
        %v1169 = vld [vmem:[%s11 + $0x38] sm:$0xff]
        %v1170 = vld [vmem:[%s11 + $0x40] sm:$0xff]
        %v1171 = vld [vmem:[%s11 + $0x48] sm:$0xff]
        %v1172 = vld [vmem:[%s11 + $0x50] sm:$0xff]
        %v1173 = vld [vmem:[%s11 + $0x58] sm:$0xff]
        %v1174 = vld [vmem:[%s11 + $0x60] sm:$0xff]
        %v1175 = vld [vmem:[%s11 + $0x68] sm:$0xff]
        %v1176 = vld [vmem:[%s11 + $0x70] sm:$0xff]
        %v1177 = vld [vmem:[%s11 + $0x78] sm:$0xff]
        %v1178 = vld [vmem:[%s11 + $0x80] sm:$0xff]
        %v1179 = vld [vmem:[%s11 + $0x88] sm:$0xff]
        %v1180 = vld [vmem:[%s11 + $0x90] sm:$0xff]
        %v1181 = vld [vmem:[%s11 + $0x98] sm:$0xff]
        %v1182 = vld [vmem:[%s11 + $0xa0] sm:$0xff]
        %v1183 = vld [vmem:[%s11 + $0xa8] sm:$0xff]
        %v1184 = vld [vmem:[%s11 + $0xb0] sm:$0xff]
        %v1185 = vld [vmem:[%s11 + $0xb8] sm:$0xff]
        %v1186 = vld [vmem:[#allocation11] sm:$0xff]
        %v1187 = vld [vmem:[#allocation11 + $0x8] sm:$0xff]
        %v1188 = vld [vmem:[#allocation11 + $0x10] sm:$0xff]
        %v1189 = vld [vmem:[#allocation11 + $0x18] sm:$0xff]
        %v1190 = vld [vmem:[#allocation11 + $0x20] sm:$0xff]
        %v1191 = vld [vmem:[#allocation11 + $0x28] sm:$0xff]
        %v1192 = vld [vmem:[#allocation11 + $0x30] sm:$0xff]
        %v1193 = vld [vmem:[#allocation11 + $0x38] sm:$0xff]
        %v1194 = vld [vmem:[#allocation11 + $0x40] sm:$0xff]
        %v1195 = vld [vmem:[#allocation11 + $0x48] sm:$0xff]
        %v1196 = vld [vmem:[#allocation11 + $0x50] sm:$0xff]
        %v1197 = vld [vmem:[#allocation11 + $0x58] sm:$0xff]
        %v1198 = vld [vmem:[#allocation11 + $0x60] sm:$0xff]
        %v1199 = vld [vmem:[#allocation11 + $0x68] sm:$0xff]
        %v1200 = vld [vmem:[#allocation11 + $0x70] sm:$0xff]
        %v1201 = vld [vmem:[#allocation11 + $0x78] sm:$0xff]
        %v1202 = vld [vmem:[#allocation11 + $0x80] sm:$0xff]
        %v1203 = vld [vmem:[#allocation11 + $0x88] sm:$0xff]
        %v1204 = vld [vmem:[#allocation11 + $0x90] sm:$0xff]
        %v1205 = vld [vmem:[#allocation11 + $0x98] sm:$0xff]
        %v1206 = vld [vmem:[#allocation11 + $0xa0] sm:$0xff]
        %v1207 = vld [vmem:[#allocation11 + $0xa8] sm:$0xff]
        %v1208 = vld [vmem:[#allocation11 + $0xb0] sm:$0xff]
        %v1209 = vld [vmem:[#allocation11 + $0xb8] sm:$0xff]
        %v1210 = vld [vmem:[#allocation13] sm:$0x1]
        %v1211 = vld [vmem:[#allocation14] sm:$0x1]
        %v1212 = vld [vmem:[#allocation16] sm:$0xff]
        %v1213 = vld [vmem:[#allocation16 + $0x8] sm:$0xff]
        %v1214 = vld [vmem:[#allocation16 + $0x10] sm:$0xff]
        %v1215 = vld [vmem:[#allocation16 + $0x18] sm:$0xff]
        %v1216 = vld [vmem:[#allocation16 + $0x20] sm:$0xff]
        %v1217 = vld [vmem:[#allocation16 + $0x28] sm:$0xff]
        %v1218 = vld [vmem:[#allocation16 + $0x30] sm:$0xff]
        %v1219 = vld [vmem:[#allocation16 + $0x38] sm:$0xff]
        %v1220 = vld [vmem:[#allocation16 + $0x40] sm:$0xff]
        %v1221 = vld [vmem:[#allocation16 + $0x48] sm:$0xff]
        %v1222 = vld [vmem:[#allocation16 + $0x50] sm:$0xff]
        %v1223 = vld [vmem:[#allocation16 + $0x58] sm:$0xff]
        %v1224 = vld [vmem:[#allocation16 + $0x60] sm:$0xff]
        %v1225 = vld [vmem:[#allocation16 + $0x68] sm:$0xff]
        %v1226 = vld [vmem:[#allocation16 + $0x70] sm:$0xff]
        %v1227 = vld [vmem:[#allocation16 + $0x78] sm:$0xff]
        %v1228 = vld [vmem:[#allocation16 + $0x80] sm:$0xff]
        %v1229 = vld [vmem:[#allocation16 + $0x88] sm:$0xff]
        %v1230 = vld [vmem:[#allocation16 + $0x90] sm:$0xff]
        %v1231 = vld [vmem:[#allocation16 + $0x98] sm:$0xff]
        %v1232 = vld [vmem:[#allocation16 + $0xa0] sm:$0xff]
        %v1233 = vld [vmem:[#allocation16 + $0xa8] sm:$0xff]
        %v1234 = vld [vmem:[#allocation16 + $0xb0] sm:$0xff]
        %v1235 = vld [vmem:[#allocation16 + $0xb8] sm:$0xff]
        %v1236 = vld [vmem:[#allocation17] sm:$0xff]
        %v1237 = vld [vmem:[#allocation17 + $0x8] sm:$0xff]
        %v1238 = vld [vmem:[#allocation17 + $0x10] sm:$0xff]
        %v1239 = vld [vmem:[#allocation17 + $0x18] sm:$0xff]
        %v1240 = vld [vmem:[#allocation17 + $0x20] sm:$0xff]
        %v1241 = vld [vmem:[#allocation17 + $0x28] sm:$0xff]
        %v1242 = vld [vmem:[#allocation17 + $0x30] sm:$0xff]
        %v1243 = vld [vmem:[#allocation17 + $0x38] sm:$0xff]
        %v1244 = vld [vmem:[#allocation17 + $0x40] sm:$0xff]
        %v1245 = vld [vmem:[#allocation17 + $0x48] sm:$0xff]
        %v1246 = vld [vmem:[#allocation17 + $0x50] sm:$0xff]
        %v1247 = vld [vmem:[#allocation17 + $0x58] sm:$0xff]
        %v1248 = vld [vmem:[#allocation17 + $0x60] sm:$0xff]
        %v1249 = vld [vmem:[#allocation17 + $0x68] sm:$0xff]
        %v1250 = vld [vmem:[#allocation17 + $0x70] sm:$0xff]
        %v1251 = vld [vmem:[#allocation17 + $0x78] sm:$0xff]
        %v1252 = vld [vmem:[#allocation17 + $0x80] sm:$0xff]
        %v1253 = vld [vmem:[#allocation17 + $0x88] sm:$0xff]
        %v1254 = vld [vmem:[#allocation17 + $0x90] sm:$0xff]
        %v1255 = vld [vmem:[#allocation17 + $0x98] sm:$0xff]
        %v1256 = vld [vmem:[#allocation17 + $0xa0] sm:$0xff]
        %v1257 = vld [vmem:[#allocation17 + $0xa8] sm:$0xff]
        %v1258 = vld [vmem:[#allocation17 + $0xb0] sm:$0xff]
        %v1259 = vld [vmem:[#allocation17 + $0xb8] sm:$0xff]
        %v1260 = vld [vmem:[#allocation19] sm:$0x1]
        %v1261 = vld [vmem:[#allocation20] sm:$0x1]
        %v1262 = vld [vmem:[#allocation22] sm:$0x1]
        %v1263 = vld [vmem:[#allocation23] sm:$0xff]
        %v1264 = vld [vmem:[#allocation23 + $0x8] sm:$0xff]
        %v1265 = vld [vmem:[#allocation23 + $0x10] sm:$0xff]
        %v1266 = vld [vmem:[#allocation23 + $0x18] sm:$0xff]
        %v1267 = vld [vmem:[#allocation23 + $0x20] sm:$0xff]
        %v1268 = vld [vmem:[#allocation23 + $0x28] sm:$0xff]
        %v1269 = vld [vmem:[#allocation23 + $0x30] sm:$0xff]
        %v1270 = vld [vmem:[#allocation23 + $0x38] sm:$0xff]
        %v1271 = vld [vmem:[#allocation23 + $0x40] sm:$0xff]
        %v1272 = vld [vmem:[#allocation23 + $0x48] sm:$0xff]
        %v1273 = vld [vmem:[#allocation23 + $0x50] sm:$0xff]
        %v1274 = vld [vmem:[#allocation23 + $0x58] sm:$0xff]
        %v1275 = vld [vmem:[#allocation23 + $0x60] sm:$0xff]
        %v1276 = vld [vmem:[#allocation23 + $0x68] sm:$0xff]
        %v1277 = vld [vmem:[#allocation23 + $0x70] sm:$0xff]
        %v1278 = vld [vmem:[#allocation23 + $0x78] sm:$0xff]
        %v1279 = vld [vmem:[#allocation23 + $0x80] sm:$0xff]
        %v1280 = vld [vmem:[#allocation23 + $0x88] sm:$0xff]
        %v1281 = vld [vmem:[#allocation23 + $0x90] sm:$0xff]
        %v1282 = vld [vmem:[#allocation23 + $0x98] sm:$0xff]
        %v1283 = vld [vmem:[#allocation23 + $0xa0] sm:$0xff]
        %v1284 = vld [vmem:[#allocation23 + $0xa8] sm:$0xff]
        %v1285 = vld [vmem:[#allocation23 + $0xb0] sm:$0xff]
        %v1286 = vld [vmem:[#allocation23 + $0xb8] sm:$0xff]
        %v1287 = vld [vmem:[%s21] sm:$0xff]
        %v1288 = vld [vmem:[%s21 + $0x8] sm:$0xff]
        %v1289 = vld [vmem:[%s21 + $0x10] sm:$0xff]
        %v1290 = vld [vmem:[%s21 + $0x18] sm:$0xff]
        %v1291 = vld [vmem:[%s21 + $0x20] sm:$0xff]
        %v1292 = vld [vmem:[%s21 + $0x28] sm:$0xff]
        %v1293 = vld [vmem:[%s21 + $0x30] sm:$0xff]
        %v1294 = vld [vmem:[%s21 + $0x38] sm:$0xff]
        %v1295 = vld [vmem:[%s21 + $0x40] sm:$0xff]
        %v1296 = vld [vmem:[%s21 + $0x48] sm:$0xff]
        %v1297 = vld [vmem:[%s21 + $0x50] sm:$0xff]
        %v1298 = vld [vmem:[%s21 + $0x58] sm:$0xff]
        %v1299 = vld [vmem:[%s21 + $0x60] sm:$0xff]
        %v1300 = vld [vmem:[%s21 + $0x68] sm:$0xff]
        %v1301 = vld [vmem:[%s21 + $0x70] sm:$0xff]
        %v1302 = vld [vmem:[%s21 + $0x78] sm:$0xff]
        %v1303 = vld [vmem:[%s21 + $0x80] sm:$0xff]
        %v1304 = vld [vmem:[%s21 + $0x88] sm:$0xff]
        %v1305 = vld [vmem:[%s21 + $0x90] sm:$0xff]
        %v1306 = vld [vmem:[%s21 + $0x98] sm:$0xff]
        %v1307 = vld [vmem:[%s21 + $0xa0] sm:$0xff]
        %v1308 = vld [vmem:[%s21 + $0xa8] sm:$0xff]
        %v1309 = vld [vmem:[%s21 + $0xb0] sm:$0xff]
        %v1310 = vld [vmem:[%s21 + $0xb8] sm:$0xff]
        %v1311 = vld [vmem:[%s21 + $0xc0] sm:$0xff]
        %v1312 = vld [vmem:[%s21 + $0xc8] sm:$0xff]
        %v1313 = vld [vmem:[%s21 + $0xd0] sm:$0xff]
        %v1314 = vld [vmem:[%s21 + $0xd8] sm:$0xff]
        %v1315 = vld [vmem:[%s21 + $0xe0] sm:$0xff]
        %v1316 = vld [vmem:[%s21 + $0xe8] sm:$0xff]
        %v1317 = vld [vmem:[%s21 + $0xf0] sm:$0xff]
        %v1318 = vld [vmem:[%s21 + $0xf8] sm:$0xff]
        %v1319 = vld [vmem:[%s21 + $0x100] sm:$0xff]
        %v1320 = vld [vmem:[%s21 + $0x108] sm:$0xff]
        %v1321 = vld [vmem:[%s21 + $0x110] sm:$0xff]
        %v1322 = vld [vmem:[%s21 + $0x118] sm:$0xff]
        %v1323 = vld [vmem:[%s21 + $0x120] sm:$0xff]
        %v1324 = vld [vmem:[%s21 + $0x128] sm:$0xff]
        %v1325 = vld [vmem:[%s21 + $0x130] sm:$0xff]
        %v1326 = vld [vmem:[%s21 + $0x138] sm:$0xff]
        %v1327 = vld [vmem:[%s21 + $0x140] sm:$0xff]
        %v1328 = vld [vmem:[%s21 + $0x148] sm:$0xff]
        %v1329 = vld [vmem:[%s21 + $0x150] sm:$0xff]
        %v1330 = vld [vmem:[%s21 + $0x158] sm:$0xff]
        %v1331 = vld [vmem:[%s21 + $0x160] sm:$0xff]
        %v1332 = vld [vmem:[%s21 + $0x168] sm:$0xff]
        %v1333 = vld [vmem:[%s21 + $0x170] sm:$0xff]
        %v1334 = vld [vmem:[%s21 + $0x178] sm:$0xff]
        %v1335 = vld [vmem:[%s22] sm:$0xff]
        %v1336 = vld [vmem:[%s22 + $0x8] sm:$0xff]
        %v1337 = vld [vmem:[%s22 + $0x10] sm:$0xff]
        %v1338 = vld [vmem:[%s22 + $0x18] sm:$0xff]
        %v1339 = vld [vmem:[%s22 + $0x20] sm:$0xff]
        %v1340 = vld [vmem:[%s22 + $0x28] sm:$0xff]
        %v1341 = vld [vmem:[%s22 + $0x30] sm:$0xff]
        %v1342 = vld [vmem:[%s22 + $0x38] sm:$0xff]
        %v1343 = vld [vmem:[#allocation25] sm:$0x1]
        %v1344 = vld [vmem:[#allocation26] sm:$0x1]
        %v1345 = vld [vmem:[%s25] sm:$0xff]
        %v1346 = vld [vmem:[%s25 + $0x8] sm:$0xff]
        %v1347 = vld [vmem:[%s25 + $0x10] sm:$0xff]
        %v1348 = vld [vmem:[%s25 + $0x18] sm:$0xff]
        %v1349 = vld [vmem:[%s25 + $0x20] sm:$0xff]
        %v1350 = vld [vmem:[%s25 + $0x28] sm:$0xff]
        %v1351 = vld [vmem:[%s25 + $0x30] sm:$0xff]
        %v1352 = vld [vmem:[%s25 + $0x38] sm:$0xff]
        %v1353 = vld [vmem:[%s25 + $0x40] sm:$0xff]
        %v1354 = vld [vmem:[%s25 + $0x48] sm:$0xff]
        %v1355 = vld [vmem:[%s25 + $0x50] sm:$0xff]
        %v1356 = vld [vmem:[%s25 + $0x58] sm:$0xff]
        %v1357 = vld [vmem:[%s25 + $0x60] sm:$0xff]
        %v1358 = vld [vmem:[%s25 + $0x68] sm:$0xff]
        %v1359 = vld [vmem:[%s25 + $0x70] sm:$0xff]
        %v1360 = vld [vmem:[%s25 + $0x78] sm:$0xff]
        %v1361 = vld [vmem:[%s25 + $0x80] sm:$0xff]
        %v1362 = vld [vmem:[%s25 + $0x88] sm:$0xff]
        %v1363 = vld [vmem:[%s25 + $0x90] sm:$0xff]
        %v1364 = vld [vmem:[%s25 + $0x98] sm:$0xff]
        %v1365 = vld [vmem:[%s25 + $0xa0] sm:$0xff]
        %v1366 = vld [vmem:[%s25 + $0xa8] sm:$0xff]
        %v1367 = vld [vmem:[%s25 + $0xb0] sm:$0xff]
        %v1368 = vld [vmem:[%s25 + $0xb8] sm:$0xff]
        %v1369 = vld [vmem:[%s25 + $0xc0] sm:$0xff]
        %v1370 = vld [vmem:[%s25 + $0xc8] sm:$0xff]
        %v1371 = vld [vmem:[%s25 + $0xd0] sm:$0xff]
        %v1372 = vld [vmem:[%s25 + $0xd8] sm:$0xff]
        %v1373 = vld [vmem:[%s25 + $0xe0] sm:$0xff]
        %v1374 = vld [vmem:[%s25 + $0xe8] sm:$0xff]
        %v1375 = vld [vmem:[%s25 + $0xf0] sm:$0xff]
        %v1376 = vld [vmem:[%s25 + $0xf8] sm:$0xff]
        %v1377 = vld [vmem:[%s25 + $0x100] sm:$0xff]
        %v1378 = vld [vmem:[%s25 + $0x108] sm:$0xff]
        %v1379 = vld [vmem:[%s25 + $0x110] sm:$0xff]
        %v1380 = vld [vmem:[%s25 + $0x118] sm:$0xff]
        %v1381 = vld [vmem:[%s25 + $0x120] sm:$0xff]
        %v1382 = vld [vmem:[%s25 + $0x128] sm:$0xff]
        %v1383 = vld [vmem:[%s25 + $0x130] sm:$0xff]
        %v1384 = vld [vmem:[%s25 + $0x138] sm:$0xff]
        %v1385 = vld [vmem:[%s25 + $0x140] sm:$0xff]
        %v1386 = vld [vmem:[%s25 + $0x148] sm:$0xff]
        %v1387 = vld [vmem:[%s25 + $0x150] sm:$0xff]
        %v1388 = vld [vmem:[%s25 + $0x158] sm:$0xff]
        %v1389 = vld [vmem:[%s25 + $0x160] sm:$0xff]
        %v1390 = vld [vmem:[%s25 + $0x168] sm:$0xff]
        %v1391 = vld [vmem:[%s25 + $0x170] sm:$0xff]
        %v1392 = vld [vmem:[%s25 + $0x178] sm:$0xff]
        %v1393 = vld [vmem:[%s26] sm:$0xff]
        %v1394 = vld [vmem:[%s26 + $0x8] sm:$0xff]
        %v1395 = vld [vmem:[%s26 + $0x10] sm:$0xff]
        %v1396 = vld [vmem:[%s26 + $0x18] sm:$0xff]
        %v1397 = vld [vmem:[%s26 + $0x20] sm:$0xff]
        %v1398 = vld [vmem:[%s26 + $0x28] sm:$0xff]
        %v1399 = vld [vmem:[%s26 + $0x30] sm:$0xff]
        %v1400 = vld [vmem:[%s26 + $0x38] sm:$0xff]
        %v1401 = vld [vmem:[%s26 + $0x40] sm:$0xff]
        %v1402 = vld [vmem:[%s26 + $0x48] sm:$0xff]
        %v1403 = vld [vmem:[%s26 + $0x50] sm:$0xff]
        %v1404 = vld [vmem:[%s26 + $0x58] sm:$0xff]
        %v1405 = vld [vmem:[%s26 + $0x60] sm:$0xff]
        %v1406 = vld [vmem:[%s26 + $0x68] sm:$0xff]
        %v1407 = vld [vmem:[%s26 + $0x70] sm:$0xff]
        %v1408 = vld [vmem:[%s26 + $0x78] sm:$0xff]
        %v1409 = vld [vmem:[%s26 + $0x80] sm:$0xff]
        %v1410 = vld [vmem:[%s26 + $0x88] sm:$0xff]
        %v1411 = vld [vmem:[%s26 + $0x90] sm:$0xff]
        %v1412 = vld [vmem:[%s26 + $0x98] sm:$0xff]
        %v1413 = vld [vmem:[%s26 + $0xa0] sm:$0xff]
        %v1414 = vld [vmem:[%s26 + $0xa8] sm:$0xff]
        %v1415 = vld [vmem:[%s26 + $0xb0] sm:$0xff]
        %v1416 = vld [vmem:[%s26 + $0xb8] sm:$0xff]
        %v1417 = vld [vmem:[%s26 + $0xc0] sm:$0xff]
        %v1418 = vld [vmem:[%s26 + $0xc8] sm:$0xff]
        %v1419 = vld [vmem:[%s26 + $0xd0] sm:$0xff]
        %v1420 = vld [vmem:[%s26 + $0xd8] sm:$0xff]
        %v1421 = vld [vmem:[%s26 + $0xe0] sm:$0xff]
        %v1422 = vld [vmem:[%s26 + $0xe8] sm:$0xff]
        %v1423 = vld [vmem:[%s26 + $0xf0] sm:$0xff]
        %v1424 = vld [vmem:[%s26 + $0xf8] sm:$0xff]
        %v1425 = vld [vmem:[%s26 + $0x100] sm:$0xff]
        %v1426 = vld [vmem:[%s26 + $0x108] sm:$0xff]
        %v1427 = vld [vmem:[%s26 + $0x110] sm:$0xff]
        %v1428 = vld [vmem:[%s26 + $0x118] sm:$0xff]
        %v1429 = vld [vmem:[%s26 + $0x120] sm:$0xff]
        %v1430 = vld [vmem:[%s26 + $0x128] sm:$0xff]
        %v1431 = vld [vmem:[%s26 + $0x130] sm:$0xff]
        %v1432 = vld [vmem:[%s26 + $0x138] sm:$0xff]
        %v1433 = vld [vmem:[%s26 + $0x140] sm:$0xff]
        %v1434 = vld [vmem:[%s26 + $0x148] sm:$0xff]
        %v1435 = vld [vmem:[%s26 + $0x150] sm:$0xff]
        %v1436 = vld [vmem:[%s26 + $0x158] sm:$0xff]
        %v1437 = vld [vmem:[%s26 + $0x160] sm:$0xff]
        %v1438 = vld [vmem:[%s26 + $0x168] sm:$0xff]
        %v1439 = vld [vmem:[%s26 + $0x170] sm:$0xff]
        %v1440 = vld [vmem:[%s26 + $0x178] sm:$0xff]
        %v1441 = vlaneseq
        %v1442 = vshrl.u32 %v1441, 7
        %v1443 = vlaneseq
        %v1444 = vand.u32 %v1443, 127
        %v1445 = vmul.u32 %v1442, 2
        %vm1446 = vcmp.eq.s32.totalorder %v1444, %v1445
        %v1447 = vsel %vm1446, 1, 0
        %v1448 = vcvt.s32.f32 %v1447
        %v1449 = vld [vmem:[%s1057] sm:$0xff]
        %v1450 = vld [vmem:[%s1057 + $0x8] sm:$0xff]
        %vm1453 = vcmask 1040384
        %v1454 = vrot.slane %v1449, 7
        %v1455 = vrot.slane %v1450, 7
        %v1456 = vsel %vm1453, %v1454, %v1455
        %v1459 = vsel %vm1453, 0.0, %v1454
        %v1460 = vsel %vm1453, %v1455, 0.0
        %vm1463 = vcmask 1046528
        %v1464 = vrot.slane %v1459, 1
        %v1465 = vrot.slane %v1456, 1
        %v1466 = vsel %vm1463, %v1464, %v1465
        %v1467 = vrot.slane %v1460, 1
        %v1468 = vsel %vm1463, %v1465, %v1467
        %vm1469 = vcmask 523264
        %v1470 = vsel %vm1469, %v1466, 0
        %v1472 = vsel %vm1469, %v1468, 0
        %1474 = vmatpush.msra.mxu0 0.0
        %1475 = vmatpush.msra.mxu0 0.0
        %1476 = vmatpush.msra.mxu0 0.0
        %1477 = vmatpush.msra.mxu0 0.0
        %1478 = vmatpush.msra.mxu0 0.0
        %1479 = vmatpush.msra.mxu0 0.0
        %1480 = vmatpush.msra.mxu0 0.0
        %1481 = vmatpush.msra.mxu0 0.0
        %1482 = vmatpush.msra.mxu0 %v1177
        %1483 = vmatpush.msra.mxu0 %v1176
        %1484 = vmatpush.msra.mxu0 %v1175
        %1485 = vmatpush.msra.mxu0 %v1174
        %1486 = vmatpush.msra.mxu0 %v1173
        %1487 = vmatpush.msra.mxu0 %v1172
        %1488 = vmatpush.msra.mxu0 %v1171
        %1489 = vmatpush.msra.mxu0 %v1170
        %1490 = vmatmul.f32.gmra.mxu0 %v1470
        %v1491 = vpop.f32.mrf.mxu0
        %v1492 = vadd.f32 0.0, %v1491
        %1493 = vmatmul.f32.gmra.mxu0 %v1472
        %v1494 = vpop.f32.mrf.mxu0
        %v1495 = vadd.f32 0.0, %v1494
        %1496 = vdwg.mxu0
        %v1497 = vsel %vm1469, %v1459, 0
        %v1499 = vsel %vm1469, %v1456, 0
        %1501 = vmatpush.msra.mxu0 0.0
        %1502 = vmatpush.msra.mxu0 0.0
        %1503 = vmatpush.msra.mxu0 0.0
        %1504 = vmatpush.msra.mxu0 0.0
        %1505 = vmatpush.msra.mxu0 0.0
        %1506 = vmatpush.msra.mxu0 0.0
        %1507 = vmatpush.msra.mxu0 0.0
        %1508 = vmatpush.msra.mxu0 0.0
        %1509 = vmatpush.msra.mxu0 %v1169
        %1510 = vmatpush.msra.mxu0 %v1168
        %1511 = vmatpush.msra.mxu0 %v1167
        %1512 = vmatpush.msra.mxu0 %v1166
        %1513 = vmatpush.msra.mxu0 %v1165
        %1514 = vmatpush.msra.mxu0 %v1164
        %1515 = vmatpush.msra.mxu0 %v1163
        %1516 = vmatpush.msra.mxu0 %v1162
        %1517 = vmatmul.f32.gmra.mxu0 %v1497
        %v1518 = vpop.f32.mrf.mxu0
        %v1519 = vadd.f32 %v1492, %v1518
        %1520 = vmatmul.f32.gmra.mxu0 %v1499
        %v1521 = vpop.f32.mrf.mxu0
        %v1522 = vadd.f32 %v1495, %v1521
        %1523 = vdwg.mxu0
        %vm1524 = vcmask 1045504
        %v1525 = vrot.slane %v1459, 2
        %v1526 = vrot.slane %v1456, 2
        %v1527 = vsel %vm1524, %v1525, %v1526
        %v1528 = vrot.slane %v1460, 2
        %v1529 = vsel %vm1524, %v1526, %v1528
        %v1530 = vsel %vm1469, %v1527, 0
        %v1532 = vsel %vm1469, %v1529, 0
        %1534 = vmatpush.msra.mxu0 0.0
        %1535 = vmatpush.msra.mxu0 0.0
        %1536 = vmatpush.msra.mxu0 0.0
        %1537 = vmatpush.msra.mxu0 0.0
        %1538 = vmatpush.msra.mxu0 0.0
        %1539 = vmatpush.msra.mxu0 0.0
        %1540 = vmatpush.msra.mxu0 0.0
        %1541 = vmatpush.msra.mxu0 0.0
        %1542 = vmatpush.msra.mxu0 %v1185
        %1543 = vmatpush.msra.mxu0 %v1184
        %1544 = vmatpush.msra.mxu0 %v1183
        %1545 = vmatpush.msra.mxu0 %v1182
        %1546 = vmatpush.msra.mxu0 %v1181
        %1547 = vmatpush.msra.mxu0 %v1180
        %1548 = vmatpush.msra.mxu0 %v1179
        %1549 = vmatpush.msra.mxu0 %v1178
        %1550 = vmatmul.f32.gmra.mxu0 %v1530
        %v1551 = vpop.f32.mrf.mxu0
        %v1552 = vadd.f32 0.0, %v1551
        %1553 = vmatmul.f32.gmra.mxu0 %v1532
        %v1554 = vpop.f32.mrf.mxu0
        %v1555 = vadd.f32 0.0, %v1554
        %1556 = vdwg.mxu0
        %v1557 = vadd.f32 %v1519, %v1552
        %v1558 = vadd.f32 %v1522, %v1555
        %v1560 = vperm.slane %v1160, 0
        %v1562 = vadd.f32 %v1557, %v1560
        %v1563 = vadd.f32 %v1558, %v1560
        %v1564 = vmax.f32 %v1562, 0.0
        %v1565 = vmax.f32 %v1563, 0.0
        %v1568 = vrot.slane %v1564, 7
        %v1569 = vrot.slane %v1565, 7
        %v1570 = vsel %vm1453, %v1568, %v1569
        %v1573 = vsel %vm1453, 0.0, %v1568
        %v1574 = vsel %vm1453, %v1569, 0.0
        %v1577 = vrot.slane %v1573, 1
        %v1578 = vrot.slane %v1570, 1
        %v1579 = vsel %vm1463, %v1577, %v1578
        %v1580 = vrot.slane %v1574, 1
        %v1581 = vsel %vm1463, %v1578, %v1580
        %v1582 = vsel %vm1469, %v1579, 0
        %v1584 = vsel %vm1469, %v1581, 0
        %1586 = vmatpush.msra.mxu0 0.0
        %1587 = vmatpush.msra.mxu0 0.0
        %1588 = vmatpush.msra.mxu0 0.0
        %1589 = vmatpush.msra.mxu0 0.0
        %1590 = vmatpush.msra.mxu0 0.0
        %1591 = vmatpush.msra.mxu0 0.0
        %1592 = vmatpush.msra.mxu0 0.0
        %1593 = vmatpush.msra.mxu0 0.0
        %1594 = vmatpush.msra.mxu0 %v1201
        %1595 = vmatpush.msra.mxu0 %v1200
        %1596 = vmatpush.msra.mxu0 %v1199
        %1597 = vmatpush.msra.mxu0 %v1198
        %1598 = vmatpush.msra.mxu0 %v1197
        %1599 = vmatpush.msra.mxu0 %v1196
        %1600 = vmatpush.msra.mxu0 %v1195
        %1601 = vmatpush.msra.mxu0 %v1194
        %1602 = vmatmul.f32.gmra.mxu0 %v1582
        %v1603 = vpop.f32.mrf.mxu0
        %v1604 = vadd.f32 0.0, %v1603
        %1605 = vmatmul.f32.gmra.mxu0 %v1584
        %v1606 = vpop.f32.mrf.mxu0
        %v1607 = vadd.f32 0.0, %v1606
        %1608 = vdwg.mxu0
        %v1609 = vsel %vm1469, %v1573, 0
        %v1611 = vsel %vm1469, %v1570, 0
        %1613 = vmatpush.msra.mxu0 0.0
        %1614 = vmatpush.msra.mxu0 0.0
        %1615 = vmatpush.msra.mxu0 0.0
        %1616 = vmatpush.msra.mxu0 0.0
        %1617 = vmatpush.msra.mxu0 0.0
        %1618 = vmatpush.msra.mxu0 0.0
        %1619 = vmatpush.msra.mxu0 0.0
        %1620 = vmatpush.msra.mxu0 0.0
        %1621 = vmatpush.msra.mxu0 %v1193
        %1622 = vmatpush.msra.mxu0 %v1192
        %1623 = vmatpush.msra.mxu0 %v1191
        %1624 = vmatpush.msra.mxu0 %v1190
        %1625 = vmatpush.msra.mxu0 %v1189
        %1626 = vmatpush.msra.mxu0 %v1188
        %1627 = vmatpush.msra.mxu0 %v1187
        %1628 = vmatpush.msra.mxu0 %v1186
        %1629 = vmatmul.f32.gmra.mxu0 %v1609
        %v1630 = vpop.f32.mrf.mxu0
        %v1631 = vadd.f32 %v1604, %v1630
        %1632 = vmatmul.f32.gmra.mxu0 %v1611
        %v1633 = vpop.f32.mrf.mxu0
        %v1634 = vadd.f32 %v1607, %v1633
        %1635 = vdwg.mxu0
        %v1636 = vrot.slane %v1573, 2
        %v1637 = vrot.slane %v1570, 2
        %v1638 = vsel %vm1524, %v1636, %v1637
        %v1639 = vrot.slane %v1574, 2
        %v1640 = vsel %vm1524, %v1637, %v1639
        %v1641 = vsel %vm1469, %v1638, 0
        %v1643 = vsel %vm1469, %v1640, 0
        %1645 = vmatpush.msra.mxu0 0.0
        %1646 = vmatpush.msra.mxu0 0.0
        %1647 = vmatpush.msra.mxu0 0.0
        %1648 = vmatpush.msra.mxu0 0.0
        %1649 = vmatpush.msra.mxu0 0.0
        %1650 = vmatpush.msra.mxu0 0.0
        %1651 = vmatpush.msra.mxu0 0.0
        %1652 = vmatpush.msra.mxu0 0.0
        %1653 = vmatpush.msra.mxu0 %v1209
        %1654 = vmatpush.msra.mxu0 %v1208
        %1655 = vmatpush.msra.mxu0 %v1207
        %1656 = vmatpush.msra.mxu0 %v1206
        %1657 = vmatpush.msra.mxu0 %v1205
        %1658 = vmatpush.msra.mxu0 %v1204
        %1659 = vmatpush.msra.mxu0 %v1203
        %1660 = vmatpush.msra.mxu0 %v1202
        %1661 = vmatmul.f32.gmra.mxu0 %v1641
        %v1662 = vpop.f32.mrf.mxu0
        %v1663 = vadd.f32 0.0, %v1662
        %1664 = vmatmul.f32.gmra.mxu0 %v1643
        %v1665 = vpop.f32.mrf.mxu0
        %v1666 = vadd.f32 0.0, %v1665
        %1667 = vdwg.mxu0
        %v1668 = vadd.f32 %v1631, %v1663
        %v1669 = vadd.f32 %v1634, %v1666
        %v1671 = vperm.slane %v1161, 0
        %v1673 = vadd.f32 %v1668, %v1671
        %v1674 = vadd.f32 %v1669, %v1671
        %v1675 = vadd.f32 %v1673, %v1449
        %v1676 = vadd.f32 %v1674, %v1450
        %v1677 = vmax.f32 %v1675, 0.0
        %v1678 = vmax.f32 %v1676, 0.0
        %v1681 = vrot.slane %v1677, 7
        %v1682 = vrot.slane %v1678, 7
        %v1683 = vsel %vm1453, %v1681, %v1682
        %v1686 = vsel %vm1453, 0.0, %v1681
        %v1687 = vsel %vm1453, %v1682, 0.0
        %v1690 = vrot.slane %v1686, 1
        %v1691 = vrot.slane %v1683, 1
        %v1692 = vsel %vm1463, %v1690, %v1691
        %v1693 = vrot.slane %v1687, 1
        %v1694 = vsel %vm1463, %v1691, %v1693
        %v1695 = vsel %vm1469, %v1692, 0
        %v1697 = vsel %vm1469, %v1694, 0
        %1699 = vmatpush.msra.mxu0 0.0
        %1700 = vmatpush.msra.mxu0 0.0
        %1701 = vmatpush.msra.mxu0 0.0
        %1702 = vmatpush.msra.mxu0 0.0
        %1703 = vmatpush.msra.mxu0 0.0
        %1704 = vmatpush.msra.mxu0 0.0
        %1705 = vmatpush.msra.mxu0 0.0
        %1706 = vmatpush.msra.mxu0 0.0
        %1707 = vmatpush.msra.mxu0 %v1227
        %1708 = vmatpush.msra.mxu0 %v1226
        %1709 = vmatpush.msra.mxu0 %v1225
        %1710 = vmatpush.msra.mxu0 %v1224
        %1711 = vmatpush.msra.mxu0 %v1223
        %1712 = vmatpush.msra.mxu0 %v1222
        %1713 = vmatpush.msra.mxu0 %v1221
        %1714 = vmatpush.msra.mxu0 %v1220
        %1715 = vmatmul.f32.gmra.mxu0 %v1695
        %v1716 = vpop.f32.mrf.mxu0
        %v1717 = vadd.f32 0.0, %v1716
        %1718 = vmatmul.f32.gmra.mxu0 %v1697
        %v1719 = vpop.f32.mrf.mxu0
        %v1720 = vadd.f32 0.0, %v1719
        %1721 = vdwg.mxu0
        %v1722 = vsel %vm1469, %v1686, 0
        %v1724 = vsel %vm1469, %v1683, 0
        %1726 = vmatpush.msra.mxu0 0.0
        %1727 = vmatpush.msra.mxu0 0.0
        %1728 = vmatpush.msra.mxu0 0.0
        %1729 = vmatpush.msra.mxu0 0.0
        %1730 = vmatpush.msra.mxu0 0.0
        %1731 = vmatpush.msra.mxu0 0.0
        %1732 = vmatpush.msra.mxu0 0.0
        %1733 = vmatpush.msra.mxu0 0.0
        %1734 = vmatpush.msra.mxu0 %v1219
        %1735 = vmatpush.msra.mxu0 %v1218
        %1736 = vmatpush.msra.mxu0 %v1217
        %1737 = vmatpush.msra.mxu0 %v1216
        %1738 = vmatpush.msra.mxu0 %v1215
        %1739 = vmatpush.msra.mxu0 %v1214
        %1740 = vmatpush.msra.mxu0 %v1213
        %1741 = vmatpush.msra.mxu0 %v1212
        %1742 = vmatmul.f32.gmra.mxu0 %v1722
        %v1743 = vpop.f32.mrf.mxu0
        %v1744 = vadd.f32 %v1717, %v1743
        %1745 = vmatmul.f32.gmra.mxu0 %v1724
        %v1746 = vpop.f32.mrf.mxu0
        %v1747 = vadd.f32 %v1720, %v1746
        %1748 = vdwg.mxu0
        %v1749 = vrot.slane %v1686, 2
        %v1750 = vrot.slane %v1683, 2
        %v1751 = vsel %vm1524, %v1749, %v1750
        %v1752 = vrot.slane %v1687, 2
        %v1753 = vsel %vm1524, %v1750, %v1752
        %v1754 = vsel %vm1469, %v1751, 0
        %v1756 = vsel %vm1469, %v1753, 0
        %1758 = vmatpush.msra.mxu0 0.0
        %1759 = vmatpush.msra.mxu0 0.0
        %1760 = vmatpush.msra.mxu0 0.0
        %1761 = vmatpush.msra.mxu0 0.0
        %1762 = vmatpush.msra.mxu0 0.0
        %1763 = vmatpush.msra.mxu0 0.0
        %1764 = vmatpush.msra.mxu0 0.0
        %1765 = vmatpush.msra.mxu0 0.0
        %1766 = vmatpush.msra.mxu0 %v1235
        %1767 = vmatpush.msra.mxu0 %v1234
        %1768 = vmatpush.msra.mxu0 %v1233
        %1769 = vmatpush.msra.mxu0 %v1232
        %1770 = vmatpush.msra.mxu0 %v1231
        %1771 = vmatpush.msra.mxu0 %v1230
        %1772 = vmatpush.msra.mxu0 %v1229
        %1773 = vmatpush.msra.mxu0 %v1228
        %1774 = vmatmul.f32.gmra.mxu0 %v1754
        %v1775 = vpop.f32.mrf.mxu0
        %v1776 = vadd.f32 0.0, %v1775
        %1777 = vmatmul.f32.gmra.mxu0 %v1756
        %v1778 = vpop.f32.mrf.mxu0
        %v1779 = vadd.f32 0.0, %v1778
        %1780 = vdwg.mxu0
        %v1781 = vadd.f32 %v1744, %v1776
        %v1782 = vadd.f32 %v1747, %v1779
        %v1784 = vperm.slane %v1210, 0
        %v1786 = vadd.f32 %v1781, %v1784
        %v1787 = vadd.f32 %v1782, %v1784
        %v1788 = vmax.f32 %v1786, 0.0
        %v1789 = vmax.f32 %v1787, 0.0
        %v1792 = vrot.slane %v1788, 7
        %v1793 = vrot.slane %v1789, 7
        %v1794 = vsel %vm1453, %v1792, %v1793
        %v1797 = vsel %vm1453, 0.0, %v1792
        %v1798 = vsel %vm1453, %v1793, 0.0
        %v1801 = vrot.slane %v1797, 1
        %v1802 = vrot.slane %v1794, 1
        %v1803 = vsel %vm1463, %v1801, %v1802
        %v1804 = vrot.slane %v1798, 1
        %v1805 = vsel %vm1463, %v1802, %v1804
        %v1806 = vsel %vm1469, %v1803, 0
        %v1808 = vsel %vm1469, %v1805, 0
        %1810 = vmatpush.msra.mxu0 0.0
        %1811 = vmatpush.msra.mxu0 0.0
        %1812 = vmatpush.msra.mxu0 0.0
        %1813 = vmatpush.msra.mxu0 0.0
        %1814 = vmatpush.msra.mxu0 0.0
        %1815 = vmatpush.msra.mxu0 0.0
        %1816 = vmatpush.msra.mxu0 0.0
        %1817 = vmatpush.msra.mxu0 0.0
        %1818 = vmatpush.msra.mxu0 %v1251
        %1819 = vmatpush.msra.mxu0 %v1250
        %1820 = vmatpush.msra.mxu0 %v1249
        %1821 = vmatpush.msra.mxu0 %v1248
        %1822 = vmatpush.msra.mxu0 %v1247
        %1823 = vmatpush.msra.mxu0 %v1246
        %1824 = vmatpush.msra.mxu0 %v1245
        %1825 = vmatpush.msra.mxu0 %v1244
        %1826 = vmatmul.f32.gmra.mxu0 %v1806
        %v1827 = vpop.f32.mrf.mxu0
        %v1828 = vadd.f32 0.0, %v1827
        %1829 = vmatmul.f32.gmra.mxu0 %v1808
        %v1830 = vpop.f32.mrf.mxu0
        %v1831 = vadd.f32 0.0, %v1830
        %1832 = vdwg.mxu0
        %v1833 = vsel %vm1469, %v1797, 0
        %v1835 = vsel %vm1469, %v1794, 0
        %1837 = vmatpush.msra.mxu0 0.0
        %1838 = vmatpush.msra.mxu0 0.0
        %1839 = vmatpush.msra.mxu0 0.0
        %1840 = vmatpush.msra.mxu0 0.0
        %1841 = vmatpush.msra.mxu0 0.0
        %1842 = vmatpush.msra.mxu0 0.0
        %1843 = vmatpush.msra.mxu0 0.0
        %1844 = vmatpush.msra.mxu0 0.0
        %1845 = vmatpush.msra.mxu0 %v1243
        %1846 = vmatpush.msra.mxu0 %v1242
        %1847 = vmatpush.msra.mxu0 %v1241
        %1848 = vmatpush.msra.mxu0 %v1240
        %1849 = vmatpush.msra.mxu0 %v1239
        %1850 = vmatpush.msra.mxu0 %v1238
        %1851 = vmatpush.msra.mxu0 %v1237
        %1852 = vmatpush.msra.mxu0 %v1236
        %1853 = vmatmul.f32.gmra.mxu0 %v1833
        %v1854 = vpop.f32.mrf.mxu0
        %v1855 = vadd.f32 %v1828, %v1854
        %1856 = vmatmul.f32.gmra.mxu0 %v1835
        %v1857 = vpop.f32.mrf.mxu0
        %v1858 = vadd.f32 %v1831, %v1857
        %1859 = vdwg.mxu0
        %v1860 = vrot.slane %v1797, 2
        %v1861 = vrot.slane %v1794, 2
        %v1862 = vsel %vm1524, %v1860, %v1861
        %v1863 = vrot.slane %v1798, 2
        %v1864 = vsel %vm1524, %v1861, %v1863
        %v1865 = vsel %vm1469, %v1862, 0
        %v1867 = vsel %vm1469, %v1864, 0
        %1869 = vmatpush.msra.mxu0 0.0
        %1870 = vmatpush.msra.mxu0 0.0
        %1871 = vmatpush.msra.mxu0 0.0
        %1872 = vmatpush.msra.mxu0 0.0
        %1873 = vmatpush.msra.mxu0 0.0
        %1874 = vmatpush.msra.mxu0 0.0
        %1875 = vmatpush.msra.mxu0 0.0
        %1876 = vmatpush.msra.mxu0 0.0
        %1877 = vmatpush.msra.mxu0 %v1259
        %1878 = vmatpush.msra.mxu0 %v1258
        %1879 = vmatpush.msra.mxu0 %v1257
        %1880 = vmatpush.msra.mxu0 %v1256
        %1881 = vmatpush.msra.mxu0 %v1255
        %1882 = vmatpush.msra.mxu0 %v1254
        %1883 = vmatpush.msra.mxu0 %v1253
        %1884 = vmatpush.msra.mxu0 %v1252
        %1885 = vmatmul.f32.gmra.mxu0 %v1865
        %v1886 = vpop.f32.mrf.mxu0
        %v1887 = vadd.f32 0.0, %v1886
        %1888 = vmatmul.f32.gmra.mxu0 %v1867
        %v1889 = vpop.f32.mrf.mxu0
        %v1890 = vadd.f32 0.0, %v1889
        %1891 = vdwg.mxu0
        %v1892 = vadd.f32 %v1855, %v1887
        %v1893 = vadd.f32 %v1858, %v1890
        %v1895 = vperm.slane %v1211, 0
        %v1897 = vadd.f32 %v1892, %v1895
        %v1898 = vadd.f32 %v1893, %v1895
        %v1899 = vadd.f32 %v1897, %v1677
        %v1900 = vadd.f32 %v1898, %v1678
        %v1901 = vmax.f32 %v1899, 0.0
        %v1902 = vmax.f32 %v1900, 0.0
        %v1905 = vrot.slane %v1901, 7
        %v1906 = vrot.slane %v1902, 7
        %v1907 = vsel %vm1453, %v1905, %v1906
        %v1910 = vsel %vm1453, 0.0, %v1905
        %v1911 = vsel %vm1453, %v1906, 0.0
        %v1914 = vrot.slane %v1910, 1
        %v1915 = vrot.slane %v1907, 1
        %v1916 = vsel %vm1463, %v1914, %v1915
        %v1917 = vrot.slane %v1911, 1
        %v1918 = vsel %vm1463, %v1915, %v1917
        %v1919 = vsel %vm1469, %v1916, 0
        %v1921 = vsel %vm1469, %v1918, 0
        %1923 = vmatpush.msra.mxu0 0.0
        %1924 = vmatpush.msra.mxu0 0.0
        %1925 = vmatpush.msra.mxu0 0.0
        %1926 = vmatpush.msra.mxu0 0.0
        %1927 = vmatpush.msra.mxu0 0.0
        %1928 = vmatpush.msra.mxu0 0.0
        %1929 = vmatpush.msra.mxu0 0.0
        %1930 = vmatpush.msra.mxu0 0.0
        %1931 = vmatpush.msra.mxu0 %v1278
        %1932 = vmatpush.msra.mxu0 %v1277
        %1933 = vmatpush.msra.mxu0 %v1276
        %1934 = vmatpush.msra.mxu0 %v1275
        %1935 = vmatpush.msra.mxu0 %v1274
        %1936 = vmatpush.msra.mxu0 %v1273
        %1937 = vmatpush.msra.mxu0 %v1272
        %1938 = vmatpush.msra.mxu0 %v1271
        %1939 = vmatmul.f32.gmra.mxu0 %v1919
        %v1940 = vpop.f32.mrf.mxu0
        %v1941 = vadd.f32 0.0, %v1940
        %1942 = vmatmul.f32.gmra.mxu0 %v1921
        %v1943 = vpop.f32.mrf.mxu0
        %v1944 = vadd.f32 0.0, %v1943
        %1945 = vdwg.mxu0
        %v1946 = vsel %vm1469, %v1910, 0
        %v1948 = vsel %vm1469, %v1907, 0
        %1950 = vmatpush.msra.mxu0 0.0
        %1951 = vmatpush.msra.mxu0 0.0
        %1952 = vmatpush.msra.mxu0 0.0
        %1953 = vmatpush.msra.mxu0 0.0
        %1954 = vmatpush.msra.mxu0 0.0
        %1955 = vmatpush.msra.mxu0 0.0
        %1956 = vmatpush.msra.mxu0 0.0
        %1957 = vmatpush.msra.mxu0 0.0
        %1958 = vmatpush.msra.mxu0 %v1270
        %1959 = vmatpush.msra.mxu0 %v1269
        %1960 = vmatpush.msra.mxu0 %v1268
        %1961 = vmatpush.msra.mxu0 %v1267
        %1962 = vmatpush.msra.mxu0 %v1266
        %1963 = vmatpush.msra.mxu0 %v1265
        %1964 = vmatpush.msra.mxu0 %v1264
        %1965 = vmatpush.msra.mxu0 %v1263
        %1966 = vmatmul.f32.gmra.mxu0 %v1946
        %v1967 = vpop.f32.mrf.mxu0
        %v1968 = vadd.f32 %v1941, %v1967
        %1969 = vmatmul.f32.gmra.mxu0 %v1948
        %v1970 = vpop.f32.mrf.mxu0
        %v1971 = vadd.f32 %v1944, %v1970
        %1972 = vdwg.mxu0
        %v1973 = vrot.slane %v1910, 2
        %v1974 = vrot.slane %v1907, 2
        %v1975 = vsel %vm1524, %v1973, %v1974
        %v1976 = vrot.slane %v1911, 2
        %v1977 = vsel %vm1524, %v1974, %v1976
        %v1978 = vsel %vm1469, %v1975, 0
        %v1980 = vsel %vm1469, %v1977, 0
        %1982 = vmatpush.msra.mxu0 0.0
        %1983 = vmatpush.msra.mxu0 0.0
        %1984 = vmatpush.msra.mxu0 0.0
        %1985 = vmatpush.msra.mxu0 0.0
        %1986 = vmatpush.msra.mxu0 0.0
        %1987 = vmatpush.msra.mxu0 0.0
        %1988 = vmatpush.msra.mxu0 0.0
        %1989 = vmatpush.msra.mxu0 0.0
        %1990 = vmatpush.msra.mxu0 %v1286
        %1991 = vmatpush.msra.mxu0 %v1285
        %1992 = vmatpush.msra.mxu0 %v1284
        %1993 = vmatpush.msra.mxu0 %v1283
        %1994 = vmatpush.msra.mxu0 %v1282
        %1995 = vmatpush.msra.mxu0 %v1281
        %1996 = vmatpush.msra.mxu0 %v1280
        %1997 = vmatpush.msra.mxu0 %v1279
        %1998 = vmatmul.f32.gmra.mxu0 %v1978
        %v1999 = vpop.f32.mrf.mxu0
        %v2000 = vadd.f32 0.0, %v1999
        %2001 = vmatmul.f32.gmra.mxu0 %v1980
        %v2002 = vpop.f32.mrf.mxu0
        %v2003 = vadd.f32 0.0, %v2002
        %2004 = vdwg.mxu0
        %v2005 = vadd.f32 %v1968, %v2000
        %v2006 = vadd.f32 %v1971, %v2003
        %v2008 = vperm.slane %v1260, 0
        %v2010 = vadd.f32 %v2005, %v2008
        %v2011 = vadd.f32 %v2006, %v2008
        %vm2012 = vcmask 130048
        %v2014 = vsel %vm2012, %v1448, 0
        %2016 = vmatpush.msra.mxu0 0.0
        %2017 = vmatpush.msra.mxu0 0.0
        %2018 = vmatpush.msra.mxu0 0.0
        %2019 = vmatpush.msra.mxu0 0.0
        %2020 = vmatpush.msra.mxu0 0.0
        %2021 = vmatpush.msra.mxu0 0.0
        %2022 = vmatpush.msra.mxu0 0.0
        %2023 = vmatpush.msra.mxu0 0.0
        %2024 = vmatpush.msra.mxu0 0.0
        %2025 = vmatpush.msra.mxu0 0.0
        %2026 = vmatpush.msra.mxu0 0.0
        %2027 = vmatpush.msra.mxu0 0.0
        %2028 = vmatpush.msra.mxu0 0.0
        %2029 = vmatpush.msra.mxu0 0.0
        %2030 = vmatpush.msra.mxu0 %v2011
        %2031 = vmatpush.msra.mxu0 %v2010
        %2032 = vmatmul.f32.gmra.mxu0 %v2014
        %v2033 = vpop.f32.mrf.mxu0
        %v2034 = vadd.f32 0.0, %v2033
        %2035 = vdwg.mxu0
        %v2036 = vmax.f32 %v2034, 0.0
        %v2038 = vrot.slane %v2036, 7
        %v2040 = vsel %vm1453, 0.0, %v2038
        %v2041 = vsel %vm1453, %v2038, 0.0
        %v2044 = vrot.slane %v2040, 1
        %v2045 = vrot.slane %v2041, 1
        %v2046 = vsel %vm1463, %v2044, %v2045
        %2048 = vmatpush.msra.mxu0 %v1318
        %2049 = vmatpush.msra.mxu0 %v1317
        %2050 = vmatpush.msra.mxu0 %v1316
        %2051 = vmatpush.msra.mxu0 %v1315
        %2052 = vmatpush.msra.mxu0 %v1314
        %2053 = vmatpush.msra.mxu0 %v1313
        %2054 = vmatpush.msra.mxu0 %v1312
        %2055 = vmatpush.msra.mxu0 %v1311
        %2056 = vmatpush.msra.mxu0 %v1310
        %2057 = vmatpush.msra.mxu0 %v1309
        %2058 = vmatpush.msra.mxu0 %v1308
        %2059 = vmatpush.msra.mxu0 %v1307
        %2060 = vmatpush.msra.mxu0 %v1306
        %2061 = vmatpush.msra.mxu0 %v1305
        %2062 = vmatpush.msra.mxu0 %v1304
        %2063 = vmatpush.msra.mxu0 %v1303
        %2064 = vmatmul.f32.gmra.mxu0 %v2046
        %v2065 = vpop.f32.mrf.mxu0
        %v2066 = vadd.f32 0.0, %v2065
        %2067 = vdwg.mxu0
        %2068 = vmatpush.msra.mxu0 %v1302
        %2069 = vmatpush.msra.mxu0 %v1301
        %2070 = vmatpush.msra.mxu0 %v1300
        %2071 = vmatpush.msra.mxu0 %v1299
        %2072 = vmatpush.msra.mxu0 %v1298
        %2073 = vmatpush.msra.mxu0 %v1297
        %2074 = vmatpush.msra.mxu0 %v1296
        %2075 = vmatpush.msra.mxu0 %v1295
        %2076 = vmatpush.msra.mxu0 %v1294
        %2077 = vmatpush.msra.mxu0 %v1293
        %2078 = vmatpush.msra.mxu0 %v1292
        %2079 = vmatpush.msra.mxu0 %v1291
        %2080 = vmatpush.msra.mxu0 %v1290
        %2081 = vmatpush.msra.mxu0 %v1289
        %2082 = vmatpush.msra.mxu0 %v1288
        %2083 = vmatpush.msra.mxu0 %v1287
        %2084 = vmatmul.f32.gmra.mxu0 %v2040
        %v2085 = vpop.f32.mrf.mxu0
        %v2086 = vadd.f32 %v2066, %v2085
        %2087 = vdwg.mxu0
        %v2088 = vrot.slane %v2040, 2
        %v2089 = vrot.slane %v2041, 2
        %v2090 = vsel %vm1524, %v2088, %v2089
        %2092 = vmatpush.msra.mxu0 %v1334
        %2093 = vmatpush.msra.mxu0 %v1333
        %2094 = vmatpush.msra.mxu0 %v1332
        %2095 = vmatpush.msra.mxu0 %v1331
        %2096 = vmatpush.msra.mxu0 %v1330
        %2097 = vmatpush.msra.mxu0 %v1329
        %2098 = vmatpush.msra.mxu0 %v1328
        %2099 = vmatpush.msra.mxu0 %v1327
        %2100 = vmatpush.msra.mxu0 %v1326
        %2101 = vmatpush.msra.mxu0 %v1325
        %2102 = vmatpush.msra.mxu0 %v1324
        %2103 = vmatpush.msra.mxu0 %v1323
        %2104 = vmatpush.msra.mxu0 %v1322
        %2105 = vmatpush.msra.mxu0 %v1321
        %2106 = vmatpush.msra.mxu0 %v1320
        %2107 = vmatpush.msra.mxu0 %v1319
        %2108 = vmatmul.f32.gmra.mxu0 %v2090
        %v2109 = vpop.f32.mrf.mxu0
        %v2110 = vadd.f32 0.0, %v2109
        %2111 = vdwg.mxu0
        %v2112 = vadd.f32 %v2086, %v2110
        %v2114 = vperm.slane %v1261, 0
        %v2116 = vadd.f32 %v2112, %v2114
        %2117 = vmatpush.msra.mxu0 0.0
        %2118 = vmatpush.msra.mxu0 0.0
        %2119 = vmatpush.msra.mxu0 0.0
        %2120 = vmatpush.msra.mxu0 0.0
        %2121 = vmatpush.msra.mxu0 0.0
        %2122 = vmatpush.msra.mxu0 0.0
        %2123 = vmatpush.msra.mxu0 0.0
        %2124 = vmatpush.msra.mxu0 0.0
        %2125 = vmatpush.msra.mxu0 0.0
        %2126 = vmatpush.msra.mxu0 0.0
        %2127 = vmatpush.msra.mxu0 0.0
        %2128 = vmatpush.msra.mxu0 0.0
        %2129 = vmatpush.msra.mxu0 0.0
        %2130 = vmatpush.msra.mxu0 0.0
        %2131 = vmatpush.msra.mxu0 %v1902
        %2132 = vmatpush.msra.mxu0 %v1901
        %2133 = vmatmul.f32.gmra.mxu0 %v2014
        %v2134 = vpop.f32.mrf.mxu0
        %v2135 = vadd.f32 0.0, %v2134
        %2136 = vdwg.mxu0
        %v2138 = vperm.slane %v1262, 0
        %v2141 = vsel %vm1469, %v2135, 0
        %2143 = vmatpush.msra.mxu0 0.0
        %2144 = vmatpush.msra.mxu0 0.0
        %2145 = vmatpush.msra.mxu0 0.0
        %2146 = vmatpush.msra.mxu0 0.0
        %2147 = vmatpush.msra.mxu0 0.0
        %2148 = vmatpush.msra.mxu0 0.0
        %2149 = vmatpush.msra.mxu0 0.0
        %2150 = vmatpush.msra.mxu0 0.0
        %2151 = vmatpush.msra.mxu0 %v1342
        %2152 = vmatpush.msra.mxu0 %v1341
        %2153 = vmatpush.msra.mxu0 %v1340
        %2154 = vmatpush.msra.mxu0 %v1339
        %2155 = vmatpush.msra.mxu0 %v1338
        %2156 = vmatpush.msra.mxu0 %v1337
        %2157 = vmatpush.msra.mxu0 %v1336
        %2158 = vmatpush.msra.mxu0 %v1335
        %2159 = vmatmul.f32.gmra.mxu0 %v2141
        %v2160 = vpop.f32.mrf.mxu0
        %v2161 = vadd.f32 %v2138, %v2160
        %2162 = vdwg.mxu0
        %v2163 = vadd.f32 %v2116, %v2161
        %v2164 = vmax.f32 %v2163, 0.0
        %v2166 = vrot.slane %v2164, 7
        %v2168 = vsel %vm1453, 0.0, %v2166
        %v2169 = vsel %vm1453, %v2166, 0.0
        %v2172 = vrot.slane %v2168, 1
        %v2173 = vrot.slane %v2169, 1
        %v2174 = vsel %vm1463, %v2172, %v2173
        %2176 = vmatpush.msra.mxu0 %v1376
        %2177 = vmatpush.msra.mxu0 %v1375
        %2178 = vmatpush.msra.mxu0 %v1374
        %2179 = vmatpush.msra.mxu0 %v1373
        %2180 = vmatpush.msra.mxu0 %v1372
        %2181 = vmatpush.msra.mxu0 %v1371
        %2182 = vmatpush.msra.mxu0 %v1370
        %2183 = vmatpush.msra.mxu0 %v1369
        %2184 = vmatpush.msra.mxu0 %v1368
        %2185 = vmatpush.msra.mxu0 %v1367
        %2186 = vmatpush.msra.mxu0 %v1366
        %2187 = vmatpush.msra.mxu0 %v1365
        %2188 = vmatpush.msra.mxu0 %v1364
        %2189 = vmatpush.msra.mxu0 %v1363
        %2190 = vmatpush.msra.mxu0 %v1362
        %2191 = vmatpush.msra.mxu0 %v1361
        %2192 = vmatmul.f32.gmra.mxu0 %v2174
        %v2193 = vpop.f32.mrf.mxu0
        %v2194 = vadd.f32 0.0, %v2193
        %2195 = vdwg.mxu0
        %2196 = vmatpush.msra.mxu0 %v1360
        %2197 = vmatpush.msra.mxu0 %v1359
        %2198 = vmatpush.msra.mxu0 %v1358
        %2199 = vmatpush.msra.mxu0 %v1357
        %2200 = vmatpush.msra.mxu0 %v1356
        %2201 = vmatpush.msra.mxu0 %v1355
        %2202 = vmatpush.msra.mxu0 %v1354
        %2203 = vmatpush.msra.mxu0 %v1353
        %2204 = vmatpush.msra.mxu0 %v1352
        %2205 = vmatpush.msra.mxu0 %v1351
        %2206 = vmatpush.msra.mxu0 %v1350
        %2207 = vmatpush.msra.mxu0 %v1349
        %2208 = vmatpush.msra.mxu0 %v1348
        %2209 = vmatpush.msra.mxu0 %v1347
        %2210 = vmatpush.msra.mxu0 %v1346
        %2211 = vmatpush.msra.mxu0 %v1345
        %2212 = vmatmul.f32.gmra.mxu0 %v2168
        %v2213 = vpop.f32.mrf.mxu0
        %v2214 = vadd.f32 %v2194, %v2213
        %2215 = vdwg.mxu0
        %v2216 = vrot.slane %v2168, 2
        %v2217 = vrot.slane %v2169, 2
        %v2218 = vsel %vm1524, %v2216, %v2217
        %2220 = vmatpush.msra.mxu0 %v1392
        %2221 = vmatpush.msra.mxu0 %v1391
        %2222 = vmatpush.msra.mxu0 %v1390
        %2223 = vmatpush.msra.mxu0 %v1389
        %2224 = vmatpush.msra.mxu0 %v1388
        %2225 = vmatpush.msra.mxu0 %v1387
        %2226 = vmatpush.msra.mxu0 %v1386
        %2227 = vmatpush.msra.mxu0 %v1385
        %2228 = vmatpush.msra.mxu0 %v1384
        %2229 = vmatpush.msra.mxu0 %v1383
        %2230 = vmatpush.msra.mxu0 %v1382
        %2231 = vmatpush.msra.mxu0 %v1381
        %2232 = vmatpush.msra.mxu0 %v1380
        %2233 = vmatpush.msra.mxu0 %v1379
        %2234 = vmatpush.msra.mxu0 %v1378
        %2235 = vmatpush.msra.mxu0 %v1377
        %2236 = vmatmul.f32.gmra.mxu0 %v2218
        %v2237 = vpop.f32.mrf.mxu0
        %v2238 = vadd.f32 0.0, %v2237
        %2239 = vdwg.mxu0
        %v2240 = vadd.f32 %v2214, %v2238
        %v2242 = vperm.slane %v1343, 0
        %v2244 = vadd.f32 %v2240, %v2242
        %v2245 = vmax.f32 %v2244, 0.0
        %v2247 = vrot.slane %v2245, 7
        %v2249 = vsel %vm1453, 0.0, %v2247
        %v2250 = vsel %vm1453, %v2247, 0.0
        %v2253 = vrot.slane %v2249, 1
        %v2254 = vrot.slane %v2250, 1
        %v2255 = vsel %vm1463, %v2253, %v2254
        %2257 = vmatpush.msra.mxu0 %v1424
        %2258 = vmatpush.msra.mxu0 %v1423
        %2259 = vmatpush.msra.mxu0 %v1422
        %2260 = vmatpush.msra.mxu0 %v1421
        %2261 = vmatpush.msra.mxu0 %v1420
        %2262 = vmatpush.msra.mxu0 %v1419
        %2263 = vmatpush.msra.mxu0 %v1418
        %2264 = vmatpush.msra.mxu0 %v1417
        %2265 = vmatpush.msra.mxu0 %v1416
        %2266 = vmatpush.msra.mxu0 %v1415
        %2267 = vmatpush.msra.mxu0 %v1414
        %2268 = vmatpush.msra.mxu0 %v1413
        %2269 = vmatpush.msra.mxu0 %v1412
        %2270 = vmatpush.msra.mxu0 %v1411
        %2271 = vmatpush.msra.mxu0 %v1410
        %2272 = vmatpush.msra.mxu0 %v1409
        %2273 = vmatmul.f32.gmra.mxu0 %v2255
        %v2274 = vpop.f32.mrf.mxu0
        %v2275 = vadd.f32 0.0, %v2274
        %2276 = vdwg.mxu0
        %2277 = vmatpush.msra.mxu0 %v1408
        %2278 = vmatpush.msra.mxu0 %v1407
        %2279 = vmatpush.msra.mxu0 %v1406
        %2280 = vmatpush.msra.mxu0 %v1405
        %2281 = vmatpush.msra.mxu0 %v1404
        %2282 = vmatpush.msra.mxu0 %v1403
        %2283 = vmatpush.msra.mxu0 %v1402
        %2284 = vmatpush.msra.mxu0 %v1401
        %2285 = vmatpush.msra.mxu0 %v1400
        %2286 = vmatpush.msra.mxu0 %v1399
        %2287 = vmatpush.msra.mxu0 %v1398
        %2288 = vmatpush.msra.mxu0 %v1397
        %2289 = vmatpush.msra.mxu0 %v1396
        %2290 = vmatpush.msra.mxu0 %v1395
        %2291 = vmatpush.msra.mxu0 %v1394
        %2292 = vmatpush.msra.mxu0 %v1393
        %2293 = vmatmul.f32.gmra.mxu0 %v2249
        %v2294 = vpop.f32.mrf.mxu0
        %v2295 = vadd.f32 %v2275, %v2294
        %2296 = vdwg.mxu0
        %v2297 = vrot.slane %v2249, 2
        %v2298 = vrot.slane %v2250, 2
        %v2299 = vsel %vm1524, %v2297, %v2298
        %2301 = vmatpush.msra.mxu0 %v1440
        %2302 = vmatpush.msra.mxu0 %v1439
        %2303 = vmatpush.msra.mxu0 %v1438
        %2304 = vmatpush.msra.mxu0 %v1437
        %2305 = vmatpush.msra.mxu0 %v1436
        %2306 = vmatpush.msra.mxu0 %v1435
        %2307 = vmatpush.msra.mxu0 %v1434
        %2308 = vmatpush.msra.mxu0 %v1433
        %2309 = vmatpush.msra.mxu0 %v1432
        %2310 = vmatpush.msra.mxu0 %v1431
        %2311 = vmatpush.msra.mxu0 %v1430
        %2312 = vmatpush.msra.mxu0 %v1429
        %2313 = vmatpush.msra.mxu0 %v1428
        %2314 = vmatpush.msra.mxu0 %v1427
        %2315 = vmatpush.msra.mxu0 %v1426
        %2316 = vmatpush.msra.mxu0 %v1425
        %2317 = vmatmul.f32.gmra.mxu0 %v2299
        %v2318 = vpop.f32.mrf.mxu0
        %v2319 = vadd.f32 0.0, %v2318
        %2320 = vdwg.mxu0
        %v2321 = vadd.f32 %v2295, %v2319
        %v2323 = vperm.slane %v1344, 0
        %v2325 = vadd.f32 %v2321, %v2323
        %v2326 = vadd.f32 %v2325, %v2164
        %v2327 = vmax.f32 %v2326, 0.0
        %v2329 = vperm.slane %v1059, 0
        %v2331 = vmul.f32 %v2327, %v2329
        %v2333 = vperm.slane %v1060, 0
        %v2335 = vadd.f32 %v2331, %v2333
        %vm2336 = vcmp.gt.f32.partialorder %v2335, 0.0
        %v2337 = vmin.f32 %v2335, 0.0
        %v2338 = vmul.f32 %v2337, 1.442695
        %v2339 = vpow.pop %v2338
        %v2340 = vsub.f32 %v2339, 1.0
        %v2341 = vsel %vm2336, %v2335, %v2340
        %v2343 = vrot.slane %v2341, 1
        %2345 = vmatpush.msra.mxu0 %v1092
        %2346 = vmatpush.msra.mxu0 %v1091
        %2347 = vmatpush.msra.mxu0 %v1090
        %2348 = vmatpush.msra.mxu0 %v1089
        %2349 = vmatpush.msra.mxu0 %v1088
        %2350 = vmatpush.msra.mxu0 %v1087
        %2351 = vmatpush.msra.mxu0 %v1086
        %2352 = vmatpush.msra.mxu0 %v1085
        %2353 = vmatpush.msra.mxu0 %v1084
        %2354 = vmatpush.msra.mxu0 %v1083
        %2355 = vmatpush.msra.mxu0 %v1082
        %2356 = vmatpush.msra.mxu0 %v1081
        %2357 = vmatpush.msra.mxu0 %v1080
        %2358 = vmatpush.msra.mxu0 %v1079
        %2359 = vmatpush.msra.mxu0 %v1078
        %2360 = vmatpush.msra.mxu0 %v1077
        %2361 = vmatmul.f32.gmra.mxu0 %v2343
        %v2362 = vpop.f32.mrf.mxu0
        %v2363 = vadd.f32 0.0, %v2362
        %2364 = vdwg.mxu0
        %2365 = vmatpush.msra.mxu0 %v1076
        %2366 = vmatpush.msra.mxu0 %v1075
        %2367 = vmatpush.msra.mxu0 %v1074
        %2368 = vmatpush.msra.mxu0 %v1073
        %2369 = vmatpush.msra.mxu0 %v1072
        %2370 = vmatpush.msra.mxu0 %v1071
        %2371 = vmatpush.msra.mxu0 %v1070
        %2372 = vmatpush.msra.mxu0 %v1069
        %2373 = vmatpush.msra.mxu0 %v1068
        %2374 = vmatpush.msra.mxu0 %v1067
        %2375 = vmatpush.msra.mxu0 %v1066
        %2376 = vmatpush.msra.mxu0 %v1065
        %2377 = vmatpush.msra.mxu0 %v1064
        %2378 = vmatpush.msra.mxu0 %v1063
        %2379 = vmatpush.msra.mxu0 %v1062
        %2380 = vmatpush.msra.mxu0 %v1061
        %2381 = vmatmul.f32.gmra.mxu0 %v2341
        %v2382 = vpop.f32.mrf.mxu0
        %v2383 = vadd.f32 %v2363, %v2382
        %2384 = vdwg.mxu0
        %v2385 = vrot.slane %v2341, 2
        %2387 = vmatpush.msra.mxu0 %v1108
        %2388 = vmatpush.msra.mxu0 %v1107
        %2389 = vmatpush.msra.mxu0 %v1106
        %2390 = vmatpush.msra.mxu0 %v1105
        %2391 = vmatpush.msra.mxu0 %v1104
        %2392 = vmatpush.msra.mxu0 %v1103
        %2393 = vmatpush.msra.mxu0 %v1102
        %2394 = vmatpush.msra.mxu0 %v1101
        %2395 = vmatpush.msra.mxu0 %v1100
        %2396 = vmatpush.msra.mxu0 %v1099
        %2397 = vmatpush.msra.mxu0 %v1098
        %2398 = vmatpush.msra.mxu0 %v1097
        %2399 = vmatpush.msra.mxu0 %v1096
        %2400 = vmatpush.msra.mxu0 %v1095
        %2401 = vmatpush.msra.mxu0 %v1094
        %2402 = vmatpush.msra.mxu0 %v1093
        %2403 = vmatmul.f32.gmra.mxu0 %v2385
        %v2404 = vpop.f32.mrf.mxu0
        %v2405 = vadd.f32 0.0, %v2404
        %2406 = vdwg.mxu0
        %v2407 = vadd.f32 %v2383, %v2405
        %v2409 = vperm.slane %v1058, 0
        %v2411 = vadd.f32 %v2407, %v2409
        %v2413 = vperm.slane %v1110, 0
        %v2415 = vmul.f32 %v2411, %v2413
        %v2417 = vperm.slane %v1111, 0
        %v2419 = vadd.f32 %v2415, %v2417
        %vm2420 = vcmp.gt.f32.partialorder %v2419, 0.0
        %v2421 = vmin.f32 %v2419, 0.0
        %v2422 = vmul.f32 %v2421, 1.442695
        %v2423 = vpow.pop %v2422
        %v2424 = vsub.f32 %v2423, 1.0
        %v2425 = vsel %vm2420, %v2419, %v2424
        %v2427 = vrot.slane %v2425, 1
        %2429 = vmatpush.msra.mxu0 %v1143
        %2430 = vmatpush.msra.mxu0 %v1142
        %2431 = vmatpush.msra.mxu0 %v1141
        %2432 = vmatpush.msra.mxu0 %v1140
        %2433 = vmatpush.msra.mxu0 %v1139
        %2434 = vmatpush.msra.mxu0 %v1138
        %2435 = vmatpush.msra.mxu0 %v1137
        %2436 = vmatpush.msra.mxu0 %v1136
        %2437 = vmatpush.msra.mxu0 %v1135
        %2438 = vmatpush.msra.mxu0 %v1134
        %2439 = vmatpush.msra.mxu0 %v1133
        %2440 = vmatpush.msra.mxu0 %v1132
        %2441 = vmatpush.msra.mxu0 %v1131
        %2442 = vmatpush.msra.mxu0 %v1130
        %2443 = vmatpush.msra.mxu0 %v1129
        %2444 = vmatpush.msra.mxu0 %v1128
        %2445 = vmatmul.f32.gmra.mxu0 %v2427
        %v2446 = vpop.f32.mrf.mxu0
        %v2447 = vadd.f32 0.0, %v2446
        %2448 = vdwg.mxu0
        %2449 = vmatpush.msra.mxu0 %v1127
        %2450 = vmatpush.msra.mxu0 %v1126
        %2451 = vmatpush.msra.mxu0 %v1125
        %2452 = vmatpush.msra.mxu0 %v1124
        %2453 = vmatpush.msra.mxu0 %v1123
        %2454 = vmatpush.msra.mxu0 %v1122
        %2455 = vmatpush.msra.mxu0 %v1121
        %2456 = vmatpush.msra.mxu0 %v1120
        %2457 = vmatpush.msra.mxu0 %v1119
        %2458 = vmatpush.msra.mxu0 %v1118
        %2459 = vmatpush.msra.mxu0 %v1117
        %2460 = vmatpush.msra.mxu0 %v1116
        %2461 = vmatpush.msra.mxu0 %v1115
        %2462 = vmatpush.msra.mxu0 %v1114
        %2463 = vmatpush.msra.mxu0 %v1113
        %2464 = vmatpush.msra.mxu0 %v1112
        %2465 = vmatmul.f32.gmra.mxu0 %v2425
        %v2466 = vpop.f32.mrf.mxu0
        %v2467 = vadd.f32 %v2447, %v2466
        %2468 = vdwg.mxu0
        %v2469 = vrot.slane %v2425, 2
        %2471 = vmatpush.msra.mxu0 %v1159
        %2472 = vmatpush.msra.mxu0 %v1158
        %2473 = vmatpush.msra.mxu0 %v1157
        %2474 = vmatpush.msra.mxu0 %v1156
        %2475 = vmatpush.msra.mxu0 %v1155
        %2476 = vmatpush.msra.mxu0 %v1154
        %2477 = vmatpush.msra.mxu0 %v1153
        %2478 = vmatpush.msra.mxu0 %v1152
        %2479 = vmatpush.msra.mxu0 %v1151
        %2480 = vmatpush.msra.mxu0 %v1150
        %2481 = vmatpush.msra.mxu0 %v1149
        %2482 = vmatpush.msra.mxu0 %v1148
        %2483 = vmatpush.msra.mxu0 %v1147
        %2484 = vmatpush.msra.mxu0 %v1146
        %2485 = vmatpush.msra.mxu0 %v1145
        %2486 = vmatpush.msra.mxu0 %v1144
        %2487 = vmatmul.f32.gmra.mxu0 %v2469
        %v2488 = vpop.f32.mrf.mxu0
        %v2489 = vadd.f32 0.0, %v2488
        %2490 = vdwg.mxu0
        %v2491 = vadd.f32 %v2467, %v2489
        %v2493 = vperm.slane %v1109, 0
        %v2495 = vadd.f32 %v2491, %v2493
        %v2497 = vrot.slane %v2495, 1
        %v2499 = vmax.f32 %v2495, %v2497
        %v2500 = vrot.slane %v2495, 2
        %v2502 = vmax.f32 %v2499, %v2500
        %2503 = vst [vmem:[%s1052] sm:$0x3] %v2502
        %s2504 = sand.u32 %s630, 1
        %s2505 = scalar_lea.sflag [#allocation4], %s2504
        %s2506 = sand.u32 %s630, 1
        %s2507 = smul.addr %s2506, 2
        %s2508 = scalar_lea.vmem [#allocation28], %s2507
        // Predicated region
        $region193: #{mynet_sequence_forward.3} parent=127 // pred_check
          %p2509 = pneg %p640
        $region194: #{mynet_sequence_forward.3} parent=127 // pred_check_branch
          %2511 = sbr.rel (%p2509) target = $region196
        $region195: #{mynet_sequence_forward.3} parent=127 // pred_region
          %2513 = vsyncadd %s2505, 0
          %s2514 = smul.addr %s50, 2
          %s2515 = scalar_lea.hbm %s27, %s2514
          %s2517 = sshll.u32 %s2508, 4
          %s2518 = int_to_ptr.vmem [resolvable:$true] %s2517
          %s2519 = sshll.u32 %s2515, 4
          %s2520 = int_to_ptr.hbm [resolvable:$true] %s2519
          %2522 = dma.vmem_to_hbm [thread:$0]  %s2518, 32, %s2520, %s2505
        $region196: #{mynet_sequence_forward.3} parent=127 // pred_fallthru
          _
      $region128: #{mynet_sequence_forward.3} parent=5 // pred_fallthru
        _
      %p2523 = scmp.le.s32.totalorder 2, %s45
      // Predicated region
      $region197: #{mynet_sequence_forward.3} parent=5 // pred_check
        %p2524 = pneg %p2523
      $region198: #{mynet_sequence_forward.3} parent=5 // pred_check_branch
        %2526 = sbr.rel (%p2524) target = $region200
      $region199: #{mynet_sequence_forward.3} parent=5 // pred_region
        %s2527 = ssub.s32 %s45, 2
        // Predicated region
        $region201: #{mynet_sequence_forward.3} parent=199 // pred_check
          %p2528 = pneg %p646
        $region202: #{mynet_sequence_forward.3} parent=199 // pred_check_branch
          %2530 = sbr.rel (%p2528) target = $region204
        $region203: #{mynet_sequence_forward.3} parent=199 // pred_region
          %s2531 = sand.u32 %s631, 1
          %s2532 = scalar_lea.sflag [#allocation4], %s2531
          %s2533 = sand.u32 %s631, 1
          %s2534 = smul.addr %s2533, 2
          %s2535 = scalar_lea.vmem [#allocation28], %s2534
          %2537 = dma.done %s2532, 32
        $region204: #{mynet_sequence_forward.3} parent=199 // pred_fallthru
          _
      $region200: #{mynet_sequence_forward.3} parent=5 // pred_fallthru
        _
    $region6: #{mynet_sequence_forward.3} parent=1 // loop_footer
      %s49 = sadd.s32 1, %s45
    $region7: #{mynet_sequence_forward.3} parent=1 // loop_footer_branch
      %44 = sbr.rel target = $region3
    $region8: #{mynet_sequence_forward.3} parent=1 // loop_exit
      _
    %2538 = vsyncpa [#allocation3], 1
    %s2539 = scalar_lea.sflag [#allocation3], 1
    %2540 = vsyncpa %s2539, 1
    %2541 = vsyncpa [#allocation6], 1
    %2542 = vsyncpa [#allocation9], 1
    %2543 = vsyncpa [#allocation12], 1
    %2544 = vsyncpa [#allocation15], 1
    %2545 = vsyncpa [#allocation18], 1
    %2546 = vsyncpa [#allocation21], 1
    %2547 = vsyncpa [#allocation24], 1
    %2548 = vsyncpa [#allocation27], 1
    %2549 = vsyncpa [#allocation4], 1
    %s2550 = scalar_lea.sflag [#allocation4], 1
    %2551 = vsyncpa %s2550, 1

// kernel: mynet_sequence_forward.2
$region0: #{mynet_sequence_forward.2}
  #allocation0 [shape = 'u32[]', space=smem, size = 0x4, offset = 0x4, fixed_abs, tag = 'smem constant byte address 0x4 - core index']
  #allocation1 [shape = 'u32[72,128]{1,0:T(1,128)}', space=vmem, size = 0x9000, scoped, tag = 'internal scratch']
  #allocation2 [shape = 'f32[32,64]{1,0:T(8,128)}', space=vmem, size = 0x4000, scoped, tag = 'scratch operand']
  %s0 = inlined_call_operand.vmem [shape: f32[32,12], index: 0, kind: input, shape index: {}]
  %s1 = inlined_call_operand.vmem [shape: f32[32,32], index: 1, kind: input, shape index: {}]
  %s2 = inlined_call_operand.vmem [shape: f32[1,256], index: 2, kind: input, shape index: {}]
  %s3 = inlined_call_operand.hbm [shape: f32[64,256], index: 3, kind: input, shape index: {}]
  %s4 = inlined_call_operand.vmem [shape: f32[12,256], index: 4, kind: input, shape index: {}]
  %s5 = inlined_call_operand.vmem [shape: f32[1,256], index: 5, kind: input, shape index: {}]
  %s6 = inlined_call_operand.hbm [shape: f32[64,256], index: 6, kind: input, shape index: {}]
  %s7 = inlined_call_operand.hbm [shape: f32[64,256], index: 7, kind: input, shape index: {}]
  %s8 = inlined_call_operand.vmem [shape: f32[32,64], index: 8, kind: output, shape index: {}]
  %s9 = sld [smem:[#allocation0]]
  $region54: #{mynet_sequence_forward.2} parent=0
    _
  %s11 = ssub.s32 1, %s9
  %s12 = scalar_select 0, %s11, %s9
  $region1: #{mynet_sequence_forward.2} parent=0
    #allocation3 [shape = 'u8[65536]{0}', space=vmem, size = 0x10000, scoped, tag = 'input window, operand 3, single buffered']
    #allocation4 [shape = 's32[1]{0}', space=sflag, size = 0x4, scoped, tag = 'scoped memory for mynet_sequence_forward.2']
    #allocation5 [shape = 'u8[65536]{0}', space=vmem, size = 0x10000, scoped, tag = 'input window, operand 6, single buffered']
    #allocation6 [shape = 's32[1]{0}', space=sflag, size = 0x4, scoped, tag = 'scoped memory for mynet_sequence_forward.2']
    #allocation7 [shape = 'u8[65536]{0}', space=vmem, size = 0x10000, scoped, tag = 'input window, operand 7, single buffered']
    %13 = vsyncpa [#allocation4], 0
    %14 = vsyncpa [#allocation6], 0
    // Predicated region
    $region2: #{mynet_sequence_forward.2} parent=1 // pred_check
      _
    $region3: #{mynet_sequence_forward.2} parent=1 // pred_check_branch
      %16 = sbr.rel (0) target = $region5
    $region4: #{mynet_sequence_forward.2} parent=1 // pred_region
      _
    $region5: #{mynet_sequence_forward.2} parent=1 // pred_fallthru
      _
    // Predicated region
    $region6: #{mynet_sequence_forward.2} parent=1 // pred_check
      _
    $region7: #{mynet_sequence_forward.2} parent=1 // pred_check_branch
      %18 = sbr.rel (0) target = $region9
    $region8: #{mynet_sequence_forward.2} parent=1 // pred_region
      _
    $region9: #{mynet_sequence_forward.2} parent=1 // pred_fallthru
      _
    // Predicated region
    $region10: #{mynet_sequence_forward.2} parent=1 // pred_check
      _
    $region11: #{mynet_sequence_forward.2} parent=1 // pred_check_branch
      %20 = sbr.rel (0) target = $region13
    $region12: #{mynet_sequence_forward.2} parent=1 // pred_region
      _
    $region13: #{mynet_sequence_forward.2} parent=1 // pred_fallthru
      _
    // Predicated region
    $region14: #{mynet_sequence_forward.2} parent=1 // pred_check
      _
    $region15: #{mynet_sequence_forward.2} parent=1 // pred_check_branch
      %22 = sbr.rel (0) target = $region17
    $region16: #{mynet_sequence_forward.2} parent=1 // pred_region
      %24 = vsyncadd [#allocation4], 0
      %s25 = sshll.u32 %s3, 4
      %s26 = int_to_ptr.hbm [resolvable:$true] %s25
      %s27 = sshll.u32 [#allocation3], 4
      %s28 = int_to_ptr.vmem [resolvable:$true] %s27
      %33 = dma.hbm_to_vmem [thread:$0]  %s26, 2048, %s28, [#allocation4], 256, 256, 16
    $region17: #{mynet_sequence_forward.2} parent=1 // pred_fallthru
      _
    // Predicated region
    $region18: #{mynet_sequence_forward.2} parent=1 // pred_check
      _
    $region19: #{mynet_sequence_forward.2} parent=1 // pred_check_branch
      %35 = sbr.rel (0) target = $region21
    $region20: #{mynet_sequence_forward.2} parent=1 // pred_region
      _
    $region21: #{mynet_sequence_forward.2} parent=1 // pred_fallthru
      _
    // Predicated region
    $region22: #{mynet_sequence_forward.2} parent=1 // pred_check
      _
    $region23: #{mynet_sequence_forward.2} parent=1 // pred_check_branch
      %37 = sbr.rel (0) target = $region25
    $region24: #{mynet_sequence_forward.2} parent=1 // pred_region
      _
    $region25: #{mynet_sequence_forward.2} parent=1 // pred_fallthru
      _
    // Predicated region
    $region26: #{mynet_sequence_forward.2} parent=1 // pred_check
      _
    $region27: #{mynet_sequence_forward.2} parent=1 // pred_check_branch
      %39 = sbr.rel (0) target = $region29
    $region28: #{mynet_sequence_forward.2} parent=1 // pred_region
      %41 = vsyncadd [#allocation6], 0
      %s42 = sshll.u32 %s6, 4
      %s43 = int_to_ptr.hbm [resolvable:$true] %s42
      %s44 = sshll.u32 [#allocation5], 4
      %s45 = int_to_ptr.vmem [resolvable:$true] %s44
      %50 = dma.hbm_to_vmem [thread:$0]  %s43, 2048, %s45, [#allocation6], 256, 256, 16
    $region29: #{mynet_sequence_forward.2} parent=1 // pred_fallthru
      _
    // Predicated region
    $region30: #{mynet_sequence_forward.2} parent=1 // pred_check
      _
    $region31: #{mynet_sequence_forward.2} parent=1 // pred_check_branch
      %52 = sbr.rel (0) target = $region33
    $region32: #{mynet_sequence_forward.2} parent=1 // pred_region
      %54 = vsyncadd [#allocation6], 0
      %s55 = sshll.u32 %s7, 4
      %s56 = int_to_ptr.hbm [resolvable:$true] %s55
      %s57 = sshll.u32 [#allocation7], 4
      %s58 = int_to_ptr.vmem [resolvable:$true] %s57
      %63 = dma.hbm_to_vmem [thread:$0]  %s56, 2048, %s58, [#allocation6], 256, 256, 16
    $region33: #{mynet_sequence_forward.2} parent=1 // pred_fallthru
      _
    // Predicated region
    $region34: #{mynet_sequence_forward.2} parent=1 // pred_check
      _
    $region35: #{mynet_sequence_forward.2} parent=1 // pred_check_branch
      %65 = sbr.rel (0) target = $region37
    $region36: #{mynet_sequence_forward.2} parent=1 // pred_region
      %67 = dma.done [#allocation4], 2048
    $region37: #{mynet_sequence_forward.2} parent=1 // pred_fallthru
      _
    // Predicated region
    $region38: #{mynet_sequence_forward.2} parent=1 // pred_check
      _
    $region39: #{mynet_sequence_forward.2} parent=1 // pred_check_branch
      %69 = sbr.rel (0) target = $region41
    $region40: #{mynet_sequence_forward.2} parent=1 // pred_region
      %71 = dma.done [#allocation6], 2048
    $region41: #{mynet_sequence_forward.2} parent=1 // pred_fallthru
      _
    // Predicated region
    $region42: #{mynet_sequence_forward.2} parent=1 // pred_check
      _
    $region43: #{mynet_sequence_forward.2} parent=1 // pred_check_branch
      %73 = sbr.rel (0) target = $region45
    $region44: #{mynet_sequence_forward.2} parent=1 // pred_region
      %75 = dma.done [#allocation6], 2048
    $region45: #{mynet_sequence_forward.2} parent=1 // pred_fallthru
      _
    %v76 = vld [vmem:[%s2] sm:$0x3]
    %v77 = vld [vmem:[#allocation3] sm:$0xff]
    %v78 = vld [vmem:[#allocation3 + $0x8] sm:$0xff]
    %v79 = vld [vmem:[#allocation3 + $0x10] sm:$0xff]
    %v80 = vld [vmem:[#allocation3 + $0x18] sm:$0xff]
    %v81 = vld [vmem:[#allocation3 + $0x20] sm:$0xff]
    %v82 = vld [vmem:[#allocation3 + $0x28] sm:$0xff]
    %v83 = vld [vmem:[#allocation3 + $0x30] sm:$0xff]
    %v84 = vld [vmem:[#allocation3 + $0x38] sm:$0xff]
    %v85 = vld [vmem:[#allocation3 + $0x40] sm:$0xff]
    %v86 = vld [vmem:[#allocation3 + $0x48] sm:$0xff]
    %v87 = vld [vmem:[#allocation3 + $0x50] sm:$0xff]
    %v88 = vld [vmem:[#allocation3 + $0x58] sm:$0xff]
    %v89 = vld [vmem:[#allocation3 + $0x60] sm:$0xff]
    %v90 = vld [vmem:[#allocation3 + $0x68] sm:$0xff]
    %v91 = vld [vmem:[#allocation3 + $0x70] sm:$0xff]
    %v92 = vld [vmem:[#allocation3 + $0x78] sm:$0xff]
    %v93 = vld [vmem:[%s4] sm:$0xff]
    %v94 = vld [vmem:[%s4 + $0x8] sm:$0xff]
    %v95 = vld [vmem:[%s4 + $0x10] sm:$0xf]
    %v96 = vld [vmem:[%s4 + $0x18] sm:$0xf]
    %v97 = vld [vmem:[%s5] sm:$0x3]
    %v98 = vld [vmem:[#allocation5] sm:$0xff]
    %v99 = vld [vmem:[#allocation5 + $0x8] sm:$0xff]
    %v100 = vld [vmem:[#allocation5 + $0x10] sm:$0xff]
    %v101 = vld [vmem:[#allocation5 + $0x18] sm:$0xff]
    %v102 = vld [vmem:[#allocation5 + $0x20] sm:$0xff]
    %v103 = vld [vmem:[#allocation5 + $0x28] sm:$0xff]
    %v104 = vld [vmem:[#allocation5 + $0x30] sm:$0xff]
    %v105 = vld [vmem:[#allocation5 + $0x38] sm:$0xff]
    %v106 = vld [vmem:[#allocation5 + $0x40] sm:$0xff]
    %v107 = vld [vmem:[#allocation5 + $0x48] sm:$0xff]
    %v108 = vld [vmem:[#allocation5 + $0x50] sm:$0xff]
    %v109 = vld [vmem:[#allocation5 + $0x58] sm:$0xff]
    %v110 = vld [vmem:[#allocation5 + $0x60] sm:$0xff]
    %v111 = vld [vmem:[#allocation5 + $0x68] sm:$0xff]
    %v112 = vld [vmem:[#allocation5 + $0x70] sm:$0xff]
    %v113 = vld [vmem:[#allocation5 + $0x78] sm:$0xff]
    %v114 = vld [vmem:[#allocation7] sm:$0xff]
    %v115 = vld [vmem:[#allocation7 + $0x8] sm:$0xff]
    %v116 = vld [vmem:[#allocation7 + $0x10] sm:$0xff]
    %v117 = vld [vmem:[#allocation7 + $0x18] sm:$0xff]
    %v118 = vld [vmem:[#allocation7 + $0x20] sm:$0xff]
    %v119 = vld [vmem:[#allocation7 + $0x28] sm:$0xff]
    %v120 = vld [vmem:[#allocation7 + $0x30] sm:$0xff]
    %v121 = vld [vmem:[#allocation7 + $0x38] sm:$0xff]
    %v122 = vld [vmem:[#allocation7 + $0x40] sm:$0xff]
    %v123 = vld [vmem:[#allocation7 + $0x48] sm:$0xff]
    %v124 = vld [vmem:[#allocation7 + $0x50] sm:$0xff]
    %v125 = vld [vmem:[#allocation7 + $0x58] sm:$0xff]
    %v126 = vld [vmem:[#allocation7 + $0x60] sm:$0xff]
    %v127 = vld [vmem:[#allocation7 + $0x68] sm:$0xff]
    %v128 = vld [vmem:[#allocation7 + $0x70] sm:$0xff]
    %v129 = vld [vmem:[#allocation7 + $0x78] sm:$0xff]
    %v130 = vld [vmem:[%s1] sm:$0xff]
    %v131 = vld [vmem:[%s1 + $0x8] sm:$0xff]
    %v132 = vld [vmem:[%s1 + $0x10] sm:$0xff]
    %v133 = vld [vmem:[%s1 + $0x18] sm:$0xff]
    %v134 = vlaneseq
    %v135 = vand.u32 %v134, 127
    %v136 = vadd.s32 %v135, 128
    %vm137 = vcmp.lt.s32.totalorder %v135, 0
    %v138 = vsub.s32 0, %v135
    %v139 = vsel %vm137, %v138, %v135
    %v140 = vshrl.u32 %v139, 6
    %v141 = vand.u32 %v139, 63
    %v142 = vsub.s32 0, %v141
    %v143 = vsel %vm137, %v142, %v141
    %vm144 = vcmp.lt.s32.totalorder %v136, 0
    %v145 = vsub.s32 0, %v136
    %v146 = vsel %vm144, %v145, %v136
    %v147 = vshrl.u32 %v146, 6
    %v148 = vand.u32 %v146, 63
    %v149 = vsub.s32 0, %v148
    %v150 = vsel %vm144, %v149, %v148
    %vm151 = vcmp.ne.s32.totalorder %v143, 0
    %vm152 = vcmp.ne.s32.totalorder %v150, 0
    %vm153 = vcmp.lt.s32.totalorder %v143, 0
    %vm154 = vcmp.lt.s32.totalorder %v150, 0
    %vm155 = vmand %vm153, %vm151
    %vm156 = vmand %vm154, %vm152
    %v157 = vadd.s32 %v143, 64
    %v158 = vadd.s32 %v150, 64
    %v159 = vsel %vm155, %v157, %v143
    %v160 = vsel %vm156, %v158, %v150
    %vm161 = vcmp.lt.s32.totalorder %v159, 32
    %vm162 = vcmp.lt.s32.totalorder %v160, 32
    %vm163 = vcmp.lt.s32.totalorder %v135, 32
    %v164 = vld [vmem:[%s0] sm:$0xff]
    %v165 = vld [vmem:[%s0 + $0x8] sm:$0xff]
    %v166 = vld [vmem:[%s0 + $0x10] sm:$0xff]
    %v167 = vld [vmem:[%s0 + $0x18] sm:$0xff]
    %v169 = vperm.slane %v76, 0
    %v170 = vperm.slane %v76, 1
    %vm173 = vcmask 97280
    %v175 = vsel %vm173, %v164, 0
    %v178 = vsel %vm173, %v165, 0
    %v181 = vsel %vm173, %v166, 0
    %v184 = vsel %vm173, %v167, 0
    %vm186 = vcmask 1043456
    %v188 = vsel %vm186, %v95, 0
    %v191 = vsel %vm186, %v96, 0
    %193 = vmatpush.msra.mxu0 0.0
    %194 = vmatpush.msra.mxu0 0.0
    %195 = vmatpush.msra.mxu0 0.0
    %196 = vmatpush.msra.mxu0 0.0
    %197 = vmatpush.msra.mxu0 0.0
    %198 = vmatpush.msra.mxu0 0.0
    %199 = vmatpush.msra.mxu0 0.0
    %200 = vmatpush.msra.mxu0 0.0
    %201 = vmatpush.msra.mxu0 0.0
    %202 = vmatpush.msra.mxu0 0.0
    %203 = vmatpush.msra.mxu0 0.0
    %204 = vmatpush.msra.mxu0 0.0
    %205 = vmatpush.msra.mxu0 0.0
    %206 = vmatpush.msra.mxu0 0.0
    %207 = vmatpush.msra.mxu0 %v188
    %208 = vmatpush.msra.mxu0 %v93
    %209 = vmatmul.f32.gmra.mxu0 %v175
    %v210 = vpop.f32.mrf.mxu0
    %v211 = vadd.f32 %v169, %v210
    %212 = vmatmul.f32.gmra.mxu0 %v178
    %v213 = vpop.f32.mrf.mxu0
    %v214 = vadd.f32 %v169, %v213
    %215 = vmatmul.f32.gmra.mxu0 %v181
    %v216 = vpop.f32.mrf.mxu0
    %v217 = vadd.f32 %v169, %v216
    %218 = vmatmul.f32.gmra.mxu0 %v184
    %v219 = vpop.f32.mrf.mxu0
    %v220 = vadd.f32 %v169, %v219
    %221 = vdwg.mxu0
    %222 = vmatpush.msra.mxu0 0.0
    %223 = vmatpush.msra.mxu0 0.0
    %224 = vmatpush.msra.mxu0 0.0
    %225 = vmatpush.msra.mxu0 0.0
    %226 = vmatpush.msra.mxu0 0.0
    %227 = vmatpush.msra.mxu0 0.0
    %228 = vmatpush.msra.mxu0 0.0
    %229 = vmatpush.msra.mxu0 0.0
    %230 = vmatpush.msra.mxu0 0.0
    %231 = vmatpush.msra.mxu0 0.0
    %232 = vmatpush.msra.mxu0 0.0
    %233 = vmatpush.msra.mxu0 0.0
    %234 = vmatpush.msra.mxu0 0.0
    %235 = vmatpush.msra.mxu0 0.0
    %236 = vmatpush.msra.mxu0 %v191
    %237 = vmatpush.msra.mxu0 %v94
    %238 = vmatmul.f32.gmra.mxu0 %v175
    %v239 = vpop.f32.mrf.mxu0
    %v240 = vadd.f32 %v170, %v239
    %241 = vmatmul.f32.gmra.mxu0 %v178
    %v242 = vpop.f32.mrf.mxu0
    %v243 = vadd.f32 %v170, %v242
    %244 = vmatmul.f32.gmra.mxu0 %v181
    %v245 = vpop.f32.mrf.mxu0
    %v246 = vadd.f32 %v170, %v245
    %247 = vmatmul.f32.gmra.mxu0 %v184
    %v248 = vpop.f32.mrf.mxu0
    %v249 = vadd.f32 %v170, %v248
    %250 = vdwg.mxu0
    %v251 = vsel %vm161, 1, 0
    %v252 = vsel %vm162, 1, 0
    %vm253 = vcmp.eq.s32.totalorder %v251, 1
    %vm254 = vcmp.eq.s32.totalorder %v252, 1
    %v257 = vrot.slane %v220, 6
    %v258 = vrot.slane %v249, 6
    %v261 = vsel %vm253, %v211, %v257
    %v262 = vsel %vm254, %v240, %v258
    %vm263 = vcmask 523264
    %v265 = vsel %vm263, 0.0, 0
    %267 = vmatpush.msra.mxu0 0.0
    %268 = vmatpush.msra.mxu0 0.0
    %269 = vmatpush.msra.mxu0 0.0
    %270 = vmatpush.msra.mxu0 0.0
    %271 = vmatpush.msra.mxu0 0.0
    %272 = vmatpush.msra.mxu0 0.0
    %273 = vmatpush.msra.mxu0 0.0
    %274 = vmatpush.msra.mxu0 0.0
    %275 = vmatpush.msra.mxu0 %v91
    %276 = vmatpush.msra.mxu0 %v89
    %277 = vmatpush.msra.mxu0 %v87
    %278 = vmatpush.msra.mxu0 %v85
    %279 = vmatpush.msra.mxu0 %v83
    %280 = vmatpush.msra.mxu0 %v81
    %281 = vmatpush.msra.mxu0 %v79
    %282 = vmatpush.msra.mxu0 %v77
    %283 = vmatmul.f32.gmra.mxu0 %v265
    %v284 = vpop.f32.mrf.mxu0
    %v285 = vadd.f32 0.0, %v284
    %286 = vdwg.mxu0
    %287 = vmatpush.msra.mxu0 0.0
    %288 = vmatpush.msra.mxu0 0.0
    %289 = vmatpush.msra.mxu0 0.0
    %290 = vmatpush.msra.mxu0 0.0
    %291 = vmatpush.msra.mxu0 0.0
    %292 = vmatpush.msra.mxu0 0.0
    %293 = vmatpush.msra.mxu0 0.0
    %294 = vmatpush.msra.mxu0 0.0
    %295 = vmatpush.msra.mxu0 %v92
    %296 = vmatpush.msra.mxu0 %v90
    %297 = vmatpush.msra.mxu0 %v88
    %298 = vmatpush.msra.mxu0 %v86
    %299 = vmatpush.msra.mxu0 %v84
    %300 = vmatpush.msra.mxu0 %v82
    %301 = vmatpush.msra.mxu0 %v80
    %302 = vmatpush.msra.mxu0 %v78
    %303 = vmatmul.f32.gmra.mxu0 %v265
    %v304 = vpop.f32.mrf.mxu0
    %v305 = vadd.f32 0.0, %v304
    %306 = vdwg.mxu0
    %v307 = vadd.f32 %v261, %v285
    %v308 = vadd.f32 %v262, %v305
    %v309 = vxor.u32 %v307, 2147483648
    %v310 = vmul.f32 %v309, 1.442695
    %v311 = vpow.pop %v310
    %v312 = vadd.f32 %v311, 1.0
    %v313 = vrcp.pop %v312
    %v314 = vmul.f32 %v312, %v313
    %v315 = vsub.f32 1.0, %v314
    %v316 = vmul.f32 %v313, %v315
    %v317 = vadd.f32 %v313, %v316
    %vm318 = vweird.f32 %v312
    %vm319 = vweird.f32 %v313
    %vm320 = vmor %vm318, %vm319
    %v321 = vsel %vm320, %v313, %v317
    %v322 = vand.u32 2147483647, %v312
    %vm323 = vcmp.eq.f32.partialorder %v322, 8.507059e+37
    %v324 = vand.u32 %v312, 2147483648
    %v325 = vor.u32 1.1754944e-38, %v324
    %v326 = vsel %vm323, %v325, %v321
    %v327 = vmul.f32 1.0, %v326
    %v328 = vtanh.pop %v308
    %v329 = vxor.u32 %v308, 2147483648
    %v330 = vmul.f32 %v329, 1.442695
    %v331 = vpow.pop %v330
    %v332 = vadd.f32 %v331, 1.0
    %v333 = vrcp.pop %v332
    %v334 = vmul.f32 %v332, %v333
    %v335 = vsub.f32 1.0, %v334
    %v336 = vmul.f32 %v333, %v335
    %v337 = vadd.f32 %v333, %v336
    %vm338 = vweird.f32 %v332
    %vm339 = vweird.f32 %v333
    %vm340 = vmor %vm338, %vm339
    %v341 = vsel %vm340, %v333, %v337
    %v342 = vand.u32 2147483647, %v332
    %vm343 = vcmp.eq.f32.partialorder %v342, 8.507059e+37
    %v344 = vand.u32 %v332, 2147483648
    %v345 = vor.u32 1.1754944e-38, %v344
    %v346 = vsel %vm343, %v345, %v341
    %v347 = vmul.f32 1.0, %v346
    %v348 = vmul.f32 %v327, 0.0
    %v349 = vmul.f32 %v327, %v328
    %351 = vrot.lane.b32.xlu0 %v349, 64
    %v352 = vpop.permute.xlu0 %351
    %v354 = vadd.f32 %v348, %v352
    %v355 = vtanh.pop %v354
    %v356 = vmul.f32 %v347, %v355
    %358 = vrot.lane.b32.xlu0 %v356, 64
    %v359 = vpop.permute.xlu0 %358
    %vm361 = vcmask 517120
    %362 = vst.msk [vmem:[#allocation2] sm:$0x3] %vm361, %v359
    %v363 = vrot.slane %v220, 2
    %v364 = vrot.slane %v249, 2
    %v367 = vsel %vm253, %v211, %v363
    %v368 = vsel %vm254, %v240, %v364
    %v369 = vsel %vm263, %v359, 0
    %371 = vmatpush.msra.mxu0 0.0
    %372 = vmatpush.msra.mxu0 0.0
    %373 = vmatpush.msra.mxu0 0.0
    %374 = vmatpush.msra.mxu0 0.0
    %375 = vmatpush.msra.mxu0 0.0
    %376 = vmatpush.msra.mxu0 0.0
    %377 = vmatpush.msra.mxu0 0.0
    %378 = vmatpush.msra.mxu0 0.0
    %379 = vmatpush.msra.mxu0 %v91
    %380 = vmatpush.msra.mxu0 %v89
    %381 = vmatpush.msra.mxu0 %v87
    %382 = vmatpush.msra.mxu0 %v85
    %383 = vmatpush.msra.mxu0 %v83
    %384 = vmatpush.msra.mxu0 %v81
    %385 = vmatpush.msra.mxu0 %v79
    %386 = vmatpush.msra.mxu0 %v77
    %387 = vmatmul.f32.gmra.mxu0 %v369
    %v388 = vpop.f32.mrf.mxu0
    %v389 = vadd.f32 0.0, %v388
    %390 = vdwg.mxu0
    %391 = vmatpush.msra.mxu0 0.0
    %392 = vmatpush.msra.mxu0 0.0
    %393 = vmatpush.msra.mxu0 0.0
    %394 = vmatpush.msra.mxu0 0.0
    %395 = vmatpush.msra.mxu0 0.0
    %396 = vmatpush.msra.mxu0 0.0
    %397 = vmatpush.msra.mxu0 0.0
    %398 = vmatpush.msra.mxu0 0.0
    %399 = vmatpush.msra.mxu0 %v92
    %400 = vmatpush.msra.mxu0 %v90
    %401 = vmatpush.msra.mxu0 %v88
    %402 = vmatpush.msra.mxu0 %v86
    %403 = vmatpush.msra.mxu0 %v84
    %404 = vmatpush.msra.mxu0 %v82
    %405 = vmatpush.msra.mxu0 %v80
    %406 = vmatpush.msra.mxu0 %v78
    %407 = vmatmul.f32.gmra.mxu0 %v369
    %v408 = vpop.f32.mrf.mxu0
    %v409 = vadd.f32 0.0, %v408
    %410 = vdwg.mxu0
    %v413 = vrot.slane %v389, 6
    %v414 = vrot.slane %v409, 6
    %v417 = vadd.f32 %v367, %v413
    %v418 = vadd.f32 %v368, %v414
    %v419 = vxor.u32 %v417, 2147483648
    %v420 = vmul.f32 %v419, 1.442695
    %v421 = vpow.pop %v420
    %v422 = vadd.f32 %v421, 1.0
    %v423 = vrcp.pop %v422
    %v424 = vmul.f32 %v422, %v423
    %v425 = vsub.f32 1.0, %v424
    %v426 = vmul.f32 %v423, %v425
    %v427 = vadd.f32 %v423, %v426
    %vm428 = vweird.f32 %v422
    %vm429 = vweird.f32 %v423
    %vm430 = vmor %vm428, %vm429
    %v431 = vsel %vm430, %v423, %v427
    %v432 = vand.u32 2147483647, %v422
    %vm433 = vcmp.eq.f32.partialorder %v432, 8.507059e+37
    %v434 = vand.u32 %v422, 2147483648
    %v435 = vor.u32 1.1754944e-38, %v434
    %v436 = vsel %vm433, %v435, %v431
    %v437 = vmul.f32 1.0, %v436
    %v438 = vtanh.pop %v418
    %v439 = vxor.u32 %v418, 2147483648
    %v440 = vmul.f32 %v439, 1.442695
    %v441 = vpow.pop %v440
    %v442 = vadd.f32 %v441, 1.0
    %v443 = vrcp.pop %v442
    %v444 = vmul.f32 %v442, %v443
    %v445 = vsub.f32 1.0, %v444
    %v446 = vmul.f32 %v443, %v445
    %v447 = vadd.f32 %v443, %v446
    %vm448 = vweird.f32 %v442
    %vm449 = vweird.f32 %v443
    %vm450 = vmor %vm448, %vm449
    %v451 = vsel %vm450, %v443, %v447
    %v452 = vand.u32 2147483647, %v442
    %vm453 = vcmp.eq.f32.partialorder %v452, 8.507059e+37
    %v454 = vand.u32 %v442, 2147483648
    %v455 = vor.u32 1.1754944e-38, %v454
    %v456 = vsel %vm453, %v455, %v451
    %v457 = vmul.f32 1.0, %v456
    %v459 = vrot.slane %v354, 6
    %v461 = vmul.f32 %v437, %v459
    %v462 = vmul.f32 %v437, %v438
    %464 = vrot.lane.b32.xlu0 %v462, 64
    %v465 = vpop.permute.xlu0 %464
    %v467 = vadd.f32 %v461, %v465
    %v468 = vtanh.pop %v467
    %v469 = vmul.f32 %v457, %v468
    %471 = vrot.lane.b32.xlu0 %v469, 64
    %v472 = vpop.permute.xlu0 %471
    %vm474 = vcmask 519170
    %475 = vst.msk [vmem:[#allocation2] sm:$0xc] %vm474, %v472
    %v476 = vrot.slane %v469, 2
    %477 = vrot.lane.b32.xlu0 %v476, 64
    %v478 = vpop.permute.xlu0 %477
    %v479 = vsel %vm263, %v478, 0
    %481 = vmatpush.msra.mxu0 0.0
    %482 = vmatpush.msra.mxu0 0.0
    %483 = vmatpush.msra.mxu0 0.0
    %484 = vmatpush.msra.mxu0 0.0
    %485 = vmatpush.msra.mxu0 0.0
    %486 = vmatpush.msra.mxu0 0.0
    %487 = vmatpush.msra.mxu0 0.0
    %488 = vmatpush.msra.mxu0 0.0
    %489 = vmatpush.msra.mxu0 %v91
    %490 = vmatpush.msra.mxu0 %v89
    %491 = vmatpush.msra.mxu0 %v87
    %492 = vmatpush.msra.mxu0 %v85
    %493 = vmatpush.msra.mxu0 %v83
    %494 = vmatpush.msra.mxu0 %v81
    %495 = vmatpush.msra.mxu0 %v79
    %496 = vmatpush.msra.mxu0 %v77
    %497 = vmatmul.f32.gmra.mxu0 %v479
    %v498 = vpop.f32.mrf.mxu0
    %v499 = vadd.f32 0.0, %v498
    %500 = vdwg.mxu0
    %501 = vmatpush.msra.mxu0 0.0
    %502 = vmatpush.msra.mxu0 0.0
    %503 = vmatpush.msra.mxu0 0.0
    %504 = vmatpush.msra.mxu0 0.0
    %505 = vmatpush.msra.mxu0 0.0
    %506 = vmatpush.msra.mxu0 0.0
    %507 = vmatpush.msra.mxu0 0.0
    %508 = vmatpush.msra.mxu0 0.0
    %509 = vmatpush.msra.mxu0 %v92
    %510 = vmatpush.msra.mxu0 %v90
    %511 = vmatpush.msra.mxu0 %v88
    %512 = vmatpush.msra.mxu0 %v86
    %513 = vmatpush.msra.mxu0 %v84
    %514 = vmatpush.msra.mxu0 %v82
    %515 = vmatpush.msra.mxu0 %v80
    %516 = vmatpush.msra.mxu0 %v78
    %517 = vmatmul.f32.gmra.mxu0 %v479
    %v518 = vpop.f32.mrf.mxu0
    %v519 = vadd.f32 0.0, %v518
    %520 = vdwg.mxu0
    %v523 = vrot.slane %v499, 4
    %v524 = vrot.slane %v519, 4
    %v527 = vadd.f32 %v261, %v523
    %v528 = vadd.f32 %v262, %v524
    %v529 = vxor.u32 %v527, 2147483648
    %v530 = vmul.f32 %v529, 1.442695
    %v531 = vpow.pop %v530
    %v532 = vadd.f32 %v531, 1.0
    %v533 = vrcp.pop %v532
    %v534 = vmul.f32 %v532, %v533
    %v535 = vsub.f32 1.0, %v534
    %v536 = vmul.f32 %v533, %v535
    %v537 = vadd.f32 %v533, %v536
    %vm538 = vweird.f32 %v532
    %vm539 = vweird.f32 %v533
    %vm540 = vmor %vm538, %vm539
    %v541 = vsel %vm540, %v533, %v537
    %v542 = vand.u32 2147483647, %v532
    %vm543 = vcmp.eq.f32.partialorder %v542, 8.507059e+37
    %v544 = vand.u32 %v532, 2147483648
    %v545 = vor.u32 1.1754944e-38, %v544
    %v546 = vsel %vm543, %v545, %v541
    %v547 = vmul.f32 1.0, %v546
    %v548 = vtanh.pop %v528
    %v549 = vxor.u32 %v528, 2147483648
    %v550 = vmul.f32 %v549, 1.442695
    %v551 = vpow.pop %v550
    %v552 = vadd.f32 %v551, 1.0
    %v553 = vrcp.pop %v552
    %v554 = vmul.f32 %v552, %v553
    %v555 = vsub.f32 1.0, %v554
    %v556 = vmul.f32 %v553, %v555
    %v557 = vadd.f32 %v553, %v556
    %vm558 = vweird.f32 %v552
    %vm559 = vweird.f32 %v553
    %vm560 = vmor %vm558, %vm559
    %v561 = vsel %vm560, %v553, %v557
    %v562 = vand.u32 2147483647, %v552
    %vm563 = vcmp.eq.f32.partialorder %v562, 8.507059e+37
    %v564 = vand.u32 %v552, 2147483648
    %v565 = vor.u32 1.1754944e-38, %v564
    %v566 = vsel %vm563, %v565, %v561
    %v567 = vmul.f32 1.0, %v566
    %v569 = vrot.slane %v467, 6
    %v571 = vmul.f32 %v547, %v569
    %v572 = vmul.f32 %v547, %v548
    %574 = vrot.lane.b32.xlu0 %v572, 64
    %v575 = vpop.permute.xlu0 %574
    %v577 = vadd.f32 %v571, %v575
    %v578 = vtanh.pop %v577
    %v579 = vmul.f32 %v567, %v578
    %581 = vrot.lane.b32.xlu0 %v579, 64
    %v582 = vpop.permute.xlu0 %581
    %vm584 = vcmask 521220
    %585 = vst.msk [vmem:[#allocation2] sm:$0x30] %vm584, %v582
    %v586 = vrot.slane %v579, 4
    %587 = vrot.lane.b32.xlu0 %v586, 64
    %v588 = vpop.permute.xlu0 %587
    %v589 = vsel %vm263, %v588, 0
    %591 = vmatpush.msra.mxu0 0.0
    %592 = vmatpush.msra.mxu0 0.0
    %593 = vmatpush.msra.mxu0 0.0
    %594 = vmatpush.msra.mxu0 0.0
    %595 = vmatpush.msra.mxu0 0.0
    %596 = vmatpush.msra.mxu0 0.0
    %597 = vmatpush.msra.mxu0 0.0
    %598 = vmatpush.msra.mxu0 0.0
    %599 = vmatpush.msra.mxu0 %v91
    %600 = vmatpush.msra.mxu0 %v89
    %601 = vmatpush.msra.mxu0 %v87
    %602 = vmatpush.msra.mxu0 %v85
    %603 = vmatpush.msra.mxu0 %v83
    %604 = vmatpush.msra.mxu0 %v81
    %605 = vmatpush.msra.mxu0 %v79
    %606 = vmatpush.msra.mxu0 %v77
    %607 = vmatmul.f32.gmra.mxu0 %v589
    %v608 = vpop.f32.mrf.mxu0
    %v609 = vadd.f32 0.0, %v608
    %610 = vdwg.mxu0
    %611 = vmatpush.msra.mxu0 0.0
    %612 = vmatpush.msra.mxu0 0.0
    %613 = vmatpush.msra.mxu0 0.0
    %614 = vmatpush.msra.mxu0 0.0
    %615 = vmatpush.msra.mxu0 0.0
    %616 = vmatpush.msra.mxu0 0.0
    %617 = vmatpush.msra.mxu0 0.0
    %618 = vmatpush.msra.mxu0 0.0
    %619 = vmatpush.msra.mxu0 %v92
    %620 = vmatpush.msra.mxu0 %v90
    %621 = vmatpush.msra.mxu0 %v88
    %622 = vmatpush.msra.mxu0 %v86
    %623 = vmatpush.msra.mxu0 %v84
    %624 = vmatpush.msra.mxu0 %v82
    %625 = vmatpush.msra.mxu0 %v80
    %626 = vmatpush.msra.mxu0 %v78
    %627 = vmatmul.f32.gmra.mxu0 %v589
    %v628 = vpop.f32.mrf.mxu0
    %v629 = vadd.f32 0.0, %v628
    %630 = vdwg.mxu0
    %v633 = vrot.slane %v609, 2
    %v634 = vrot.slane %v629, 2
    %v637 = vadd.f32 %v367, %v633
    %v638 = vadd.f32 %v368, %v634
    %v639 = vxor.u32 %v637, 2147483648
    %v640 = vmul.f32 %v639, 1.442695
    %v641 = vpow.pop %v640
    %v642 = vadd.f32 %v641, 1.0
    %v643 = vrcp.pop %v642
    %v644 = vmul.f32 %v642, %v643
    %v645 = vsub.f32 1.0, %v644
    %v646 = vmul.f32 %v643, %v645
    %v647 = vadd.f32 %v643, %v646
    %vm648 = vweird.f32 %v642
    %vm649 = vweird.f32 %v643
    %vm650 = vmor %vm648, %vm649
    %v651 = vsel %vm650, %v643, %v647
    %v652 = vand.u32 2147483647, %v642
    %vm653 = vcmp.eq.f32.partialorder %v652, 8.507059e+37
    %v654 = vand.u32 %v642, 2147483648
    %v655 = vor.u32 1.1754944e-38, %v654
    %v656 = vsel %vm653, %v655, %v651
    %v657 = vmul.f32 1.0, %v656
    %v658 = vtanh.pop %v638
    %v659 = vxor.u32 %v638, 2147483648
    %v660 = vmul.f32 %v659, 1.442695
    %v661 = vpow.pop %v660
    %v662 = vadd.f32 %v661, 1.0
    %v663 = vrcp.pop %v662
    %v664 = vmul.f32 %v662, %v663
    %v665 = vsub.f32 1.0, %v664
    %v666 = vmul.f32 %v663, %v665
    %v667 = vadd.f32 %v663, %v666
    %vm668 = vweird.f32 %v662
    %vm669 = vweird.f32 %v663
    %vm670 = vmor %vm668, %vm669
    %v671 = vsel %vm670, %v663, %v667
    %v672 = vand.u32 2147483647, %v662
    %vm673 = vcmp.eq.f32.partialorder %v672, 8.507059e+37
    %v674 = vand.u32 %v662, 2147483648
    %v675 = vor.u32 1.1754944e-38, %v674
    %v676 = vsel %vm673, %v675, %v671
    %v677 = vmul.f32 1.0, %v676
    %v679 = vrot.slane %v577, 6
    %v681 = vmul.f32 %v657, %v679
    %v682 = vmul.f32 %v657, %v658
    %684 = vrot.lane.b32.xlu0 %v682, 64
    %v685 = vpop.permute.xlu0 %684
    %v687 = vadd.f32 %v681, %v685
    %v688 = vtanh.pop %v687
    %v689 = vmul.f32 %v677, %v688
    %691 = vrot.lane.b32.xlu0 %v689, 64
    %v692 = vpop.permute.xlu0 %691
    %vm694 = vcmask 523270
    %695 = vst.msk [vmem:[#allocation2] sm:$0xc0] %vm694, %v692
    %v698 = vrot.slane %v217, 6
    %v699 = vrot.slane %v246, 6
    %v702 = vsel %vm253, %v214, %v698
    %v703 = vsel %vm254, %v243, %v699
    %v704 = vrot.slane %v689, 6
    %705 = vrot.lane.b32.xlu0 %v704, 64
    %v706 = vpop.permute.xlu0 %705
    %v707 = vsel %vm263, %v706, 0
    %709 = vmatpush.msra.mxu0 0.0
    %710 = vmatpush.msra.mxu0 0.0
    %711 = vmatpush.msra.mxu0 0.0
    %712 = vmatpush.msra.mxu0 0.0
    %713 = vmatpush.msra.mxu0 0.0
    %714 = vmatpush.msra.mxu0 0.0
    %715 = vmatpush.msra.mxu0 0.0
    %716 = vmatpush.msra.mxu0 0.0
    %717 = vmatpush.msra.mxu0 %v91
    %718 = vmatpush.msra.mxu0 %v89
    %719 = vmatpush.msra.mxu0 %v87
    %720 = vmatpush.msra.mxu0 %v85
    %721 = vmatpush.msra.mxu0 %v83
    %722 = vmatpush.msra.mxu0 %v81
    %723 = vmatpush.msra.mxu0 %v79
    %724 = vmatpush.msra.mxu0 %v77
    %725 = vmatmul.f32.gmra.mxu0 %v707
    %v726 = vpop.f32.mrf.mxu0
    %v727 = vadd.f32 0.0, %v726
    %728 = vdwg.mxu0
    %729 = vmatpush.msra.mxu0 0.0
    %730 = vmatpush.msra.mxu0 0.0
    %731 = vmatpush.msra.mxu0 0.0
    %732 = vmatpush.msra.mxu0 0.0
    %733 = vmatpush.msra.mxu0 0.0
    %734 = vmatpush.msra.mxu0 0.0
    %735 = vmatpush.msra.mxu0 0.0
    %736 = vmatpush.msra.mxu0 0.0
    %737 = vmatpush.msra.mxu0 %v92
    %738 = vmatpush.msra.mxu0 %v90
    %739 = vmatpush.msra.mxu0 %v88
    %740 = vmatpush.msra.mxu0 %v86
    %741 = vmatpush.msra.mxu0 %v84
    %742 = vmatpush.msra.mxu0 %v82
    %743 = vmatpush.msra.mxu0 %v80
    %744 = vmatpush.msra.mxu0 %v78
    %745 = vmatmul.f32.gmra.mxu0 %v707
    %v746 = vpop.f32.mrf.mxu0
    %v747 = vadd.f32 0.0, %v746
    %748 = vdwg.mxu0
    %v749 = vadd.f32 %v702, %v727
    %v750 = vadd.f32 %v703, %v747
    %v751 = vxor.u32 %v749, 2147483648
    %v752 = vmul.f32 %v751, 1.442695
    %v753 = vpow.pop %v752
    %v754 = vadd.f32 %v753, 1.0
    %v755 = vrcp.pop %v754
    %v756 = vmul.f32 %v754, %v755
    %v757 = vsub.f32 1.0, %v756
    %v758 = vmul.f32 %v755, %v757
    %v759 = vadd.f32 %v755, %v758
    %vm760 = vweird.f32 %v754
    %vm761 = vweird.f32 %v755
    %vm762 = vmor %vm760, %vm761
    %v763 = vsel %vm762, %v755, %v759
    %v764 = vand.u32 2147483647, %v754
    %vm765 = vcmp.eq.f32.partialorder %v764, 8.507059e+37
    %v766 = vand.u32 %v754, 2147483648
    %v767 = vor.u32 1.1754944e-38, %v766
    %v768 = vsel %vm765, %v767, %v763
    %v769 = vmul.f32 1.0, %v768
    %v770 = vtanh.pop %v750
    %v771 = vxor.u32 %v750, 2147483648
    %v772 = vmul.f32 %v771, 1.442695
    %v773 = vpow.pop %v772
    %v774 = vadd.f32 %v773, 1.0
    %v775 = vrcp.pop %v774
    %v776 = vmul.f32 %v774, %v775
    %v777 = vsub.f32 1.0, %v776
    %v778 = vmul.f32 %v775, %v777
    %v779 = vadd.f32 %v775, %v778
    %vm780 = vweird.f32 %v774
    %vm781 = vweird.f32 %v775
    %vm782 = vmor %vm780, %vm781
    %v783 = vsel %vm782, %v775, %v779
    %v784 = vand.u32 2147483647, %v774
    %vm785 = vcmp.eq.f32.partialorder %v784, 8.507059e+37
    %v786 = vand.u32 %v774, 2147483648
    %v787 = vor.u32 1.1754944e-38, %v786
    %v788 = vsel %vm785, %v787, %v783
    %v789 = vmul.f32 1.0, %v788
    %v791 = vrot.slane %v687, 6
    %v793 = vmul.f32 %v769, %v791
    %v794 = vmul.f32 %v769, %v770
    %796 = vrot.lane.b32.xlu0 %v794, 64
    %v797 = vpop.permute.xlu0 %796
    %v799 = vadd.f32 %v793, %v797
    %v800 = vtanh.pop %v799
    %v801 = vmul.f32 %v789, %v800
    %803 = vrot.lane.b32.xlu0 %v801, 64
    %v804 = vpop.permute.xlu0 %803
    %806 = vst.msk [vmem:[#allocation2 + $0x8] sm:$0x3] %vm361, %v804
    %v807 = vrot.slane %v217, 2
    %v808 = vrot.slane %v246, 2
    %v811 = vsel %vm253, %v214, %v807
    %v812 = vsel %vm254, %v243, %v808
    %v813 = vsel %vm263, %v804, 0
    %815 = vmatpush.msra.mxu0 0.0
    %816 = vmatpush.msra.mxu0 0.0
    %817 = vmatpush.msra.mxu0 0.0
    %818 = vmatpush.msra.mxu0 0.0
    %819 = vmatpush.msra.mxu0 0.0
    %820 = vmatpush.msra.mxu0 0.0
    %821 = vmatpush.msra.mxu0 0.0
    %822 = vmatpush.msra.mxu0 0.0
    %823 = vmatpush.msra.mxu0 %v91
    %824 = vmatpush.msra.mxu0 %v89
    %825 = vmatpush.msra.mxu0 %v87
    %826 = vmatpush.msra.mxu0 %v85
    %827 = vmatpush.msra.mxu0 %v83
    %828 = vmatpush.msra.mxu0 %v81
    %829 = vmatpush.msra.mxu0 %v79
    %830 = vmatpush.msra.mxu0 %v77
    %831 = vmatmul.f32.gmra.mxu0 %v813
    %v832 = vpop.f32.mrf.mxu0
    %v833 = vadd.f32 0.0, %v832
    %834 = vdwg.mxu0
    %835 = vmatpush.msra.mxu0 0.0
    %836 = vmatpush.msra.mxu0 0.0
    %837 = vmatpush.msra.mxu0 0.0
    %838 = vmatpush.msra.mxu0 0.0
    %839 = vmatpush.msra.mxu0 0.0
    %840 = vmatpush.msra.mxu0 0.0
    %841 = vmatpush.msra.mxu0 0.0
    %842 = vmatpush.msra.mxu0 0.0
    %843 = vmatpush.msra.mxu0 %v92
    %844 = vmatpush.msra.mxu0 %v90
    %845 = vmatpush.msra.mxu0 %v88
    %846 = vmatpush.msra.mxu0 %v86
    %847 = vmatpush.msra.mxu0 %v84
    %848 = vmatpush.msra.mxu0 %v82
    %849 = vmatpush.msra.mxu0 %v80
    %850 = vmatpush.msra.mxu0 %v78
    %851 = vmatmul.f32.gmra.mxu0 %v813
    %v852 = vpop.f32.mrf.mxu0
    %v853 = vadd.f32 0.0, %v852
    %854 = vdwg.mxu0
    %v857 = vrot.slane %v833, 6
    %v858 = vrot.slane %v853, 6
    %v861 = vadd.f32 %v811, %v857
    %v862 = vadd.f32 %v812, %v858
    %v863 = vxor.u32 %v861, 2147483648
    %v864 = vmul.f32 %v863, 1.442695
    %v865 = vpow.pop %v864
    %v866 = vadd.f32 %v865, 1.0
    %v867 = vrcp.pop %v866
    %v868 = vmul.f32 %v866, %v867
    %v869 = vsub.f32 1.0, %v868
    %v870 = vmul.f32 %v867, %v869
    %v871 = vadd.f32 %v867, %v870
    %vm872 = vweird.f32 %v866
    %vm873 = vweird.f32 %v867
    %vm874 = vmor %vm872, %vm873
    %v875 = vsel %vm874, %v867, %v871
    %v876 = vand.u32 2147483647, %v866
    %vm877 = vcmp.eq.f32.partialorder %v876, 8.507059e+37
    %v878 = vand.u32 %v866, 2147483648
    %v879 = vor.u32 1.1754944e-38, %v878
    %v880 = vsel %vm877, %v879, %v875
    %v881 = vmul.f32 1.0, %v880
    %v882 = vtanh.pop %v862
    %v883 = vxor.u32 %v862, 2147483648
    %v884 = vmul.f32 %v883, 1.442695
    %v885 = vpow.pop %v884
    %v886 = vadd.f32 %v885, 1.0
    %v887 = vrcp.pop %v886
    %v888 = vmul.f32 %v886, %v887
    %v889 = vsub.f32 1.0, %v888
    %v890 = vmul.f32 %v887, %v889
    %v891 = vadd.f32 %v887, %v890
    %vm892 = vweird.f32 %v886
    %vm893 = vweird.f32 %v887
    %vm894 = vmor %vm892, %vm893
    %v895 = vsel %vm894, %v887, %v891
    %v896 = vand.u32 2147483647, %v886
    %vm897 = vcmp.eq.f32.partialorder %v896, 8.507059e+37
    %v898 = vand.u32 %v886, 2147483648
    %v899 = vor.u32 1.1754944e-38, %v898
    %v900 = vsel %vm897, %v899, %v895
    %v901 = vmul.f32 1.0, %v900
    %v903 = vrot.slane %v799, 6
    %v905 = vmul.f32 %v881, %v903
    %v906 = vmul.f32 %v881, %v882
    %908 = vrot.lane.b32.xlu0 %v906, 64
    %v909 = vpop.permute.xlu0 %908
    %v911 = vadd.f32 %v905, %v909
    %v912 = vtanh.pop %v911
    %v913 = vmul.f32 %v901, %v912
    %915 = vrot.lane.b32.xlu0 %v913, 64
    %v916 = vpop.permute.xlu0 %915
    %918 = vst.msk [vmem:[#allocation2 + $0x8] sm:$0xc] %vm474, %v916
    %v919 = vrot.slane %v913, 2
    %920 = vrot.lane.b32.xlu0 %v919, 64
    %v921 = vpop.permute.xlu0 %920
    %v922 = vsel %vm263, %v921, 0
    %924 = vmatpush.msra.mxu0 0.0
    %925 = vmatpush.msra.mxu0 0.0
    %926 = vmatpush.msra.mxu0 0.0
    %927 = vmatpush.msra.mxu0 0.0
    %928 = vmatpush.msra.mxu0 0.0
    %929 = vmatpush.msra.mxu0 0.0
    %930 = vmatpush.msra.mxu0 0.0
    %931 = vmatpush.msra.mxu0 0.0
    %932 = vmatpush.msra.mxu0 %v91
    %933 = vmatpush.msra.mxu0 %v89
    %934 = vmatpush.msra.mxu0 %v87
    %935 = vmatpush.msra.mxu0 %v85
    %936 = vmatpush.msra.mxu0 %v83
    %937 = vmatpush.msra.mxu0 %v81
    %938 = vmatpush.msra.mxu0 %v79
    %939 = vmatpush.msra.mxu0 %v77
    %940 = vmatmul.f32.gmra.mxu0 %v922
    %v941 = vpop.f32.mrf.mxu0
    %v942 = vadd.f32 0.0, %v941
    %943 = vdwg.mxu0
    %944 = vmatpush.msra.mxu0 0.0
    %945 = vmatpush.msra.mxu0 0.0
    %946 = vmatpush.msra.mxu0 0.0
    %947 = vmatpush.msra.mxu0 0.0
    %948 = vmatpush.msra.mxu0 0.0
    %949 = vmatpush.msra.mxu0 0.0
    %950 = vmatpush.msra.mxu0 0.0
    %951 = vmatpush.msra.mxu0 0.0
    %952 = vmatpush.msra.mxu0 %v92
    %953 = vmatpush.msra.mxu0 %v90
    %954 = vmatpush.msra.mxu0 %v88
    %955 = vmatpush.msra.mxu0 %v86
    %956 = vmatpush.msra.mxu0 %v84
    %957 = vmatpush.msra.mxu0 %v82
    %958 = vmatpush.msra.mxu0 %v80
    %959 = vmatpush.msra.mxu0 %v78
    %960 = vmatmul.f32.gmra.mxu0 %v922
    %v961 = vpop.f32.mrf.mxu0
    %v962 = vadd.f32 0.0, %v961
    %963 = vdwg.mxu0
    %v966 = vrot.slane %v942, 4
    %v967 = vrot.slane %v962, 4
    %v970 = vadd.f32 %v702, %v966
    %v971 = vadd.f32 %v703, %v967
    %v972 = vxor.u32 %v970, 2147483648
    %v973 = vmul.f32 %v972, 1.442695
    %v974 = vpow.pop %v973
    %v975 = vadd.f32 %v974, 1.0
    %v976 = vrcp.pop %v975
    %v977 = vmul.f32 %v975, %v976
    %v978 = vsub.f32 1.0, %v977
    %v979 = vmul.f32 %v976, %v978
    %v980 = vadd.f32 %v976, %v979
    %vm981 = vweird.f32 %v975
    %vm982 = vweird.f32 %v976
    %vm983 = vmor %vm981, %vm982
    %v984 = vsel %vm983, %v976, %v980
    %v985 = vand.u32 2147483647, %v975
    %vm986 = vcmp.eq.f32.partialorder %v985, 8.507059e+37
    %v987 = vand.u32 %v975, 2147483648
    %v988 = vor.u32 1.1754944e-38, %v987
    %v989 = vsel %vm986, %v988, %v984
    %v990 = vmul.f32 1.0, %v989
    %v991 = vtanh.pop %v971
    %v992 = vxor.u32 %v971, 2147483648
    %v993 = vmul.f32 %v992, 1.442695
    %v994 = vpow.pop %v993
    %v995 = vadd.f32 %v994, 1.0
    %v996 = vrcp.pop %v995
    %v997 = vmul.f32 %v995, %v996
    %v998 = vsub.f32 1.0, %v997
    %v999 = vmul.f32 %v996, %v998
    %v1000 = vadd.f32 %v996, %v999
    %vm1001 = vweird.f32 %v995
    %vm1002 = vweird.f32 %v996
    %vm1003 = vmor %vm1001, %vm1002
    %v1004 = vsel %vm1003, %v996, %v1000
    %v1005 = vand.u32 2147483647, %v995
    %vm1006 = vcmp.eq.f32.partialorder %v1005, 8.507059e+37
    %v1007 = vand.u32 %v995, 2147483648
    %v1008 = vor.u32 1.1754944e-38, %v1007
    %v1009 = vsel %vm1006, %v1008, %v1004
    %v1010 = vmul.f32 1.0, %v1009
    %v1012 = vrot.slane %v911, 6
    %v1014 = vmul.f32 %v990, %v1012
    %v1015 = vmul.f32 %v990, %v991
    %1017 = vrot.lane.b32.xlu0 %v1015, 64
    %v1018 = vpop.permute.xlu0 %1017
    %v1020 = vadd.f32 %v1014, %v1018
    %v1021 = vtanh.pop %v1020
    %v1022 = vmul.f32 %v1010, %v1021
    %1024 = vrot.lane.b32.xlu0 %v1022, 64
    %v1025 = vpop.permute.xlu0 %1024
    %1027 = vst.msk [vmem:[#allocation2 + $0x8] sm:$0x30] %vm584, %v1025
    %v1028 = vrot.slane %v1022, 4
    %1029 = vrot.lane.b32.xlu0 %v1028, 64
    %v1030 = vpop.permute.xlu0 %1029
    %v1031 = vsel %vm263, %v1030, 0
    %1033 = vmatpush.msra.mxu0 0.0
    %1034 = vmatpush.msra.mxu0 0.0
    %1035 = vmatpush.msra.mxu0 0.0
    %1036 = vmatpush.msra.mxu0 0.0
    %1037 = vmatpush.msra.mxu0 0.0
    %1038 = vmatpush.msra.mxu0 0.0
    %1039 = vmatpush.msra.mxu0 0.0
    %1040 = vmatpush.msra.mxu0 0.0
    %1041 = vmatpush.msra.mxu0 %v91
    %1042 = vmatpush.msra.mxu0 %v89
    %1043 = vmatpush.msra.mxu0 %v87
    %1044 = vmatpush.msra.mxu0 %v85
    %1045 = vmatpush.msra.mxu0 %v83
    %1046 = vmatpush.msra.mxu0 %v81
    %1047 = vmatpush.msra.mxu0 %v79
    %1048 = vmatpush.msra.mxu0 %v77
    %1049 = vmatmul.f32.gmra.mxu0 %v1031
    %v1050 = vpop.f32.mrf.mxu0
    %v1051 = vadd.f32 0.0, %v1050
    %1052 = vdwg.mxu0
    %1053 = vmatpush.msra.mxu0 0.0
    %1054 = vmatpush.msra.mxu0 0.0
    %1055 = vmatpush.msra.mxu0 0.0
    %1056 = vmatpush.msra.mxu0 0.0
    %1057 = vmatpush.msra.mxu0 0.0
    %1058 = vmatpush.msra.mxu0 0.0
    %1059 = vmatpush.msra.mxu0 0.0
    %1060 = vmatpush.msra.mxu0 0.0
    %1061 = vmatpush.msra.mxu0 %v92
    %1062 = vmatpush.msra.mxu0 %v90
    %1063 = vmatpush.msra.mxu0 %v88
    %1064 = vmatpush.msra.mxu0 %v86
    %1065 = vmatpush.msra.mxu0 %v84
    %1066 = vmatpush.msra.mxu0 %v82
    %1067 = vmatpush.msra.mxu0 %v80
    %1068 = vmatpush.msra.mxu0 %v78
    %1069 = vmatmul.f32.gmra.mxu0 %v1031
    %v1070 = vpop.f32.mrf.mxu0
    %v1071 = vadd.f32 0.0, %v1070
    %1072 = vdwg.mxu0
    %v1075 = vrot.slane %v1051, 2
    %v1076 = vrot.slane %v1071, 2
    %v1079 = vadd.f32 %v811, %v1075
    %v1080 = vadd.f32 %v812, %v1076
    %v1081 = vxor.u32 %v1079, 2147483648
    %v1082 = vmul.f32 %v1081, 1.442695
    %v1083 = vpow.pop %v1082
    %v1084 = vadd.f32 %v1083, 1.0
    %v1085 = vrcp.pop %v1084
    %v1086 = vmul.f32 %v1084, %v1085
    %v1087 = vsub.f32 1.0, %v1086
    %v1088 = vmul.f32 %v1085, %v1087
    %v1089 = vadd.f32 %v1085, %v1088
    %vm1090 = vweird.f32 %v1084
    %vm1091 = vweird.f32 %v1085
    %vm1092 = vmor %vm1090, %vm1091
    %v1093 = vsel %vm1092, %v1085, %v1089
    %v1094 = vand.u32 2147483647, %v1084
    %vm1095 = vcmp.eq.f32.partialorder %v1094, 8.507059e+37
    %v1096 = vand.u32 %v1084, 2147483648
    %v1097 = vor.u32 1.1754944e-38, %v1096
    %v1098 = vsel %vm1095, %v1097, %v1093
    %v1099 = vmul.f32 1.0, %v1098
    %v1100 = vtanh.pop %v1080
    %v1101 = vxor.u32 %v1080, 2147483648
    %v1102 = vmul.f32 %v1101, 1.442695
    %v1103 = vpow.pop %v1102
    %v1104 = vadd.f32 %v1103, 1.0
    %v1105 = vrcp.pop %v1104
    %v1106 = vmul.f32 %v1104, %v1105
    %v1107 = vsub.f32 1.0, %v1106
    %v1108 = vmul.f32 %v1105, %v1107
    %v1109 = vadd.f32 %v1105, %v1108
    %vm1110 = vweird.f32 %v1104
    %vm1111 = vweird.f32 %v1105
    %vm1112 = vmor %vm1110, %vm1111
    %v1113 = vsel %vm1112, %v1105, %v1109
    %v1114 = vand.u32 2147483647, %v1104
    %vm1115 = vcmp.eq.f32.partialorder %v1114, 8.507059e+37
    %v1116 = vand.u32 %v1104, 2147483648
    %v1117 = vor.u32 1.1754944e-38, %v1116
    %v1118 = vsel %vm1115, %v1117, %v1113
    %v1119 = vmul.f32 1.0, %v1118
    %v1121 = vrot.slane %v1020, 6
    %v1123 = vmul.f32 %v1099, %v1121
    %v1124 = vmul.f32 %v1099, %v1100
    %1126 = vrot.lane.b32.xlu0 %v1124, 64
    %v1127 = vpop.permute.xlu0 %1126
    %v1129 = vadd.f32 %v1123, %v1127
    %v1130 = vtanh.pop %v1129
    %v1131 = vmul.f32 %v1119, %v1130
    %1133 = vrot.lane.b32.xlu0 %v1131, 64
    %v1134 = vpop.permute.xlu0 %1133
    %1136 = vst.msk [vmem:[#allocation2 + $0x8] sm:$0xc0] %vm694, %v1134
    %v1139 = vrot.slane %v214, 6
    %v1140 = vrot.slane %v243, 6
    %v1143 = vsel %vm253, %v217, %v1139
    %v1144 = vsel %vm254, %v246, %v1140
    %v1145 = vrot.slane %v1131, 6
    %1146 = vrot.lane.b32.xlu0 %v1145, 64
    %v1147 = vpop.permute.xlu0 %1146
    %v1148 = vsel %vm263, %v1147, 0
    %1150 = vmatpush.msra.mxu0 0.0
    %1151 = vmatpush.msra.mxu0 0.0
    %1152 = vmatpush.msra.mxu0 0.0
    %1153 = vmatpush.msra.mxu0 0.0
    %1154 = vmatpush.msra.mxu0 0.0
    %1155 = vmatpush.msra.mxu0 0.0
    %1156 = vmatpush.msra.mxu0 0.0
    %1157 = vmatpush.msra.mxu0 0.0
    %1158 = vmatpush.msra.mxu0 %v91
    %1159 = vmatpush.msra.mxu0 %v89
    %1160 = vmatpush.msra.mxu0 %v87
    %1161 = vmatpush.msra.mxu0 %v85
    %1162 = vmatpush.msra.mxu0 %v83
    %1163 = vmatpush.msra.mxu0 %v81
    %1164 = vmatpush.msra.mxu0 %v79
    %1165 = vmatpush.msra.mxu0 %v77
    %1166 = vmatmul.f32.gmra.mxu0 %v1148
    %v1167 = vpop.f32.mrf.mxu0
    %v1168 = vadd.f32 0.0, %v1167
    %1169 = vdwg.mxu0
    %1170 = vmatpush.msra.mxu0 0.0
    %1171 = vmatpush.msra.mxu0 0.0
    %1172 = vmatpush.msra.mxu0 0.0
    %1173 = vmatpush.msra.mxu0 0.0
    %1174 = vmatpush.msra.mxu0 0.0
    %1175 = vmatpush.msra.mxu0 0.0
    %1176 = vmatpush.msra.mxu0 0.0
    %1177 = vmatpush.msra.mxu0 0.0
    %1178 = vmatpush.msra.mxu0 %v92
    %1179 = vmatpush.msra.mxu0 %v90
    %1180 = vmatpush.msra.mxu0 %v88
    %1181 = vmatpush.msra.mxu0 %v86
    %1182 = vmatpush.msra.mxu0 %v84
    %1183 = vmatpush.msra.mxu0 %v82
    %1184 = vmatpush.msra.mxu0 %v80
    %1185 = vmatpush.msra.mxu0 %v78
    %1186 = vmatmul.f32.gmra.mxu0 %v1148
    %v1187 = vpop.f32.mrf.mxu0
    %v1188 = vadd.f32 0.0, %v1187
    %1189 = vdwg.mxu0
    %v1190 = vadd.f32 %v1143, %v1168
    %v1191 = vadd.f32 %v1144, %v1188
    %v1192 = vxor.u32 %v1190, 2147483648
    %v1193 = vmul.f32 %v1192, 1.442695
    %v1194 = vpow.pop %v1193
    %v1195 = vadd.f32 %v1194, 1.0
    %v1196 = vrcp.pop %v1195
    %v1197 = vmul.f32 %v1195, %v1196
    %v1198 = vsub.f32 1.0, %v1197
    %v1199 = vmul.f32 %v1196, %v1198
    %v1200 = vadd.f32 %v1196, %v1199
    %vm1201 = vweird.f32 %v1195
    %vm1202 = vweird.f32 %v1196
    %vm1203 = vmor %vm1201, %vm1202
    %v1204 = vsel %vm1203, %v1196, %v1200
    %v1205 = vand.u32 2147483647, %v1195
    %vm1206 = vcmp.eq.f32.partialorder %v1205, 8.507059e+37
    %v1207 = vand.u32 %v1195, 2147483648
    %v1208 = vor.u32 1.1754944e-38, %v1207
    %v1209 = vsel %vm1206, %v1208, %v1204
    %v1210 = vmul.f32 1.0, %v1209
    %v1211 = vtanh.pop %v1191
    %v1212 = vxor.u32 %v1191, 2147483648
    %v1213 = vmul.f32 %v1212, 1.442695
    %v1214 = vpow.pop %v1213
    %v1215 = vadd.f32 %v1214, 1.0
    %v1216 = vrcp.pop %v1215
    %v1217 = vmul.f32 %v1215, %v1216
    %v1218 = vsub.f32 1.0, %v1217
    %v1219 = vmul.f32 %v1216, %v1218
    %v1220 = vadd.f32 %v1216, %v1219
    %vm1221 = vweird.f32 %v1215
    %vm1222 = vweird.f32 %v1216
    %vm1223 = vmor %vm1221, %vm1222
    %v1224 = vsel %vm1223, %v1216, %v1220
    %v1225 = vand.u32 2147483647, %v1215
    %vm1226 = vcmp.eq.f32.partialorder %v1225, 8.507059e+37
    %v1227 = vand.u32 %v1215, 2147483648
    %v1228 = vor.u32 1.1754944e-38, %v1227
    %v1229 = vsel %vm1226, %v1228, %v1224
    %v1230 = vmul.f32 1.0, %v1229
    %v1232 = vrot.slane %v1129, 6
    %v1234 = vmul.f32 %v1210, %v1232
    %v1235 = vmul.f32 %v1210, %v1211
    %1237 = vrot.lane.b32.xlu0 %v1235, 64
    %v1238 = vpop.permute.xlu0 %1237
    %v1240 = vadd.f32 %v1234, %v1238
    %v1241 = vtanh.pop %v1240
    %v1242 = vmul.f32 %v1230, %v1241
    %1244 = vrot.lane.b32.xlu0 %v1242, 64
    %v1245 = vpop.permute.xlu0 %1244
    %1247 = vst.msk [vmem:[#allocation2 + $0x10] sm:$0x3] %vm361, %v1245
    %v1248 = vrot.slane %v214, 2
    %v1249 = vrot.slane %v243, 2
    %v1252 = vsel %vm253, %v217, %v1248
    %v1253 = vsel %vm254, %v246, %v1249
    %v1254 = vsel %vm263, %v1245, 0
    %1256 = vmatpush.msra.mxu0 0.0
    %1257 = vmatpush.msra.mxu0 0.0
    %1258 = vmatpush.msra.mxu0 0.0
    %1259 = vmatpush.msra.mxu0 0.0
    %1260 = vmatpush.msra.mxu0 0.0
    %1261 = vmatpush.msra.mxu0 0.0
    %1262 = vmatpush.msra.mxu0 0.0
    %1263 = vmatpush.msra.mxu0 0.0
    %1264 = vmatpush.msra.mxu0 %v91
    %1265 = vmatpush.msra.mxu0 %v89
    %1266 = vmatpush.msra.mxu0 %v87
    %1267 = vmatpush.msra.mxu0 %v85
    %1268 = vmatpush.msra.mxu0 %v83
    %1269 = vmatpush.msra.mxu0 %v81
    %1270 = vmatpush.msra.mxu0 %v79
    %1271 = vmatpush.msra.mxu0 %v77
    %1272 = vmatmul.f32.gmra.mxu0 %v1254
    %v1273 = vpop.f32.mrf.mxu0
    %v1274 = vadd.f32 0.0, %v1273
    %1275 = vdwg.mxu0
    %1276 = vmatpush.msra.mxu0 0.0
    %1277 = vmatpush.msra.mxu0 0.0
    %1278 = vmatpush.msra.mxu0 0.0
    %1279 = vmatpush.msra.mxu0 0.0
    %1280 = vmatpush.msra.mxu0 0.0
    %1281 = vmatpush.msra.mxu0 0.0
    %1282 = vmatpush.msra.mxu0 0.0
    %1283 = vmatpush.msra.mxu0 0.0
    %1284 = vmatpush.msra.mxu0 %v92
    %1285 = vmatpush.msra.mxu0 %v90
    %1286 = vmatpush.msra.mxu0 %v88
    %1287 = vmatpush.msra.mxu0 %v86
    %1288 = vmatpush.msra.mxu0 %v84
    %1289 = vmatpush.msra.mxu0 %v82
    %1290 = vmatpush.msra.mxu0 %v80
    %1291 = vmatpush.msra.mxu0 %v78
    %1292 = vmatmul.f32.gmra.mxu0 %v1254
    %v1293 = vpop.f32.mrf.mxu0
    %v1294 = vadd.f32 0.0, %v1293
    %1295 = vdwg.mxu0
    %v1298 = vrot.slane %v1274, 6
    %v1299 = vrot.slane %v1294, 6
    %v1302 = vadd.f32 %v1252, %v1298
    %v1303 = vadd.f32 %v1253, %v1299
    %v1304 = vxor.u32 %v1302, 2147483648
    %v1305 = vmul.f32 %v1304, 1.442695
    %v1306 = vpow.pop %v1305
    %v1307 = vadd.f32 %v1306, 1.0
    %v1308 = vrcp.pop %v1307
    %v1309 = vmul.f32 %v1307, %v1308
    %v1310 = vsub.f32 1.0, %v1309
    %v1311 = vmul.f32 %v1308, %v1310
    %v1312 = vadd.f32 %v1308, %v1311
    %vm1313 = vweird.f32 %v1307
    %vm1314 = vweird.f32 %v1308
    %vm1315 = vmor %vm1313, %vm1314
    %v1316 = vsel %vm1315, %v1308, %v1312
    %v1317 = vand.u32 2147483647, %v1307
    %vm1318 = vcmp.eq.f32.partialorder %v1317, 8.507059e+37
    %v1319 = vand.u32 %v1307, 2147483648
    %v1320 = vor.u32 1.1754944e-38, %v1319
    %v1321 = vsel %vm1318, %v1320, %v1316
    %v1322 = vmul.f32 1.0, %v1321
    %v1323 = vtanh.pop %v1303
    %v1324 = vxor.u32 %v1303, 2147483648
    %v1325 = vmul.f32 %v1324, 1.442695
    %v1326 = vpow.pop %v1325
    %v1327 = vadd.f32 %v1326, 1.0
    %v1328 = vrcp.pop %v1327
    %v1329 = vmul.f32 %v1327, %v1328
    %v1330 = vsub.f32 1.0, %v1329
    %v1331 = vmul.f32 %v1328, %v1330
    %v1332 = vadd.f32 %v1328, %v1331
    %vm1333 = vweird.f32 %v1327
    %vm1334 = vweird.f32 %v1328
    %vm1335 = vmor %vm1333, %vm1334
    %v1336 = vsel %vm1335, %v1328, %v1332
    %v1337 = vand.u32 2147483647, %v1327
    %vm1338 = vcmp.eq.f32.partialorder %v1337, 8.507059e+37
    %v1339 = vand.u32 %v1327, 2147483648
    %v1340 = vor.u32 1.1754944e-38, %v1339
    %v1341 = vsel %vm1338, %v1340, %v1336
    %v1342 = vmul.f32 1.0, %v1341
    %v1344 = vrot.slane %v1240, 6
    %v1346 = vmul.f32 %v1322, %v1344
    %v1347 = vmul.f32 %v1322, %v1323
    %1349 = vrot.lane.b32.xlu0 %v1347, 64
    %v1350 = vpop.permute.xlu0 %1349
    %v1352 = vadd.f32 %v1346, %v1350
    %v1353 = vtanh.pop %v1352
    %v1354 = vmul.f32 %v1342, %v1353
    %1356 = vrot.lane.b32.xlu0 %v1354, 64
    %v1357 = vpop.permute.xlu0 %1356
    %1359 = vst.msk [vmem:[#allocation2 + $0x10] sm:$0xc] %vm474, %v1357
    %v1360 = vrot.slane %v1354, 2
    %1361 = vrot.lane.b32.xlu0 %v1360, 64
    %v1362 = vpop.permute.xlu0 %1361
    %v1363 = vsel %vm263, %v1362, 0
    %1365 = vmatpush.msra.mxu0 0.0
    %1366 = vmatpush.msra.mxu0 0.0
    %1367 = vmatpush.msra.mxu0 0.0
    %1368 = vmatpush.msra.mxu0 0.0
    %1369 = vmatpush.msra.mxu0 0.0
    %1370 = vmatpush.msra.mxu0 0.0
    %1371 = vmatpush.msra.mxu0 0.0
    %1372 = vmatpush.msra.mxu0 0.0
    %1373 = vmatpush.msra.mxu0 %v91
    %1374 = vmatpush.msra.mxu0 %v89
    %1375 = vmatpush.msra.mxu0 %v87
    %1376 = vmatpush.msra.mxu0 %v85
    %1377 = vmatpush.msra.mxu0 %v83
    %1378 = vmatpush.msra.mxu0 %v81
    %1379 = vmatpush.msra.mxu0 %v79
    %1380 = vmatpush.msra.mxu0 %v77
    %1381 = vmatmul.f32.gmra.mxu0 %v1363
    %v1382 = vpop.f32.mrf.mxu0
    %v1383 = vadd.f32 0.0, %v1382
    %1384 = vdwg.mxu0
    %1385 = vmatpush.msra.mxu0 0.0
    %1386 = vmatpush.msra.mxu0 0.0
    %1387 = vmatpush.msra.mxu0 0.0
    %1388 = vmatpush.msra.mxu0 0.0
    %1389 = vmatpush.msra.mxu0 0.0
    %1390 = vmatpush.msra.mxu0 0.0
    %1391 = vmatpush.msra.mxu0 0.0
    %1392 = vmatpush.msra.mxu0 0.0
    %1393 = vmatpush.msra.mxu0 %v92
    %1394 = vmatpush.msra.mxu0 %v90
    %1395 = vmatpush.msra.mxu0 %v88
    %1396 = vmatpush.msra.mxu0 %v86
    %1397 = vmatpush.msra.mxu0 %v84
    %1398 = vmatpush.msra.mxu0 %v82
    %1399 = vmatpush.msra.mxu0 %v80
    %1400 = vmatpush.msra.mxu0 %v78
    %1401 = vmatmul.f32.gmra.mxu0 %v1363
    %v1402 = vpop.f32.mrf.mxu0
    %v1403 = vadd.f32 0.0, %v1402
    %1404 = vdwg.mxu0
    %v1407 = vrot.slane %v1383, 4
    %v1408 = vrot.slane %v1403, 4
    %v1411 = vadd.f32 %v1143, %v1407
    %v1412 = vadd.f32 %v1144, %v1408
    %v1413 = vxor.u32 %v1411, 2147483648
    %v1414 = vmul.f32 %v1413, 1.442695
    %v1415 = vpow.pop %v1414
    %v1416 = vadd.f32 %v1415, 1.0
    %v1417 = vrcp.pop %v1416
    %v1418 = vmul.f32 %v1416, %v1417
    %v1419 = vsub.f32 1.0, %v1418
    %v1420 = vmul.f32 %v1417, %v1419
    %v1421 = vadd.f32 %v1417, %v1420
    %vm1422 = vweird.f32 %v1416
    %vm1423 = vweird.f32 %v1417
    %vm1424 = vmor %vm1422, %vm1423
    %v1425 = vsel %vm1424, %v1417, %v1421
    %v1426 = vand.u32 2147483647, %v1416
    %vm1427 = vcmp.eq.f32.partialorder %v1426, 8.507059e+37
    %v1428 = vand.u32 %v1416, 2147483648
    %v1429 = vor.u32 1.1754944e-38, %v1428
    %v1430 = vsel %vm1427, %v1429, %v1425
    %v1431 = vmul.f32 1.0, %v1430
    %v1432 = vtanh.pop %v1412
    %v1433 = vxor.u32 %v1412, 2147483648
    %v1434 = vmul.f32 %v1433, 1.442695
    %v1435 = vpow.pop %v1434
    %v1436 = vadd.f32 %v1435, 1.0
    %v1437 = vrcp.pop %v1436
    %v1438 = vmul.f32 %v1436, %v1437
    %v1439 = vsub.f32 1.0, %v1438
    %v1440 = vmul.f32 %v1437, %v1439
    %v1441 = vadd.f32 %v1437, %v1440
    %vm1442 = vweird.f32 %v1436
    %vm1443 = vweird.f32 %v1437
    %vm1444 = vmor %vm1442, %vm1443
    %v1445 = vsel %vm1444, %v1437, %v1441
    %v1446 = vand.u32 2147483647, %v1436
    %vm1447 = vcmp.eq.f32.partialorder %v1446, 8.507059e+37
    %v1448 = vand.u32 %v1436, 2147483648
    %v1449 = vor.u32 1.1754944e-38, %v1448
    %v1450 = vsel %vm1447, %v1449, %v1445
    %v1451 = vmul.f32 1.0, %v1450
    %v1453 = vrot.slane %v1352, 6
    %v1455 = vmul.f32 %v1431, %v1453
    %v1456 = vmul.f32 %v1431, %v1432
    %1458 = vrot.lane.b32.xlu0 %v1456, 64
    %v1459 = vpop.permute.xlu0 %1458
    %v1461 = vadd.f32 %v1455, %v1459
    %v1462 = vtanh.pop %v1461
    %v1463 = vmul.f32 %v1451, %v1462
    %1465 = vrot.lane.b32.xlu0 %v1463, 64
    %v1466 = vpop.permute.xlu0 %1465
    %1468 = vst.msk [vmem:[#allocation2 + $0x10] sm:$0x30] %vm584, %v1466
    %v1469 = vrot.slane %v1463, 4
    %1470 = vrot.lane.b32.xlu0 %v1469, 64
    %v1471 = vpop.permute.xlu0 %1470
    %v1472 = vsel %vm263, %v1471, 0
    %1474 = vmatpush.msra.mxu0 0.0
    %1475 = vmatpush.msra.mxu0 0.0
    %1476 = vmatpush.msra.mxu0 0.0
    %1477 = vmatpush.msra.mxu0 0.0
    %1478 = vmatpush.msra.mxu0 0.0
    %1479 = vmatpush.msra.mxu0 0.0
    %1480 = vmatpush.msra.mxu0 0.0
    %1481 = vmatpush.msra.mxu0 0.0
    %1482 = vmatpush.msra.mxu0 %v91
    %1483 = vmatpush.msra.mxu0 %v89
    %1484 = vmatpush.msra.mxu0 %v87
    %1485 = vmatpush.msra.mxu0 %v85
    %1486 = vmatpush.msra.mxu0 %v83
    %1487 = vmatpush.msra.mxu0 %v81
    %1488 = vmatpush.msra.mxu0 %v79
    %1489 = vmatpush.msra.mxu0 %v77
    %1490 = vmatmul.f32.gmra.mxu0 %v1472
    %v1491 = vpop.f32.mrf.mxu0
    %v1492 = vadd.f32 0.0, %v1491
    %1493 = vdwg.mxu0
    %1494 = vmatpush.msra.mxu0 0.0
    %1495 = vmatpush.msra.mxu0 0.0
    %1496 = vmatpush.msra.mxu0 0.0
    %1497 = vmatpush.msra.mxu0 0.0
    %1498 = vmatpush.msra.mxu0 0.0
    %1499 = vmatpush.msra.mxu0 0.0
    %1500 = vmatpush.msra.mxu0 0.0
    %1501 = vmatpush.msra.mxu0 0.0
    %1502 = vmatpush.msra.mxu0 %v92
    %1503 = vmatpush.msra.mxu0 %v90
    %1504 = vmatpush.msra.mxu0 %v88
    %1505 = vmatpush.msra.mxu0 %v86
    %1506 = vmatpush.msra.mxu0 %v84
    %1507 = vmatpush.msra.mxu0 %v82
    %1508 = vmatpush.msra.mxu0 %v80
    %1509 = vmatpush.msra.mxu0 %v78
    %1510 = vmatmul.f32.gmra.mxu0 %v1472
    %v1511 = vpop.f32.mrf.mxu0
    %v1512 = vadd.f32 0.0, %v1511
    %1513 = vdwg.mxu0
    %v1516 = vrot.slane %v1492, 2
    %v1517 = vrot.slane %v1512, 2
    %v1520 = vadd.f32 %v1252, %v1516
    %v1521 = vadd.f32 %v1253, %v1517
    %v1522 = vxor.u32 %v1520, 2147483648
    %v1523 = vmul.f32 %v1522, 1.442695
    %v1524 = vpow.pop %v1523
    %v1525 = vadd.f32 %v1524, 1.0
    %v1526 = vrcp.pop %v1525
    %v1527 = vmul.f32 %v1525, %v1526
    %v1528 = vsub.f32 1.0, %v1527
    %v1529 = vmul.f32 %v1526, %v1528
    %v1530 = vadd.f32 %v1526, %v1529
    %vm1531 = vweird.f32 %v1525
    %vm1532 = vweird.f32 %v1526
    %vm1533 = vmor %vm1531, %vm1532
    %v1534 = vsel %vm1533, %v1526, %v1530
    %v1535 = vand.u32 2147483647, %v1525
    %vm1536 = vcmp.eq.f32.partialorder %v1535, 8.507059e+37
    %v1537 = vand.u32 %v1525, 2147483648
    %v1538 = vor.u32 1.1754944e-38, %v1537
    %v1539 = vsel %vm1536, %v1538, %v1534
    %v1540 = vmul.f32 1.0, %v1539
    %v1541 = vtanh.pop %v1521
    %v1542 = vxor.u32 %v1521, 2147483648
    %v1543 = vmul.f32 %v1542, 1.442695
    %v1544 = vpow.pop %v1543
    %v1545 = vadd.f32 %v1544, 1.0
    %v1546 = vrcp.pop %v1545
    %v1547 = vmul.f32 %v1545, %v1546
    %v1548 = vsub.f32 1.0, %v1547
    %v1549 = vmul.f32 %v1546, %v1548
    %v1550 = vadd.f32 %v1546, %v1549
    %vm1551 = vweird.f32 %v1545
    %vm1552 = vweird.f32 %v1546
    %vm1553 = vmor %vm1551, %vm1552
    %v1554 = vsel %vm1553, %v1546, %v1550
    %v1555 = vand.u32 2147483647, %v1545
    %vm1556 = vcmp.eq.f32.partialorder %v1555, 8.507059e+37
    %v1557 = vand.u32 %v1545, 2147483648
    %v1558 = vor.u32 1.1754944e-38, %v1557
    %v1559 = vsel %vm1556, %v1558, %v1554
    %v1560 = vmul.f32 1.0, %v1559
    %v1562 = vrot.slane %v1461, 6
    %v1564 = vmul.f32 %v1540, %v1562
    %v1565 = vmul.f32 %v1540, %v1541
    %1567 = vrot.lane.b32.xlu0 %v1565, 64
    %v1568 = vpop.permute.xlu0 %1567
    %v1570 = vadd.f32 %v1564, %v1568
    %v1571 = vtanh.pop %v1570
    %v1572 = vmul.f32 %v1560, %v1571
    %1574 = vrot.lane.b32.xlu0 %v1572, 64
    %v1575 = vpop.permute.xlu0 %1574
    %1577 = vst.msk [vmem:[#allocation2 + $0x10] sm:$0xc0] %vm694, %v1575
    %v1580 = vrot.slane %v211, 6
    %v1581 = vrot.slane %v240, 6
    %v1584 = vsel %vm253, %v220, %v1580
    %v1585 = vsel %vm254, %v249, %v1581
    %v1586 = vrot.slane %v1572, 6
    %1587 = vrot.lane.b32.xlu0 %v1586, 64
    %v1588 = vpop.permute.xlu0 %1587
    %v1589 = vsel %vm263, %v1588, 0
    %1591 = vmatpush.msra.mxu0 0.0
    %1592 = vmatpush.msra.mxu0 0.0
    %1593 = vmatpush.msra.mxu0 0.0
    %1594 = vmatpush.msra.mxu0 0.0
    %1595 = vmatpush.msra.mxu0 0.0
    %1596 = vmatpush.msra.mxu0 0.0
    %1597 = vmatpush.msra.mxu0 0.0
    %1598 = vmatpush.msra.mxu0 0.0
    %1599 = vmatpush.msra.mxu0 %v91
    %1600 = vmatpush.msra.mxu0 %v89
    %1601 = vmatpush.msra.mxu0 %v87
    %1602 = vmatpush.msra.mxu0 %v85
    %1603 = vmatpush.msra.mxu0 %v83
    %1604 = vmatpush.msra.mxu0 %v81
    %1605 = vmatpush.msra.mxu0 %v79
    %1606 = vmatpush.msra.mxu0 %v77
    %1607 = vmatmul.f32.gmra.mxu0 %v1589
    %v1608 = vpop.f32.mrf.mxu0
    %v1609 = vadd.f32 0.0, %v1608
    %1610 = vdwg.mxu0
    %1611 = vmatpush.msra.mxu0 0.0
    %1612 = vmatpush.msra.mxu0 0.0
    %1613 = vmatpush.msra.mxu0 0.0
    %1614 = vmatpush.msra.mxu0 0.0
    %1615 = vmatpush.msra.mxu0 0.0
    %1616 = vmatpush.msra.mxu0 0.0
    %1617 = vmatpush.msra.mxu0 0.0
    %1618 = vmatpush.msra.mxu0 0.0
    %1619 = vmatpush.msra.mxu0 %v92
    %1620 = vmatpush.msra.mxu0 %v90
    %1621 = vmatpush.msra.mxu0 %v88
    %1622 = vmatpush.msra.mxu0 %v86
    %1623 = vmatpush.msra.mxu0 %v84
    %1624 = vmatpush.msra.mxu0 %v82
    %1625 = vmatpush.msra.mxu0 %v80
    %1626 = vmatpush.msra.mxu0 %v78
    %1627 = vmatmul.f32.gmra.mxu0 %v1589
    %v1628 = vpop.f32.mrf.mxu0
    %v1629 = vadd.f32 0.0, %v1628
    %1630 = vdwg.mxu0
    %v1631 = vadd.f32 %v1584, %v1609
    %v1632 = vadd.f32 %v1585, %v1629
    %v1633 = vxor.u32 %v1631, 2147483648
    %v1634 = vmul.f32 %v1633, 1.442695
    %v1635 = vpow.pop %v1634
    %v1636 = vadd.f32 %v1635, 1.0
    %v1637 = vrcp.pop %v1636
    %v1638 = vmul.f32 %v1636, %v1637
    %v1639 = vsub.f32 1.0, %v1638
    %v1640 = vmul.f32 %v1637, %v1639
    %v1641 = vadd.f32 %v1637, %v1640
    %vm1642 = vweird.f32 %v1636
    %vm1643 = vweird.f32 %v1637
    %vm1644 = vmor %vm1642, %vm1643
    %v1645 = vsel %vm1644, %v1637, %v1641
    %v1646 = vand.u32 2147483647, %v1636
    %vm1647 = vcmp.eq.f32.partialorder %v1646, 8.507059e+37
    %v1648 = vand.u32 %v1636, 2147483648
    %v1649 = vor.u32 1.1754944e-38, %v1648
    %v1650 = vsel %vm1647, %v1649, %v1645
    %v1651 = vmul.f32 1.0, %v1650
    %v1652 = vtanh.pop %v1632
    %v1653 = vxor.u32 %v1632, 2147483648
    %v1654 = vmul.f32 %v1653, 1.442695
    %v1655 = vpow.pop %v1654
    %v1656 = vadd.f32 %v1655, 1.0
    %v1657 = vrcp.pop %v1656
    %v1658 = vmul.f32 %v1656, %v1657
    %v1659 = vsub.f32 1.0, %v1658
    %v1660 = vmul.f32 %v1657, %v1659
    %v1661 = vadd.f32 %v1657, %v1660
    %vm1662 = vweird.f32 %v1656
    %vm1663 = vweird.f32 %v1657
    %vm1664 = vmor %vm1662, %vm1663
    %v1665 = vsel %vm1664, %v1657, %v1661
    %v1666 = vand.u32 2147483647, %v1656
    %vm1667 = vcmp.eq.f32.partialorder %v1666, 8.507059e+37
    %v1668 = vand.u32 %v1656, 2147483648
    %v1669 = vor.u32 1.1754944e-38, %v1668
    %v1670 = vsel %vm1667, %v1669, %v1665
    %v1671 = vmul.f32 1.0, %v1670
    %v1673 = vrot.slane %v1570, 6
    %v1675 = vmul.f32 %v1651, %v1673
    %v1676 = vmul.f32 %v1651, %v1652
    %1678 = vrot.lane.b32.xlu0 %v1676, 64
    %v1679 = vpop.permute.xlu0 %1678
    %v1681 = vadd.f32 %v1675, %v1679
    %v1682 = vtanh.pop %v1681
    %v1683 = vmul.f32 %v1671, %v1682
    %1685 = vrot.lane.b32.xlu0 %v1683, 64
    %v1686 = vpop.permute.xlu0 %1685
    %1688 = vst.msk [vmem:[#allocation2 + $0x18] sm:$0x3] %vm361, %v1686
    %v1689 = vrot.slane %v211, 2
    %v1690 = vrot.slane %v240, 2
    %v1693 = vsel %vm253, %v220, %v1689
    %v1694 = vsel %vm254, %v249, %v1690
    %v1695 = vsel %vm263, %v1686, 0
    %1697 = vmatpush.msra.mxu0 0.0
    %1698 = vmatpush.msra.mxu0 0.0
    %1699 = vmatpush.msra.mxu0 0.0
    %1700 = vmatpush.msra.mxu0 0.0
    %1701 = vmatpush.msra.mxu0 0.0
    %1702 = vmatpush.msra.mxu0 0.0
    %1703 = vmatpush.msra.mxu0 0.0
    %1704 = vmatpush.msra.mxu0 0.0
    %1705 = vmatpush.msra.mxu0 %v91
    %1706 = vmatpush.msra.mxu0 %v89
    %1707 = vmatpush.msra.mxu0 %v87
    %1708 = vmatpush.msra.mxu0 %v85
    %1709 = vmatpush.msra.mxu0 %v83
    %1710 = vmatpush.msra.mxu0 %v81
    %1711 = vmatpush.msra.mxu0 %v79
    %1712 = vmatpush.msra.mxu0 %v77
    %1713 = vmatmul.f32.gmra.mxu0 %v1695
    %v1714 = vpop.f32.mrf.mxu0
    %v1715 = vadd.f32 0.0, %v1714
    %1716 = vdwg.mxu0
    %1717 = vmatpush.msra.mxu0 0.0
    %1718 = vmatpush.msra.mxu0 0.0
    %1719 = vmatpush.msra.mxu0 0.0
    %1720 = vmatpush.msra.mxu0 0.0
    %1721 = vmatpush.msra.mxu0 0.0
    %1722 = vmatpush.msra.mxu0 0.0
    %1723 = vmatpush.msra.mxu0 0.0
    %1724 = vmatpush.msra.mxu0 0.0
    %1725 = vmatpush.msra.mxu0 %v92
    %1726 = vmatpush.msra.mxu0 %v90
    %1727 = vmatpush.msra.mxu0 %v88
    %1728 = vmatpush.msra.mxu0 %v86
    %1729 = vmatpush.msra.mxu0 %v84
    %1730 = vmatpush.msra.mxu0 %v82
    %1731 = vmatpush.msra.mxu0 %v80
    %1732 = vmatpush.msra.mxu0 %v78
    %1733 = vmatmul.f32.gmra.mxu0 %v1695
    %v1734 = vpop.f32.mrf.mxu0
    %v1735 = vadd.f32 0.0, %v1734
    %1736 = vdwg.mxu0
    %v1739 = vrot.slane %v1715, 6
    %v1740 = vrot.slane %v1735, 6
    %v1743 = vadd.f32 %v1693, %v1739
    %v1744 = vadd.f32 %v1694, %v1740
    %v1745 = vxor.u32 %v1743, 2147483648
    %v1746 = vmul.f32 %v1745, 1.442695
    %v1747 = vpow.pop %v1746
    %v1748 = vadd.f32 %v1747, 1.0
    %v1749 = vrcp.pop %v1748
    %v1750 = vmul.f32 %v1748, %v1749
    %v1751 = vsub.f32 1.0, %v1750
    %v1752 = vmul.f32 %v1749, %v1751
    %v1753 = vadd.f32 %v1749, %v1752
    %vm1754 = vweird.f32 %v1748
    %vm1755 = vweird.f32 %v1749
    %vm1756 = vmor %vm1754, %vm1755
    %v1757 = vsel %vm1756, %v1749, %v1753
    %v1758 = vand.u32 2147483647, %v1748
    %vm1759 = vcmp.eq.f32.partialorder %v1758, 8.507059e+37
    %v1760 = vand.u32 %v1748, 2147483648
    %v1761 = vor.u32 1.1754944e-38, %v1760
    %v1762 = vsel %vm1759, %v1761, %v1757
    %v1763 = vmul.f32 1.0, %v1762
    %v1764 = vtanh.pop %v1744
    %v1765 = vxor.u32 %v1744, 2147483648
    %v1766 = vmul.f32 %v1765, 1.442695
    %v1767 = vpow.pop %v1766
    %v1768 = vadd.f32 %v1767, 1.0
    %v1769 = vrcp.pop %v1768
    %v1770 = vmul.f32 %v1768, %v1769
    %v1771 = vsub.f32 1.0, %v1770
    %v1772 = vmul.f32 %v1769, %v1771
    %v1773 = vadd.f32 %v1769, %v1772
    %vm1774 = vweird.f32 %v1768
    %vm1775 = vweird.f32 %v1769
    %vm1776 = vmor %vm1774, %vm1775
    %v1777 = vsel %vm1776, %v1769, %v1773
    %v1778 = vand.u32 2147483647, %v1768
    %vm1779 = vcmp.eq.f32.partialorder %v1778, 8.507059e+37
    %v1780 = vand.u32 %v1768, 2147483648
    %v1781 = vor.u32 1.1754944e-38, %v1780
    %v1782 = vsel %vm1779, %v1781, %v1777
    %v1783 = vmul.f32 1.0, %v1782
    %v1785 = vrot.slane %v1681, 6
    %v1787 = vmul.f32 %v1763, %v1785
    %v1788 = vmul.f32 %v1763, %v1764
    %1790 = vrot.lane.b32.xlu0 %v1788, 64
    %v1791 = vpop.permute.xlu0 %1790
    %v1793 = vadd.f32 %v1787, %v1791
    %v1794 = vtanh.pop %v1793
    %v1795 = vmul.f32 %v1783, %v1794
    %1797 = vrot.lane.b32.xlu0 %v1795, 64
    %v1798 = vpop.permute.xlu0 %1797
    %1800 = vst.msk [vmem:[#allocation2 + $0x18] sm:$0xc] %vm474, %v1798
    %v1801 = vrot.slane %v1795, 2
    %1802 = vrot.lane.b32.xlu0 %v1801, 64
    %v1803 = vpop.permute.xlu0 %1802
    %v1804 = vsel %vm263, %v1803, 0
    %1806 = vmatpush.msra.mxu0 0.0
    %1807 = vmatpush.msra.mxu0 0.0
    %1808 = vmatpush.msra.mxu0 0.0
    %1809 = vmatpush.msra.mxu0 0.0
    %1810 = vmatpush.msra.mxu0 0.0
    %1811 = vmatpush.msra.mxu0 0.0
    %1812 = vmatpush.msra.mxu0 0.0
    %1813 = vmatpush.msra.mxu0 0.0
    %1814 = vmatpush.msra.mxu0 %v91
    %1815 = vmatpush.msra.mxu0 %v89
    %1816 = vmatpush.msra.mxu0 %v87
    %1817 = vmatpush.msra.mxu0 %v85
    %1818 = vmatpush.msra.mxu0 %v83
    %1819 = vmatpush.msra.mxu0 %v81
    %1820 = vmatpush.msra.mxu0 %v79
    %1821 = vmatpush.msra.mxu0 %v77
    %1822 = vmatmul.f32.gmra.mxu0 %v1804
    %v1823 = vpop.f32.mrf.mxu0
    %v1824 = vadd.f32 0.0, %v1823
    %1825 = vdwg.mxu0
    %1826 = vmatpush.msra.mxu0 0.0
    %1827 = vmatpush.msra.mxu0 0.0
    %1828 = vmatpush.msra.mxu0 0.0
    %1829 = vmatpush.msra.mxu0 0.0
    %1830 = vmatpush.msra.mxu0 0.0
    %1831 = vmatpush.msra.mxu0 0.0
    %1832 = vmatpush.msra.mxu0 0.0
    %1833 = vmatpush.msra.mxu0 0.0
    %1834 = vmatpush.msra.mxu0 %v92
    %1835 = vmatpush.msra.mxu0 %v90
    %1836 = vmatpush.msra.mxu0 %v88
    %1837 = vmatpush.msra.mxu0 %v86
    %1838 = vmatpush.msra.mxu0 %v84
    %1839 = vmatpush.msra.mxu0 %v82
    %1840 = vmatpush.msra.mxu0 %v80
    %1841 = vmatpush.msra.mxu0 %v78
    %1842 = vmatmul.f32.gmra.mxu0 %v1804
    %v1843 = vpop.f32.mrf.mxu0
    %v1844 = vadd.f32 0.0, %v1843
    %1845 = vdwg.mxu0
    %v1848 = vrot.slane %v1824, 4
    %v1849 = vrot.slane %v1844, 4
    %v1852 = vadd.f32 %v1584, %v1848
    %v1853 = vadd.f32 %v1585, %v1849
    %v1854 = vxor.u32 %v1852, 2147483648
    %v1855 = vmul.f32 %v1854, 1.442695
    %v1856 = vpow.pop %v1855
    %v1857 = vadd.f32 %v1856, 1.0
    %v1858 = vrcp.pop %v1857
    %v1859 = vmul.f32 %v1857, %v1858
    %v1860 = vsub.f32 1.0, %v1859
    %v1861 = vmul.f32 %v1858, %v1860
    %v1862 = vadd.f32 %v1858, %v1861
    %vm1863 = vweird.f32 %v1857
    %vm1864 = vweird.f32 %v1858
    %vm1865 = vmor %vm1863, %vm1864
    %v1866 = vsel %vm1865, %v1858, %v1862
    %v1867 = vand.u32 2147483647, %v1857
    %vm1868 = vcmp.eq.f32.partialorder %v1867, 8.507059e+37
    %v1869 = vand.u32 %v1857, 2147483648
    %v1870 = vor.u32 1.1754944e-38, %v1869
    %v1871 = vsel %vm1868, %v1870, %v1866
    %v1872 = vmul.f32 1.0, %v1871
    %v1873 = vtanh.pop %v1853
    %v1874 = vxor.u32 %v1853, 2147483648
    %v1875 = vmul.f32 %v1874, 1.442695
    %v1876 = vpow.pop %v1875
    %v1877 = vadd.f32 %v1876, 1.0
    %v1878 = vrcp.pop %v1877
    %v1879 = vmul.f32 %v1877, %v1878
    %v1880 = vsub.f32 1.0, %v1879
    %v1881 = vmul.f32 %v1878, %v1880
    %v1882 = vadd.f32 %v1878, %v1881
    %vm1883 = vweird.f32 %v1877
    %vm1884 = vweird.f32 %v1878
    %vm1885 = vmor %vm1883, %vm1884
    %v1886 = vsel %vm1885, %v1878, %v1882
    %v1887 = vand.u32 2147483647, %v1877
    %vm1888 = vcmp.eq.f32.partialorder %v1887, 8.507059e+37
    %v1889 = vand.u32 %v1877, 2147483648
    %v1890 = vor.u32 1.1754944e-38, %v1889
    %v1891 = vsel %vm1888, %v1890, %v1886
    %v1892 = vmul.f32 1.0, %v1891
    %v1894 = vrot.slane %v1793, 6
    %v1896 = vmul.f32 %v1872, %v1894
    %v1897 = vmul.f32 %v1872, %v1873
    %1899 = vrot.lane.b32.xlu0 %v1897, 64
    %v1900 = vpop.permute.xlu0 %1899
    %v1902 = vadd.f32 %v1896, %v1900
    %v1903 = vtanh.pop %v1902
    %v1904 = vmul.f32 %v1892, %v1903
    %1906 = vrot.lane.b32.xlu0 %v1904, 64
    %v1907 = vpop.permute.xlu0 %1906
    %1909 = vst.msk [vmem:[#allocation2 + $0x18] sm:$0x30] %vm584, %v1907
    %v1910 = vrot.slane %v1904, 4
    %1911 = vrot.lane.b32.xlu0 %v1910, 64
    %v1912 = vpop.permute.xlu0 %1911
    %v1913 = vsel %vm263, %v1912, 0
    %1915 = vmatpush.msra.mxu0 0.0
    %1916 = vmatpush.msra.mxu0 0.0
    %1917 = vmatpush.msra.mxu0 0.0
    %1918 = vmatpush.msra.mxu0 0.0
    %1919 = vmatpush.msra.mxu0 0.0
    %1920 = vmatpush.msra.mxu0 0.0
    %1921 = vmatpush.msra.mxu0 0.0
    %1922 = vmatpush.msra.mxu0 0.0
    %1923 = vmatpush.msra.mxu0 %v91
    %1924 = vmatpush.msra.mxu0 %v89
    %1925 = vmatpush.msra.mxu0 %v87
    %1926 = vmatpush.msra.mxu0 %v85
    %1927 = vmatpush.msra.mxu0 %v83
    %1928 = vmatpush.msra.mxu0 %v81
    %1929 = vmatpush.msra.mxu0 %v79
    %1930 = vmatpush.msra.mxu0 %v77
    %1931 = vmatmul.f32.gmra.mxu0 %v1913
    %v1932 = vpop.f32.mrf.mxu0
    %v1933 = vadd.f32 0.0, %v1932
    %1934 = vdwg.mxu0
    %1935 = vmatpush.msra.mxu0 0.0
    %1936 = vmatpush.msra.mxu0 0.0
    %1937 = vmatpush.msra.mxu0 0.0
    %1938 = vmatpush.msra.mxu0 0.0
    %1939 = vmatpush.msra.mxu0 0.0
    %1940 = vmatpush.msra.mxu0 0.0
    %1941 = vmatpush.msra.mxu0 0.0
    %1942 = vmatpush.msra.mxu0 0.0
    %1943 = vmatpush.msra.mxu0 %v92
    %1944 = vmatpush.msra.mxu0 %v90
    %1945 = vmatpush.msra.mxu0 %v88
    %1946 = vmatpush.msra.mxu0 %v86
    %1947 = vmatpush.msra.mxu0 %v84
    %1948 = vmatpush.msra.mxu0 %v82
    %1949 = vmatpush.msra.mxu0 %v80
    %1950 = vmatpush.msra.mxu0 %v78
    %1951 = vmatmul.f32.gmra.mxu0 %v1913
    %v1952 = vpop.f32.mrf.mxu0
    %v1953 = vadd.f32 0.0, %v1952
    %1954 = vdwg.mxu0
    %v1957 = vrot.slane %v1933, 2
    %v1958 = vrot.slane %v1953, 2
    %v1961 = vadd.f32 %v1693, %v1957
    %v1962 = vadd.f32 %v1694, %v1958
    %v1963 = vxor.u32 %v1961, 2147483648
    %v1964 = vmul.f32 %v1963, 1.442695
    %v1965 = vpow.pop %v1964
    %v1966 = vadd.f32 %v1965, 1.0
    %v1967 = vrcp.pop %v1966
    %v1968 = vmul.f32 %v1966, %v1967
    %v1969 = vsub.f32 1.0, %v1968
    %v1970 = vmul.f32 %v1967, %v1969
    %v1971 = vadd.f32 %v1967, %v1970
    %vm1972 = vweird.f32 %v1966
    %vm1973 = vweird.f32 %v1967
    %vm1974 = vmor %vm1972, %vm1973
    %v1975 = vsel %vm1974, %v1967, %v1971
    %v1976 = vand.u32 2147483647, %v1966
    %vm1977 = vcmp.eq.f32.partialorder %v1976, 8.507059e+37
    %v1978 = vand.u32 %v1966, 2147483648
    %v1979 = vor.u32 1.1754944e-38, %v1978
    %v1980 = vsel %vm1977, %v1979, %v1975
    %v1981 = vmul.f32 1.0, %v1980
    %v1982 = vtanh.pop %v1962
    %v1983 = vxor.u32 %v1962, 2147483648
    %v1984 = vmul.f32 %v1983, 1.442695
    %v1985 = vpow.pop %v1984
    %v1986 = vadd.f32 %v1985, 1.0
    %v1987 = vrcp.pop %v1986
    %v1988 = vmul.f32 %v1986, %v1987
    %v1989 = vsub.f32 1.0, %v1988
    %v1990 = vmul.f32 %v1987, %v1989
    %v1991 = vadd.f32 %v1987, %v1990
    %vm1992 = vweird.f32 %v1986
    %vm1993 = vweird.f32 %v1987
    %vm1994 = vmor %vm1992, %vm1993
    %v1995 = vsel %vm1994, %v1987, %v1991
    %v1996 = vand.u32 2147483647, %v1986
    %vm1997 = vcmp.eq.f32.partialorder %v1996, 8.507059e+37
    %v1998 = vand.u32 %v1986, 2147483648
    %v1999 = vor.u32 1.1754944e-38, %v1998
    %v2000 = vsel %vm1997, %v1999, %v1995
    %v2001 = vmul.f32 1.0, %v2000
    %v2003 = vrot.slane %v1902, 6
    %v2005 = vmul.f32 %v1981, %v2003
    %v2006 = vmul.f32 %v1981, %v1982
    %2008 = vrot.lane.b32.xlu0 %v2006, 64
    %v2009 = vpop.permute.xlu0 %2008
    %v2011 = vadd.f32 %v2005, %v2009
    %v2012 = vtanh.pop %v2011
    %v2013 = vmul.f32 %v2001, %v2012
    %2015 = vrot.lane.b32.xlu0 %v2013, 64
    %v2016 = vpop.permute.xlu0 %2015
    %2018 = vst.msk [vmem:[#allocation2 + $0x18] sm:$0xc0] %vm694, %v2016
    %v2019 = vld [vmem:[#allocation2] sm:$0xff]
    %v2020 = vld [vmem:[#allocation2 + $0x8] sm:$0xff]
    %v2021 = vld [vmem:[#allocation2 + $0x10] sm:$0xff]
    %v2022 = vld [vmem:[#allocation2 + $0x18] sm:$0xff]
    %vm2023 = vcmask 261120
    %v2025 = vsel %vm2023, %v130, 0
    %v2028 = vsel %vm2023, %v131, 0
    %v2031 = vsel %vm2023, %v132, 0
    %v2034 = vsel %vm2023, %v133, 0
    %2036 = vmatpush.msra.mxu0 0.0
    %2037 = vmatpush.msra.mxu0 0.0
    %2038 = vmatpush.msra.mxu0 0.0
    %2039 = vmatpush.msra.mxu0 0.0
    %2040 = vmatpush.msra.mxu0 0.0
    %2041 = vmatpush.msra.mxu0 0.0
    %2042 = vmatpush.msra.mxu0 0.0
    %2043 = vmatpush.msra.mxu0 0.0
    %2044 = vmatpush.msra.mxu0 0.0
    %2045 = vmatpush.msra.mxu0 0.0
    %2046 = vmatpush.msra.mxu0 0.0
    %2047 = vmatpush.msra.mxu0 0.0
    %2048 = vmatpush.msra.mxu0 %v2022
    %2049 = vmatpush.msra.mxu0 %v2021
    %2050 = vmatpush.msra.mxu0 %v2020
    %2051 = vmatpush.msra.mxu0 %v2019
    %2052 = vmatmul.f32.gmra.mxu0 %v2025
    %v2053 = vpop.f32.mrf.mxu0
    %v2054 = vadd.f32 0.0, %v2053
    %2055 = vmatmul.f32.gmra.mxu0 %v2028
    %v2056 = vpop.f32.mrf.mxu0
    %v2057 = vadd.f32 0.0, %v2056
    %2058 = vmatmul.f32.gmra.mxu0 %v2031
    %v2059 = vpop.f32.mrf.mxu0
    %v2060 = vadd.f32 0.0, %v2059
    %2061 = vmatmul.f32.gmra.mxu0 %v2034
    %v2062 = vpop.f32.mrf.mxu0
    %v2063 = vadd.f32 0.0, %v2062
    %2064 = vdwg.mxu0
    %v2065 = vsel %vm163, 1, 0
    %vm2066 = vcmp.eq.s32.totalorder %v2065, 1
    %v2067 = vsel %vm2066, %v2019, %v2054
    %v2068 = vsel %vm2066, %v2020, %v2057
    %v2069 = vsel %vm2066, %v2021, %v2060
    %v2070 = vsel %vm2066, %v2022, %v2063
    %v2072 = vperm.slane %v97, 0
    %v2073 = vperm.slane %v97, 1
    %v2077 = vsel %vm263, %v2067, 0
    %v2080 = vsel %vm263, %v2068, 0
    %v2083 = vsel %vm263, %v2069, 0
    %v2086 = vsel %vm263, %v2070, 0
    %2088 = vmatpush.msra.mxu0 0.0
    %2089 = vmatpush.msra.mxu0 0.0
    %2090 = vmatpush.msra.mxu0 0.0
    %2091 = vmatpush.msra.mxu0 0.0
    %2092 = vmatpush.msra.mxu0 0.0
    %2093 = vmatpush.msra.mxu0 0.0
    %2094 = vmatpush.msra.mxu0 0.0
    %2095 = vmatpush.msra.mxu0 0.0
    %2096 = vmatpush.msra.mxu0 %v128
    %2097 = vmatpush.msra.mxu0 %v126
    %2098 = vmatpush.msra.mxu0 %v124
    %2099 = vmatpush.msra.mxu0 %v122
    %2100 = vmatpush.msra.mxu0 %v120
    %2101 = vmatpush.msra.mxu0 %v118
    %2102 = vmatpush.msra.mxu0 %v116
    %2103 = vmatpush.msra.mxu0 %v114
    %2104 = vmatmul.f32.gmra.mxu0 %v2077
    %v2105 = vpop.f32.mrf.mxu0
    %v2106 = vadd.f32 %v2072, %v2105
    %2107 = vmatmul.f32.gmra.mxu0 %v2080
    %v2108 = vpop.f32.mrf.mxu0
    %v2109 = vadd.f32 %v2072, %v2108
    %2110 = vmatmul.f32.gmra.mxu0 %v2083
    %v2111 = vpop.f32.mrf.mxu0
    %v2112 = vadd.f32 %v2072, %v2111
    %2113 = vmatmul.f32.gmra.mxu0 %v2086
    %v2114 = vpop.f32.mrf.mxu0
    %v2115 = vadd.f32 %v2072, %v2114
    %2116 = vdwg.mxu0
    %2117 = vmatpush.msra.mxu0 0.0
    %2118 = vmatpush.msra.mxu0 0.0
    %2119 = vmatpush.msra.mxu0 0.0
    %2120 = vmatpush.msra.mxu0 0.0
    %2121 = vmatpush.msra.mxu0 0.0
    %2122 = vmatpush.msra.mxu0 0.0
    %2123 = vmatpush.msra.mxu0 0.0
    %2124 = vmatpush.msra.mxu0 0.0
    %2125 = vmatpush.msra.mxu0 %v129
    %2126 = vmatpush.msra.mxu0 %v127
    %2127 = vmatpush.msra.mxu0 %v125
    %2128 = vmatpush.msra.mxu0 %v123
    %2129 = vmatpush.msra.mxu0 %v121
    %2130 = vmatpush.msra.mxu0 %v119
    %2131 = vmatpush.msra.mxu0 %v117
    %2132 = vmatpush.msra.mxu0 %v115
    %2133 = vmatmul.f32.gmra.mxu0 %v2077
    %v2134 = vpop.f32.mrf.mxu0
    %v2135 = vadd.f32 %v2073, %v2134
    %2136 = vmatmul.f32.gmra.mxu0 %v2080
    %v2137 = vpop.f32.mrf.mxu0
    %v2138 = vadd.f32 %v2073, %v2137
    %2139 = vmatmul.f32.gmra.mxu0 %v2083
    %v2140 = vpop.f32.mrf.mxu0
    %v2141 = vadd.f32 %v2073, %v2140
    %2142 = vmatmul.f32.gmra.mxu0 %v2086
    %v2143 = vpop.f32.mrf.mxu0
    %v2144 = vadd.f32 %v2073, %v2143
    %2145 = vdwg.mxu0
    %v2148 = vrot.slane %v2115, 6
    %v2149 = vrot.slane %v2144, 6
    %v2152 = vsel %vm253, %v2106, %v2148
    %v2153 = vsel %vm254, %v2135, %v2149
    %2154 = vmatpush.msra.mxu0 0.0
    %2155 = vmatpush.msra.mxu0 0.0
    %2156 = vmatpush.msra.mxu0 0.0
    %2157 = vmatpush.msra.mxu0 0.0
    %2158 = vmatpush.msra.mxu0 0.0
    %2159 = vmatpush.msra.mxu0 0.0
    %2160 = vmatpush.msra.mxu0 0.0
    %2161 = vmatpush.msra.mxu0 0.0
    %2162 = vmatpush.msra.mxu0 %v112
    %2163 = vmatpush.msra.mxu0 %v110
    %2164 = vmatpush.msra.mxu0 %v108
    %2165 = vmatpush.msra.mxu0 %v106
    %2166 = vmatpush.msra.mxu0 %v104
    %2167 = vmatpush.msra.mxu0 %v102
    %2168 = vmatpush.msra.mxu0 %v100
    %2169 = vmatpush.msra.mxu0 %v98
    %2170 = vmatmul.f32.gmra.mxu0 %v265
    %v2171 = vpop.f32.mrf.mxu0
    %v2172 = vadd.f32 0.0, %v2171
    %2173 = vdwg.mxu0
    %2174 = vmatpush.msra.mxu0 0.0
    %2175 = vmatpush.msra.mxu0 0.0
    %2176 = vmatpush.msra.mxu0 0.0
    %2177 = vmatpush.msra.mxu0 0.0
    %2178 = vmatpush.msra.mxu0 0.0
    %2179 = vmatpush.msra.mxu0 0.0
    %2180 = vmatpush.msra.mxu0 0.0
    %2181 = vmatpush.msra.mxu0 0.0
    %2182 = vmatpush.msra.mxu0 %v113
    %2183 = vmatpush.msra.mxu0 %v111
    %2184 = vmatpush.msra.mxu0 %v109
    %2185 = vmatpush.msra.mxu0 %v107
    %2186 = vmatpush.msra.mxu0 %v105
    %2187 = vmatpush.msra.mxu0 %v103
    %2188 = vmatpush.msra.mxu0 %v101
    %2189 = vmatpush.msra.mxu0 %v99
    %2190 = vmatmul.f32.gmra.mxu0 %v265
    %v2191 = vpop.f32.mrf.mxu0
    %v2192 = vadd.f32 0.0, %v2191
    %2193 = vdwg.mxu0
    %v2194 = vadd.f32 %v2152, %v2172
    %v2195 = vadd.f32 %v2153, %v2192
    %v2196 = vxor.u32 %v2194, 2147483648
    %v2197 = vmul.f32 %v2196, 1.442695
    %v2198 = vpow.pop %v2197
    %v2199 = vadd.f32 %v2198, 1.0
    %v2200 = vrcp.pop %v2199
    %v2201 = vmul.f32 %v2199, %v2200
    %v2202 = vsub.f32 1.0, %v2201
    %v2203 = vmul.f32 %v2200, %v2202
    %v2204 = vadd.f32 %v2200, %v2203
    %vm2205 = vweird.f32 %v2199
    %vm2206 = vweird.f32 %v2200
    %vm2207 = vmor %vm2205, %vm2206
    %v2208 = vsel %vm2207, %v2200, %v2204
    %v2209 = vand.u32 2147483647, %v2199
    %vm2210 = vcmp.eq.f32.partialorder %v2209, 8.507059e+37
    %v2211 = vand.u32 %v2199, 2147483648
    %v2212 = vor.u32 1.1754944e-38, %v2211
    %v2213 = vsel %vm2210, %v2212, %v2208
    %v2214 = vmul.f32 1.0, %v2213
    %v2215 = vtanh.pop %v2195
    %v2216 = vxor.u32 %v2195, 2147483648
    %v2217 = vmul.f32 %v2216, 1.442695
    %v2218 = vpow.pop %v2217
    %v2219 = vadd.f32 %v2218, 1.0
    %v2220 = vrcp.pop %v2219
    %v2221 = vmul.f32 %v2219, %v2220
    %v2222 = vsub.f32 1.0, %v2221
    %v2223 = vmul.f32 %v2220, %v2222
    %v2224 = vadd.f32 %v2220, %v2223
    %vm2225 = vweird.f32 %v2219
    %vm2226 = vweird.f32 %v2220
    %vm2227 = vmor %vm2225, %vm2226
    %v2228 = vsel %vm2227, %v2220, %v2224
    %v2229 = vand.u32 2147483647, %v2219
    %vm2230 = vcmp.eq.f32.partialorder %v2229, 8.507059e+37
    %v2231 = vand.u32 %v2219, 2147483648
    %v2232 = vor.u32 1.1754944e-38, %v2231
    %v2233 = vsel %vm2230, %v2232, %v2228
    %v2234 = vmul.f32 1.0, %v2233
    %v2235 = vmul.f32 %v2214, 0.0
    %v2236 = vmul.f32 %v2214, %v2215
    %2238 = vrot.lane.b32.xlu0 %v2236, 64
    %v2239 = vpop.permute.xlu0 %2238
    %v2241 = vadd.f32 %v2235, %v2239
    %v2242 = vtanh.pop %v2241
    %v2243 = vmul.f32 %v2234, %v2242
    %2245 = vrot.lane.b32.xlu0 %v2243, 64
    %v2246 = vpop.permute.xlu0 %2245
    %2248 = vst.msk [vmem:[#allocation2] sm:$0x3] %vm361, %v2246
    %v2249 = vrot.slane %v2115, 2
    %v2250 = vrot.slane %v2144, 2
    %v2253 = vsel %vm253, %v2106, %v2249
    %v2254 = vsel %vm254, %v2135, %v2250
    %v2255 = vsel %vm263, %v2246, 0
    %2257 = vmatpush.msra.mxu0 0.0
    %2258 = vmatpush.msra.mxu0 0.0
    %2259 = vmatpush.msra.mxu0 0.0
    %2260 = vmatpush.msra.mxu0 0.0
    %2261 = vmatpush.msra.mxu0 0.0
    %2262 = vmatpush.msra.mxu0 0.0
    %2263 = vmatpush.msra.mxu0 0.0
    %2264 = vmatpush.msra.mxu0 0.0
    %2265 = vmatpush.msra.mxu0 %v112
    %2266 = vmatpush.msra.mxu0 %v110
    %2267 = vmatpush.msra.mxu0 %v108
    %2268 = vmatpush.msra.mxu0 %v106
    %2269 = vmatpush.msra.mxu0 %v104
    %2270 = vmatpush.msra.mxu0 %v102
    %2271 = vmatpush.msra.mxu0 %v100
    %2272 = vmatpush.msra.mxu0 %v98
    %2273 = vmatmul.f32.gmra.mxu0 %v2255
    %v2274 = vpop.f32.mrf.mxu0
    %v2275 = vadd.f32 0.0, %v2274
    %2276 = vdwg.mxu0
    %2277 = vmatpush.msra.mxu0 0.0
    %2278 = vmatpush.msra.mxu0 0.0
    %2279 = vmatpush.msra.mxu0 0.0
    %2280 = vmatpush.msra.mxu0 0.0
    %2281 = vmatpush.msra.mxu0 0.0
    %2282 = vmatpush.msra.mxu0 0.0
    %2283 = vmatpush.msra.mxu0 0.0
    %2284 = vmatpush.msra.mxu0 0.0
    %2285 = vmatpush.msra.mxu0 %v113
    %2286 = vmatpush.msra.mxu0 %v111
    %2287 = vmatpush.msra.mxu0 %v109
    %2288 = vmatpush.msra.mxu0 %v107
    %2289 = vmatpush.msra.mxu0 %v105
    %2290 = vmatpush.msra.mxu0 %v103
    %2291 = vmatpush.msra.mxu0 %v101
    %2292 = vmatpush.msra.mxu0 %v99
    %2293 = vmatmul.f32.gmra.mxu0 %v2255
    %v2294 = vpop.f32.mrf.mxu0
    %v2295 = vadd.f32 0.0, %v2294
    %2296 = vdwg.mxu0
    %v2299 = vrot.slane %v2275, 6
    %v2300 = vrot.slane %v2295, 6
    %v2303 = vadd.f32 %v2253, %v2299
    %v2304 = vadd.f32 %v2254, %v2300
    %v2305 = vxor.u32 %v2303, 2147483648
    %v2306 = vmul.f32 %v2305, 1.442695
    %v2307 = vpow.pop %v2306
    %v2308 = vadd.f32 %v2307, 1.0
    %v2309 = vrcp.pop %v2308
    %v2310 = vmul.f32 %v2308, %v2309
    %v2311 = vsub.f32 1.0, %v2310
    %v2312 = vmul.f32 %v2309, %v2311
    %v2313 = vadd.f32 %v2309, %v2312
    %vm2314 = vweird.f32 %v2308
    %vm2315 = vweird.f32 %v2309
    %vm2316 = vmor %vm2314, %vm2315
    %v2317 = vsel %vm2316, %v2309, %v2313
    %v2318 = vand.u32 2147483647, %v2308
    %vm2319 = vcmp.eq.f32.partialorder %v2318, 8.507059e+37
    %v2320 = vand.u32 %v2308, 2147483648
    %v2321 = vor.u32 1.1754944e-38, %v2320
    %v2322 = vsel %vm2319, %v2321, %v2317
    %v2323 = vmul.f32 1.0, %v2322
    %v2324 = vtanh.pop %v2304
    %v2325 = vxor.u32 %v2304, 2147483648
    %v2326 = vmul.f32 %v2325, 1.442695
    %v2327 = vpow.pop %v2326
    %v2328 = vadd.f32 %v2327, 1.0
    %v2329 = vrcp.pop %v2328
    %v2330 = vmul.f32 %v2328, %v2329
    %v2331 = vsub.f32 1.0, %v2330
    %v2332 = vmul.f32 %v2329, %v2331
    %v2333 = vadd.f32 %v2329, %v2332
    %vm2334 = vweird.f32 %v2328
    %vm2335 = vweird.f32 %v2329
    %vm2336 = vmor %vm2334, %vm2335
    %v2337 = vsel %vm2336, %v2329, %v2333
    %v2338 = vand.u32 2147483647, %v2328
    %vm2339 = vcmp.eq.f32.partialorder %v2338, 8.507059e+37
    %v2340 = vand.u32 %v2328, 2147483648
    %v2341 = vor.u32 1.1754944e-38, %v2340
    %v2342 = vsel %vm2339, %v2341, %v2337
    %v2343 = vmul.f32 1.0, %v2342
    %v2345 = vrot.slane %v2241, 6
    %v2347 = vmul.f32 %v2323, %v2345
    %v2348 = vmul.f32 %v2323, %v2324
    %2350 = vrot.lane.b32.xlu0 %v2348, 64
    %v2351 = vpop.permute.xlu0 %2350
    %v2353 = vadd.f32 %v2347, %v2351
    %v2354 = vtanh.pop %v2353
    %v2355 = vmul.f32 %v2343, %v2354
    %2357 = vrot.lane.b32.xlu0 %v2355, 64
    %v2358 = vpop.permute.xlu0 %2357
    %2360 = vst.msk [vmem:[#allocation2] sm:$0xc] %vm474, %v2358
    %v2361 = vrot.slane %v2355, 2
    %2362 = vrot.lane.b32.xlu0 %v2361, 64
    %v2363 = vpop.permute.xlu0 %2362
    %v2364 = vsel %vm263, %v2363, 0
    %2366 = vmatpush.msra.mxu0 0.0
    %2367 = vmatpush.msra.mxu0 0.0
    %2368 = vmatpush.msra.mxu0 0.0
    %2369 = vmatpush.msra.mxu0 0.0
    %2370 = vmatpush.msra.mxu0 0.0
    %2371 = vmatpush.msra.mxu0 0.0
    %2372 = vmatpush.msra.mxu0 0.0
    %2373 = vmatpush.msra.mxu0 0.0
    %2374 = vmatpush.msra.mxu0 %v112
    %2375 = vmatpush.msra.mxu0 %v110
    %2376 = vmatpush.msra.mxu0 %v108
    %2377 = vmatpush.msra.mxu0 %v106
    %2378 = vmatpush.msra.mxu0 %v104
    %2379 = vmatpush.msra.mxu0 %v102
    %2380 = vmatpush.msra.mxu0 %v100
    %2381 = vmatpush.msra.mxu0 %v98
    %2382 = vmatmul.f32.gmra.mxu0 %v2364
    %v2383 = vpop.f32.mrf.mxu0
    %v2384 = vadd.f32 0.0, %v2383
    %2385 = vdwg.mxu0
    %2386 = vmatpush.msra.mxu0 0.0
    %2387 = vmatpush.msra.mxu0 0.0
    %2388 = vmatpush.msra.mxu0 0.0
    %2389 = vmatpush.msra.mxu0 0.0
    %2390 = vmatpush.msra.mxu0 0.0
    %2391 = vmatpush.msra.mxu0 0.0
    %2392 = vmatpush.msra.mxu0 0.0
    %2393 = vmatpush.msra.mxu0 0.0
    %2394 = vmatpush.msra.mxu0 %v113
    %2395 = vmatpush.msra.mxu0 %v111
    %2396 = vmatpush.msra.mxu0 %v109
    %2397 = vmatpush.msra.mxu0 %v107
    %2398 = vmatpush.msra.mxu0 %v105
    %2399 = vmatpush.msra.mxu0 %v103
    %2400 = vmatpush.msra.mxu0 %v101
    %2401 = vmatpush.msra.mxu0 %v99
    %2402 = vmatmul.f32.gmra.mxu0 %v2364
    %v2403 = vpop.f32.mrf.mxu0
    %v2404 = vadd.f32 0.0, %v2403
    %2405 = vdwg.mxu0
    %v2408 = vrot.slane %v2384, 4
    %v2409 = vrot.slane %v2404, 4
    %v2412 = vadd.f32 %v2152, %v2408
    %v2413 = vadd.f32 %v2153, %v2409
    %v2414 = vxor.u32 %v2412, 2147483648
    %v2415 = vmul.f32 %v2414, 1.442695
    %v2416 = vpow.pop %v2415
    %v2417 = vadd.f32 %v2416, 1.0
    %v2418 = vrcp.pop %v2417
    %v2419 = vmul.f32 %v2417, %v2418
    %v2420 = vsub.f32 1.0, %v2419
    %v2421 = vmul.f32 %v2418, %v2420
    %v2422 = vadd.f32 %v2418, %v2421
    %vm2423 = vweird.f32 %v2417
    %vm2424 = vweird.f32 %v2418
    %vm2425 = vmor %vm2423, %vm2424
    %v2426 = vsel %vm2425, %v2418, %v2422
    %v2427 = vand.u32 2147483647, %v2417
    %vm2428 = vcmp.eq.f32.partialorder %v2427, 8.507059e+37
    %v2429 = vand.u32 %v2417, 2147483648
    %v2430 = vor.u32 1.1754944e-38, %v2429
    %v2431 = vsel %vm2428, %v2430, %v2426
    %v2432 = vmul.f32 1.0, %v2431
    %v2433 = vtanh.pop %v2413
    %v2434 = vxor.u32 %v2413, 2147483648
    %v2435 = vmul.f32 %v2434, 1.442695
    %v2436 = vpow.pop %v2435
    %v2437 = vadd.f32 %v2436, 1.0
    %v2438 = vrcp.pop %v2437
    %v2439 = vmul.f32 %v2437, %v2438
    %v2440 = vsub.f32 1.0, %v2439
    %v2441 = vmul.f32 %v2438, %v2440
    %v2442 = vadd.f32 %v2438, %v2441
    %vm2443 = vweird.f32 %v2437
    %vm2444 = vweird.f32 %v2438
    %vm2445 = vmor %vm2443, %vm2444
    %v2446 = vsel %vm2445, %v2438, %v2442
    %v2447 = vand.u32 2147483647, %v2437
    %vm2448 = vcmp.eq.f32.partialorder %v2447, 8.507059e+37
    %v2449 = vand.u32 %v2437, 2147483648
    %v2450 = vor.u32 1.1754944e-38, %v2449
    %v2451 = vsel %vm2448, %v2450, %v2446
    %v2452 = vmul.f32 1.0, %v2451
    %v2454 = vrot.slane %v2353, 6
    %v2456 = vmul.f32 %v2432, %v2454
    %v2457 = vmul.f32 %v2432, %v2433
    %2459 = vrot.lane.b32.xlu0 %v2457, 64
    %v2460 = vpop.permute.xlu0 %2459
    %v2462 = vadd.f32 %v2456, %v2460
    %v2463 = vtanh.pop %v2462
    %v2464 = vmul.f32 %v2452, %v2463
    %2466 = vrot.lane.b32.xlu0 %v2464, 64
    %v2467 = vpop.permute.xlu0 %2466
    %2469 = vst.msk [vmem:[#allocation2] sm:$0x30] %vm584, %v2467
    %v2470 = vrot.slane %v2464, 4
    %2471 = vrot.lane.b32.xlu0 %v2470, 64
    %v2472 = vpop.permute.xlu0 %2471
    %v2473 = vsel %vm263, %v2472, 0
    %2475 = vmatpush.msra.mxu0 0.0
    %2476 = vmatpush.msra.mxu0 0.0
    %2477 = vmatpush.msra.mxu0 0.0
    %2478 = vmatpush.msra.mxu0 0.0
    %2479 = vmatpush.msra.mxu0 0.0
    %2480 = vmatpush.msra.mxu0 0.0
    %2481 = vmatpush.msra.mxu0 0.0
    %2482 = vmatpush.msra.mxu0 0.0
    %2483 = vmatpush.msra.mxu0 %v112
    %2484 = vmatpush.msra.mxu0 %v110
    %2485 = vmatpush.msra.mxu0 %v108
    %2486 = vmatpush.msra.mxu0 %v106
    %2487 = vmatpush.msra.mxu0 %v104
    %2488 = vmatpush.msra.mxu0 %v102
    %2489 = vmatpush.msra.mxu0 %v100
    %2490 = vmatpush.msra.mxu0 %v98
    %2491 = vmatmul.f32.gmra.mxu0 %v2473
    %v2492 = vpop.f32.mrf.mxu0
    %v2493 = vadd.f32 0.0, %v2492
    %2494 = vdwg.mxu0
    %2495 = vmatpush.msra.mxu0 0.0
    %2496 = vmatpush.msra.mxu0 0.0
    %2497 = vmatpush.msra.mxu0 0.0
    %2498 = vmatpush.msra.mxu0 0.0
    %2499 = vmatpush.msra.mxu0 0.0
    %2500 = vmatpush.msra.mxu0 0.0
    %2501 = vmatpush.msra.mxu0 0.0
    %2502 = vmatpush.msra.mxu0 0.0
    %2503 = vmatpush.msra.mxu0 %v113
    %2504 = vmatpush.msra.mxu0 %v111
    %2505 = vmatpush.msra.mxu0 %v109
    %2506 = vmatpush.msra.mxu0 %v107
    %2507 = vmatpush.msra.mxu0 %v105
    %2508 = vmatpush.msra.mxu0 %v103
    %2509 = vmatpush.msra.mxu0 %v101
    %2510 = vmatpush.msra.mxu0 %v99
    %2511 = vmatmul.f32.gmra.mxu0 %v2473
    %v2512 = vpop.f32.mrf.mxu0
    %v2513 = vadd.f32 0.0, %v2512
    %2514 = vdwg.mxu0
    %v2517 = vrot.slane %v2493, 2
    %v2518 = vrot.slane %v2513, 2
    %v2521 = vadd.f32 %v2253, %v2517
    %v2522 = vadd.f32 %v2254, %v2518
    %v2523 = vxor.u32 %v2521, 2147483648
    %v2524 = vmul.f32 %v2523, 1.442695
    %v2525 = vpow.pop %v2524
    %v2526 = vadd.f32 %v2525, 1.0
    %v2527 = vrcp.pop %v2526
    %v2528 = vmul.f32 %v2526, %v2527
    %v2529 = vsub.f32 1.0, %v2528
    %v2530 = vmul.f32 %v2527, %v2529
    %v2531 = vadd.f32 %v2527, %v2530
    %vm2532 = vweird.f32 %v2526
    %vm2533 = vweird.f32 %v2527
    %vm2534 = vmor %vm2532, %vm2533
    %v2535 = vsel %vm2534, %v2527, %v2531
    %v2536 = vand.u32 2147483647, %v2526
    %vm2537 = vcmp.eq.f32.partialorder %v2536, 8.507059e+37
    %v2538 = vand.u32 %v2526, 2147483648
    %v2539 = vor.u32 1.1754944e-38, %v2538
    %v2540 = vsel %vm2537, %v2539, %v2535
    %v2541 = vmul.f32 1.0, %v2540
    %v2542 = vtanh.pop %v2522
    %v2543 = vxor.u32 %v2522, 2147483648
    %v2544 = vmul.f32 %v2543, 1.442695
    %v2545 = vpow.pop %v2544
    %v2546 = vadd.f32 %v2545, 1.0
    %v2547 = vrcp.pop %v2546
    %v2548 = vmul.f32 %v2546, %v2547
    %v2549 = vsub.f32 1.0, %v2548
    %v2550 = vmul.f32 %v2547, %v2549
    %v2551 = vadd.f32 %v2547, %v2550
    %vm2552 = vweird.f32 %v2546
    %vm2553 = vweird.f32 %v2547
    %vm2554 = vmor %vm2552, %vm2553
    %v2555 = vsel %vm2554, %v2547, %v2551
    %v2556 = vand.u32 2147483647, %v2546
    %vm2557 = vcmp.eq.f32.partialorder %v2556, 8.507059e+37
    %v2558 = vand.u32 %v2546, 2147483648
    %v2559 = vor.u32 1.1754944e-38, %v2558
    %v2560 = vsel %vm2557, %v2559, %v2555
    %v2561 = vmul.f32 1.0, %v2560
    %v2563 = vrot.slane %v2462, 6
    %v2565 = vmul.f32 %v2541, %v2563
    %v2566 = vmul.f32 %v2541, %v2542
    %2568 = vrot.lane.b32.xlu0 %v2566, 64
    %v2569 = vpop.permute.xlu0 %2568
    %v2571 = vadd.f32 %v2565, %v2569
    %v2572 = vtanh.pop %v2571
    %v2573 = vmul.f32 %v2561, %v2572
    %2575 = vrot.lane.b32.xlu0 %v2573, 64
    %v2576 = vpop.permute.xlu0 %2575
    %2578 = vst.msk [vmem:[#allocation2] sm:$0xc0] %vm694, %v2576
    %v2581 = vrot.slane %v2112, 6
    %v2582 = vrot.slane %v2141, 6
    %v2585 = vsel %vm253, %v2109, %v2581
    %v2586 = vsel %vm254, %v2138, %v2582
    %v2587 = vrot.slane %v2573, 6
    %2588 = vrot.lane.b32.xlu0 %v2587, 64
    %v2589 = vpop.permute.xlu0 %2588
    %v2590 = vsel %vm263, %v2589, 0
    %2592 = vmatpush.msra.mxu0 0.0
    %2593 = vmatpush.msra.mxu0 0.0
    %2594 = vmatpush.msra.mxu0 0.0
    %2595 = vmatpush.msra.mxu0 0.0
    %2596 = vmatpush.msra.mxu0 0.0
    %2597 = vmatpush.msra.mxu0 0.0
    %2598 = vmatpush.msra.mxu0 0.0
    %2599 = vmatpush.msra.mxu0 0.0
    %2600 = vmatpush.msra.mxu0 %v112
    %2601 = vmatpush.msra.mxu0 %v110
    %2602 = vmatpush.msra.mxu0 %v108
    %2603 = vmatpush.msra.mxu0 %v106
    %2604 = vmatpush.msra.mxu0 %v104
    %2605 = vmatpush.msra.mxu0 %v102
    %2606 = vmatpush.msra.mxu0 %v100
    %2607 = vmatpush.msra.mxu0 %v98
    %2608 = vmatmul.f32.gmra.mxu0 %v2590
    %v2609 = vpop.f32.mrf.mxu0
    %v2610 = vadd.f32 0.0, %v2609
    %2611 = vdwg.mxu0
    %2612 = vmatpush.msra.mxu0 0.0
    %2613 = vmatpush.msra.mxu0 0.0
    %2614 = vmatpush.msra.mxu0 0.0
    %2615 = vmatpush.msra.mxu0 0.0
    %2616 = vmatpush.msra.mxu0 0.0
    %2617 = vmatpush.msra.mxu0 0.0
    %2618 = vmatpush.msra.mxu0 0.0
    %2619 = vmatpush.msra.mxu0 0.0
    %2620 = vmatpush.msra.mxu0 %v113
    %2621 = vmatpush.msra.mxu0 %v111
    %2622 = vmatpush.msra.mxu0 %v109
    %2623 = vmatpush.msra.mxu0 %v107
    %2624 = vmatpush.msra.mxu0 %v105
    %2625 = vmatpush.msra.mxu0 %v103
    %2626 = vmatpush.msra.mxu0 %v101
    %2627 = vmatpush.msra.mxu0 %v99
    %2628 = vmatmul.f32.gmra.mxu0 %v2590
    %v2629 = vpop.f32.mrf.mxu0
    %v2630 = vadd.f32 0.0, %v2629
    %2631 = vdwg.mxu0
    %v2632 = vadd.f32 %v2585, %v2610
    %v2633 = vadd.f32 %v2586, %v2630
    %v2634 = vxor.u32 %v2632, 2147483648
    %v2635 = vmul.f32 %v2634, 1.442695
    %v2636 = vpow.pop %v2635
    %v2637 = vadd.f32 %v2636, 1.0
    %v2638 = vrcp.pop %v2637
    %v2639 = vmul.f32 %v2637, %v2638
    %v2640 = vsub.f32 1.0, %v2639
    %v2641 = vmul.f32 %v2638, %v2640
    %v2642 = vadd.f32 %v2638, %v2641
    %vm2643 = vweird.f32 %v2637
    %vm2644 = vweird.f32 %v2638
    %vm2645 = vmor %vm2643, %vm2644
    %v2646 = vsel %vm2645, %v2638, %v2642
    %v2647 = vand.u32 2147483647, %v2637
    %vm2648 = vcmp.eq.f32.partialorder %v2647, 8.507059e+37
    %v2649 = vand.u32 %v2637, 2147483648
    %v2650 = vor.u32 1.1754944e-38, %v2649
    %v2651 = vsel %vm2648, %v2650, %v2646
    %v2652 = vmul.f32 1.0, %v2651
    %v2653 = vtanh.pop %v2633
    %v2654 = vxor.u32 %v2633, 2147483648
    %v2655 = vmul.f32 %v2654, 1.442695
    %v2656 = vpow.pop %v2655
    %v2657 = vadd.f32 %v2656, 1.0
    %v2658 = vrcp.pop %v2657
    %v2659 = vmul.f32 %v2657, %v2658
    %v2660 = vsub.f32 1.0, %v2659
    %v2661 = vmul.f32 %v2658, %v2660
    %v2662 = vadd.f32 %v2658, %v2661
    %vm2663 = vweird.f32 %v2657
    %vm2664 = vweird.f32 %v2658
    %vm2665 = vmor %vm2663, %vm2664
    %v2666 = vsel %vm2665, %v2658, %v2662
    %v2667 = vand.u32 2147483647, %v2657
    %vm2668 = vcmp.eq.f32.partialorder %v2667, 8.507059e+37
    %v2669 = vand.u32 %v2657, 2147483648
    %v2670 = vor.u32 1.1754944e-38, %v2669
    %v2671 = vsel %vm2668, %v2670, %v2666
    %v2672 = vmul.f32 1.0, %v2671
    %v2674 = vrot.slane %v2571, 6
    %v2676 = vmul.f32 %v2652, %v2674
    %v2677 = vmul.f32 %v2652, %v2653
    %2679 = vrot.lane.b32.xlu0 %v2677, 64
    %v2680 = vpop.permute.xlu0 %2679
    %v2682 = vadd.f32 %v2676, %v2680
    %v2683 = vtanh.pop %v2682
    %v2684 = vmul.f32 %v2672, %v2683
    %2686 = vrot.lane.b32.xlu0 %v2684, 64
    %v2687 = vpop.permute.xlu0 %2686
    %2689 = vst.msk [vmem:[#allocation2 + $0x8] sm:$0x3] %vm361, %v2687
    %v2690 = vrot.slane %v2112, 2
    %v2691 = vrot.slane %v2141, 2
    %v2694 = vsel %vm253, %v2109, %v2690
    %v2695 = vsel %vm254, %v2138, %v2691
    %v2696 = vsel %vm263, %v2687, 0
    %2698 = vmatpush.msra.mxu0 0.0
    %2699 = vmatpush.msra.mxu0 0.0
    %2700 = vmatpush.msra.mxu0 0.0
    %2701 = vmatpush.msra.mxu0 0.0
    %2702 = vmatpush.msra.mxu0 0.0
    %2703 = vmatpush.msra.mxu0 0.0
    %2704 = vmatpush.msra.mxu0 0.0
    %2705 = vmatpush.msra.mxu0 0.0
    %2706 = vmatpush.msra.mxu0 %v112
    %2707 = vmatpush.msra.mxu0 %v110
    %2708 = vmatpush.msra.mxu0 %v108
    %2709 = vmatpush.msra.mxu0 %v106
    %2710 = vmatpush.msra.mxu0 %v104
    %2711 = vmatpush.msra.mxu0 %v102
    %2712 = vmatpush.msra.mxu0 %v100
    %2713 = vmatpush.msra.mxu0 %v98
    %2714 = vmatmul.f32.gmra.mxu0 %v2696
    %v2715 = vpop.f32.mrf.mxu0
    %v2716 = vadd.f32 0.0, %v2715
    %2717 = vdwg.mxu0
    %2718 = vmatpush.msra.mxu0 0.0
    %2719 = vmatpush.msra.mxu0 0.0
    %2720 = vmatpush.msra.mxu0 0.0
    %2721 = vmatpush.msra.mxu0 0.0
    %2722 = vmatpush.msra.mxu0 0.0
    %2723 = vmatpush.msra.mxu0 0.0
    %2724 = vmatpush.msra.mxu0 0.0
    %2725 = vmatpush.msra.mxu0 0.0
    %2726 = vmatpush.msra.mxu0 %v113
    %2727 = vmatpush.msra.mxu0 %v111
    %2728 = vmatpush.msra.mxu0 %v109
    %2729 = vmatpush.msra.mxu0 %v107
    %2730 = vmatpush.msra.mxu0 %v105
    %2731 = vmatpush.msra.mxu0 %v103
    %2732 = vmatpush.msra.mxu0 %v101
    %2733 = vmatpush.msra.mxu0 %v99
    %2734 = vmatmul.f32.gmra.mxu0 %v2696
    %v2735 = vpop.f32.mrf.mxu0
    %v2736 = vadd.f32 0.0, %v2735
    %2737 = vdwg.mxu0
    %v2740 = vrot.slane %v2716, 6
    %v2741 = vrot.slane %v2736, 6
    %v2744 = vadd.f32 %v2694, %v2740
    %v2745 = vadd.f32 %v2695, %v2741
    %v2746 = vxor.u32 %v2744, 2147483648
    %v2747 = vmul.f32 %v2746, 1.442695
    %v2748 = vpow.pop %v2747
    %v2749 = vadd.f32 %v2748, 1.0
    %v2750 = vrcp.pop %v2749
    %v2751 = vmul.f32 %v2749, %v2750
    %v2752 = vsub.f32 1.0, %v2751
    %v2753 = vmul.f32 %v2750, %v2752
    %v2754 = vadd.f32 %v2750, %v2753
    %vm2755 = vweird.f32 %v2749
    %vm2756 = vweird.f32 %v2750
    %vm2757 = vmor %vm2755, %vm2756
    %v2758 = vsel %vm2757, %v2750, %v2754
    %v2759 = vand.u32 2147483647, %v2749
    %vm2760 = vcmp.eq.f32.partialorder %v2759, 8.507059e+37
    %v2761 = vand.u32 %v2749, 2147483648
    %v2762 = vor.u32 1.1754944e-38, %v2761
    %v2763 = vsel %vm2760, %v2762, %v2758
    %v2764 = vmul.f32 1.0, %v2763
    %v2765 = vtanh.pop %v2745
    %v2766 = vxor.u32 %v2745, 2147483648
    %v2767 = vmul.f32 %v2766, 1.442695
    %v2768 = vpow.pop %v2767
    %v2769 = vadd.f32 %v2768, 1.0
    %v2770 = vrcp.pop %v2769
    %v2771 = vmul.f32 %v2769, %v2770
    %v2772 = vsub.f32 1.0, %v2771
    %v2773 = vmul.f32 %v2770, %v2772
    %v2774 = vadd.f32 %v2770, %v2773
    %vm2775 = vweird.f32 %v2769
    %vm2776 = vweird.f32 %v2770
    %vm2777 = vmor %vm2775, %vm2776
    %v2778 = vsel %vm2777, %v2770, %v2774
    %v2779 = vand.u32 2147483647, %v2769
    %vm2780 = vcmp.eq.f32.partialorder %v2779, 8.507059e+37
    %v2781 = vand.u32 %v2769, 2147483648
    %v2782 = vor.u32 1.1754944e-38, %v2781
    %v2783 = vsel %vm2780, %v2782, %v2778
    %v2784 = vmul.f32 1.0, %v2783
    %v2786 = vrot.slane %v2682, 6
    %v2788 = vmul.f32 %v2764, %v2786
    %v2789 = vmul.f32 %v2764, %v2765
    %2791 = vrot.lane.b32.xlu0 %v2789, 64
    %v2792 = vpop.permute.xlu0 %2791
    %v2794 = vadd.f32 %v2788, %v2792
    %v2795 = vtanh.pop %v2794
    %v2796 = vmul.f32 %v2784, %v2795
    %2798 = vrot.lane.b32.xlu0 %v2796, 64
    %v2799 = vpop.permute.xlu0 %2798
    %2801 = vst.msk [vmem:[#allocation2 + $0x8] sm:$0xc] %vm474, %v2799
    %v2802 = vrot.slane %v2796, 2
    %2803 = vrot.lane.b32.xlu0 %v2802, 64
    %v2804 = vpop.permute.xlu0 %2803
    %v2805 = vsel %vm263, %v2804, 0
    %2807 = vmatpush.msra.mxu0 0.0
    %2808 = vmatpush.msra.mxu0 0.0
    %2809 = vmatpush.msra.mxu0 0.0
    %2810 = vmatpush.msra.mxu0 0.0
    %2811 = vmatpush.msra.mxu0 0.0
    %2812 = vmatpush.msra.mxu0 0.0
    %2813 = vmatpush.msra.mxu0 0.0
    %2814 = vmatpush.msra.mxu0 0.0
    %2815 = vmatpush.msra.mxu0 %v112
    %2816 = vmatpush.msra.mxu0 %v110
    %2817 = vmatpush.msra.mxu0 %v108
    %2818 = vmatpush.msra.mxu0 %v106
    %2819 = vmatpush.msra.mxu0 %v104
    %2820 = vmatpush.msra.mxu0 %v102
    %2821 = vmatpush.msra.mxu0 %v100
    %2822 = vmatpush.msra.mxu0 %v98
    %2823 = vmatmul.f32.gmra.mxu0 %v2805
    %v2824 = vpop.f32.mrf.mxu0
    %v2825 = vadd.f32 0.0, %v2824
    %2826 = vdwg.mxu0
    %2827 = vmatpush.msra.mxu0 0.0
    %2828 = vmatpush.msra.mxu0 0.0
    %2829 = vmatpush.msra.mxu0 0.0
    %2830 = vmatpush.msra.mxu0 0.0
    %2831 = vmatpush.msra.mxu0 0.0
    %2832 = vmatpush.msra.mxu0 0.0
    %2833 = vmatpush.msra.mxu0 0.0
    %2834 = vmatpush.msra.mxu0 0.0
    %2835 = vmatpush.msra.mxu0 %v113
    %2836 = vmatpush.msra.mxu0 %v111
    %2837 = vmatpush.msra.mxu0 %v109
    %2838 = vmatpush.msra.mxu0 %v107
    %2839 = vmatpush.msra.mxu0 %v105
    %2840 = vmatpush.msra.mxu0 %v103
    %2841 = vmatpush.msra.mxu0 %v101
    %2842 = vmatpush.msra.mxu0 %v99
    %2843 = vmatmul.f32.gmra.mxu0 %v2805
    %v2844 = vpop.f32.mrf.mxu0
    %v2845 = vadd.f32 0.0, %v2844
    %2846 = vdwg.mxu0
    %v2849 = vrot.slane %v2825, 4
    %v2850 = vrot.slane %v2845, 4
    %v2853 = vadd.f32 %v2585, %v2849
    %v2854 = vadd.f32 %v2586, %v2850
    %v2855 = vxor.u32 %v2853, 2147483648
    %v2856 = vmul.f32 %v2855, 1.442695
    %v2857 = vpow.pop %v2856
    %v2858 = vadd.f32 %v2857, 1.0
    %v2859 = vrcp.pop %v2858
    %v2860 = vmul.f32 %v2858, %v2859
    %v2861 = vsub.f32 1.0, %v2860
    %v2862 = vmul.f32 %v2859, %v2861
    %v2863 = vadd.f32 %v2859, %v2862
    %vm2864 = vweird.f32 %v2858
    %vm2865 = vweird.f32 %v2859
    %vm2866 = vmor %vm2864, %vm2865
    %v2867 = vsel %vm2866, %v2859, %v2863
    %v2868 = vand.u32 2147483647, %v2858
    %vm2869 = vcmp.eq.f32.partialorder %v2868, 8.507059e+37
    %v2870 = vand.u32 %v2858, 2147483648
    %v2871 = vor.u32 1.1754944e-38, %v2870
    %v2872 = vsel %vm2869, %v2871, %v2867
    %v2873 = vmul.f32 1.0, %v2872
    %v2874 = vtanh.pop %v2854
    %v2875 = vxor.u32 %v2854, 2147483648
    %v2876 = vmul.f32 %v2875, 1.442695
    %v2877 = vpow.pop %v2876
    %v2878 = vadd.f32 %v2877, 1.0
    %v2879 = vrcp.pop %v2878
    %v2880 = vmul.f32 %v2878, %v2879
    %v2881 = vsub.f32 1.0, %v2880
    %v2882 = vmul.f32 %v2879, %v2881
    %v2883 = vadd.f32 %v2879, %v2882
    %vm2884 = vweird.f32 %v2878
    %vm2885 = vweird.f32 %v2879
    %vm2886 = vmor %vm2884, %vm2885
    %v2887 = vsel %vm2886, %v2879, %v2883
    %v2888 = vand.u32 2147483647, %v2878
    %vm2889 = vcmp.eq.f32.partialorder %v2888, 8.507059e+37
    %v2890 = vand.u32 %v2878, 2147483648
    %v2891 = vor.u32 1.1754944e-38, %v2890
    %v2892 = vsel %vm2889, %v2891, %v2887
    %v2893 = vmul.f32 1.0, %v2892
    %v2895 = vrot.slane %v2794, 6
    %v2897 = vmul.f32 %v2873, %v2895
    %v2898 = vmul.f32 %v2873, %v2874
    %2900 = vrot.lane.b32.xlu0 %v2898, 64
    %v2901 = vpop.permute.xlu0 %2900
    %v2903 = vadd.f32 %v2897, %v2901
    %v2904 = vtanh.pop %v2903
    %v2905 = vmul.f32 %v2893, %v2904
    %2907 = vrot.lane.b32.xlu0 %v2905, 64
    %v2908 = vpop.permute.xlu0 %2907
    %2910 = vst.msk [vmem:[#allocation2 + $0x8] sm:$0x30] %vm584, %v2908
    %v2911 = vrot.slane %v2905, 4
    %2912 = vrot.lane.b32.xlu0 %v2911, 64
    %v2913 = vpop.permute.xlu0 %2912
    %v2914 = vsel %vm263, %v2913, 0
    %2916 = vmatpush.msra.mxu0 0.0
    %2917 = vmatpush.msra.mxu0 0.0
    %2918 = vmatpush.msra.mxu0 0.0
    %2919 = vmatpush.msra.mxu0 0.0
    %2920 = vmatpush.msra.mxu0 0.0
    %2921 = vmatpush.msra.mxu0 0.0
    %2922 = vmatpush.msra.mxu0 0.0
    %2923 = vmatpush.msra.mxu0 0.0
    %2924 = vmatpush.msra.mxu0 %v112
    %2925 = vmatpush.msra.mxu0 %v110
    %2926 = vmatpush.msra.mxu0 %v108
    %2927 = vmatpush.msra.mxu0 %v106
    %2928 = vmatpush.msra.mxu0 %v104
    %2929 = vmatpush.msra.mxu0 %v102
    %2930 = vmatpush.msra.mxu0 %v100
    %2931 = vmatpush.msra.mxu0 %v98
    %2932 = vmatmul.f32.gmra.mxu0 %v2914
    %v2933 = vpop.f32.mrf.mxu0
    %v2934 = vadd.f32 0.0, %v2933
    %2935 = vdwg.mxu0
    %2936 = vmatpush.msra.mxu0 0.0
    %2937 = vmatpush.msra.mxu0 0.0
    %2938 = vmatpush.msra.mxu0 0.0
    %2939 = vmatpush.msra.mxu0 0.0
    %2940 = vmatpush.msra.mxu0 0.0
    %2941 = vmatpush.msra.mxu0 0.0
    %2942 = vmatpush.msra.mxu0 0.0
    %2943 = vmatpush.msra.mxu0 0.0
    %2944 = vmatpush.msra.mxu0 %v113
    %2945 = vmatpush.msra.mxu0 %v111
    %2946 = vmatpush.msra.mxu0 %v109
    %2947 = vmatpush.msra.mxu0 %v107
    %2948 = vmatpush.msra.mxu0 %v105
    %2949 = vmatpush.msra.mxu0 %v103
    %2950 = vmatpush.msra.mxu0 %v101
    %2951 = vmatpush.msra.mxu0 %v99
    %2952 = vmatmul.f32.gmra.mxu0 %v2914
    %v2953 = vpop.f32.mrf.mxu0
    %v2954 = vadd.f32 0.0, %v2953
    %2955 = vdwg.mxu0
    %v2958 = vrot.slane %v2934, 2
    %v2959 = vrot.slane %v2954, 2
    %v2962 = vadd.f32 %v2694, %v2958
    %v2963 = vadd.f32 %v2695, %v2959
    %v2964 = vxor.u32 %v2962, 2147483648
    %v2965 = vmul.f32 %v2964, 1.442695
    %v2966 = vpow.pop %v2965
    %v2967 = vadd.f32 %v2966, 1.0
    %v2968 = vrcp.pop %v2967
    %v2969 = vmul.f32 %v2967, %v2968
    %v2970 = vsub.f32 1.0, %v2969
    %v2971 = vmul.f32 %v2968, %v2970
    %v2972 = vadd.f32 %v2968, %v2971
    %vm2973 = vweird.f32 %v2967
    %vm2974 = vweird.f32 %v2968
    %vm2975 = vmor %vm2973, %vm2974
    %v2976 = vsel %vm2975, %v2968, %v2972
    %v2977 = vand.u32 2147483647, %v2967
    %vm2978 = vcmp.eq.f32.partialorder %v2977, 8.507059e+37
    %v2979 = vand.u32 %v2967, 2147483648
    %v2980 = vor.u32 1.1754944e-38, %v2979
    %v2981 = vsel %vm2978, %v2980, %v2976
    %v2982 = vmul.f32 1.0, %v2981
    %v2983 = vtanh.pop %v2963
    %v2984 = vxor.u32 %v2963, 2147483648
    %v2985 = vmul.f32 %v2984, 1.442695
    %v2986 = vpow.pop %v2985
    %v2987 = vadd.f32 %v2986, 1.0
    %v2988 = vrcp.pop %v2987
    %v2989 = vmul.f32 %v2987, %v2988
    %v2990 = vsub.f32 1.0, %v2989
    %v2991 = vmul.f32 %v2988, %v2990
    %v2992 = vadd.f32 %v2988, %v2991
    %vm2993 = vweird.f32 %v2987
    %vm2994 = vweird.f32 %v2988
    %vm2995 = vmor %vm2993, %vm2994
    %v2996 = vsel %vm2995, %v2988, %v2992
    %v2997 = vand.u32 2147483647, %v2987
    %vm2998 = vcmp.eq.f32.partialorder %v2997, 8.507059e+37
    %v2999 = vand.u32 %v2987, 2147483648
    %v3000 = vor.u32 1.1754944e-38, %v2999
    %v3001 = vsel %vm2998, %v3000, %v2996
    %v3002 = vmul.f32 1.0, %v3001
    %v3004 = vrot.slane %v2903, 6
    %v3006 = vmul.f32 %v2982, %v3004
    %v3007 = vmul.f32 %v2982, %v2983
    %3009 = vrot.lane.b32.xlu0 %v3007, 64
    %v3010 = vpop.permute.xlu0 %3009
    %v3012 = vadd.f32 %v3006, %v3010
    %v3013 = vtanh.pop %v3012
    %v3014 = vmul.f32 %v3002, %v3013
    %3016 = vrot.lane.b32.xlu0 %v3014, 64
    %v3017 = vpop.permute.xlu0 %3016
    %3019 = vst.msk [vmem:[#allocation2 + $0x8] sm:$0xc0] %vm694, %v3017
    %v3022 = vrot.slane %v2109, 6
    %v3023 = vrot.slane %v2138, 6
    %v3026 = vsel %vm253, %v2112, %v3022
    %v3027 = vsel %vm254, %v2141, %v3023
    %v3028 = vrot.slane %v3014, 6
    %3029 = vrot.lane.b32.xlu0 %v3028, 64
    %v3030 = vpop.permute.xlu0 %3029
    %v3031 = vsel %vm263, %v3030, 0
    %3033 = vmatpush.msra.mxu0 0.0
    %3034 = vmatpush.msra.mxu0 0.0
    %3035 = vmatpush.msra.mxu0 0.0
    %3036 = vmatpush.msra.mxu0 0.0
    %3037 = vmatpush.msra.mxu0 0.0
    %3038 = vmatpush.msra.mxu0 0.0
    %3039 = vmatpush.msra.mxu0 0.0
    %3040 = vmatpush.msra.mxu0 0.0
    %3041 = vmatpush.msra.mxu0 %v112
    %3042 = vmatpush.msra.mxu0 %v110
    %3043 = vmatpush.msra.mxu0 %v108
    %3044 = vmatpush.msra.mxu0 %v106
    %3045 = vmatpush.msra.mxu0 %v104
    %3046 = vmatpush.msra.mxu0 %v102
    %3047 = vmatpush.msra.mxu0 %v100
    %3048 = vmatpush.msra.mxu0 %v98
    %3049 = vmatmul.f32.gmra.mxu0 %v3031
    %v3050 = vpop.f32.mrf.mxu0
    %v3051 = vadd.f32 0.0, %v3050
    %3052 = vdwg.mxu0
    %3053 = vmatpush.msra.mxu0 0.0
    %3054 = vmatpush.msra.mxu0 0.0
    %3055 = vmatpush.msra.mxu0 0.0
    %3056 = vmatpush.msra.mxu0 0.0
    %3057 = vmatpush.msra.mxu0 0.0
    %3058 = vmatpush.msra.mxu0 0.0
    %3059 = vmatpush.msra.mxu0 0.0
    %3060 = vmatpush.msra.mxu0 0.0
    %3061 = vmatpush.msra.mxu0 %v113
    %3062 = vmatpush.msra.mxu0 %v111
    %3063 = vmatpush.msra.mxu0 %v109
    %3064 = vmatpush.msra.mxu0 %v107
    %3065 = vmatpush.msra.mxu0 %v105
    %3066 = vmatpush.msra.mxu0 %v103
    %3067 = vmatpush.msra.mxu0 %v101
    %3068 = vmatpush.msra.mxu0 %v99
    %3069 = vmatmul.f32.gmra.mxu0 %v3031
    %v3070 = vpop.f32.mrf.mxu0
    %v3071 = vadd.f32 0.0, %v3070
    %3072 = vdwg.mxu0
    %v3073 = vadd.f32 %v3026, %v3051
    %v3074 = vadd.f32 %v3027, %v3071
    %v3075 = vxor.u32 %v3073, 2147483648
    %v3076 = vmul.f32 %v3075, 1.442695
    %v3077 = vpow.pop %v3076
    %v3078 = vadd.f32 %v3077, 1.0
    %v3079 = vrcp.pop %v3078
    %v3080 = vmul.f32 %v3078, %v3079
    %v3081 = vsub.f32 1.0, %v3080
    %v3082 = vmul.f32 %v3079, %v3081
    %v3083 = vadd.f32 %v3079, %v3082
    %vm3084 = vweird.f32 %v3078
    %vm3085 = vweird.f32 %v3079
    %vm3086 = vmor %vm3084, %vm3085
    %v3087 = vsel %vm3086, %v3079, %v3083
    %v3088 = vand.u32 2147483647, %v3078
    %vm3089 = vcmp.eq.f32.partialorder %v3088, 8.507059e+37
    %v3090 = vand.u32 %v3078, 2147483648
    %v3091 = vor.u32 1.1754944e-38, %v3090
    %v3092 = vsel %vm3089, %v3091, %v3087
    %v3093 = vmul.f32 1.0, %v3092
    %v3094 = vtanh.pop %v3074
    %v3095 = vxor.u32 %v3074, 2147483648
    %v3096 = vmul.f32 %v3095, 1.442695
    %v3097 = vpow.pop %v3096
    %v3098 = vadd.f32 %v3097, 1.0
    %v3099 = vrcp.pop %v3098
    %v3100 = vmul.f32 %v3098, %v3099
    %v3101 = vsub.f32 1.0, %v3100
    %v3102 = vmul.f32 %v3099, %v3101
    %v3103 = vadd.f32 %v3099, %v3102
    %vm3104 = vweird.f32 %v3098
    %vm3105 = vweird.f32 %v3099
    %vm3106 = vmor %vm3104, %vm3105
    %v3107 = vsel %vm3106, %v3099, %v3103
    %v3108 = vand.u32 2147483647, %v3098
    %vm3109 = vcmp.eq.f32.partialorder %v3108, 8.507059e+37
    %v3110 = vand.u32 %v3098, 2147483648
    %v3111 = vor.u32 1.1754944e-38, %v3110
    %v3112 = vsel %vm3109, %v3111, %v3107
    %v3113 = vmul.f32 1.0, %v3112
    %v3115 = vrot.slane %v3012, 6
    %v3117 = vmul.f32 %v3093, %v3115
    %v3118 = vmul.f32 %v3093, %v3094
    %3120 = vrot.lane.b32.xlu0 %v3118, 64
    %v3121 = vpop.permute.xlu0 %3120
    %v3123 = vadd.f32 %v3117, %v3121
    %v3124 = vtanh.pop %v3123
    %v3125 = vmul.f32 %v3113, %v3124
    %3127 = vrot.lane.b32.xlu0 %v3125, 64
    %v3128 = vpop.permute.xlu0 %3127
    %3130 = vst.msk [vmem:[#allocation2 + $0x10] sm:$0x3] %vm361, %v3128
    %v3131 = vrot.slane %v2109, 2
    %v3132 = vrot.slane %v2138, 2
    %v3135 = vsel %vm253, %v2112, %v3131
    %v3136 = vsel %vm254, %v2141, %v3132
    %v3137 = vsel %vm263, %v3128, 0
    %3139 = vmatpush.msra.mxu0 0.0
    %3140 = vmatpush.msra.mxu0 0.0
    %3141 = vmatpush.msra.mxu0 0.0
    %3142 = vmatpush.msra.mxu0 0.0
    %3143 = vmatpush.msra.mxu0 0.0
    %3144 = vmatpush.msra.mxu0 0.0
    %3145 = vmatpush.msra.mxu0 0.0
    %3146 = vmatpush.msra.mxu0 0.0
    %3147 = vmatpush.msra.mxu0 %v112
    %3148 = vmatpush.msra.mxu0 %v110
    %3149 = vmatpush.msra.mxu0 %v108
    %3150 = vmatpush.msra.mxu0 %v106
    %3151 = vmatpush.msra.mxu0 %v104
    %3152 = vmatpush.msra.mxu0 %v102
    %3153 = vmatpush.msra.mxu0 %v100
    %3154 = vmatpush.msra.mxu0 %v98
    %3155 = vmatmul.f32.gmra.mxu0 %v3137
    %v3156 = vpop.f32.mrf.mxu0
    %v3157 = vadd.f32 0.0, %v3156
    %3158 = vdwg.mxu0
    %3159 = vmatpush.msra.mxu0 0.0
    %3160 = vmatpush.msra.mxu0 0.0
    %3161 = vmatpush.msra.mxu0 0.0
    %3162 = vmatpush.msra.mxu0 0.0
    %3163 = vmatpush.msra.mxu0 0.0
    %3164 = vmatpush.msra.mxu0 0.0
    %3165 = vmatpush.msra.mxu0 0.0
    %3166 = vmatpush.msra.mxu0 0.0
    %3167 = vmatpush.msra.mxu0 %v113
    %3168 = vmatpush.msra.mxu0 %v111
    %3169 = vmatpush.msra.mxu0 %v109
    %3170 = vmatpush.msra.mxu0 %v107
    %3171 = vmatpush.msra.mxu0 %v105
    %3172 = vmatpush.msra.mxu0 %v103
    %3173 = vmatpush.msra.mxu0 %v101
    %3174 = vmatpush.msra.mxu0 %v99
    %3175 = vmatmul.f32.gmra.mxu0 %v3137
    %v3176 = vpop.f32.mrf.mxu0
    %v3177 = vadd.f32 0.0, %v3176
    %3178 = vdwg.mxu0
    %v3181 = vrot.slane %v3157, 6
    %v3182 = vrot.slane %v3177, 6
    %v3185 = vadd.f32 %v3135, %v3181
    %v3186 = vadd.f32 %v3136, %v3182
    %v3187 = vxor.u32 %v3185, 2147483648
    %v3188 = vmul.f32 %v3187, 1.442695
    %v3189 = vpow.pop %v3188
    %v3190 = vadd.f32 %v3189, 1.0
    %v3191 = vrcp.pop %v3190
    %v3192 = vmul.f32 %v3190, %v3191
    %v3193 = vsub.f32 1.0, %v3192
    %v3194 = vmul.f32 %v3191, %v3193
    %v3195 = vadd.f32 %v3191, %v3194
    %vm3196 = vweird.f32 %v3190
    %vm3197 = vweird.f32 %v3191
    %vm3198 = vmor %vm3196, %vm3197
    %v3199 = vsel %vm3198, %v3191, %v3195
    %v3200 = vand.u32 2147483647, %v3190
    %vm3201 = vcmp.eq.f32.partialorder %v3200, 8.507059e+37
    %v3202 = vand.u32 %v3190, 2147483648
    %v3203 = vor.u32 1.1754944e-38, %v3202
    %v3204 = vsel %vm3201, %v3203, %v3199
    %v3205 = vmul.f32 1.0, %v3204
    %v3206 = vtanh.pop %v3186
    %v3207 = vxor.u32 %v3186, 2147483648
    %v3208 = vmul.f32 %v3207, 1.442695
    %v3209 = vpow.pop %v3208
    %v3210 = vadd.f32 %v3209, 1.0
    %v3211 = vrcp.pop %v3210
    %v3212 = vmul.f32 %v3210, %v3211
    %v3213 = vsub.f32 1.0, %v3212
    %v3214 = vmul.f32 %v3211, %v3213
    %v3215 = vadd.f32 %v3211, %v3214
    %vm3216 = vweird.f32 %v3210
    %vm3217 = vweird.f32 %v3211
    %vm3218 = vmor %vm3216, %vm3217
    %v3219 = vsel %vm3218, %v3211, %v3215
    %v3220 = vand.u32 2147483647, %v3210
    %vm3221 = vcmp.eq.f32.partialorder %v3220, 8.507059e+37
    %v3222 = vand.u32 %v3210, 2147483648
    %v3223 = vor.u32 1.1754944e-38, %v3222
    %v3224 = vsel %vm3221, %v3223, %v3219
    %v3225 = vmul.f32 1.0, %v3224
    %v3227 = vrot.slane %v3123, 6
    %v3229 = vmul.f32 %v3205, %v3227
    %v3230 = vmul.f32 %v3205, %v3206
    %3232 = vrot.lane.b32.xlu0 %v3230, 64
    %v3233 = vpop.permute.xlu0 %3232
    %v3235 = vadd.f32 %v3229, %v3233
    %v3236 = vtanh.pop %v3235
    %v3237 = vmul.f32 %v3225, %v3236
    %3239 = vrot.lane.b32.xlu0 %v3237, 64
    %v3240 = vpop.permute.xlu0 %3239
    %3242 = vst.msk [vmem:[#allocation2 + $0x10] sm:$0xc] %vm474, %v3240
    %v3243 = vrot.slane %v3237, 2
    %3244 = vrot.lane.b32.xlu0 %v3243, 64
    %v3245 = vpop.permute.xlu0 %3244
    %v3246 = vsel %vm263, %v3245, 0
    %3248 = vmatpush.msra.mxu0 0.0
    %3249 = vmatpush.msra.mxu0 0.0
    %3250 = vmatpush.msra.mxu0 0.0
    %3251 = vmatpush.msra.mxu0 0.0
    %3252 = vmatpush.msra.mxu0 0.0
    %3253 = vmatpush.msra.mxu0 0.0
    %3254 = vmatpush.msra.mxu0 0.0
    %3255 = vmatpush.msra.mxu0 0.0
    %3256 = vmatpush.msra.mxu0 %v112
    %3257 = vmatpush.msra.mxu0 %v110
    %3258 = vmatpush.msra.mxu0 %v108
    %3259 = vmatpush.msra.mxu0 %v106
    %3260 = vmatpush.msra.mxu0 %v104
    %3261 = vmatpush.msra.mxu0 %v102
    %3262 = vmatpush.msra.mxu0 %v100
    %3263 = vmatpush.msra.mxu0 %v98
    %3264 = vmatmul.f32.gmra.mxu0 %v3246
    %v3265 = vpop.f32.mrf.mxu0
    %v3266 = vadd.f32 0.0, %v3265
    %3267 = vdwg.mxu0
    %3268 = vmatpush.msra.mxu0 0.0
    %3269 = vmatpush.msra.mxu0 0.0
    %3270 = vmatpush.msra.mxu0 0.0
    %3271 = vmatpush.msra.mxu0 0.0
    %3272 = vmatpush.msra.mxu0 0.0
    %3273 = vmatpush.msra.mxu0 0.0
    %3274 = vmatpush.msra.mxu0 0.0
    %3275 = vmatpush.msra.mxu0 0.0
    %3276 = vmatpush.msra.mxu0 %v113
    %3277 = vmatpush.msra.mxu0 %v111
    %3278 = vmatpush.msra.mxu0 %v109
    %3279 = vmatpush.msra.mxu0 %v107
    %3280 = vmatpush.msra.mxu0 %v105
    %3281 = vmatpush.msra.mxu0 %v103
    %3282 = vmatpush.msra.mxu0 %v101
    %3283 = vmatpush.msra.mxu0 %v99
    %3284 = vmatmul.f32.gmra.mxu0 %v3246
    %v3285 = vpop.f32.mrf.mxu0
    %v3286 = vadd.f32 0.0, %v3285
    %3287 = vdwg.mxu0
    %v3290 = vrot.slane %v3266, 4
    %v3291 = vrot.slane %v3286, 4
    %v3294 = vadd.f32 %v3026, %v3290
    %v3295 = vadd.f32 %v3027, %v3291
    %v3296 = vxor.u32 %v3294, 2147483648
    %v3297 = vmul.f32 %v3296, 1.442695
    %v3298 = vpow.pop %v3297
    %v3299 = vadd.f32 %v3298, 1.0
    %v3300 = vrcp.pop %v3299
    %v3301 = vmul.f32 %v3299, %v3300
    %v3302 = vsub.f32 1.0, %v3301
    %v3303 = vmul.f32 %v3300, %v3302
    %v3304 = vadd.f32 %v3300, %v3303
    %vm3305 = vweird.f32 %v3299
    %vm3306 = vweird.f32 %v3300
    %vm3307 = vmor %vm3305, %vm3306
    %v3308 = vsel %vm3307, %v3300, %v3304
    %v3309 = vand.u32 2147483647, %v3299
    %vm3310 = vcmp.eq.f32.partialorder %v3309, 8.507059e+37
    %v3311 = vand.u32 %v3299, 2147483648
    %v3312 = vor.u32 1.1754944e-38, %v3311
    %v3313 = vsel %vm3310, %v3312, %v3308
    %v3314 = vmul.f32 1.0, %v3313
    %v3315 = vtanh.pop %v3295
    %v3316 = vxor.u32 %v3295, 2147483648
    %v3317 = vmul.f32 %v3316, 1.442695
    %v3318 = vpow.pop %v3317
    %v3319 = vadd.f32 %v3318, 1.0
    %v3320 = vrcp.pop %v3319
    %v3321 = vmul.f32 %v3319, %v3320
    %v3322 = vsub.f32 1.0, %v3321
    %v3323 = vmul.f32 %v3320, %v3322
    %v3324 = vadd.f32 %v3320, %v3323
    %vm3325 = vweird.f32 %v3319
    %vm3326 = vweird.f32 %v3320
    %vm3327 = vmor %vm3325, %vm3326
    %v3328 = vsel %vm3327, %v3320, %v3324
    %v3329 = vand.u32 2147483647, %v3319
    %vm3330 = vcmp.eq.f32.partialorder %v3329, 8.507059e+37
    %v3331 = vand.u32 %v3319, 2147483648
    %v3332 = vor.u32 1.1754944e-38, %v3331
    %v3333 = vsel %vm3330, %v3332, %v3328
    %v3334 = vmul.f32 1.0, %v3333
    %v3336 = vrot.slane %v3235, 6
    %v3338 = vmul.f32 %v3314, %v3336
    %v3339 = vmul.f32 %v3314, %v3315
    %3341 = vrot.lane.b32.xlu0 %v3339, 64
    %v3342 = vpop.permute.xlu0 %3341
    %v3344 = vadd.f32 %v3338, %v3342
    %v3345 = vtanh.pop %v3344
    %v3346 = vmul.f32 %v3334, %v3345
    %3348 = vrot.lane.b32.xlu0 %v3346, 64
    %v3349 = vpop.permute.xlu0 %3348
    %3351 = vst.msk [vmem:[#allocation2 + $0x10] sm:$0x30] %vm584, %v3349
    %v3352 = vrot.slane %v3346, 4
    %3353 = vrot.lane.b32.xlu0 %v3352, 64
    %v3354 = vpop.permute.xlu0 %3353
    %v3355 = vsel %vm263, %v3354, 0
    %3357 = vmatpush.msra.mxu0 0.0
    %3358 = vmatpush.msra.mxu0 0.0
    %3359 = vmatpush.msra.mxu0 0.0
    %3360 = vmatpush.msra.mxu0 0.0
    %3361 = vmatpush.msra.mxu0 0.0
    %3362 = vmatpush.msra.mxu0 0.0
    %3363 = vmatpush.msra.mxu0 0.0
    %3364 = vmatpush.msra.mxu0 0.0
    %3365 = vmatpush.msra.mxu0 %v112
    %3366 = vmatpush.msra.mxu0 %v110
    %3367 = vmatpush.msra.mxu0 %v108
    %3368 = vmatpush.msra.mxu0 %v106
    %3369 = vmatpush.msra.mxu0 %v104
    %3370 = vmatpush.msra.mxu0 %v102
    %3371 = vmatpush.msra.mxu0 %v100
    %3372 = vmatpush.msra.mxu0 %v98
    %3373 = vmatmul.f32.gmra.mxu0 %v3355
    %v3374 = vpop.f32.mrf.mxu0
    %v3375 = vadd.f32 0.0, %v3374
    %3376 = vdwg.mxu0
    %3377 = vmatpush.msra.mxu0 0.0
    %3378 = vmatpush.msra.mxu0 0.0
    %3379 = vmatpush.msra.mxu0 0.0
    %3380 = vmatpush.msra.mxu0 0.0
    %3381 = vmatpush.msra.mxu0 0.0
    %3382 = vmatpush.msra.mxu0 0.0
    %3383 = vmatpush.msra.mxu0 0.0
    %3384 = vmatpush.msra.mxu0 0.0
    %3385 = vmatpush.msra.mxu0 %v113
    %3386 = vmatpush.msra.mxu0 %v111
    %3387 = vmatpush.msra.mxu0 %v109
    %3388 = vmatpush.msra.mxu0 %v107
    %3389 = vmatpush.msra.mxu0 %v105
    %3390 = vmatpush.msra.mxu0 %v103
    %3391 = vmatpush.msra.mxu0 %v101
    %3392 = vmatpush.msra.mxu0 %v99
    %3393 = vmatmul.f32.gmra.mxu0 %v3355
    %v3394 = vpop.f32.mrf.mxu0
    %v3395 = vadd.f32 0.0, %v3394
    %3396 = vdwg.mxu0
    %v3399 = vrot.slane %v3375, 2
    %v3400 = vrot.slane %v3395, 2
    %v3403 = vadd.f32 %v3135, %v3399
    %v3404 = vadd.f32 %v3136, %v3400
    %v3405 = vxor.u32 %v3403, 2147483648
    %v3406 = vmul.f32 %v3405, 1.442695
    %v3407 = vpow.pop %v3406
    %v3408 = vadd.f32 %v3407, 1.0
    %v3409 = vrcp.pop %v3408
    %v3410 = vmul.f32 %v3408, %v3409
    %v3411 = vsub.f32 1.0, %v3410
    %v3412 = vmul.f32 %v3409, %v3411
    %v3413 = vadd.f32 %v3409, %v3412
    %vm3414 = vweird.f32 %v3408
    %vm3415 = vweird.f32 %v3409
    %vm3416 = vmor %vm3414, %vm3415
    %v3417 = vsel %vm3416, %v3409, %v3413
    %v3418 = vand.u32 2147483647, %v3408
    %vm3419 = vcmp.eq.f32.partialorder %v3418, 8.507059e+37
    %v3420 = vand.u32 %v3408, 2147483648
    %v3421 = vor.u32 1.1754944e-38, %v3420
    %v3422 = vsel %vm3419, %v3421, %v3417
    %v3423 = vmul.f32 1.0, %v3422
    %v3424 = vtanh.pop %v3404
    %v3425 = vxor.u32 %v3404, 2147483648
    %v3426 = vmul.f32 %v3425, 1.442695
    %v3427 = vpow.pop %v3426
    %v3428 = vadd.f32 %v3427, 1.0
    %v3429 = vrcp.pop %v3428
    %v3430 = vmul.f32 %v3428, %v3429
    %v3431 = vsub.f32 1.0, %v3430
    %v3432 = vmul.f32 %v3429, %v3431
    %v3433 = vadd.f32 %v3429, %v3432
    %vm3434 = vweird.f32 %v3428
    %vm3435 = vweird.f32 %v3429
    %vm3436 = vmor %vm3434, %vm3435
    %v3437 = vsel %vm3436, %v3429, %v3433
    %v3438 = vand.u32 2147483647, %v3428
    %vm3439 = vcmp.eq.f32.partialorder %v3438, 8.507059e+37
    %v3440 = vand.u32 %v3428, 2147483648
    %v3441 = vor.u32 1.1754944e-38, %v3440
    %v3442 = vsel %vm3439, %v3441, %v3437
    %v3443 = vmul.f32 1.0, %v3442
    %v3445 = vrot.slane %v3344, 6
    %v3447 = vmul.f32 %v3423, %v3445
    %v3448 = vmul.f32 %v3423, %v3424
    %3450 = vrot.lane.b32.xlu0 %v3448, 64
    %v3451 = vpop.permute.xlu0 %3450
    %v3453 = vadd.f32 %v3447, %v3451
    %v3454 = vtanh.pop %v3453
    %v3455 = vmul.f32 %v3443, %v3454
    %3457 = vrot.lane.b32.xlu0 %v3455, 64
    %v3458 = vpop.permute.xlu0 %3457
    %3460 = vst.msk [vmem:[#allocation2 + $0x10] sm:$0xc0] %vm694, %v3458
    %v3463 = vrot.slane %v2106, 6
    %v3464 = vrot.slane %v2135, 6
    %v3467 = vsel %vm253, %v2115, %v3463
    %v3468 = vsel %vm254, %v2144, %v3464
    %v3469 = vrot.slane %v3455, 6
    %3470 = vrot.lane.b32.xlu0 %v3469, 64
    %v3471 = vpop.permute.xlu0 %3470
    %v3472 = vsel %vm263, %v3471, 0
    %3474 = vmatpush.msra.mxu0 0.0
    %3475 = vmatpush.msra.mxu0 0.0
    %3476 = vmatpush.msra.mxu0 0.0
    %3477 = vmatpush.msra.mxu0 0.0
    %3478 = vmatpush.msra.mxu0 0.0
    %3479 = vmatpush.msra.mxu0 0.0
    %3480 = vmatpush.msra.mxu0 0.0
    %3481 = vmatpush.msra.mxu0 0.0
    %3482 = vmatpush.msra.mxu0 %v112
    %3483 = vmatpush.msra.mxu0 %v110
    %3484 = vmatpush.msra.mxu0 %v108
    %3485 = vmatpush.msra.mxu0 %v106
    %3486 = vmatpush.msra.mxu0 %v104
    %3487 = vmatpush.msra.mxu0 %v102
    %3488 = vmatpush.msra.mxu0 %v100
    %3489 = vmatpush.msra.mxu0 %v98
    %3490 = vmatmul.f32.gmra.mxu0 %v3472
    %v3491 = vpop.f32.mrf.mxu0
    %v3492 = vadd.f32 0.0, %v3491
    %3493 = vdwg.mxu0
    %3494 = vmatpush.msra.mxu0 0.0
    %3495 = vmatpush.msra.mxu0 0.0
    %3496 = vmatpush.msra.mxu0 0.0
    %3497 = vmatpush.msra.mxu0 0.0
    %3498 = vmatpush.msra.mxu0 0.0
    %3499 = vmatpush.msra.mxu0 0.0
    %3500 = vmatpush.msra.mxu0 0.0
    %3501 = vmatpush.msra.mxu0 0.0
    %3502 = vmatpush.msra.mxu0 %v113
    %3503 = vmatpush.msra.mxu0 %v111
    %3504 = vmatpush.msra.mxu0 %v109
    %3505 = vmatpush.msra.mxu0 %v107
    %3506 = vmatpush.msra.mxu0 %v105
    %3507 = vmatpush.msra.mxu0 %v103
    %3508 = vmatpush.msra.mxu0 %v101
    %3509 = vmatpush.msra.mxu0 %v99
    %3510 = vmatmul.f32.gmra.mxu0 %v3472
    %v3511 = vpop.f32.mrf.mxu0
    %v3512 = vadd.f32 0.0, %v3511
    %3513 = vdwg.mxu0
    %v3514 = vadd.f32 %v3467, %v3492
    %v3515 = vadd.f32 %v3468, %v3512
    %v3516 = vxor.u32 %v3514, 2147483648
    %v3517 = vmul.f32 %v3516, 1.442695
    %v3518 = vpow.pop %v3517
    %v3519 = vadd.f32 %v3518, 1.0
    %v3520 = vrcp.pop %v3519
    %v3521 = vmul.f32 %v3519, %v3520
    %v3522 = vsub.f32 1.0, %v3521
    %v3523 = vmul.f32 %v3520, %v3522
    %v3524 = vadd.f32 %v3520, %v3523
    %vm3525 = vweird.f32 %v3519
    %vm3526 = vweird.f32 %v3520
    %vm3527 = vmor %vm3525, %vm3526
    %v3528 = vsel %vm3527, %v3520, %v3524
    %v3529 = vand.u32 2147483647, %v3519
    %vm3530 = vcmp.eq.f32.partialorder %v3529, 8.507059e+37
    %v3531 = vand.u32 %v3519, 2147483648
    %v3532 = vor.u32 1.1754944e-38, %v3531
    %v3533 = vsel %vm3530, %v3532, %v3528
    %v3534 = vmul.f32 1.0, %v3533
    %v3535 = vtanh.pop %v3515
    %v3536 = vxor.u32 %v3515, 2147483648
    %v3537 = vmul.f32 %v3536, 1.442695
    %v3538 = vpow.pop %v3537
    %v3539 = vadd.f32 %v3538, 1.0
    %v3540 = vrcp.pop %v3539
    %v3541 = vmul.f32 %v3539, %v3540
    %v3542 = vsub.f32 1.0, %v3541
    %v3543 = vmul.f32 %v3540, %v3542
    %v3544 = vadd.f32 %v3540, %v3543
    %vm3545 = vweird.f32 %v3539
    %vm3546 = vweird.f32 %v3540
    %vm3547 = vmor %vm3545, %vm3546
    %v3548 = vsel %vm3547, %v3540, %v3544
    %v3549 = vand.u32 2147483647, %v3539
    %vm3550 = vcmp.eq.f32.partialorder %v3549, 8.507059e+37
    %v3551 = vand.u32 %v3539, 2147483648
    %v3552 = vor.u32 1.1754944e-38, %v3551
    %v3553 = vsel %vm3550, %v3552, %v3548
    %v3554 = vmul.f32 1.0, %v3553
    %v3556 = vrot.slane %v3453, 6
    %v3558 = vmul.f32 %v3534, %v3556
    %v3559 = vmul.f32 %v3534, %v3535
    %3561 = vrot.lane.b32.xlu0 %v3559, 64
    %v3562 = vpop.permute.xlu0 %3561
    %v3564 = vadd.f32 %v3558, %v3562
    %v3565 = vtanh.pop %v3564
    %v3566 = vmul.f32 %v3554, %v3565
    %3568 = vrot.lane.b32.xlu0 %v3566, 64
    %v3569 = vpop.permute.xlu0 %3568
    %3571 = vst.msk [vmem:[#allocation2 + $0x18] sm:$0x3] %vm361, %v3569
    %v3572 = vrot.slane %v2106, 2
    %v3573 = vrot.slane %v2135, 2
    %v3576 = vsel %vm253, %v2115, %v3572
    %v3577 = vsel %vm254, %v2144, %v3573
    %v3578 = vsel %vm263, %v3569, 0
    %3580 = vmatpush.msra.mxu0 0.0
    %3581 = vmatpush.msra.mxu0 0.0
    %3582 = vmatpush.msra.mxu0 0.0
    %3583 = vmatpush.msra.mxu0 0.0
    %3584 = vmatpush.msra.mxu0 0.0
    %3585 = vmatpush.msra.mxu0 0.0
    %3586 = vmatpush.msra.mxu0 0.0
    %3587 = vmatpush.msra.mxu0 0.0
    %3588 = vmatpush.msra.mxu0 %v112
    %3589 = vmatpush.msra.mxu0 %v110
    %3590 = vmatpush.msra.mxu0 %v108
    %3591 = vmatpush.msra.mxu0 %v106
    %3592 = vmatpush.msra.mxu0 %v104
    %3593 = vmatpush.msra.mxu0 %v102
    %3594 = vmatpush.msra.mxu0 %v100
    %3595 = vmatpush.msra.mxu0 %v98
    %3596 = vmatmul.f32.gmra.mxu0 %v3578
    %v3597 = vpop.f32.mrf.mxu0
    %v3598 = vadd.f32 0.0, %v3597
    %3599 = vdwg.mxu0
    %3600 = vmatpush.msra.mxu0 0.0
    %3601 = vmatpush.msra.mxu0 0.0
    %3602 = vmatpush.msra.mxu0 0.0
    %3603 = vmatpush.msra.mxu0 0.0
    %3604 = vmatpush.msra.mxu0 0.0
    %3605 = vmatpush.msra.mxu0 0.0
    %3606 = vmatpush.msra.mxu0 0.0
    %3607 = vmatpush.msra.mxu0 0.0
    %3608 = vmatpush.msra.mxu0 %v113
    %3609 = vmatpush.msra.mxu0 %v111
    %3610 = vmatpush.msra.mxu0 %v109
    %3611 = vmatpush.msra.mxu0 %v107
    %3612 = vmatpush.msra.mxu0 %v105
    %3613 = vmatpush.msra.mxu0 %v103
    %3614 = vmatpush.msra.mxu0 %v101
    %3615 = vmatpush.msra.mxu0 %v99
    %3616 = vmatmul.f32.gmra.mxu0 %v3578
    %v3617 = vpop.f32.mrf.mxu0
    %v3618 = vadd.f32 0.0, %v3617
    %3619 = vdwg.mxu0
    %v3622 = vrot.slane %v3598, 6
    %v3623 = vrot.slane %v3618, 6
    %v3626 = vadd.f32 %v3576, %v3622
    %v3627 = vadd.f32 %v3577, %v3623
    %v3628 = vxor.u32 %v3626, 2147483648
    %v3629 = vmul.f32 %v3628, 1.442695
    %v3630 = vpow.pop %v3629
    %v3631 = vadd.f32 %v3630, 1.0
    %v3632 = vrcp.pop %v3631
    %v3633 = vmul.f32 %v3631, %v3632
    %v3634 = vsub.f32 1.0, %v3633
    %v3635 = vmul.f32 %v3632, %v3634
    %v3636 = vadd.f32 %v3632, %v3635
    %vm3637 = vweird.f32 %v3631
    %vm3638 = vweird.f32 %v3632
    %vm3639 = vmor %vm3637, %vm3638
    %v3640 = vsel %vm3639, %v3632, %v3636
    %v3641 = vand.u32 2147483647, %v3631
    %vm3642 = vcmp.eq.f32.partialorder %v3641, 8.507059e+37
    %v3643 = vand.u32 %v3631, 2147483648
    %v3644 = vor.u32 1.1754944e-38, %v3643
    %v3645 = vsel %vm3642, %v3644, %v3640
    %v3646 = vmul.f32 1.0, %v3645
    %v3647 = vtanh.pop %v3627
    %v3648 = vxor.u32 %v3627, 2147483648
    %v3649 = vmul.f32 %v3648, 1.442695
    %v3650 = vpow.pop %v3649
    %v3651 = vadd.f32 %v3650, 1.0
    %v3652 = vrcp.pop %v3651
    %v3653 = vmul.f32 %v3651, %v3652
    %v3654 = vsub.f32 1.0, %v3653
    %v3655 = vmul.f32 %v3652, %v3654
    %v3656 = vadd.f32 %v3652, %v3655
    %vm3657 = vweird.f32 %v3651
    %vm3658 = vweird.f32 %v3652
    %vm3659 = vmor %vm3657, %vm3658
    %v3660 = vsel %vm3659, %v3652, %v3656
    %v3661 = vand.u32 2147483647, %v3651
    %vm3662 = vcmp.eq.f32.partialorder %v3661, 8.507059e+37
    %v3663 = vand.u32 %v3651, 2147483648
    %v3664 = vor.u32 1.1754944e-38, %v3663
    %v3665 = vsel %vm3662, %v3664, %v3660
    %v3666 = vmul.f32 1.0, %v3665
    %v3668 = vrot.slane %v3564, 6
    %v3670 = vmul.f32 %v3646, %v3668
    %v3671 = vmul.f32 %v3646, %v3647
    %3673 = vrot.lane.b32.xlu0 %v3671, 64
    %v3674 = vpop.permute.xlu0 %3673
    %v3676 = vadd.f32 %v3670, %v3674
    %v3677 = vtanh.pop %v3676
    %v3678 = vmul.f32 %v3666, %v3677
    %3680 = vrot.lane.b32.xlu0 %v3678, 64
    %v3681 = vpop.permute.xlu0 %3680
    %3683 = vst.msk [vmem:[#allocation2 + $0x18] sm:$0xc] %vm474, %v3681
    %v3684 = vrot.slane %v3678, 2
    %3685 = vrot.lane.b32.xlu0 %v3684, 64
    %v3686 = vpop.permute.xlu0 %3685
    %v3687 = vsel %vm263, %v3686, 0
    %3689 = vmatpush.msra.mxu0 0.0
    %3690 = vmatpush.msra.mxu0 0.0
    %3691 = vmatpush.msra.mxu0 0.0
    %3692 = vmatpush.msra.mxu0 0.0
    %3693 = vmatpush.msra.mxu0 0.0
    %3694 = vmatpush.msra.mxu0 0.0
    %3695 = vmatpush.msra.mxu0 0.0
    %3696 = vmatpush.msra.mxu0 0.0
    %3697 = vmatpush.msra.mxu0 %v112
    %3698 = vmatpush.msra.mxu0 %v110
    %3699 = vmatpush.msra.mxu0 %v108
    %3700 = vmatpush.msra.mxu0 %v106
    %3701 = vmatpush.msra.mxu0 %v104
    %3702 = vmatpush.msra.mxu0 %v102
    %3703 = vmatpush.msra.mxu0 %v100
    %3704 = vmatpush.msra.mxu0 %v98
    %3705 = vmatmul.f32.gmra.mxu0 %v3687
    %v3706 = vpop.f32.mrf.mxu0
    %v3707 = vadd.f32 0.0, %v3706
    %3708 = vdwg.mxu0
    %3709 = vmatpush.msra.mxu0 0.0
    %3710 = vmatpush.msra.mxu0 0.0
    %3711 = vmatpush.msra.mxu0 0.0
    %3712 = vmatpush.msra.mxu0 0.0
    %3713 = vmatpush.msra.mxu0 0.0
    %3714 = vmatpush.msra.mxu0 0.0
    %3715 = vmatpush.msra.mxu0 0.0
    %3716 = vmatpush.msra.mxu0 0.0
    %3717 = vmatpush.msra.mxu0 %v113
    %3718 = vmatpush.msra.mxu0 %v111
    %3719 = vmatpush.msra.mxu0 %v109
    %3720 = vmatpush.msra.mxu0 %v107
    %3721 = vmatpush.msra.mxu0 %v105
    %3722 = vmatpush.msra.mxu0 %v103
    %3723 = vmatpush.msra.mxu0 %v101
    %3724 = vmatpush.msra.mxu0 %v99
    %3725 = vmatmul.f32.gmra.mxu0 %v3687
    %v3726 = vpop.f32.mrf.mxu0
    %v3727 = vadd.f32 0.0, %v3726
    %3728 = vdwg.mxu0
    %v3731 = vrot.slane %v3707, 4
    %v3732 = vrot.slane %v3727, 4
    %v3735 = vadd.f32 %v3467, %v3731
    %v3736 = vadd.f32 %v3468, %v3732
    %v3737 = vxor.u32 %v3735, 2147483648
    %v3738 = vmul.f32 %v3737, 1.442695
    %v3739 = vpow.pop %v3738
    %v3740 = vadd.f32 %v3739, 1.0
    %v3741 = vrcp.pop %v3740
    %v3742 = vmul.f32 %v3740, %v3741
    %v3743 = vsub.f32 1.0, %v3742
    %v3744 = vmul.f32 %v3741, %v3743
    %v3745 = vadd.f32 %v3741, %v3744
    %vm3746 = vweird.f32 %v3740
    %vm3747 = vweird.f32 %v3741
    %vm3748 = vmor %vm3746, %vm3747
    %v3749 = vsel %vm3748, %v3741, %v3745
    %v3750 = vand.u32 2147483647, %v3740
    %vm3751 = vcmp.eq.f32.partialorder %v3750, 8.507059e+37
    %v3752 = vand.u32 %v3740, 2147483648
    %v3753 = vor.u32 1.1754944e-38, %v3752
    %v3754 = vsel %vm3751, %v3753, %v3749
    %v3755 = vmul.f32 1.0, %v3754
    %v3756 = vtanh.pop %v3736
    %v3757 = vxor.u32 %v3736, 2147483648
    %v3758 = vmul.f32 %v3757, 1.442695
    %v3759 = vpow.pop %v3758
    %v3760 = vadd.f32 %v3759, 1.0
    %v3761 = vrcp.pop %v3760
    %v3762 = vmul.f32 %v3760, %v3761
    %v3763 = vsub.f32 1.0, %v3762
    %v3764 = vmul.f32 %v3761, %v3763
    %v3765 = vadd.f32 %v3761, %v3764
    %vm3766 = vweird.f32 %v3760
    %vm3767 = vweird.f32 %v3761
    %vm3768 = vmor %vm3766, %vm3767
    %v3769 = vsel %vm3768, %v3761, %v3765
    %v3770 = vand.u32 2147483647, %v3760
    %vm3771 = vcmp.eq.f32.partialorder %v3770, 8.507059e+37
    %v3772 = vand.u32 %v3760, 2147483648
    %v3773 = vor.u32 1.1754944e-38, %v3772
    %v3774 = vsel %vm3771, %v3773, %v3769
    %v3775 = vmul.f32 1.0, %v3774
    %v3777 = vrot.slane %v3676, 6
    %v3779 = vmul.f32 %v3755, %v3777
    %v3780 = vmul.f32 %v3755, %v3756
    %3782 = vrot.lane.b32.xlu0 %v3780, 64
    %v3783 = vpop.permute.xlu0 %3782
    %v3785 = vadd.f32 %v3779, %v3783
    %v3786 = vtanh.pop %v3785
    %v3787 = vmul.f32 %v3775, %v3786
    %3789 = vrot.lane.b32.xlu0 %v3787, 64
    %v3790 = vpop.permute.xlu0 %3789
    %3792 = vst.msk [vmem:[#allocation2 + $0x18] sm:$0x30] %vm584, %v3790
    %v3793 = vrot.slane %v3787, 4
    %3794 = vrot.lane.b32.xlu0 %v3793, 64
    %v3795 = vpop.permute.xlu0 %3794
    %v3796 = vsel %vm263, %v3795, 0
    %3798 = vmatpush.msra.mxu0 0.0
    %3799 = vmatpush.msra.mxu0 0.0
    %3800 = vmatpush.msra.mxu0 0.0
    %3801 = vmatpush.msra.mxu0 0.0
    %3802 = vmatpush.msra.mxu0 0.0
    %3803 = vmatpush.msra.mxu0 0.0
    %3804 = vmatpush.msra.mxu0 0.0
    %3805 = vmatpush.msra.mxu0 0.0
    %3806 = vmatpush.msra.mxu0 %v112
    %3807 = vmatpush.msra.mxu0 %v110
    %3808 = vmatpush.msra.mxu0 %v108
    %3809 = vmatpush.msra.mxu0 %v106
    %3810 = vmatpush.msra.mxu0 %v104
    %3811 = vmatpush.msra.mxu0 %v102
    %3812 = vmatpush.msra.mxu0 %v100
    %3813 = vmatpush.msra.mxu0 %v98
    %3814 = vmatmul.f32.gmra.mxu0 %v3796
    %v3815 = vpop.f32.mrf.mxu0
    %v3816 = vadd.f32 0.0, %v3815
    %3817 = vdwg.mxu0
    %3818 = vmatpush.msra.mxu0 0.0
    %3819 = vmatpush.msra.mxu0 0.0
    %3820 = vmatpush.msra.mxu0 0.0
    %3821 = vmatpush.msra.mxu0 0.0
    %3822 = vmatpush.msra.mxu0 0.0
    %3823 = vmatpush.msra.mxu0 0.0
    %3824 = vmatpush.msra.mxu0 0.0
    %3825 = vmatpush.msra.mxu0 0.0
    %3826 = vmatpush.msra.mxu0 %v113
    %3827 = vmatpush.msra.mxu0 %v111
    %3828 = vmatpush.msra.mxu0 %v109
    %3829 = vmatpush.msra.mxu0 %v107
    %3830 = vmatpush.msra.mxu0 %v105
    %3831 = vmatpush.msra.mxu0 %v103
    %3832 = vmatpush.msra.mxu0 %v101
    %3833 = vmatpush.msra.mxu0 %v99
    %3834 = vmatmul.f32.gmra.mxu0 %v3796
    %v3835 = vpop.f32.mrf.mxu0
    %v3836 = vadd.f32 0.0, %v3835
    %3837 = vdwg.mxu0
    %v3840 = vrot.slane %v3816, 2
    %v3841 = vrot.slane %v3836, 2
    %v3844 = vadd.f32 %v3576, %v3840
    %v3845 = vadd.f32 %v3577, %v3841
    %v3846 = vxor.u32 %v3844, 2147483648
    %v3847 = vmul.f32 %v3846, 1.442695
    %v3848 = vpow.pop %v3847
    %v3849 = vadd.f32 %v3848, 1.0
    %v3850 = vrcp.pop %v3849
    %v3851 = vmul.f32 %v3849, %v3850
    %v3852 = vsub.f32 1.0, %v3851
    %v3853 = vmul.f32 %v3850, %v3852
    %v3854 = vadd.f32 %v3850, %v3853
    %vm3855 = vweird.f32 %v3849
    %vm3856 = vweird.f32 %v3850
    %vm3857 = vmor %vm3855, %vm3856
    %v3858 = vsel %vm3857, %v3850, %v3854
    %v3859 = vand.u32 2147483647, %v3849
    %vm3860 = vcmp.eq.f32.partialorder %v3859, 8.507059e+37
    %v3861 = vand.u32 %v3849, 2147483648
    %v3862 = vor.u32 1.1754944e-38, %v3861
    %v3863 = vsel %vm3860, %v3862, %v3858
    %v3864 = vmul.f32 1.0, %v3863
    %v3865 = vtanh.pop %v3845
    %v3866 = vxor.u32 %v3845, 2147483648
    %v3867 = vmul.f32 %v3866, 1.442695
    %v3868 = vpow.pop %v3867
    %v3869 = vadd.f32 %v3868, 1.0
    %v3870 = vrcp.pop %v3869
    %v3871 = vmul.f32 %v3869, %v3870
    %v3872 = vsub.f32 1.0, %v3871
    %v3873 = vmul.f32 %v3870, %v3872
    %v3874 = vadd.f32 %v3870, %v3873
    %vm3875 = vweird.f32 %v3869
    %vm3876 = vweird.f32 %v3870
    %vm3877 = vmor %vm3875, %vm3876
    %v3878 = vsel %vm3877, %v3870, %v3874
    %v3879 = vand.u32 2147483647, %v3869
    %vm3880 = vcmp.eq.f32.partialorder %v3879, 8.507059e+37
    %v3881 = vand.u32 %v3869, 2147483648
    %v3882 = vor.u32 1.1754944e-38, %v3881
    %v3883 = vsel %vm3880, %v3882, %v3878
    %v3884 = vmul.f32 1.0, %v3883
    %v3886 = vrot.slane %v3785, 6
    %v3888 = vmul.f32 %v3864, %v3886
    %v3889 = vmul.f32 %v3864, %v3865
    %3891 = vrot.lane.b32.xlu0 %v3889, 64
    %v3892 = vpop.permute.xlu0 %3891
    %v3894 = vadd.f32 %v3888, %v3892
    %v3895 = vtanh.pop %v3894
    %v3896 = vmul.f32 %v3884, %v3895
    %3898 = vrot.lane.b32.xlu0 %v3896, 64
    %v3899 = vpop.permute.xlu0 %3898
    %3901 = vst.msk [vmem:[#allocation2 + $0x18] sm:$0xc0] %vm694, %v3899
    %v3902 = vld [vmem:[#allocation2] sm:$0xff]
    %v3903 = vld [vmem:[#allocation2 + $0x8] sm:$0xff]
    %v3904 = vld [vmem:[#allocation2 + $0x10] sm:$0xff]
    %v3905 = vld [vmem:[#allocation2 + $0x18] sm:$0xff]
    %3906 = vmatpush.msra.mxu0 0.0
    %3907 = vmatpush.msra.mxu0 0.0
    %3908 = vmatpush.msra.mxu0 0.0
    %3909 = vmatpush.msra.mxu0 0.0
    %3910 = vmatpush.msra.mxu0 0.0
    %3911 = vmatpush.msra.mxu0 0.0
    %3912 = vmatpush.msra.mxu0 0.0
    %3913 = vmatpush.msra.mxu0 0.0
    %3914 = vmatpush.msra.mxu0 0.0
    %3915 = vmatpush.msra.mxu0 0.0
    %3916 = vmatpush.msra.mxu0 0.0
    %3917 = vmatpush.msra.mxu0 0.0
    %3918 = vmatpush.msra.mxu0 %v3905
    %3919 = vmatpush.msra.mxu0 %v3904
    %3920 = vmatpush.msra.mxu0 %v3903
    %3921 = vmatpush.msra.mxu0 %v3902
    %3922 = vmatmul.f32.gmra.mxu0 %v2025
    %v3923 = vpop.f32.mrf.mxu0
    %v3924 = vadd.f32 0.0, %v3923
    %3925 = vmatmul.f32.gmra.mxu0 %v2028
    %v3926 = vpop.f32.mrf.mxu0
    %v3927 = vadd.f32 0.0, %v3926
    %3928 = vmatmul.f32.gmra.mxu0 %v2031
    %v3929 = vpop.f32.mrf.mxu0
    %v3930 = vadd.f32 0.0, %v3929
    %3931 = vmatmul.f32.gmra.mxu0 %v2034
    %v3932 = vpop.f32.mrf.mxu0
    %v3933 = vadd.f32 0.0, %v3932
    %3934 = vdwg.mxu0
    %v3935 = vsel %vm2066, %v3902, %v3924
    %v3936 = vsel %vm2066, %v3903, %v3927
    %v3937 = vsel %vm2066, %v3904, %v3930
    %v3938 = vsel %vm2066, %v3905, %v3933
    %3939 = vst.msk [vmem:[%s8] sm:$0xff] %vm263, %v3935
    %3940 = vst.msk [vmem:[%s8 + $0x8] sm:$0xff] %vm263, %v3936
    %3941 = vst.msk [vmem:[%s8 + $0x10] sm:$0xff] %vm263, %v3937
    %3942 = vst.msk [vmem:[%s8 + $0x18] sm:$0xff] %vm263, %v3938
    // Predicated region
    $region46: #{mynet_sequence_forward.2} parent=1 // pred_check
      _
    $region47: #{mynet_sequence_forward.2} parent=1 // pred_check_branch
      %3944 = sbr.rel (0) target = $region49
    $region48: #{mynet_sequence_forward.2} parent=1 // pred_region
      _
    $region49: #{mynet_sequence_forward.2} parent=1 // pred_fallthru
      _
    // Predicated region
    $region50: #{mynet_sequence_forward.2} parent=1 // pred_check
      _
    $region51: #{mynet_sequence_forward.2} parent=1 // pred_check_branch
      %3946 = sbr.rel (0) target = $region53
    $region52: #{mynet_sequence_forward.2} parent=1 // pred_region
      _
    $region53: #{mynet_sequence_forward.2} parent=1 // pred_fallthru
      _
    %3947 = vsyncpa [#allocation4], 1
    %3948 = vsyncpa [#allocation6], 1

</llo_original>
